<compile_context>
chip_gen: v6e
topology: v6e:2x2x1
jax: 0.10.0
libtpu: 0.0.40
codegen_flags: <defaults>
</compile_context>

<pallas_src>
import functools

import jax
import jax.numpy as jnp
from jax.experimental import pallas as pl
from jax.experimental.pallas import tpu as pltpu


# ----------------------------------------------------------------------------
# Fused kernel: whole DetectorCNN forward, everything resident in VMEM.
# ----------------------------------------------------------------------------

def detector_kernel(x_ref,
                    w1, w2, w3, w4, w5, w6,
                    bn1, bn2, bn3, bn4, bn5, bn6,
                    wf_ref, bf_ref,
                    o_ref,
                    p1, p2, p3, p4, p5, p6):
    """x_ref : (Bb, S, S, 3)        bf16  NHWC input block
       w*    : (9*Cin, Cout)        bf16  conv weights, tap-major (im2col layout)
       bn*   : (2, Cout)            f32   row 0 = folded BN scale, row 1 = shift
       wf_ref: (Hf*Wf*128, Npad)    bf16  FC weight (NCHW-flatten permutation folded in)
       bf_ref: (1, Npad)            f32   FC bias (zero-padded to the 128-lane slab)
       o_ref : (1, Bb, Npad)        f32   logits slab (first num_classes cols valid)
       p1..p6: (Bb, H+2, W+2, Cin)  f32   per-layer zero-halo padded-input scratch
    """
    f32 = jnp.float32

    def fill_padded(pad_ref, act):
        # Zero ONLY the 1-pixel halo strips (review item), then store the interior.
        Bb, Hp, Wp, C = pad_ref.shape
        H, W = Hp - 2, Wp - 2
        pad_ref[:, 0:1, :, :] = jnp.zeros((Bb, 1, Wp, C), f32)
        pad_ref[:, H + 1:H + 2, :, :] = jnp.zeros((Bb, 1, Wp, C), f32)
        pad_ref[:, :, 0:1, :] = jnp.zeros((Bb, Hp, 1, C), f32)
        pad_ref[:, :, W + 1:W + 2, :] = jnp.zeros((Bb, Hp, 1, C), f32)
        pad_ref[:, 1:H + 1, 1:W + 1, :] = act

    def conv_elu_bn(pad_ref, w_ref, bn_ref):
        # 3x3 'same' conv (no bias) via im2col -> ONE matmul -> ELU -> folded BN.
        Bb, Hp, Wp, Cin = pad_ref.shape
        H, W = Hp - 2, Wp - 2
        Cout = w_ref.shape[1]
        xp = pad_ref[...]                                   # (Bb, H+2, W+2, Cin) f32
        # im2col: the 9 shifted windows side-by-side along lanes -> K = 9*Cin.
        taps = [xp[:, dy:dy + H, dx:dx + W, :]
                for dy in range(3) for dx in range(3)]
        patch = jnp.concatenate(taps, axis=-1).astype(jnp.bfloat16)   # (Bb,H,W,9*Cin)
        acc = jnp.dot(patch.reshape(Bb * H * W, 9 * Cin), w_ref[...],
                      preferred_element_type=f32)           # single MXU matmul
        # ELU (alpha=1); clamp the exp argument so the untaken branch never overflows.
        neg = jnp.exp(jnp.minimum(acc, 0.0)) - 1.0
        y = jnp.where(acc > 0.0, acc, neg)
        y = y * bn_ref[0:1, :] + bn_ref[1:2, :]             # BatchNorm (inference, folded)
        return y.reshape(Bb, H, W, Cout)                    # keep f32 between layers

    def maxpool2x2(a4):
        Bb, H, W, C = a4.shape
        # H pool: split an untiled leading dim (layout-free), reduce the pair.
        a4 = jnp.max(a4.reshape(Bb, H // 2, 2, W, C), axis=2)
        # W pool: split the sublane dim into pairs, reduce over the 2-sublane axis.
        a4 = jnp.max(a4.reshape(Bb, H // 2, W // 2, 2, C), axis=3)
        return a4

    # ---- Block 1 (S x S, 32 ch) ----
    fill_padded(p1, x_ref[...].astype(f32))
    a = conv_elu_bn(p1, w1, bn1)
    fill_padded(p2, a)
    a = conv_elu_bn(p2, w2, bn2)
    a = maxpool2x2(a)                       # dropout1: identity (inference)

    # ---- Block 2 (S/2 x S/2, 64 ch) ----
    fill_padded(p3, a)
    a = conv_elu_bn(p3, w3, bn3)
    fill_padded(p4, a)
    a = conv_elu_bn(p4, w4, bn4)
    a = maxpool2x2(a)                       # dropout2: identity (inference)

    # ---- Block 3 (S/4 x S/4, 128 ch) ----
    fill_padded(p5, a)
    a = conv_elu_bn(p5, w5, bn5)
    fill_padded(p6, a)
    a = conv_elu_bn(p6, w6, bn6)
    a = maxpool2x2(a)                       # dropout3: identity (inference)

    # ---- Flatten + FC as ONE matmul into a lane-dense 128-wide slab ----
    Bb, Hf, Wf, C = a.shape
    # Feature order is (h, w, c); the PyTorch NCHW flatten permutation is folded into
    # wf's row order on the host.  128-wide pieces -> aligned lane concatenation.
    flat = jnp.concatenate([a[:, i, j, :] for i in range(Hf) for j in range(Wf)],
                           axis=-1).astype(jnp.bfloat16)            # (Bb, Hf*Wf*128)
    logits = jnp.dot(flat, wf_ref[...], preferred_element_type=f32)
    o_ref[0] = logits + bf_ref[...]


# ----------------------------------------------------------------------------
# Wrapper: batch grid + explicit BlockSpecs + cost estimate
# ----------------------------------------------------------------------------

@functools.partial(jax.jit, static_argnames=("num_classes", "batch_block"))
def detector_cnn_forward(x_nchw, params, *, num_classes, batch_block=16):
    B, _, S, _ = x_nchw.shape
    bblk = min(batch_block, B)              # production: ~16 so block-3 M = 16*bblk >= 256
    assert B % bblk == 0, (B, bblk)
    nblk = B // bblk

    # NCHW -> NHWC, cast to bf16.  The input stays 3-channel (no host-side channel pad).
    x = jnp.transpose(x_nchw, (0, 2, 3, 1)).astype(jnp.bfloat16)

    n_pad = params["fc_w"].shape[1]
    s1, s2, s3 = S, S // 2, S // 4

    in_specs = [pl.BlockSpec((bblk, S, S, 3), lambda b: (b, 0, 0, 0))]
    for w in params["convs"]:
        in_specs.append(pl.BlockSpec(w.shape, lambda b: (0, 0)))
    for bn in params["bns"]:
        in_specs.append(pl.BlockSpec(bn.shape, lambda b: (0, 0)))
    in_specs.append(pl.BlockSpec(params["fc_w"].shape, lambda b: (0, 0)))
    in_specs.append(pl.BlockSpec(params["fc_b"].shape, lambda b: (0, 0)))

    out_specs = pl.BlockSpec((1, bblk, n_pad), lambda b: (b, 0, 0))

    scratch = [
        pltpu.VMEM((bblk, s1 + 2, s1 + 2, 3), jnp.float32),
        pltpu.VMEM((bblk, s1 + 2, s1 + 2, 32), jnp.float32),
        pltpu.VMEM((bblk, s2 + 2, s2 + 2, 32), jnp.float32),
        pltpu.VMEM((bblk, s2 + 2, s2 + 2, 64), jnp.float32),
        pltpu.VMEM((bblk, s3 + 2, s3 + 2, 64), jnp.float32),
        pltpu.VMEM((bblk, s3 + 2, s3 + 2, 128), jnp.float32),
    ]

    # Advisory cost estimate for XLA's scheduler around the custom call.
    conv_ks = [(w.shape[0], w.shape[1]) for w in params["convs"]]   # (9*Cin, Cout)
    sizes = [s1, s1, s2, s2, s3, s3]
    macs = sum(s * s * k * n for (k, n), s in zip(conv_ks, sizes))
    feat = params["fc_w"].shape[0]
    macs += feat * n_pad
    flops = int(2 * B * macs)
    trans = int(B * 2 * (s1 * s1 * 32 + s2 * s2 * 64 + s3 * s3 * 128))
    bytes_accessed = int(
        x.size * 2
        + sum(w.size * 2 for w in params["convs"])
        + sum(b.size * 4 for b in params["bns"])
        + params["fc_w"].size * 2 + params["fc_b"].size * 4
        + B * n_pad * 4)

    out = pl.pallas_call(
        detector_kernel,
        out_shape=jax.ShapeDtypeStruct((nblk, bblk, n_pad), jnp.float32),
        grid_spec=pltpu.PrefetchScalarGridSpec(
            num_scalar_prefetch=0,
            grid=(nblk,),
            in_specs=in_specs,
            out_specs=out_specs,
            scratch_shapes=scratch),
        compiler_params=pltpu.CompilerParams(
            dimension_semantics=("parallel",)),       # v7x: split batch across both TCs
        cost_estimate=pl.CostEstimate(flops=flops, transcendentals=trans,
                                      bytes_accessed=bytes_accessed),
    )(x, *params["convs"], *params["bns"], params["fc_w"], params["fc_b"])

    return out.reshape(B, n_pad)[:, :num_classes]


# ----------------------------------------------------------------------------
# Parameter construction (deterministic, synthetic; inference-mode BN folding).
# Returns kernel-layout params and "raw" params for the pure-JAX reference.
# ----------------------------------------------------------------------------

def make_params(key, num_classes=10, input_size=16):
    conv_channels = [(3, 32), (32, 32), (32, 64), (64, 64), (64, 128), (128, 128)]
    n_pad = max(128, ((num_classes + 127) // 128) * 128)
    keys = jax.random.split(key, 5 * len(conv_channels) + 2)
    ki = 0

    convs_k, bns_k, convs_r, bns_r = [], [], [], []
    for cin, cout in conv_channels:
        w = jax.random.normal(keys[ki], (3, 3, cin, cout), jnp.float32)
        w = w * (1.0 / (9.0 * cin)) ** 0.5
        ki += 1
        w_bf = w.astype(jnp.bfloat16)                       # HWIO, bf16 (shared values)
        convs_r.append(w_bf)
        convs_k.append(w_bf.reshape(9 * cin, cout))         # im2col weight layout

        gamma = 1.0 + 0.1 * jax.random.normal(keys[ki], (cout,), jnp.float32); ki += 1
        beta = 0.1 * jax.random.normal(keys[ki], (cout,), jnp.float32); ki += 1
        mean = 0.1 * jax.random.normal(keys[ki], (cout,), jnp.float32); ki += 1
        var = 0.5 + jax.random.uniform(keys[ki], (cout,), jnp.float32); ki += 1
        scale = gamma * jax.lax.rsqrt(var + 1e-5)
        shift = beta - mean * scale
        bns_r.append((scale, shift))
        bns_k.append(jnp.stack([scale, shift], axis=0))     # (2, Cout) f32

    hf = wf = input_size // 8
    feat = 128 * hf * wf
    # FC weight rows generated in PyTorch NCHW-flatten order (c, h, w); the permutation
    # to the kernel's (h, w, c) order is folded here, and the output dim is padded to a
    # full 128-lane slab so the final store is lane-dense.
    w_fc = jax.random.normal(keys[ki], (feat, num_classes), jnp.float32)
    w_fc = w_fc * (1.0 / feat) ** 0.5; ki += 1
    b_fc = 0.01 * jax.random.normal(keys[ki], (num_classes,), jnp.float32); ki += 1
    w_fc_bf = w_fc.astype(jnp.bfloat16)
    w_hwc = jnp.transpose(w_fc_bf.reshape(128, hf, wf, num_classes), (1, 2, 0, 3))
    fc_w = jnp.pad(w_hwc.reshape(feat, num_classes),
                   ((0, 0), (0, n_pad - num_classes)))
    fc_b = jnp.pad(b_fc, (0, n_pad - num_classes)).reshape(1, n_pad)

    params = {"convs": convs_k, "bns": bns_k, "fc_w": fc_w, "fc_b": fc_b}
    raw = {"convs": convs_r, "bns": bns_r, "fc_w": w_fc_bf, "fc_b": b_fc}
    return params, raw


# ----------------------------------------------------------------------------
# Pure-JAX reference (same bf16 weights / bf16 MXU inputs, f32 accumulation).
# ----------------------------------------------------------------------------

def reference_forward(x_nchw, raw):
    act = jnp.transpose(x_nchw, (0, 2, 3, 1))               # NHWC, f32
    dn = ("NHWC", "HWIO", "NHWC")
    for i, (w_bf, (scale, shift)) in enumerate(zip(raw["convs"], raw["bns"])):
        y = jax.lax.conv_general_dilated(
            act.astype(jnp.bfloat16), w_bf, (1, 1), "SAME",
            dimension_numbers=dn, preferred_element_type=jnp.float32)
        y = jnp.where(y > 0.0, y, jnp.exp(jnp.minimum(y, 0.0)) - 1.0)   # ELU
        act = y * scale + shift                                          # folded BN
        if i in (1, 3, 5):                                               # maxpool 2x2
            B, H, W, C = act.shape
            act = act.reshape(B, H // 2, 2, W // 2, 2, C).max(axis=(2, 4))
    B, Hf, Wf, C = act.shape
    flat = jnp.transpose(act, (0, 3, 1, 2)).reshape(B, C * Hf * Wf)      # NCHW flatten
    return jnp.dot(flat.astype(jnp.bfloat16), raw["fc_w"],
                   preferred_element_type=jnp.float32) + raw["fc_b"]


# ----------------------------------------------------------------------------
# Main
# ----------------------------------------------------------------------------

if __name__ == "__main__":
    num_classes = 10
    input_size = 16   # small spatial size; fc features = 128 * (16 // 8) ** 2 = 512
    batch = 2

    key = jax.random.PRNGKey(0)
    key_x, key_p = jax.random.split(key)

    x = jax.random.normal(key_x, (batch, 3, input_size, input_size), jnp.float32)
    params, raw = make_params(key_p, num_classes=num_classes, input_size=input_size)

    # batch_block=1 exercises the batch grid (grid=(2,)); production would use ~16.
    out = detector_cnn_forward(x, params, num_classes=num_classes, batch_block=1)
    out = jax.block_until_ready(out)

    assert out.shape == (batch, num_classes), out.shape
    assert bool(jnp.all(jnp.isfinite(out)))

    ref = reference_forward(x, raw)
    err = float(jnp.max(jnp.abs(out - ref)))
    assert err < 5e-2, f"max |kernel - reference| = {err}"

    print("KERNEL_OK")
</pallas_src>

<mosaic_0001>
module attributes {stable_mosaic.version = 11 : i64} {
  func.func @detector_kernel(%arg0: i32, %arg1: memref<1x16x16x3xbf16, #tpu.memory_space<vmem>>, %arg2: memref<27x32xbf16, #tpu.memory_space<vmem>>, %arg3: memref<288x32xbf16, #tpu.memory_space<vmem>>, %arg4: memref<288x64xbf16, #tpu.memory_space<vmem>>, %arg5: memref<576x64xbf16, #tpu.memory_space<vmem>>, %arg6: memref<576x128xbf16, #tpu.memory_space<vmem>>, %arg7: memref<1152x128xbf16, #tpu.memory_space<vmem>>, %arg8: memref<2x32xf32, #tpu.memory_space<vmem>>, %arg9: memref<2x32xf32, #tpu.memory_space<vmem>>, %arg10: memref<2x64xf32, #tpu.memory_space<vmem>>, %arg11: memref<2x64xf32, #tpu.memory_space<vmem>>, %arg12: memref<2x128xf32, #tpu.memory_space<vmem>>, %arg13: memref<2x128xf32, #tpu.memory_space<vmem>>, %arg14: memref<512x128xbf16, #tpu.memory_space<vmem>>, %arg15: memref<1x128xf32, #tpu.memory_space<vmem>>, %arg16: memref<1x1x128xf32, #tpu.memory_space<vmem>>, %arg17: memref<1x18x18x3xf32, #tpu.memory_space<vmem>>, %arg18: memref<1x18x18x32xf32, #tpu.memory_space<vmem>>, %arg19: memref<1x10x10x32xf32, #tpu.memory_space<vmem>>, %arg20: memref<1x10x10x64xf32, #tpu.memory_space<vmem>>, %arg21: memref<1x6x6x64xf32, #tpu.memory_space<vmem>>, %arg22: memref<1x6x6x128xf32, #tpu.memory_space<vmem>>) attributes {dimension_semantics = [#tpu.dimension_semantics<parallel>], iteration_bounds = array<i64: 2>, scalar_prefetch = 0 : i64, scratch_operands = 6 : i64, tpu.core_type = #tpu.core_type<tc>, window_params = [{transform_indices = @transform_0, window_bounds = array<i64: 1, 16, 16, 3>}, {pipeline_mode = #tpu.pipeline_mode<synchronous>, transform_indices = @transform_1, window_bounds = array<i64: 27, 32>}, {pipeline_mode = #tpu.pipeline_mode<synchronous>, transform_indices = @transform_2, window_bounds = array<i64: 288, 32>}, {pipeline_mode = #tpu.pipeline_mode<synchronous>, transform_indices = @transform_3, window_bounds = array<i64: 288, 64>}, {pipeline_mode = #tpu.pipeline_mode<synchronous>, transform_indices = @transform_4, window_bounds = array<i64: 576, 64>}, {pipeline_mode = #tpu.pipeline_mode<synchronous>, transform_indices = @transform_5, window_bounds = array<i64: 576, 128>}, {pipeline_mode = #tpu.pipeline_mode<synchronous>, transform_indices = @transform_6, window_bounds = array<i64: 1152, 128>}, {pipeline_mode = #tpu.pipeline_mode<synchronous>, transform_indices = @transform_7, window_bounds = array<i64: 2, 32>}, {pipeline_mode = #tpu.pipeline_mode<synchronous>, transform_indices = @transform_8, window_bounds = array<i64: 2, 32>}, {pipeline_mode = #tpu.pipeline_mode<synchronous>, transform_indices = @transform_9, window_bounds = array<i64: 2, 64>}, {pipeline_mode = #tpu.pipeline_mode<synchronous>, transform_indices = @transform_10, window_bounds = array<i64: 2, 64>}, {pipeline_mode = #tpu.pipeline_mode<synchronous>, transform_indices = @transform_11, window_bounds = array<i64: 2, 128>}, {pipeline_mode = #tpu.pipeline_mode<synchronous>, transform_indices = @transform_12, window_bounds = array<i64: 2, 128>}, {pipeline_mode = #tpu.pipeline_mode<synchronous>, transform_indices = @transform_13, window_bounds = array<i64: 512, 128>}, {pipeline_mode = #tpu.pipeline_mode<synchronous>, transform_indices = @transform_14, window_bounds = array<i64: 1, 128>}, {transform_indices = @transform_15, window_bounds = array<i64: 1, 1, 128>}]} {
    %c0 = arith.constant 0 : index
    %c0_0 = arith.constant 0 : index
    %c0_1 = arith.constant 0 : index
    %c0_2 = arith.constant 0 : index
    %0 = vector.load %arg1[%c0, %c0_0, %c0_1, %c0_2] : memref<1x16x16x3xbf16, #tpu.memory_space<vmem>>, vector<1x16x16x3xbf16>
    %1 = arith.extf %0 : vector<1x16x16x3xbf16> to vector<1x16x16x3xf32>
    %cst = arith.constant 0.000000e+00 : f32
    %2 = vector.broadcast %cst : f32 to vector<1x1x18x3xf32>
    %c0_3 = arith.constant 0 : index
    %c0_4 = arith.constant 0 : index
    %c0_5 = arith.constant 0 : index
    %c0_6 = arith.constant 0 : index
    %3 = vector.load %arg17[%c0_3, %c0_4, %c0_5, %c0_6] : memref<1x18x18x3xf32, #tpu.memory_space<vmem>>, vector<1x1x18x3xf32>
    tpu.vector_store %arg17[%c0_3, %c0_4, %c0_5, %c0_6], %2 {strides = array<i32>} : memref<1x18x18x3xf32, #tpu.memory_space<vmem>>, vector<1x1x18x3xf32>,
    %cst_7 = arith.constant 0.000000e+00 : f32
    %4 = vector.broadcast %cst_7 : f32 to vector<1x1x18x3xf32>
    %c0_8 = arith.constant 0 : index
    %c17 = arith.constant 17 : index
    %c0_9 = arith.constant 0 : index
    %c0_10 = arith.constant 0 : index
    %5 = vector.load %arg17[%c0_8, %c17, %c0_9, %c0_10] : memref<1x18x18x3xf32, #tpu.memory_space<vmem>>, vector<1x1x18x3xf32>
    tpu.vector_store %arg17[%c0_8, %c17, %c0_9, %c0_10], %4 {strides = array<i32>} : memref<1x18x18x3xf32, #tpu.memory_space<vmem>>, vector<1x1x18x3xf32>,
    %cst_11 = arith.constant 0.000000e+00 : f32
    %6 = vector.broadcast %cst_11 : f32 to vector<1x18x1x3xf32>
    %c0_12 = arith.constant 0 : index
    %c0_13 = arith.constant 0 : index
    %c0_14 = arith.constant 0 : index
    %c0_15 = arith.constant 0 : index
    %7 = vector.load %arg17[%c0_12, %c0_13, %c0_14, %c0_15] : memref<1x18x18x3xf32, #tpu.memory_space<vmem>>, vector<1x18x1x3xf32>
    tpu.vector_store %arg17[%c0_12, %c0_13, %c0_14, %c0_15], %6 {strides = array<i32>} : memref<1x18x18x3xf32, #tpu.memory_space<vmem>>, vector<1x18x1x3xf32>,
    %cst_16 = arith.constant 0.000000e+00 : f32
    %8 = vector.broadcast %cst_16 : f32 to vector<1x18x1x3xf32>
    %c0_17 = arith.constant 0 : index
    %c0_18 = arith.constant 0 : index
    %c17_19 = arith.constant 17 : index
    %c0_20 = arith.constant 0 : index
    %9 = vector.load %arg17[%c0_17, %c0_18, %c17_19, %c0_20] : memref<1x18x18x3xf32, #tpu.memory_space<vmem>>, vector<1x18x1x3xf32>
    tpu.vector_store %arg17[%c0_17, %c0_18, %c17_19, %c0_20], %8 {strides = array<i32>} : memref<1x18x18x3xf32, #tpu.memory_space<vmem>>, vector<1x18x1x3xf32>,
    %c0_21 = arith.constant 0 : index
    %c1 = arith.constant 1 : index
    %c1_22 = arith.constant 1 : index
    %c0_23 = arith.constant 0 : index
    %10 = vector.load %arg17[%c0_21, %c1, %c1_22, %c0_23] : memref<1x18x18x3xf32, #tpu.memory_space<vmem>>, vector<1x16x16x3xf32>
    tpu.vector_store %arg17[%c0_21, %c1, %c1_22, %c0_23], %1 {strides = array<i32>} : memref<1x18x18x3xf32, #tpu.memory_space<vmem>>, vector<1x16x16x3xf32>,
    %c0_24 = arith.constant 0 : index
    %c0_25 = arith.constant 0 : index
    %c0_26 = arith.constant 0 : index
    %c0_27 = arith.constant 0 : index
    %11 = vector.load %arg17[%c0_24, %c0_25, %c0_26, %c0_27] : memref<1x18x18x3xf32, #tpu.memory_space<vmem>>, vector<1x18x18x3xf32>
    %12 = vector.extract_strided_slice %11 {offsets = [0, 0, 0, 0], sizes = [1, 16, 16, 3], strides = [1, 1, 1, 1]} : vector<1x18x18x3xf32> to vector<1x16x16x3xf32>
    %13 = vector.extract_strided_slice %11 {offsets = [0, 0, 1, 0], sizes = [1, 16, 16, 3], strides = [1, 1, 1, 1]} : vector<1x18x18x3xf32> to vector<1x16x16x3xf32>
    %14 = vector.extract_strided_slice %11 {offsets = [0, 0, 2, 0], sizes = [1, 16, 16, 3], strides = [1, 1, 1, 1]} : vector<1x18x18x3xf32> to vector<1x16x16x3xf32>
    %15 = vector.extract_strided_slice %11 {offsets = [0, 1, 0, 0], sizes = [1, 16, 16, 3], strides = [1, 1, 1, 1]} : vector<1x18x18x3xf32> to vector<1x16x16x3xf32>
    %16 = vector.extract_strided_slice %11 {offsets = [0, 1, 1, 0], sizes = [1, 16, 16, 3], strides = [1, 1, 1, 1]} : vector<1x18x18x3xf32> to vector<1x16x16x3xf32>
    %17 = vector.extract_strided_slice %11 {offsets = [0, 1, 2, 0], sizes = [1, 16, 16, 3], strides = [1, 1, 1, 1]} : vector<1x18x18x3xf32> to vector<1x16x16x3xf32>
    %18 = vector.extract_strided_slice %11 {offsets = [0, 2, 0, 0], sizes = [1, 16, 16, 3], strides = [1, 1, 1, 1]} : vector<1x18x18x3xf32> to vector<1x16x16x3xf32>
    %19 = vector.extract_strided_slice %11 {offsets = [0, 2, 1, 0], sizes = [1, 16, 16, 3], strides = [1, 1, 1, 1]} : vector<1x18x18x3xf32> to vector<1x16x16x3xf32>
    %20 = vector.extract_strided_slice %11 {offsets = [0, 2, 2, 0], sizes = [1, 16, 16, 3], strides = [1, 1, 1, 1]} : vector<1x18x18x3xf32> to vector<1x16x16x3xf32>
    %21 = tpu.concatenate %12, %13, %14, %15, %16, %17, %18, %19, %20 in 3 : vector<1x16x16x3xf32>, vector<1x16x16x3xf32>, vector<1x16x16x3xf32>, vector<1x16x16x3xf32>, vector<1x16x16x3xf32>, vector<1x16x16x3xf32>, vector<1x16x16x3xf32>, vector<1x16x16x3xf32>, vector<1x16x16x3xf32> -> vector<1x16x16x27xf32>
    %22 = arith.truncf %21 : vector<1x16x16x27xf32> to vector<1x16x16x27xbf16>
    %23 = vector.shape_cast %22 : vector<1x16x16x27xbf16> to vector<256x27xbf16>
    %c0_28 = arith.constant 0 : index
    %c0_29 = arith.constant 0 : index
    %24 = vector.load %arg2[%c0_28, %c0_29] : memref<27x32xbf16, #tpu.memory_space<vmem>>, vector<27x32xbf16>
    %cst_30 = arith.constant dense<0.000000e+00> : vector<256x32xf32>
    %25 = tpu.matmul %23, %24, %cst_30 {dimension_numbers = #tpu.dot_dimension_numbers<[1], [0], [0], [1], [0, 0, 1, 1], [], []>} : vector<256x27xbf16>, vector<27x32xbf16>, vector<256x32xf32> -> vector<256x32xf32>
    %cst_31 = arith.constant 0.000000e+00 : f32
    %26 = vector.broadcast %cst_31 : f32 to vector<256x32xf32>
    %27 = arith.minimumf %25, %26 : vector<256x32xf32>
    %28 = math.exp %27 : vector<256x32xf32>
    %cst_32 = arith.constant 1.000000e+00 : f32
    %29 = vector.broadcast %cst_32 : f32 to vector<256x32xf32>
    %30 = arith.subf %28, %29 : vector<256x32xf32>
    %cst_33 = arith.constant 0.000000e+00 : f32
    %31 = vector.broadcast %cst_33 : f32 to vector<256x32xf32>
    %32 = arith.cmpf ogt, %25, %31 : vector<256x32xf32>
    %33 = arith.select %32, %25, %30 : vector<256x32xi1>, vector<256x32xf32>
    %c0_34 = arith.constant 0 : index
    %c0_35 = arith.constant 0 : index
    %34 = vector.load %arg8[%c0_34, %c0_35] : memref<2x32xf32, #tpu.memory_space<vmem>>, vector<1x32xf32>
    %35 = vector.broadcast %34 : vector<1x32xf32> to vector<256x32xf32>
    %36 = arith.mulf %33, %35 : vector<256x32xf32>
    %c1_36 = arith.constant 1 : index
    %c0_37 = arith.constant 0 : index
    %37 = vector.load %arg8[%c1_36, %c0_37] : memref<2x32xf32, #tpu.memory_space<vmem>>, vector<1x32xf32>
    %38 = vector.broadcast %37 : vector<1x32xf32> to vector<256x32xf32>
    %39 = arith.addf %36, %38 : vector<256x32xf32>
    %40 = vector.shape_cast %39 : vector<256x32xf32> to vector<1x16x16x32xf32>
    %cst_38 = arith.constant 0.000000e+00 : f32
    %41 = vector.broadcast %cst_38 : f32 to vector<1x1x18x32xf32>
    %c0_39 = arith.constant 0 : index
    %c0_40 = arith.constant 0 : index
    %c0_41 = arith.constant 0 : index
    %c0_42 = arith.constant 0 : index
    %42 = vector.load %arg18[%c0_39, %c0_40, %c0_41, %c0_42] : memref<1x18x18x32xf32, #tpu.memory_space<vmem>>, vector<1x1x18x32xf32>
    tpu.vector_store %arg18[%c0_39, %c0_40, %c0_41, %c0_42], %41 {strides = array<i32>} : memref<1x18x18x32xf32, #tpu.memory_space<vmem>>, vector<1x1x18x32xf32>,
    %cst_43 = arith.constant 0.000000e+00 : f32
    %43 = vector.broadcast %cst_43 : f32 to vector<1x1x18x32xf32>
    %c0_44 = arith.constant 0 : index
    %c17_45 = arith.constant 17 : index
    %c0_46 = arith.constant 0 : index
    %c0_47 = arith.constant 0 : index
    %44 = vector.load %arg18[%c0_44, %c17_45, %c0_46, %c0_47] : memref<1x18x18x32xf32, #tpu.memory_space<vmem>>, vector<1x1x18x32xf32>
    tpu.vector_store %arg18[%c0_44, %c17_45, %c0_46, %c0_47], %43 {strides = array<i32>} : memref<1x18x18x32xf32, #tpu.memory_space<vmem>>, vector<1x1x18x32xf32>,
    %cst_48 = arith.constant 0.000000e+00 : f32
    %45 = vector.broadcast %cst_48 : f32 to vector<1x18x1x32xf32>
    %c0_49 = arith.constant 0 : index
    %c0_50 = arith.constant 0 : index
    %c0_51 = arith.constant 0 : index
    %c0_52 = arith.constant 0 : index
    %46 = vector.load %arg18[%c0_49, %c0_50, %c0_51, %c0_52] : memref<1x18x18x32xf32, #tpu.memory_space<vmem>>, vector<1x18x1x32xf32>
    tpu.vector_store %arg18[%c0_49, %c0_50, %c0_51, %c0_52], %45 {strides = array<i32>} : memref<1x18x18x32xf32, #tpu.memory_space<vmem>>, vector<1x18x1x32xf32>,
    %cst_53 = arith.constant 0.000000e+00 : f32
    %47 = vector.broadcast %cst_53 : f32 to vector<1x18x1x32xf32>
    %c0_54 = arith.constant 0 : index
    %c0_55 = arith.constant 0 : index
    %c17_56 = arith.constant 17 : index
    %c0_57 = arith.constant 0 : index
    %48 = vector.load %arg18[%c0_54, %c0_55, %c17_56, %c0_57] : memref<1x18x18x32xf32, #tpu.memory_space<vmem>>, vector<1x18x1x32xf32>
    tpu.vector_store %arg18[%c0_54, %c0_55, %c17_56, %c0_57], %47 {strides = array<i32>} : memref<1x18x18x32xf32, #tpu.memory_space<vmem>>, vector<1x18x1x32xf32>,
    %c0_58 = arith.constant 0 : index
    %c1_59 = arith.constant 1 : index
    %c1_60 = arith.constant 1 : index
    %c0_61 = arith.constant 0 : index
    %49 = vector.load %arg18[%c0_58, %c1_59, %c1_60, %c0_61] : memref<1x18x18x32xf32, #tpu.memory_space<vmem>>, vector<1x16x16x32xf32>
    tpu.vector_store %arg18[%c0_58, %c1_59, %c1_60, %c0_61], %40 {strides = array<i32>} : memref<1x18x18x32xf32, #tpu.memory_space<vmem>>, vector<1x16x16x32xf32>,
    %c0_62 = arith.constant 0 : index
    %c0_63 = arith.constant 0 : index
    %c0_64 = arith.constant 0 : index
    %c0_65 = arith.constant 0 : index
    %50 = vector.load %arg18[%c0_62, %c0_63, %c0_64, %c0_65] : memref<1x18x18x32xf32, #tpu.memory_space<vmem>>, vector<1x18x18x32xf32>
    %51 = vector.extract_strided_slice %50 {offsets = [0, 0, 0, 0], sizes = [1, 16, 16, 32], strides = [1, 1, 1, 1]} : vector<1x18x18x32xf32> to vector<1x16x16x32xf32>
    %52 = vector.extract_strided_slice %50 {offsets = [0, 0, 1, 0], sizes = [1, 16, 16, 32], strides = [1, 1, 1, 1]} : vector<1x18x18x32xf32> to vector<1x16x16x32xf32>
    %53 = vector.extract_strided_slice %50 {offsets = [0, 0, 2, 0], sizes = [1, 16, 16, 32], strides = [1, 1, 1, 1]} : vector<1x18x18x32xf32> to vector<1x16x16x32xf32>
    %54 = vector.extract_strided_slice %50 {offsets = [0, 1, 0, 0], sizes = [1, 16, 16, 32], strides = [1, 1, 1, 1]} : vector<1x18x18x32xf32> to vector<1x16x16x32xf32>
    %55 = vector.extract_strided_slice %50 {offsets = [0, 1, 1, 0], sizes = [1, 16, 16, 32], strides = [1, 1, 1, 1]} : vector<1x18x18x32xf32> to vector<1x16x16x32xf32>
    %56 = vector.extract_strided_slice %50 {offsets = [0, 1, 2, 0], sizes = [1, 16, 16, 32], strides = [1, 1, 1, 1]} : vector<1x18x18x32xf32> to vector<1x16x16x32xf32>
    %57 = vector.extract_strided_slice %50 {offsets = [0, 2, 0, 0], sizes = [1, 16, 16, 32], strides = [1, 1, 1, 1]} : vector<1x18x18x32xf32> to vector<1x16x16x32xf32>
    %58 = vector.extract_strided_slice %50 {offsets = [0, 2, 1, 0], sizes = [1, 16, 16, 32], strides = [1, 1, 1, 1]} : vector<1x18x18x32xf32> to vector<1x16x16x32xf32>
    %59 = vector.extract_strided_slice %50 {offsets = [0, 2, 2, 0], sizes = [1, 16, 16, 32], strides = [1, 1, 1, 1]} : vector<1x18x18x32xf32> to vector<1x16x16x32xf32>
    %60 = tpu.concatenate %51, %52, %53, %54, %55, %56, %57, %58, %59 in 3 : vector<1x16x16x32xf32>, vector<1x16x16x32xf32>, vector<1x16x16x32xf32>, vector<1x16x16x32xf32>, vector<1x16x16x32xf32>, vector<1x16x16x32xf32>, vector<1x16x16x32xf32>, vector<1x16x16x32xf32>, vector<1x16x16x32xf32> -> vector<1x16x16x288xf32>
    %61 = arith.truncf %60 : vector<1x16x16x288xf32> to vector<1x16x16x288xbf16>
    %62 = vector.shape_cast %61 : vector<1x16x16x288xbf16> to vector<256x288xbf16>
    %c0_66 = arith.constant 0 : index
    %c0_67 = arith.constant 0 : index
    %63 = vector.load %arg3[%c0_66, %c0_67] : memref<288x32xbf16, #tpu.memory_space<vmem>>, vector<288x32xbf16>
    %cst_68 = arith.constant dense<0.000000e+00> : vector<256x32xf32>
    %64 = tpu.matmul %62, %63, %cst_68 {dimension_numbers = #tpu.dot_dimension_numbers<[1], [0], [0], [1], [0, 0, 1, 1], [], []>} : vector<256x288xbf16>, vector<288x32xbf16>, vector<256x32xf32> -> vector<256x32xf32>
    %cst_69 = arith.constant 0.000000e+00 : f32
    %65 = vector.broadcast %cst_69 : f32 to vector<256x32xf32>
    %66 = arith.minimumf %64, %65 : vector<256x32xf32>
    %67 = math.exp %66 : vector<256x32xf32>
    %cst_70 = arith.constant 1.000000e+00 : f32
    %68 = vector.broadcast %cst_70 : f32 to vector<256x32xf32>
    %69 = arith.subf %67, %68 : vector<256x32xf32>
    %cst_71 = arith.constant 0.000000e+00 : f32
    %70 = vector.broadcast %cst_71 : f32 to vector<256x32xf32>
    %71 = arith.cmpf ogt, %64, %70 : vector<256x32xf32>
    %72 = arith.select %71, %64, %69 : vector<256x32xi1>, vector<256x32xf32>
    %c0_72 = arith.constant 0 : index
    %c0_73 = arith.constant 0 : index
    %73 = vector.load %arg9[%c0_72, %c0_73] : memref<2x32xf32, #tpu.memory_space<vmem>>, vector<1x32xf32>
    %74 = vector.broadcast %73 : vector<1x32xf32> to vector<256x32xf32>
    %75 = arith.mulf %72, %74 : vector<256x32xf32>
    %c1_74 = arith.constant 1 : index
    %c0_75 = arith.constant 0 : index
    %76 = vector.load %arg9[%c1_74, %c0_75] : memref<2x32xf32, #tpu.memory_space<vmem>>, vector<1x32xf32>
    %77 = vector.broadcast %76 : vector<1x32xf32> to vector<256x32xf32>
    %78 = arith.addf %75, %77 : vector<256x32xf32>
    %79 = vector.shape_cast %78 : vector<256x32xf32> to vector<1x16x16x32xf32>
    %80 = vector.shape_cast %79 : vector<1x16x16x32xf32> to vector<1x8x2x16x32xf32>
    %cst_76 = arith.constant dense<0xFF800000> : vector<1x8x16x32xf32>
    %81 = vector.multi_reduction <maximumf>, %80, %cst_76 [2] : vector<1x8x2x16x32xf32> to vector<1x8x16x32xf32>
    %82 = vector.shape_cast %81 : vector<1x8x16x32xf32> to vector<1x8x8x2x32xf32>
    %cst_77 = arith.constant dense<0xFF800000> : vector<1x8x8x32xf32>
    %83 = vector.multi_reduction <maximumf>, %82, %cst_77 [3] : vector<1x8x8x2x32xf32> to vector<1x8x8x32xf32>
    %cst_78 = arith.constant 0.000000e+00 : f32
    %84 = vector.broadcast %cst_78 : f32 to vector<1x1x10x32xf32>
    %c0_79 = arith.constant 0 : index
    %c0_80 = arith.constant 0 : index
    %c0_81 = arith.constant 0 : index
    %c0_82 = arith.constant 0 : index
    %85 = vector.load %arg19[%c0_79, %c0_80, %c0_81, %c0_82] : memref<1x10x10x32xf32, #tpu.memory_space<vmem>>, vector<1x1x10x32xf32>
    tpu.vector_store %arg19[%c0_79, %c0_80, %c0_81, %c0_82], %84 {strides = array<i32>} : memref<1x10x10x32xf32, #tpu.memory_space<vmem>>, vector<1x1x10x32xf32>,
    %cst_83 = arith.constant 0.000000e+00 : f32
    %86 = vector.broadcast %cst_83 : f32 to vector<1x1x10x32xf32>
    %c0_84 = arith.constant 0 : index
    %c9 = arith.constant 9 : index
    %c0_85 = arith.constant 0 : index
    %c0_86 = arith.constant 0 : index
    %87 = vector.load %arg19[%c0_84, %c9, %c0_85, %c0_86] : memref<1x10x10x32xf32, #tpu.memory_space<vmem>>, vector<1x1x10x32xf32>
    tpu.vector_store %arg19[%c0_84, %c9, %c0_85, %c0_86], %86 {strides = array<i32>} : memref<1x10x10x32xf32, #tpu.memory_space<vmem>>, vector<1x1x10x32xf32>,
    %cst_87 = arith.constant 0.000000e+00 : f32
    %88 = vector.broadcast %cst_87 : f32 to vector<1x10x1x32xf32>
    %c0_88 = arith.constant 0 : index
    %c0_89 = arith.constant 0 : index
    %c0_90 = arith.constant 0 : index
    %c0_91 = arith.constant 0 : index
    %89 = vector.load %arg19[%c0_88, %c0_89, %c0_90, %c0_91] : memref<1x10x10x32xf32, #tpu.memory_space<vmem>>, vector<1x10x1x32xf32>
    tpu.vector_store %arg19[%c0_88, %c0_89, %c0_90, %c0_91], %88 {strides = array<i32>} : memref<1x10x10x32xf32, #tpu.memory_space<vmem>>, vector<1x10x1x32xf32>,
    %cst_92 = arith.constant 0.000000e+00 : f32
    %90 = vector.broadcast %cst_92 : f32 to vector<1x10x1x32xf32>
    %c0_93 = arith.constant 0 : index
    %c0_94 = arith.constant 0 : index
    %c9_95 = arith.constant 9 : index
    %c0_96 = arith.constant 0 : index
    %91 = vector.load %arg19[%c0_93, %c0_94, %c9_95, %c0_96] : memref<1x10x10x32xf32, #tpu.memory_space<vmem>>, vector<1x10x1x32xf32>
    tpu.vector_store %arg19[%c0_93, %c0_94, %c9_95, %c0_96], %90 {strides = array<i32>} : memref<1x10x10x32xf32, #tpu.memory_space<vmem>>, vector<1x10x1x32xf32>,
    %c0_97 = arith.constant 0 : index
    %c1_98 = arith.constant 1 : index
    %c1_99 = arith.constant 1 : index
    %c0_100 = arith.constant 0 : index
    %92 = vector.load %arg19[%c0_97, %c1_98, %c1_99, %c0_100] : memref<1x10x10x32xf32, #tpu.memory_space<vmem>>, vector<1x8x8x32xf32>
    tpu.vector_store %arg19[%c0_97, %c1_98, %c1_99, %c0_100], %83 {strides = array<i32>} : memref<1x10x10x32xf32, #tpu.memory_space<vmem>>, vector<1x8x8x32xf32>,
    %c0_101 = arith.constant 0 : index
    %c0_102 = arith.constant 0 : index
    %c0_103 = arith.constant 0 : index
    %c0_104 = arith.constant 0 : index
    %93 = vector.load %arg19[%c0_101, %c0_102, %c0_103, %c0_104] : memref<1x10x10x32xf32, #tpu.memory_space<vmem>>, vector<1x10x10x32xf32>
    %94 = vector.extract_strided_slice %93 {offsets = [0, 0, 0, 0], sizes = [1, 8, 8, 32], strides = [1, 1, 1, 1]} : vector<1x10x10x32xf32> to vector<1x8x8x32xf32>
    %95 = vector.extract_strided_slice %93 {offsets = [0, 0, 1, 0], sizes = [1, 8, 8, 32], strides = [1, 1, 1, 1]} : vector<1x10x10x32xf32> to vector<1x8x8x32xf32>
    %96 = vector.extract_strided_slice %93 {offsets = [0, 0, 2, 0], sizes = [1, 8, 8, 32], strides = [1, 1, 1, 1]} : vector<1x10x10x32xf32> to vector<1x8x8x32xf32>
    %97 = vector.extract_strided_slice %93 {offsets = [0, 1, 0, 0], sizes = [1, 8, 8, 32], strides = [1, 1, 1, 1]} : vector<1x10x10x32xf32> to vector<1x8x8x32xf32>
    %98 = vector.extract_strided_slice %93 {offsets = [0, 1, 1, 0], sizes = [1, 8, 8, 32], strides = [1, 1, 1, 1]} : vector<1x10x10x32xf32> to vector<1x8x8x32xf32>
    %99 = vector.extract_strided_slice %93 {offsets = [0, 1, 2, 0], sizes = [1, 8, 8, 32], strides = [1, 1, 1, 1]} : vector<1x10x10x32xf32> to vector<1x8x8x32xf32>
    %100 = vector.extract_strided_slice %93 {offsets = [0, 2, 0, 0], sizes = [1, 8, 8, 32], strides = [1, 1, 1, 1]} : vector<1x10x10x32xf32> to vector<1x8x8x32xf32>
    %101 = vector.extract_strided_slice %93 {offsets = [0, 2, 1, 0], sizes = [1, 8, 8, 32], strides = [1, 1, 1, 1]} : vector<1x10x10x32xf32> to vector<1x8x8x32xf32>
    %102 = vector.extract_strided_slice %93 {offsets = [0, 2, 2, 0], sizes = [1, 8, 8, 32], strides = [1, 1, 1, 1]} : vector<1x10x10x32xf32> to vector<1x8x8x32xf32>
    %103 = tpu.concatenate %94, %95, %96, %97, %98, %99, %100, %101, %102 in 3 : vector<1x8x8x32xf32>, vector<1x8x8x32xf32>, vector<1x8x8x32xf32>, vector<1x8x8x32xf32>, vector<1x8x8x32xf32>, vector<1x8x8x32xf32>, vector<1x8x8x32xf32>, vector<1x8x8x32xf32>, vector<1x8x8x32xf32> -> vector<1x8x8x288xf32>
    %104 = arith.truncf %103 : vector<1x8x8x288xf32> to vector<1x8x8x288xbf16>
    %105 = vector.shape_cast %104 : vector<1x8x8x288xbf16> to vector<64x288xbf16>
    %c0_105 = arith.constant 0 : index
    %c0_106 = arith.constant 0 : index
    %106 = vector.load %arg4[%c0_105, %c0_106] : memref<288x64xbf16, #tpu.memory_space<vmem>>, vector<288x64xbf16>
    %cst_107 = arith.constant dense<0.000000e+00> : vector<64x64xf32>
    %107 = tpu.matmul %105, %106, %cst_107 {dimension_numbers = #tpu.dot_dimension_numbers<[1], [0], [0], [1], [0, 0, 1, 1], [], []>} : vector<64x288xbf16>, vector<288x64xbf16>, vector<64x64xf32> -> vector<64x64xf32>
    %cst_108 = arith.constant 0.000000e+00 : f32
    %108 = vector.broadcast %cst_108 : f32 to vector<64x64xf32>
    %109 = arith.minimumf %107, %108 : vector<64x64xf32>
    %110 = math.exp %109 : vector<64x64xf32>
    %cst_109 = arith.constant 1.000000e+00 : f32
    %111 = vector.broadcast %cst_109 : f32 to vector<64x64xf32>
    %112 = arith.subf %110, %111 : vector<64x64xf32>
    %cst_110 = arith.constant 0.000000e+00 : f32
    %113 = vector.broadcast %cst_110 : f32 to vector<64x64xf32>
    %114 = arith.cmpf ogt, %107, %113 : vector<64x64xf32>
    %115 = arith.select %114, %107, %112 : vector<64x64xi1>, vector<64x64xf32>
    %c0_111 = arith.constant 0 : index
    %c0_112 = arith.constant 0 : index
    %116 = vector.load %arg10[%c0_111, %c0_112] : memref<2x64xf32, #tpu.memory_space<vmem>>, vector<1x64xf32>
    %117 = vector.broadcast %116 : vector<1x64xf32> to vector<64x64xf32>
    %118 = arith.mulf %115, %117 : vector<64x64xf32>
    %c1_113 = arith.constant 1 : index
    %c0_114 = arith.constant 0 : index
    %119 = vector.load %arg10[%c1_113, %c0_114] : memref<2x64xf32, #tpu.memory_space<vmem>>, vector<1x64xf32>
    %120 = vector.broadcast %119 : vector<1x64xf32> to vector<64x64xf32>
    %121 = arith.addf %118, %120 : vector<64x64xf32>
    %122 = vector.shape_cast %121 : vector<64x64xf32> to vector<1x8x8x64xf32>
    %cst_115 = arith.constant 0.000000e+00 : f32
    %123 = vector.broadcast %cst_115 : f32 to vector<1x1x10x64xf32>
    %c0_116 = arith.constant 0 : index
    %c0_117 = arith.constant 0 : index
    %c0_118 = arith.constant 0 : index
    %c0_119 = arith.constant 0 : index
    %124 = vector.load %arg20[%c0_116, %c0_117, %c0_118, %c0_119] : memref<1x10x10x64xf32, #tpu.memory_space<vmem>>, vector<1x1x10x64xf32>
    tpu.vector_store %arg20[%c0_116, %c0_117, %c0_118, %c0_119], %123 {strides = array<i32>} : memref<1x10x10x64xf32, #tpu.memory_space<vmem>>, vector<1x1x10x64xf32>,
    %cst_120 = arith.constant 0.000000e+00 : f32
    %125 = vector.broadcast %cst_120 : f32 to vector<1x1x10x64xf32>
    %c0_121 = arith.constant 0 : index
    %c9_122 = arith.constant 9 : index
    %c0_123 = arith.constant 0 : index
    %c0_124 = arith.constant 0 : index
    %126 = vector.load %arg20[%c0_121, %c9_122, %c0_123, %c0_124] : memref<1x10x10x64xf32, #tpu.memory_space<vmem>>, vector<1x1x10x64xf32>
    tpu.vector_store %arg20[%c0_121, %c9_122, %c0_123, %c0_124], %125 {strides = array<i32>} : memref<1x10x10x64xf32, #tpu.memory_space<vmem>>, vector<1x1x10x64xf32>,
    %cst_125 = arith.constant 0.000000e+00 : f32
    %127 = vector.broadcast %cst_125 : f32 to vector<1x10x1x64xf32>
    %c0_126 = arith.constant 0 : index
    %c0_127 = arith.constant 0 : index
    %c0_128 = arith.constant 0 : index
    %c0_129 = arith.constant 0 : index
    %128 = vector.load %arg20[%c0_126, %c0_127, %c0_128, %c0_129] : memref<1x10x10x64xf32, #tpu.memory_space<vmem>>, vector<1x10x1x64xf32>
    tpu.vector_store %arg20[%c0_126, %c0_127, %c0_128, %c0_129], %127 {strides = array<i32>} : memref<1x10x10x64xf32, #tpu.memory_space<vmem>>, vector<1x10x1x64xf32>,
    %cst_130 = arith.constant 0.000000e+00 : f32
    %129 = vector.broadcast %cst_130 : f32 to vector<1x10x1x64xf32>
    %c0_131 = arith.constant 0 : index
    %c0_132 = arith.constant 0 : index
    %c9_133 = arith.constant 9 : index
    %c0_134 = arith.constant 0 : index
    %130 = vector.load %arg20[%c0_131, %c0_132, %c9_133, %c0_134] : memref<1x10x10x64xf32, #tpu.memory_space<vmem>>, vector<1x10x1x64xf32>
    tpu.vector_store %arg20[%c0_131, %c0_132, %c9_133, %c0_134], %129 {strides = array<i32>} : memref<1x10x10x64xf32, #tpu.memory_space<vmem>>, vector<1x10x1x64xf32>,
    %c0_135 = arith.constant 0 : index
    %c1_136 = arith.constant 1 : index
    %c1_137 = arith.constant 1 : index
    %c0_138 = arith.constant 0 : index
    %131 = vector.load %arg20[%c0_135, %c1_136, %c1_137, %c0_138] : memref<1x10x10x64xf32, #tpu.memory_space<vmem>>, vector<1x8x8x64xf32>
    tpu.vector_store %arg20[%c0_135, %c1_136, %c1_137, %c0_138], %122 {strides = array<i32>} : memref<1x10x10x64xf32, #tpu.memory_space<vmem>>, vector<1x8x8x64xf32>,
    %c0_139 = arith.constant 0 : index
    %c0_140 = arith.constant 0 : index
    %c0_141 = arith.constant 0 : index
    %c0_142 = arith.constant 0 : index
    %132 = vector.load %arg20[%c0_139, %c0_140, %c0_141, %c0_142] : memref<1x10x10x64xf32, #tpu.memory_space<vmem>>, vector<1x10x10x64xf32>
    %133 = vector.extract_strided_slice %132 {offsets = [0, 0, 0, 0], sizes = [1, 8, 8, 64], strides = [1, 1, 1, 1]} : vector<1x10x10x64xf32> to vector<1x8x8x64xf32>
    %134 = vector.extract_strided_slice %132 {offsets = [0, 0, 1, 0], sizes = [1, 8, 8, 64], strides = [1, 1, 1, 1]} : vector<1x10x10x64xf32> to vector<1x8x8x64xf32>
    %135 = vector.extract_strided_slice %132 {offsets = [0, 0, 2, 0], sizes = [1, 8, 8, 64], strides = [1, 1, 1, 1]} : vector<1x10x10x64xf32> to vector<1x8x8x64xf32>
    %136 = vector.extract_strided_slice %132 {offsets = [0, 1, 0, 0], sizes = [1, 8, 8, 64], strides = [1, 1, 1, 1]} : vector<1x10x10x64xf32> to vector<1x8x8x64xf32>
    %137 = vector.extract_strided_slice %132 {offsets = [0, 1, 1, 0], sizes = [1, 8, 8, 64], strides = [1, 1, 1, 1]} : vector<1x10x10x64xf32> to vector<1x8x8x64xf32>
    %138 = vector.extract_strided_slice %132 {offsets = [0, 1, 2, 0], sizes = [1, 8, 8, 64], strides = [1, 1, 1, 1]} : vector<1x10x10x64xf32> to vector<1x8x8x64xf32>
    %139 = vector.extract_strided_slice %132 {offsets = [0, 2, 0, 0], sizes = [1, 8, 8, 64], strides = [1, 1, 1, 1]} : vector<1x10x10x64xf32> to vector<1x8x8x64xf32>
    %140 = vector.extract_strided_slice %132 {offsets = [0, 2, 1, 0], sizes = [1, 8, 8, 64], strides = [1, 1, 1, 1]} : vector<1x10x10x64xf32> to vector<1x8x8x64xf32>
    %141 = vector.extract_strided_slice %132 {offsets = [0, 2, 2, 0], sizes = [1, 8, 8, 64], strides = [1, 1, 1, 1]} : vector<1x10x10x64xf32> to vector<1x8x8x64xf32>
    %142 = tpu.concatenate %133, %134, %135, %136, %137, %138, %139, %140, %141 in 3 : vector<1x8x8x64xf32>, vector<1x8x8x64xf32>, vector<1x8x8x64xf32>, vector<1x8x8x64xf32>, vector<1x8x8x64xf32>, vector<1x8x8x64xf32>, vector<1x8x8x64xf32>, vector<1x8x8x64xf32>, vector<1x8x8x64xf32> -> vector<1x8x8x576xf32>
    %143 = arith.truncf %142 : vector<1x8x8x576xf32> to vector<1x8x8x576xbf16>
    %144 = vector.shape_cast %143 : vector<1x8x8x576xbf16> to vector<64x576xbf16>
    %c0_143 = arith.constant 0 : index
    %c0_144 = arith.constant 0 : index
    %145 = vector.load %arg5[%c0_143, %c0_144] : memref<576x64xbf16, #tpu.memory_space<vmem>>, vector<576x64xbf16>
    %cst_145 = arith.constant dense<0.000000e+00> : vector<64x64xf32>
    %146 = tpu.matmul %144, %145, %cst_145 {dimension_numbers = #tpu.dot_dimension_numbers<[1], [0], [0], [1], [0, 0, 1, 1], [], []>} : vector<64x576xbf16>, vector<576x64xbf16>, vector<64x64xf32> -> vector<64x64xf32>
    %cst_146 = arith.constant 0.000000e+00 : f32
    %147 = vector.broadcast %cst_146 : f32 to vector<64x64xf32>
    %148 = arith.minimumf %146, %147 : vector<64x64xf32>
    %149 = math.exp %148 : vector<64x64xf32>
    %cst_147 = arith.constant 1.000000e+00 : f32
    %150 = vector.broadcast %cst_147 : f32 to vector<64x64xf32>
    %151 = arith.subf %149, %150 : vector<64x64xf32>
    %cst_148 = arith.constant 0.000000e+00 : f32
    %152 = vector.broadcast %cst_148 : f32 to vector<64x64xf32>
    %153 = arith.cmpf ogt, %146, %152 : vector<64x64xf32>
    %154 = arith.select %153, %146, %151 : vector<64x64xi1>, vector<64x64xf32>
    %c0_149 = arith.constant 0 : index
    %c0_150 = arith.constant 0 : index
    %155 = vector.load %arg11[%c0_149, %c0_150] : memref<2x64xf32, #tpu.memory_space<vmem>>, vector<1x64xf32>
    %156 = vector.broadcast %155 : vector<1x64xf32> to vector<64x64xf32>
    %157 = arith.mulf %154, %156 : vector<64x64xf32>
    %c1_151 = arith.constant 1 : index
    %c0_152 = arith.constant 0 : index
    %158 = vector.load %arg11[%c1_151, %c0_152] : memref<2x64xf32, #tpu.memory_space<vmem>>, vector<1x64xf32>
    %159 = vector.broadcast %158 : vector<1x64xf32> to vector<64x64xf32>
    %160 = arith.addf %157, %159 : vector<64x64xf32>
    %161 = vector.shape_cast %160 : vector<64x64xf32> to vector<1x8x8x64xf32>
    %162 = vector.shape_cast %161 : vector<1x8x8x64xf32> to vector<1x4x2x8x64xf32>
    %cst_153 = arith.constant dense<0xFF800000> : vector<1x4x8x64xf32>
    %163 = vector.multi_reduction <maximumf>, %162, %cst_153 [2] : vector<1x4x2x8x64xf32> to vector<1x4x8x64xf32>
    %164 = vector.shape_cast %163 : vector<1x4x8x64xf32> to vector<1x4x4x2x64xf32>
    %cst_154 = arith.constant dense<0xFF800000> : vector<1x4x4x64xf32>
    %165 = vector.multi_reduction <maximumf>, %164, %cst_154 [3] : vector<1x4x4x2x64xf32> to vector<1x4x4x64xf32>
    %cst_155 = arith.constant 0.000000e+00 : f32
    %166 = vector.broadcast %cst_155 : f32 to vector<1x1x6x64xf32>
    %c0_156 = arith.constant 0 : index
    %c0_157 = arith.constant 0 : index
    %c0_158 = arith.constant 0 : index
    %c0_159 = arith.constant 0 : index
    %167 = vector.load %arg21[%c0_156, %c0_157, %c0_158, %c0_159] : memref<1x6x6x64xf32, #tpu.memory_space<vmem>>, vector<1x1x6x64xf32>
    tpu.vector_store %arg21[%c0_156, %c0_157, %c0_158, %c0_159], %166 {strides = array<i32>} : memref<1x6x6x64xf32, #tpu.memory_space<vmem>>, vector<1x1x6x64xf32>,
    %cst_160 = arith.constant 0.000000e+00 : f32
    %168 = vector.broadcast %cst_160 : f32 to vector<1x1x6x64xf32>
    %c0_161 = arith.constant 0 : index
    %c5 = arith.constant 5 : index
    %c0_162 = arith.constant 0 : index
    %c0_163 = arith.constant 0 : index
    %169 = vector.load %arg21[%c0_161, %c5, %c0_162, %c0_163] : memref<1x6x6x64xf32, #tpu.memory_space<vmem>>, vector<1x1x6x64xf32>
    tpu.vector_store %arg21[%c0_161, %c5, %c0_162, %c0_163], %168 {strides = array<i32>} : memref<1x6x6x64xf32, #tpu.memory_space<vmem>>, vector<1x1x6x64xf32>,
    %cst_164 = arith.constant 0.000000e+00 : f32
    %170 = vector.broadcast %cst_164 : f32 to vector<1x6x1x64xf32>
    %c0_165 = arith.constant 0 : index
    %c0_166 = arith.constant 0 : index
    %c0_167 = arith.constant 0 : index
    %c0_168 = arith.constant 0 : index
    %171 = vector.load %arg21[%c0_165, %c0_166, %c0_167, %c0_168] : memref<1x6x6x64xf32, #tpu.memory_space<vmem>>, vector<1x6x1x64xf32>
    tpu.vector_store %arg21[%c0_165, %c0_166, %c0_167, %c0_168], %170 {strides = array<i32>} : memref<1x6x6x64xf32, #tpu.memory_space<vmem>>, vector<1x6x1x64xf32>,
    %cst_169 = arith.constant 0.000000e+00 : f32
    %172 = vector.broadcast %cst_169 : f32 to vector<1x6x1x64xf32>
    %c0_170 = arith.constant 0 : index
    %c0_171 = arith.constant 0 : index
    %c5_172 = arith.constant 5 : index
    %c0_173 = arith.constant 0 : index
    %173 = vector.load %arg21[%c0_170, %c0_171, %c5_172, %c0_173] : memref<1x6x6x64xf32, #tpu.memory_space<vmem>>, vector<1x6x1x64xf32>
    tpu.vector_store %arg21[%c0_170, %c0_171, %c5_172, %c0_173], %172 {strides = array<i32>} : memref<1x6x6x64xf32, #tpu.memory_space<vmem>>, vector<1x6x1x64xf32>,
    %c0_174 = arith.constant 0 : index
    %c1_175 = arith.constant 1 : index
    %c1_176 = arith.constant 1 : index
    %c0_177 = arith.constant 0 : index
    %174 = vector.load %arg21[%c0_174, %c1_175, %c1_176, %c0_177] : memref<1x6x6x64xf32, #tpu.memory_space<vmem>>, vector<1x4x4x64xf32>
    tpu.vector_store %arg21[%c0_174, %c1_175, %c1_176, %c0_177], %165 {strides = array<i32>} : memref<1x6x6x64xf32, #tpu.memory_space<vmem>>, vector<1x4x4x64xf32>,
    %c0_178 = arith.constant 0 : index
    %c0_179 = arith.constant 0 : index
    %c0_180 = arith.constant 0 : index
    %c0_181 = arith.constant 0 : index
    %175 = vector.load %arg21[%c0_178, %c0_179, %c0_180, %c0_181] : memref<1x6x6x64xf32, #tpu.memory_space<vmem>>, vector<1x6x6x64xf32>
    %176 = vector.extract_strided_slice %175 {offsets = [0, 0, 0, 0], sizes = [1, 4, 4, 64], strides = [1, 1, 1, 1]} : vector<1x6x6x64xf32> to vector<1x4x4x64xf32>
    %177 = vector.extract_strided_slice %175 {offsets = [0, 0, 1, 0], sizes = [1, 4, 4, 64], strides = [1, 1, 1, 1]} : vector<1x6x6x64xf32> to vector<1x4x4x64xf32>
    %178 = vector.extract_strided_slice %175 {offsets = [0, 0, 2, 0], sizes = [1, 4, 4, 64], strides = [1, 1, 1, 1]} : vector<1x6x6x64xf32> to vector<1x4x4x64xf32>
    %179 = vector.extract_strided_slice %175 {offsets = [0, 1, 0, 0], sizes = [1, 4, 4, 64], strides = [1, 1, 1, 1]} : vector<1x6x6x64xf32> to vector<1x4x4x64xf32>
    %180 = vector.extract_strided_slice %175 {offsets = [0, 1, 1, 0], sizes = [1, 4, 4, 64], strides = [1, 1, 1, 1]} : vector<1x6x6x64xf32> to vector<1x4x4x64xf32>
    %181 = vector.extract_strided_slice %175 {offsets = [0, 1, 2, 0], sizes = [1, 4, 4, 64], strides = [1, 1, 1, 1]} : vector<1x6x6x64xf32> to vector<1x4x4x64xf32>
    %182 = vector.extract_strided_slice %175 {offsets = [0, 2, 0, 0], sizes = [1, 4, 4, 64], strides = [1, 1, 1, 1]} : vector<1x6x6x64xf32> to vector<1x4x4x64xf32>
    %183 = vector.extract_strided_slice %175 {offsets = [0, 2, 1, 0], sizes = [1, 4, 4, 64], strides = [1, 1, 1, 1]} : vector<1x6x6x64xf32> to vector<1x4x4x64xf32>
    %184 = vector.extract_strided_slice %175 {offsets = [0, 2, 2, 0], sizes = [1, 4, 4, 64], strides = [1, 1, 1, 1]} : vector<1x6x6x64xf32> to vector<1x4x4x64xf32>
    %185 = tpu.concatenate %176, %177, %178, %179, %180, %181, %182, %183, %184 in 3 : vector<1x4x4x64xf32>, vector<1x4x4x64xf32>, vector<1x4x4x64xf32>, vector<1x4x4x64xf32>, vector<1x4x4x64xf32>, vector<1x4x4x64xf32>, vector<1x4x4x64xf32>, vector<1x4x4x64xf32>, vector<1x4x4x64xf32> -> vector<1x4x4x576xf32>
    %186 = arith.truncf %185 : vector<1x4x4x576xf32> to vector<1x4x4x576xbf16>
    %187 = vector.shape_cast %186 : vector<1x4x4x576xbf16> to vector<16x576xbf16>
    %c0_182 = arith.constant 0 : index
    %c0_183 = arith.constant 0 : index
    %188 = vector.load %arg6[%c0_182, %c0_183] : memref<576x128xbf16, #tpu.memory_space<vmem>>, vector<576x128xbf16>
    %cst_184 = arith.constant dense<0.000000e+00> : vector<16x128xf32>
    %189 = tpu.matmul %187, %188, %cst_184 {dimension_numbers = #tpu.dot_dimension_numbers<[1], [0], [0], [1], [0, 0, 1, 1], [], []>} : vector<16x576xbf16>, vector<576x128xbf16>, vector<16x128xf32> -> vector<16x128xf32>
    %cst_185 = arith.constant 0.000000e+00 : f32
    %190 = vector.broadcast %cst_185 : f32 to vector<16x128xf32>
    %191 = arith.minimumf %189, %190 : vector<16x128xf32>
    %192 = math.exp %191 : vector<16x128xf32>
    %cst_186 = arith.constant 1.000000e+00 : f32
    %193 = vector.broadcast %cst_186 : f32 to vector<16x128xf32>
    %194 = arith.subf %192, %193 : vector<16x128xf32>
    %cst_187 = arith.constant 0.000000e+00 : f32
    %195 = vector.broadcast %cst_187 : f32 to vector<16x128xf32>
    %196 = arith.cmpf ogt, %189, %195 : vector<16x128xf32>
    %197 = arith.select %196, %189, %194 : vector<16x128xi1>, vector<16x128xf32>
    %c0_188 = arith.constant 0 : index
    %c0_189 = arith.constant 0 : index
    %198 = vector.load %arg12[%c0_188, %c0_189] : memref<2x128xf32, #tpu.memory_space<vmem>>, vector<1x128xf32>
    %199 = vector.broadcast %198 : vector<1x128xf32> to vector<16x128xf32>
    %200 = arith.mulf %197, %199 : vector<16x128xf32>
    %c1_190 = arith.constant 1 : index
    %c0_191 = arith.constant 0 : index
    %201 = vector.load %arg12[%c1_190, %c0_191] : memref<2x128xf32, #tpu.memory_space<vmem>>, vector<1x128xf32>
    %202 = vector.broadcast %201 : vector<1x128xf32> to vector<16x128xf32>
    %203 = arith.addf %200, %202 : vector<16x128xf32>
    %204 = vector.shape_cast %203 : vector<16x128xf32> to vector<1x4x4x128xf32>
    %cst_192 = arith.constant 0.000000e+00 : f32
    %205 = vector.broadcast %cst_192 : f32 to vector<1x1x6x128xf32>
    %c0_193 = arith.constant 0 : index
    %c0_194 = arith.constant 0 : index
    %c0_195 = arith.constant 0 : index
    %c0_196 = arith.constant 0 : index
    %206 = vector.load %arg22[%c0_193, %c0_194, %c0_195, %c0_196] : memref<1x6x6x128xf32, #tpu.memory_space<vmem>>, vector<1x1x6x128xf32>
    tpu.vector_store %arg22[%c0_193, %c0_194, %c0_195, %c0_196], %205 {strides = array<i32>} : memref<1x6x6x128xf32, #tpu.memory_space<vmem>>, vector<1x1x6x128xf32>,
    %cst_197 = arith.constant 0.000000e+00 : f32
    %207 = vector.broadcast %cst_197 : f32 to vector<1x1x6x128xf32>
    %c0_198 = arith.constant 0 : index
    %c5_199 = arith.constant 5 : index
    %c0_200 = arith.constant 0 : index
    %c0_201 = arith.constant 0 : index
    %208 = vector.load %arg22[%c0_198, %c5_199, %c0_200, %c0_201] : memref<1x6x6x128xf32, #tpu.memory_space<vmem>>, vector<1x1x6x128xf32>
    tpu.vector_store %arg22[%c0_198, %c5_199, %c0_200, %c0_201], %207 {strides = array<i32>} : memref<1x6x6x128xf32, #tpu.memory_space<vmem>>, vector<1x1x6x128xf32>,
    %cst_202 = arith.constant 0.000000e+00 : f32
    %209 = vector.broadcast %cst_202 : f32 to vector<1x6x1x128xf32>
    %c0_203 = arith.constant 0 : index
    %c0_204 = arith.constant 0 : index
    %c0_205 = arith.constant 0 : index
    %c0_206 = arith.constant 0 : index
    %210 = vector.load %arg22[%c0_203, %c0_204, %c0_205, %c0_206] : memref<1x6x6x128xf32, #tpu.memory_space<vmem>>, vector<1x6x1x128xf32>
    tpu.vector_store %arg22[%c0_203, %c0_204, %c0_205, %c0_206], %209 {strides = array<i32>} : memref<1x6x6x128xf32, #tpu.memory_space<vmem>>, vector<1x6x1x128xf32>,
    %cst_207 = arith.constant 0.000000e+00 : f32
    %211 = vector.broadcast %cst_207 : f32 to vector<1x6x1x128xf32>
    %c0_208 = arith.constant 0 : index
    %c0_209 = arith.constant 0 : index
    %c5_210 = arith.constant 5 : index
    %c0_211 = arith.constant 0 : index
    %212 = vector.load %arg22[%c0_208, %c0_209, %c5_210, %c0_211] : memref<1x6x6x128xf32, #tpu.memory_space<vmem>>, vector<1x6x1x128xf32>
    tpu.vector_store %arg22[%c0_208, %c0_209, %c5_210, %c0_211], %211 {strides = array<i32>} : memref<1x6x6x128xf32, #tpu.memory_space<vmem>>, vector<1x6x1x128xf32>,
    %c0_212 = arith.constant 0 : index
    %c1_213 = arith.constant 1 : index
    %c1_214 = arith.constant 1 : index
    %c0_215 = arith.constant 0 : index
    %213 = vector.load %arg22[%c0_212, %c1_213, %c1_214, %c0_215] : memref<1x6x6x128xf32, #tpu.memory_space<vmem>>, vector<1x4x4x128xf32>
    tpu.vector_store %arg22[%c0_212, %c1_213, %c1_214, %c0_215], %204 {strides = array<i32>} : memref<1x6x6x128xf32, #tpu.memory_space<vmem>>, vector<1x4x4x128xf32>,
    %c0_216 = arith.constant 0 : index
    %c0_217 = arith.constant 0 : index
    %c0_218 = arith.constant 0 : index
    %c0_219 = arith.constant 0 : index
    %214 = vector.load %arg22[%c0_216, %c0_217, %c0_218, %c0_219] : memref<1x6x6x128xf32, #tpu.memory_space<vmem>>, vector<1x6x6x128xf32>
    %215 = vector.extract_strided_slice %214 {offsets = [0, 0, 0, 0], sizes = [1, 4, 4, 128], strides = [1, 1, 1, 1]} : vector<1x6x6x128xf32> to vector<1x4x4x128xf32>
    %216 = vector.extract_strided_slice %214 {offsets = [0, 0, 1, 0], sizes = [1, 4, 4, 128], strides = [1, 1, 1, 1]} : vector<1x6x6x128xf32> to vector<1x4x4x128xf32>
    %217 = vector.extract_strided_slice %214 {offsets = [0, 0, 2, 0], sizes = [1, 4, 4, 128], strides = [1, 1, 1, 1]} : vector<1x6x6x128xf32> to vector<1x4x4x128xf32>
    %218 = vector.extract_strided_slice %214 {offsets = [0, 1, 0, 0], sizes = [1, 4, 4, 128], strides = [1, 1, 1, 1]} : vector<1x6x6x128xf32> to vector<1x4x4x128xf32>
    %219 = vector.extract_strided_slice %214 {offsets = [0, 1, 1, 0], sizes = [1, 4, 4, 128], strides = [1, 1, 1, 1]} : vector<1x6x6x128xf32> to vector<1x4x4x128xf32>
    %220 = vector.extract_strided_slice %214 {offsets = [0, 1, 2, 0], sizes = [1, 4, 4, 128], strides = [1, 1, 1, 1]} : vector<1x6x6x128xf32> to vector<1x4x4x128xf32>
    %221 = vector.extract_strided_slice %214 {offsets = [0, 2, 0, 0], sizes = [1, 4, 4, 128], strides = [1, 1, 1, 1]} : vector<1x6x6x128xf32> to vector<1x4x4x128xf32>
    %222 = vector.extract_strided_slice %214 {offsets = [0, 2, 1, 0], sizes = [1, 4, 4, 128], strides = [1, 1, 1, 1]} : vector<1x6x6x128xf32> to vector<1x4x4x128xf32>
    %223 = vector.extract_strided_slice %214 {offsets = [0, 2, 2, 0], sizes = [1, 4, 4, 128], strides = [1, 1, 1, 1]} : vector<1x6x6x128xf32> to vector<1x4x4x128xf32>
    %224 = tpu.concatenate %215, %216, %217, %218, %219, %220, %221, %222, %223 in 3 : vector<1x4x4x128xf32>, vector<1x4x4x128xf32>, vector<1x4x4x128xf32>, vector<1x4x4x128xf32>, vector<1x4x4x128xf32>, vector<1x4x4x128xf32>, vector<1x4x4x128xf32>, vector<1x4x4x128xf32>, vector<1x4x4x128xf32> -> vector<1x4x4x1152xf32>
    %225 = arith.truncf %224 : vector<1x4x4x1152xf32> to vector<1x4x4x1152xbf16>
    %226 = vector.shape_cast %225 : vector<1x4x4x1152xbf16> to vector<16x1152xbf16>
    %c0_220 = arith.constant 0 : index
    %c0_221 = arith.constant 0 : index
    %227 = vector.load %arg7[%c0_220, %c0_221] : memref<1152x128xbf16, #tpu.memory_space<vmem>>, vector<1152x128xbf16>
    %cst_222 = arith.constant dense<0.000000e+00> : vector<16x128xf32>
    %228 = tpu.matmul %226, %227, %cst_222 {dimension_numbers = #tpu.dot_dimension_numbers<[1], [0], [0], [1], [0, 0, 1, 1], [], []>} : vector<16x1152xbf16>, vector<1152x128xbf16>, vector<16x128xf32> -> vector<16x128xf32>
    %cst_223 = arith.constant 0.000000e+00 : f32
    %229 = vector.broadcast %cst_223 : f32 to vector<16x128xf32>
    %230 = arith.minimumf %228, %229 : vector<16x128xf32>
    %231 = math.exp %230 : vector<16x128xf32>
    %cst_224 = arith.constant 1.000000e+00 : f32
    %232 = vector.broadcast %cst_224 : f32 to vector<16x128xf32>
    %233 = arith.subf %231, %232 : vector<16x128xf32>
    %cst_225 = arith.constant 0.000000e+00 : f32
    %234 = vector.broadcast %cst_225 : f32 to vector<16x128xf32>
    %235 = arith.cmpf ogt, %228, %234 : vector<16x128xf32>
    %236 = arith.select %235, %228, %233 : vector<16x128xi1>, vector<16x128xf32>
    %c0_226 = arith.constant 0 : index
    %c0_227 = arith.constant 0 : index
    %237 = vector.load %arg13[%c0_226, %c0_227] : memref<2x128xf32, #tpu.memory_space<vmem>>, vector<1x128xf32>
    %238 = vector.broadcast %237 : vector<1x128xf32> to vector<16x128xf32>
    %239 = arith.mulf %236, %238 : vector<16x128xf32>
    %c1_228 = arith.constant 1 : index
    %c0_229 = arith.constant 0 : index
    %240 = vector.load %arg13[%c1_228, %c0_229] : memref<2x128xf32, #tpu.memory_space<vmem>>, vector<1x128xf32>
    %241 = vector.broadcast %240 : vector<1x128xf32> to vector<16x128xf32>
    %242 = arith.addf %239, %241 : vector<16x128xf32>
    %243 = vector.shape_cast %242 : vector<16x128xf32> to vector<1x4x4x128xf32>
    %244 = vector.shape_cast %243 : vector<1x4x4x128xf32> to vector<1x2x2x4x128xf32>
    %cst_230 = arith.constant dense<0xFF800000> : vector<1x2x4x128xf32>
    %245 = vector.multi_reduction <maximumf>, %244, %cst_230 [2] : vector<1x2x2x4x128xf32> to vector<1x2x4x128xf32>
    %246 = vector.shape_cast %245 : vector<1x2x4x128xf32> to vector<1x2x2x2x128xf32>
    %cst_231 = arith.constant dense<0xFF800000> : vector<1x2x2x128xf32>
    %247 = vector.multi_reduction <maximumf>, %246, %cst_231 [3] : vector<1x2x2x2x128xf32> to vector<1x2x2x128xf32>
    %248 = vector.extract_strided_slice %247 {offsets = [0, 0, 0, 0], sizes = [1, 1, 1, 128], strides = [1, 1, 1, 1]} : vector<1x2x2x128xf32> to vector<1x1x1x128xf32>
    %249 = vector.shape_cast %248 : vector<1x1x1x128xf32> to vector<1x128xf32>
    %250 = vector.extract_strided_slice %247 {offsets = [0, 0, 1, 0], sizes = [1, 1, 1, 128], strides = [1, 1, 1, 1]} : vector<1x2x2x128xf32> to vector<1x1x1x128xf32>
    %251 = vector.shape_cast %250 : vector<1x1x1x128xf32> to vector<1x128xf32>
    %252 = vector.extract_strided_slice %247 {offsets = [0, 1, 0, 0], sizes = [1, 1, 1, 128], strides = [1, 1, 1, 1]} : vector<1x2x2x128xf32> to vector<1x1x1x128xf32>
    %253 = vector.shape_cast %252 : vector<1x1x1x128xf32> to vector<1x128xf32>
    %254 = vector.extract_strided_slice %247 {offsets = [0, 1, 1, 0], sizes = [1, 1, 1, 128], strides = [1, 1, 1, 1]} : vector<1x2x2x128xf32> to vector<1x1x1x128xf32>
    %255 = vector.shape_cast %254 : vector<1x1x1x128xf32> to vector<1x128xf32>
    %256 = tpu.concatenate %249, %251, %253, %255 in 1 : vector<1x128xf32>, vector<1x128xf32>, vector<1x128xf32>, vector<1x128xf32> -> vector<1x512xf32>
    %257 = arith.truncf %256 : vector<1x512xf32> to vector<1x512xbf16>
    %c0_232 = arith.constant 0 : index
    %c0_233 = arith.constant 0 : index
    %258 = vector.load %arg14[%c0_232, %c0_233] : memref<512x128xbf16, #tpu.memory_space<vmem>>, vector<512x128xbf16>
    %cst_234 = arith.constant dense<0.000000e+00> : vector<1x128xf32>
    %259 = tpu.matmul %257, %258, %cst_234 {dimension_numbers = #tpu.dot_dimension_numbers<[1], [0], [0], [1], [0, 0, 1, 1], [], []>} : vector<1x512xbf16>, vector<512x128xbf16>, vector<1x128xf32> -> vector<1x128xf32>
    %c0_235 = arith.constant 0 : index
    %c0_236 = arith.constant 0 : index
    %260 = vector.load %arg15[%c0_235, %c0_236] : memref<1x128xf32, #tpu.memory_space<vmem>>, vector<1x128xf32>
    %261 = arith.addf %259, %260 : vector<1x128xf32>
    %c0_237 = arith.constant 0 : index
    %c0_238 = arith.constant 0 : index
    %c0_239 = arith.constant 0 : index
    %262 = vector.load %arg16[%c0_237, %c0_238, %c0_239] : memref<1x1x128xf32, #tpu.memory_space<vmem>>, vector<1x1x128xf32>
    %263 = vector.shape_cast %262 : vector<1x1x128xf32> to vector<1x128xf32>
    %264 = vector.shape_cast %261 : vector<1x128xf32> to vector<1x1x128xf32>
    tpu.vector_store %arg16[%c0_237, %c0_238, %c0_239], %264 {strides = array<i32>} : memref<1x1x128xf32, #tpu.memory_space<vmem>>, vector<1x1x128xf32>,
    return
  }
  func.func @transform_0(%arg0: i32) -> (i32, i32, i32, i32) {
    %c0_i32 = arith.constant 0 : i32
    %c0_i32_0 = arith.constant 0 : i32
    %c0_i32_1 = arith.constant 0 : i32
    %c0_i32_2 = arith.constant 0 : i32
    return %arg0, %c0_i32, %c0_i32_0, %c0_i32_1 : i32, i32, i32, i32
  }
  func.func @transform_1(%arg0: i32) -> (i32, i32) {
    %c0_i32 = arith.constant 0 : i32
    %c0_i32_0 = arith.constant 0 : i32
    %c0_i32_1 = arith.constant 0 : i32
    return %c0_i32, %c0_i32_0 : i32, i32
  }
  func.func @transform_2(%arg0: i32) -> (i32, i32) {
    %c0_i32 = arith.constant 0 : i32
    %c0_i32_0 = arith.constant 0 : i32
    %c0_i32_1 = arith.constant 0 : i32
    return %c0_i32, %c0_i32_0 : i32, i32
  }
  func.func @transform_3(%arg0: i32) -> (i32, i32) {
    %c0_i32 = arith.constant 0 : i32
    %c0_i32_0 = arith.constant 0 : i32
    %c0_i32_1 = arith.constant 0 : i32
    return %c0_i32, %c0_i32_0 : i32, i32
  }
  func.func @transform_4(%arg0: i32) -> (i32, i32) {
    %c0_i32 = arith.constant 0 : i32
    %c0_i32_0 = arith.constant 0 : i32
    %c0_i32_1 = arith.constant 0 : i32
    return %c0_i32, %c0_i32_0 : i32, i32
  }
  func.func @transform_5(%arg0: i32) -> (i32, i32) {
    %c0_i32 = arith.constant 0 : i32
    %c0_i32_0 = arith.constant 0 : i32
    %c0_i32_1 = arith.constant 0 : i32
    return %c0_i32, %c0_i32_0 : i32, i32
  }
  func.func @transform_6(%arg0: i32) -> (i32, i32) {
    %c0_i32 = arith.constant 0 : i32
    %c0_i32_0 = arith.constant 0 : i32
    %c0_i32_1 = arith.constant 0 : i32
    return %c0_i32, %c0_i32_0 : i32, i32
  }
  func.func @transform_7(%arg0: i32) -> (i32, i32) {
    %c0_i32 = arith.constant 0 : i32
    %c0_i32_0 = arith.constant 0 : i32
    %c0_i32_1 = arith.constant 0 : i32
    return %c0_i32, %c0_i32_0 : i32, i32
  }
  func.func @transform_8(%arg0: i32) -> (i32, i32) {
    %c0_i32 = arith.constant 0 : i32
    %c0_i32_0 = arith.constant 0 : i32
    %c0_i32_1 = arith.constant 0 : i32
    return %c0_i32, %c0_i32_0 : i32, i32
  }
  func.func @transform_9(%arg0: i32) -> (i32, i32) {
    %c0_i32 = arith.constant 0 : i32
    %c0_i32_0 = arith.constant 0 : i32
    %c0_i32_1 = arith.constant 0 : i32
    return %c0_i32, %c0_i32_0 : i32, i32
  }
  func.func @transform_10(%arg0: i32) -> (i32, i32) {
    %c0_i32 = arith.constant 0 : i32
    %c0_i32_0 = arith.constant 0 : i32
    %c0_i32_1 = arith.constant 0 : i32
    return %c0_i32, %c0_i32_0 : i32, i32
  }
  func.func @transform_11(%arg0: i32) -> (i32, i32) {
    %c0_i32 = arith.constant 0 : i32
    %c0_i32_0 = arith.constant 0 : i32
    %c0_i32_1 = arith.constant 0 : i32
    return %c0_i32, %c0_i32_0 : i32, i32
  }
  func.func @transform_12(%arg0: i32) -> (i32, i32) {
    %c0_i32 = arith.constant 0 : i32
    %c0_i32_0 = arith.constant 0 : i32
    %c0_i32_1 = arith.constant 0 : i32
    return %c0_i32, %c0_i32_0 : i32, i32
  }
  func.func @transform_13(%arg0: i32) -> (i32, i32) {
    %c0_i32 = arith.constant 0 : i32
    %c0_i32_0 = arith.constant 0 : i32
    %c0_i32_1 = arith.constant 0 : i32
    return %c0_i32, %c0_i32_0 : i32, i32
  }
  func.func @transform_14(%arg0: i32) -> (i32, i32) {
    %c0_i32 = arith.constant 0 : i32
    %c0_i32_0 = arith.constant 0 : i32
    %c0_i32_1 = arith.constant 0 : i32
    return %c0_i32, %c0_i32_0 : i32, i32
  }
  func.func @transform_15(%arg0: i32) -> (i32, i32, i32) {
    %c0_i32 = arith.constant 0 : i32
    %c0_i32_0 = arith.constant 0 : i32
    %c0_i32_1 = arith.constant 0 : i32
    return %arg0, %c0_i32, %c0_i32_0 : i32, i32, i32
  }
}

</mosaic_0001>

<llo_original>
// kernel: detector_cnn_forward.1
$region0: #{detector_cnn_forward.1}
  #allocation0 [shape = 'u32[]', space=smem, size = 0x4, offset = 0x4, fixed_abs, tag = 'smem constant byte address 0x4 - core index']
  #allocation1 [shape = 'u32[144,128]{1,0:T(1,128)}', space=vmem, size = 0x12000, scoped, tag = 'internal scratch']
  #allocation2 [shape = 'f32[1,18,18,3]{3,2,1,0:T(8,128)}', space=vmem, size = 0x36000, scoped, tag = 'scratch operand']
  #allocation3 [shape = 'f32[1,18,18,32]{3,2,1,0:T(8,128)}', space=vmem, size = 0x36000, scoped, tag = 'scratch operand']
  #allocation4 [shape = 'f32[1,10,10,32]{3,2,1,0:T(8,128)}', space=vmem, size = 0x14000, scoped, tag = 'scratch operand']
  #allocation5 [shape = 'f32[1,10,10,64]{3,2,1,0:T(8,128)}', space=vmem, size = 0x14000, scoped, tag = 'scratch operand']
  #allocation6 [shape = 'f32[1,6,6,64]{3,2,1,0:T(8,128)}', space=vmem, size = 0x6000, scoped, tag = 'scratch operand']
  #allocation7 [shape = 'f32[1,6,6,128]{3,2,1,0:T(8,128)}', space=vmem, size = 0x6000, scoped, tag = 'scratch operand']
  %s0 = inlined_call_operand.vmem [shape: bf16[2,16,16,3], index: 0, kind: input, shape index: {}]
  %s1 = inlined_call_operand.hbm [shape: bf16[27,32], index: 1, kind: input, shape index: {}]
  %s2 = inlined_call_operand.vmem [shape: bf16[288,32], index: 2, kind: input, shape index: {}]
  %s3 = inlined_call_operand.vmem [shape: bf16[288,64], index: 3, kind: input, shape index: {}]
  %s4 = inlined_call_operand.vmem [shape: bf16[576,64], index: 4, kind: input, shape index: {}]
  %s5 = inlined_call_operand.vmem [shape: bf16[576,128], index: 5, kind: input, shape index: {}]
  %s6 = inlined_call_operand.vmem [shape: bf16[1152,128], index: 6, kind: input, shape index: {}]
  %s7 = inlined_call_operand.vmem [shape: f32[2,32], index: 7, kind: input, shape index: {}]
  %s8 = inlined_call_operand.hbm [shape: f32[2,32], index: 8, kind: input, shape index: {}]
  %s9 = inlined_call_operand.hbm [shape: f32[2,64], index: 9, kind: input, shape index: {}]
  %s10 = inlined_call_operand.hbm [shape: f32[2,64], index: 10, kind: input, shape index: {}]
  %s11 = inlined_call_operand.hbm [shape: f32[2,128], index: 11, kind: input, shape index: {}]
  %s12 = inlined_call_operand.hbm [shape: f32[2,128], index: 12, kind: input, shape index: {}]
  %s13 = inlined_call_operand.vmem [shape: bf16[512,128], index: 13, kind: input, shape index: {}]
  %s14 = inlined_call_operand.vmem [shape: f32[1,128], index: 14, kind: input, shape index: {}]
  %s15 = inlined_call_operand.hbm [shape: f32[2,1,128], index: 15, kind: output, shape index: {}]
  %s16 = sld [smem:[#allocation0]]
  $region117: #{detector_cnn_forward.1} parent=0
    _
  %s18 = ssub.s32 1, %s16
  %s19 = scalar_select 0, %s18, %s16
  $region1: #{detector_cnn_forward.1} parent=0
    #allocation8 [shape = 'u8[8192]{0}', space=vmem, size = 0x2000, scoped, tag = 'input window, operand 1, single buffered']
    #allocation9 [shape = 's32[2]{0}', space=sflag, size = 0x8, scoped, tag = 'scoped memory for detector_cnn_forward.1']
    #allocation10 [shape = 's32[2]{0}', space=sflag, size = 0x8, scoped, tag = 'scoped memory for detector_cnn_forward.1']
    #allocation11 [shape = 'u8[1024]{0}', space=vmem, size = 0x400, scoped, tag = 'input window, operand 8, single buffered']
    #allocation12 [shape = 's32[1]{0}', space=sflag, size = 0x4, scoped, tag = 'scoped memory for detector_cnn_forward.1']
    #allocation13 [shape = 'u8[1024]{0}', space=vmem, size = 0x400, scoped, tag = 'input window, operand 9, single buffered']
    #allocation14 [shape = 'u8[1024]{0}', space=vmem, size = 0x400, scoped, tag = 'input window, operand 10, single buffered']
    #allocation15 [shape = 's32[1]{0}', space=sflag, size = 0x4, scoped, tag = 'scoped memory for detector_cnn_forward.1']
    #allocation16 [shape = 'u8[1024]{0}', space=vmem, size = 0x400, scoped, tag = 'input window, operand 11, single buffered']
    #allocation17 [shape = 'u8[1024]{0}', space=vmem, size = 0x400, scoped, tag = 'input window, operand 12, single buffered']
    #allocation18 [shape = 's32[1]{0}', space=sflag, size = 0x4, scoped, tag = 'scoped memory for detector_cnn_forward.1']
    #allocation19 [shape = 'u8[1024]{0}', space=vmem, size = 0x400, scoped, tag = 'output window, operand 0']
    %20 = vsyncpa [#allocation9], 0
    %21 = vsyncpa [#allocation12], 0
    %22 = vsyncpa [#allocation15], 0
    %23 = vsyncpa [#allocation18], 0
    %24 = vsyncpa [#allocation10], 0
    %s25 = scalar_lea.sflag [#allocation10], 1
    %26 = vsyncpa %s25, 0
    loop: start=0, step=1, limit=4
    $region2: #{detector_cnn_forward.1} parent=1 // loop_pre_header
      _
    $region3: #{detector_cnn_forward.1} parent=1 // loop_header
      %s28 = sphi 0, %s32
      %p29 = scmp.ge.s32.totalorder %s28, 4
      %s38 = sphi 0, %s40
      %s41 = sphi 0, %s38
      %s42 = sphi 0, %s41
      %s58 = sphi 0, %s42
      %s62 = sphi 0, %s62
      %s64 = sphi 0, %s62
      %s65 = sphi 0, %s64
      %s79 = sphi 0, %s65
      %s83 = sphi 0, %s83
      %s85 = sphi 0, %s83
      %s86 = sphi 0, %s85
      %s100 = sphi 0, %s86
      %s104 = sphi 0, %s104
      %s106 = sphi 0, %s104
      %s107 = sphi 0, %s106
      %s121 = sphi 0, %s107
      %s125 = sphi 0, %s125
      %s127 = sphi 0, %s125
      %s128 = sphi 0, %s127
      %s142 = sphi 0, %s128
      %s146 = sphi 0, %s146
      %s148 = sphi 0, %s146
      %s149 = sphi 0, %s148
      %s163 = sphi 0, %s149
      %s167 = sphi 0, %s167
      %s169 = sphi 0, %s167
      %s170 = sphi 0, %s169
      %s184 = sphi 0, %s170
      %s188 = sphi 0, %s188
      %s190 = sphi 0, %s188
      %s191 = sphi 0, %s190
      %s205 = sphi 0, %s191
      %s209 = sphi 0, %s209
      %s211 = sphi 0, %s209
      %s212 = sphi 0, %s211
      %s226 = sphi 0, %s212
      %s230 = sphi 0, %s230
      %s232 = sphi 0, %s230
      %s233 = sphi 0, %s232
      %s247 = sphi 0, %s233
      %s251 = sphi 0, %s251
      %s253 = sphi 0, %s251
      %s254 = sphi 0, %s253
      %s268 = sphi 0, %s254
      %s272 = sphi 0, %s272
      %s274 = sphi 0, %s272
      %s275 = sphi 0, %s274
      %s289 = sphi 0, %s275
      %s293 = sphi 0, %s293
      %s295 = sphi 0, %s293
      %s296 = sphi 0, %s295
      %s310 = sphi 0, %s296
      %s314 = sphi 0, %s314
      %s316 = sphi 0, %s314
      %s317 = sphi 0, %s316
      %s331 = sphi 0, %s317
      %s335 = sphi 0, %s335
      %s337 = sphi 0, %s335
      %s338 = sphi 0, %s337
      %s352 = sphi 0, %s338
      %s358 = sphi 0, %s360
      %s361 = sphi 0, %s358
      %s362 = sphi 0, %s361
      %s378 = sphi 0, %s362
    $region4: #{detector_cnn_forward.1} parent=1 // loop_header_branch
      %31 = sbr.rel (%p29) target = $region8
    $region5: #{detector_cnn_forward.1} parent=1 // loop_body
      %s33 = ssub.s32 %s28, 1
      %s34 = ssub.s32 %s28, 2
      %s35 = sadd.s32 %s28, 1
      %s36 = ssub.s32 %s28, %s35
      %p37 = scmp.eq.s32.totalorder %s36, 0
      %s39 = sadd.s32 %s38, 1
      %s40 = scalar_select %p37, %s38, %s39
      %p43 = pneg %p37
      %p44 = scmp.eq.s32.totalorder %s28, 1
      %p45 = por %p43, %p44
      %p46 = scmp.ne.s32.totalorder %s38, %s41
      %p47 = scmp.eq.s32.totalorder %s28, 0
      %p48 = por %p46, %p47
      %p49 = scmp.ne.s32.totalorder %s38, %s41
      %p50 = scmp.eq.s32.totalorder %s33, 1
      %p51 = por %p49, %p50
      %p52 = scmp.ne.s32.totalorder %s41, %s42
      %p53 = scmp.eq.s32.totalorder %s33, 0
      %p54 = por %p52, %p53
      %p55 = scmp.ne.s32.totalorder %s41, %s42
      %p56 = scmp.eq.s32.totalorder %s34, 1
      %p57 = por %p55, %p56
      %p59 = scmp.ne.s32.totalorder %s42, %s58
      %p60 = scmp.eq.s32.totalorder %s34, 0
      %p61 = por %p59, %p60
      %s63 = sadd.s32 %s62, 1
      %p66 = scmp.eq.s32.totalorder %s28, 1
      %p67 = scmp.ne.s32.totalorder %s62, %s64
      %p68 = scmp.eq.s32.totalorder %s28, 0
      %p69 = por %p67, %p68
      %p70 = scmp.ne.s32.totalorder %s62, %s64
      %p71 = scmp.eq.s32.totalorder %s33, 1
      %p72 = por %p70, %p71
      %p73 = scmp.ne.s32.totalorder %s64, %s65
      %p74 = scmp.eq.s32.totalorder %s33, 0
      %p75 = por %p73, %p74
      %p76 = scmp.ne.s32.totalorder %s64, %s65
      %p77 = scmp.eq.s32.totalorder %s34, 1
      %p78 = por %p76, %p77
      %p80 = scmp.ne.s32.totalorder %s65, %s79
      %p81 = scmp.eq.s32.totalorder %s34, 0
      %p82 = por %p80, %p81
      %s84 = sadd.s32 %s83, 1
      %p87 = scmp.eq.s32.totalorder %s28, 1
      %p88 = scmp.ne.s32.totalorder %s83, %s85
      %p89 = scmp.eq.s32.totalorder %s28, 0
      %p90 = por %p88, %p89
      %p91 = scmp.ne.s32.totalorder %s83, %s85
      %p92 = scmp.eq.s32.totalorder %s33, 1
      %p93 = por %p91, %p92
      %p94 = scmp.ne.s32.totalorder %s85, %s86
      %p95 = scmp.eq.s32.totalorder %s33, 0
      %p96 = por %p94, %p95
      %p97 = scmp.ne.s32.totalorder %s85, %s86
      %p98 = scmp.eq.s32.totalorder %s34, 1
      %p99 = por %p97, %p98
      %p101 = scmp.ne.s32.totalorder %s86, %s100
      %p102 = scmp.eq.s32.totalorder %s34, 0
      %p103 = por %p101, %p102
      %s105 = sadd.s32 %s104, 1
      %p108 = scmp.eq.s32.totalorder %s28, 1
      %p109 = scmp.ne.s32.totalorder %s104, %s106
      %p110 = scmp.eq.s32.totalorder %s28, 0
      %p111 = por %p109, %p110
      %p112 = scmp.ne.s32.totalorder %s104, %s106
      %p113 = scmp.eq.s32.totalorder %s33, 1
      %p114 = por %p112, %p113
      %p115 = scmp.ne.s32.totalorder %s106, %s107
      %p116 = scmp.eq.s32.totalorder %s33, 0
      %p117 = por %p115, %p116
      %p118 = scmp.ne.s32.totalorder %s106, %s107
      %p119 = scmp.eq.s32.totalorder %s34, 1
      %p120 = por %p118, %p119
      %p122 = scmp.ne.s32.totalorder %s107, %s121
      %p123 = scmp.eq.s32.totalorder %s34, 0
      %p124 = por %p122, %p123
      %s126 = sadd.s32 %s125, 1
      %p129 = scmp.eq.s32.totalorder %s28, 1
      %p130 = scmp.ne.s32.totalorder %s125, %s127
      %p131 = scmp.eq.s32.totalorder %s28, 0
      %p132 = por %p130, %p131
      %p133 = scmp.ne.s32.totalorder %s125, %s127
      %p134 = scmp.eq.s32.totalorder %s33, 1
      %p135 = por %p133, %p134
      %p136 = scmp.ne.s32.totalorder %s127, %s128
      %p137 = scmp.eq.s32.totalorder %s33, 0
      %p138 = por %p136, %p137
      %p139 = scmp.ne.s32.totalorder %s127, %s128
      %p140 = scmp.eq.s32.totalorder %s34, 1
      %p141 = por %p139, %p140
      %p143 = scmp.ne.s32.totalorder %s128, %s142
      %p144 = scmp.eq.s32.totalorder %s34, 0
      %p145 = por %p143, %p144
      %s147 = sadd.s32 %s146, 1
      %p150 = scmp.eq.s32.totalorder %s28, 1
      %p151 = scmp.ne.s32.totalorder %s146, %s148
      %p152 = scmp.eq.s32.totalorder %s28, 0
      %p153 = por %p151, %p152
      %p154 = scmp.ne.s32.totalorder %s146, %s148
      %p155 = scmp.eq.s32.totalorder %s33, 1
      %p156 = por %p154, %p155
      %p157 = scmp.ne.s32.totalorder %s148, %s149
      %p158 = scmp.eq.s32.totalorder %s33, 0
      %p159 = por %p157, %p158
      %p160 = scmp.ne.s32.totalorder %s148, %s149
      %p161 = scmp.eq.s32.totalorder %s34, 1
      %p162 = por %p160, %p161
      %p164 = scmp.ne.s32.totalorder %s149, %s163
      %p165 = scmp.eq.s32.totalorder %s34, 0
      %p166 = por %p164, %p165
      %s168 = sadd.s32 %s167, 1
      %p171 = scmp.eq.s32.totalorder %s28, 1
      %p172 = scmp.ne.s32.totalorder %s167, %s169
      %p173 = scmp.eq.s32.totalorder %s28, 0
      %p174 = por %p172, %p173
      %p175 = scmp.ne.s32.totalorder %s167, %s169
      %p176 = scmp.eq.s32.totalorder %s33, 1
      %p177 = por %p175, %p176
      %p178 = scmp.ne.s32.totalorder %s169, %s170
      %p179 = scmp.eq.s32.totalorder %s33, 0
      %p180 = por %p178, %p179
      %p181 = scmp.ne.s32.totalorder %s169, %s170
      %p182 = scmp.eq.s32.totalorder %s34, 1
      %p183 = por %p181, %p182
      %p185 = scmp.ne.s32.totalorder %s170, %s184
      %p186 = scmp.eq.s32.totalorder %s34, 0
      %p187 = por %p185, %p186
      %s189 = sadd.s32 %s188, 1
      %p192 = scmp.eq.s32.totalorder %s28, 1
      %p193 = scmp.ne.s32.totalorder %s188, %s190
      %p194 = scmp.eq.s32.totalorder %s28, 0
      %p195 = por %p193, %p194
      %p196 = scmp.ne.s32.totalorder %s188, %s190
      %p197 = scmp.eq.s32.totalorder %s33, 1
      %p198 = por %p196, %p197
      %p199 = scmp.ne.s32.totalorder %s190, %s191
      %p200 = scmp.eq.s32.totalorder %s33, 0
      %p201 = por %p199, %p200
      %p202 = scmp.ne.s32.totalorder %s190, %s191
      %p203 = scmp.eq.s32.totalorder %s34, 1
      %p204 = por %p202, %p203
      %p206 = scmp.ne.s32.totalorder %s191, %s205
      %p207 = scmp.eq.s32.totalorder %s34, 0
      %p208 = por %p206, %p207
      %s210 = sadd.s32 %s209, 1
      %p213 = scmp.eq.s32.totalorder %s28, 1
      %p214 = scmp.ne.s32.totalorder %s209, %s211
      %p215 = scmp.eq.s32.totalorder %s28, 0
      %p216 = por %p214, %p215
      %p217 = scmp.ne.s32.totalorder %s209, %s211
      %p218 = scmp.eq.s32.totalorder %s33, 1
      %p219 = por %p217, %p218
      %p220 = scmp.ne.s32.totalorder %s211, %s212
      %p221 = scmp.eq.s32.totalorder %s33, 0
      %p222 = por %p220, %p221
      %p223 = scmp.ne.s32.totalorder %s211, %s212
      %p224 = scmp.eq.s32.totalorder %s34, 1
      %p225 = por %p223, %p224
      %p227 = scmp.ne.s32.totalorder %s212, %s226
      %p228 = scmp.eq.s32.totalorder %s34, 0
      %p229 = por %p227, %p228
      %s231 = sadd.s32 %s230, 1
      %p234 = scmp.eq.s32.totalorder %s28, 1
      %p235 = scmp.ne.s32.totalorder %s230, %s232
      %p236 = scmp.eq.s32.totalorder %s28, 0
      %p237 = por %p235, %p236
      %p238 = scmp.ne.s32.totalorder %s230, %s232
      %p239 = scmp.eq.s32.totalorder %s33, 1
      %p240 = por %p238, %p239
      %p241 = scmp.ne.s32.totalorder %s232, %s233
      %p242 = scmp.eq.s32.totalorder %s33, 0
      %p243 = por %p241, %p242
      %p244 = scmp.ne.s32.totalorder %s232, %s233
      %p245 = scmp.eq.s32.totalorder %s34, 1
      %p246 = por %p244, %p245
      %p248 = scmp.ne.s32.totalorder %s233, %s247
      %p249 = scmp.eq.s32.totalorder %s34, 0
      %p250 = por %p248, %p249
      %s252 = sadd.s32 %s251, 1
      %p255 = scmp.eq.s32.totalorder %s28, 1
      %p256 = scmp.ne.s32.totalorder %s251, %s253
      %p257 = scmp.eq.s32.totalorder %s28, 0
      %p258 = por %p256, %p257
      %p259 = scmp.ne.s32.totalorder %s251, %s253
      %p260 = scmp.eq.s32.totalorder %s33, 1
      %p261 = por %p259, %p260
      %p262 = scmp.ne.s32.totalorder %s253, %s254
      %p263 = scmp.eq.s32.totalorder %s33, 0
      %p264 = por %p262, %p263
      %p265 = scmp.ne.s32.totalorder %s253, %s254
      %p266 = scmp.eq.s32.totalorder %s34, 1
      %p267 = por %p265, %p266
      %p269 = scmp.ne.s32.totalorder %s254, %s268
      %p270 = scmp.eq.s32.totalorder %s34, 0
      %p271 = por %p269, %p270
      %s273 = sadd.s32 %s272, 1
      %p276 = scmp.eq.s32.totalorder %s28, 1
      %p277 = scmp.ne.s32.totalorder %s272, %s274
      %p278 = scmp.eq.s32.totalorder %s28, 0
      %p279 = por %p277, %p278
      %p280 = scmp.ne.s32.totalorder %s272, %s274
      %p281 = scmp.eq.s32.totalorder %s33, 1
      %p282 = por %p280, %p281
      %p283 = scmp.ne.s32.totalorder %s274, %s275
      %p284 = scmp.eq.s32.totalorder %s33, 0
      %p285 = por %p283, %p284
      %p286 = scmp.ne.s32.totalorder %s274, %s275
      %p287 = scmp.eq.s32.totalorder %s34, 1
      %p288 = por %p286, %p287
      %p290 = scmp.ne.s32.totalorder %s275, %s289
      %p291 = scmp.eq.s32.totalorder %s34, 0
      %p292 = por %p290, %p291
      %s294 = sadd.s32 %s293, 1
      %p297 = scmp.eq.s32.totalorder %s28, 1
      %p298 = scmp.ne.s32.totalorder %s293, %s295
      %p299 = scmp.eq.s32.totalorder %s28, 0
      %p300 = por %p298, %p299
      %p301 = scmp.ne.s32.totalorder %s293, %s295
      %p302 = scmp.eq.s32.totalorder %s33, 1
      %p303 = por %p301, %p302
      %p304 = scmp.ne.s32.totalorder %s295, %s296
      %p305 = scmp.eq.s32.totalorder %s33, 0
      %p306 = por %p304, %p305
      %p307 = scmp.ne.s32.totalorder %s295, %s296
      %p308 = scmp.eq.s32.totalorder %s34, 1
      %p309 = por %p307, %p308
      %p311 = scmp.ne.s32.totalorder %s296, %s310
      %p312 = scmp.eq.s32.totalorder %s34, 0
      %p313 = por %p311, %p312
      %s315 = sadd.s32 %s314, 1
      %p318 = scmp.eq.s32.totalorder %s28, 1
      %p319 = scmp.ne.s32.totalorder %s314, %s316
      %p320 = scmp.eq.s32.totalorder %s28, 0
      %p321 = por %p319, %p320
      %p322 = scmp.ne.s32.totalorder %s314, %s316
      %p323 = scmp.eq.s32.totalorder %s33, 1
      %p324 = por %p322, %p323
      %p325 = scmp.ne.s32.totalorder %s316, %s317
      %p326 = scmp.eq.s32.totalorder %s33, 0
      %p327 = por %p325, %p326
      %p328 = scmp.ne.s32.totalorder %s316, %s317
      %p329 = scmp.eq.s32.totalorder %s34, 1
      %p330 = por %p328, %p329
      %p332 = scmp.ne.s32.totalorder %s317, %s331
      %p333 = scmp.eq.s32.totalorder %s34, 0
      %p334 = por %p332, %p333
      %s336 = sadd.s32 %s335, 1
      %p339 = scmp.eq.s32.totalorder %s28, 1
      %p340 = scmp.ne.s32.totalorder %s335, %s337
      %p341 = scmp.eq.s32.totalorder %s28, 0
      %p342 = por %p340, %p341
      %p343 = scmp.ne.s32.totalorder %s335, %s337
      %p344 = scmp.eq.s32.totalorder %s33, 1
      %p345 = por %p343, %p344
      %p346 = scmp.ne.s32.totalorder %s337, %s338
      %p347 = scmp.eq.s32.totalorder %s33, 0
      %p348 = por %p346, %p347
      %p349 = scmp.ne.s32.totalorder %s337, %s338
      %p350 = scmp.eq.s32.totalorder %s34, 1
      %p351 = por %p349, %p350
      %p353 = scmp.ne.s32.totalorder %s338, %s352
      %p354 = scmp.eq.s32.totalorder %s34, 0
      %p355 = por %p353, %p354
      %s356 = ssub.s32 %s28, %s35
      %p357 = scmp.eq.s32.totalorder %s356, 0
      %s359 = sadd.s32 %s358, 1
      %s360 = scalar_select %p357, %s358, %s359
      %p363 = pneg %p357
      %p364 = scmp.eq.s32.totalorder %s28, 1
      %p365 = por %p363, %p364
      %p366 = scmp.ne.s32.totalorder %s358, %s361
      %p367 = scmp.eq.s32.totalorder %s28, 0
      %p368 = por %p366, %p367
      %p369 = scmp.ne.s32.totalorder %s358, %s361
      %p370 = scmp.eq.s32.totalorder %s33, 1
      %p371 = por %p369, %p370
      %p372 = scmp.ne.s32.totalorder %s361, %s362
      %p373 = scmp.eq.s32.totalorder %s33, 0
      %p374 = por %p372, %p373
      %p375 = scmp.ne.s32.totalorder %s361, %s362
      %p376 = scmp.eq.s32.totalorder %s34, 1
      %p377 = por %p375, %p376
      %p379 = scmp.ne.s32.totalorder %s362, %s378
      %p380 = scmp.eq.s32.totalorder %s34, 0
      %p381 = por %p379, %p380
      %p382 = scmp.le.s32.totalorder 1, %s28
      %p383 = scmp.lt.s32.totalorder %s28, 3
      %p384 = pnand %p382, %p383
      %p385 = pneg %p384
      // Predicated region
      $region9: #{detector_cnn_forward.1} parent=5 // pred_check
        _
      $region10: #{detector_cnn_forward.1} parent=5 // pred_check_branch
        %387 = sbr.rel (%p384) target = $region12
      $region11: #{detector_cnn_forward.1} parent=5 // pred_region
        %s388 = ssub.s32 %s28, 1
        // Predicated region
        $region13: #{detector_cnn_forward.1} parent=11 // pred_check
          %p389 = pneg %p75
        $region14: #{detector_cnn_forward.1} parent=11 // pred_check_branch
          %391 = sbr.rel (%p389) target = $region16
        $region15: #{detector_cnn_forward.1} parent=11 // pred_region
          %s393 = ssub.s32 256, 256
          %394 = vsyncadd [#allocation9], %s393
          %s395 = sshll.u32 [#allocation8], 4
          %s396 = int_to_ptr.vmem [resolvable:$true] %s395
          %401 = dma.hbm_to_vmem [thread:$0]  %s1, 256, %s396, [#allocation9], 64, 64, 4
        $region16: #{detector_cnn_forward.1} parent=11 // pred_fallthru
          _
        // Predicated region
        $region17: #{detector_cnn_forward.1} parent=11 // pred_check
          %p402 = pneg %p96
        $region18: #{detector_cnn_forward.1} parent=11 // pred_check_branch
          %404 = sbr.rel (%p402) target = $region20
        $region19: #{detector_cnn_forward.1} parent=11 // pred_region
          _
        $region20: #{detector_cnn_forward.1} parent=11 // pred_fallthru
          _
        // Predicated region
        $region21: #{detector_cnn_forward.1} parent=11 // pred_check
          %p405 = pneg %p117
        $region22: #{detector_cnn_forward.1} parent=11 // pred_check_branch
          %407 = sbr.rel (%p405) target = $region24
        $region23: #{detector_cnn_forward.1} parent=11 // pred_region
          _
        $region24: #{detector_cnn_forward.1} parent=11 // pred_fallthru
          _
        // Predicated region
        $region25: #{detector_cnn_forward.1} parent=11 // pred_check
          %p408 = pneg %p138
        $region26: #{detector_cnn_forward.1} parent=11 // pred_check_branch
          %410 = sbr.rel (%p408) target = $region28
        $region27: #{detector_cnn_forward.1} parent=11 // pred_region
          _
        $region28: #{detector_cnn_forward.1} parent=11 // pred_fallthru
          _
        // Predicated region
        $region29: #{detector_cnn_forward.1} parent=11 // pred_check
          %p411 = pneg %p159
        $region30: #{detector_cnn_forward.1} parent=11 // pred_check_branch
          %413 = sbr.rel (%p411) target = $region32
        $region31: #{detector_cnn_forward.1} parent=11 // pred_region
          _
        $region32: #{detector_cnn_forward.1} parent=11 // pred_fallthru
          _
        // Predicated region
        $region33: #{detector_cnn_forward.1} parent=11 // pred_check
          %p414 = pneg %p180
        $region34: #{detector_cnn_forward.1} parent=11 // pred_check_branch
          %416 = sbr.rel (%p414) target = $region36
        $region35: #{detector_cnn_forward.1} parent=11 // pred_region
          _
        $region36: #{detector_cnn_forward.1} parent=11 // pred_fallthru
          _
        // Predicated region
        $region37: #{detector_cnn_forward.1} parent=11 // pred_check
          %p417 = pneg %p201
        $region38: #{detector_cnn_forward.1} parent=11 // pred_check_branch
          %419 = sbr.rel (%p417) target = $region40
        $region39: #{detector_cnn_forward.1} parent=11 // pred_region
          _
        $region40: #{detector_cnn_forward.1} parent=11 // pred_fallthru
          _
        // Predicated region
        $region41: #{detector_cnn_forward.1} parent=11 // pred_check
          %p420 = pneg %p222
        $region42: #{detector_cnn_forward.1} parent=11 // pred_check_branch
          %422 = sbr.rel (%p420) target = $region44
        $region43: #{detector_cnn_forward.1} parent=11 // pred_region
          %s424 = ssub.s32 32, 32
          %425 = vsyncadd [#allocation12], %s424
          %s427 = sshll.u32 [#allocation11], 4
          %s428 = int_to_ptr.vmem [resolvable:$true] %s427
          %430 = dma.hbm_to_vmem [thread:$0]  %s8, 32, %s428, [#allocation12]
        $region44: #{detector_cnn_forward.1} parent=11 // pred_fallthru
          _
        // Predicated region
        $region45: #{detector_cnn_forward.1} parent=11 // pred_check
          %p431 = pneg %p243
        $region46: #{detector_cnn_forward.1} parent=11 // pred_check_branch
          %433 = sbr.rel (%p431) target = $region48
        $region47: #{detector_cnn_forward.1} parent=11 // pred_region
          %s435 = ssub.s32 32, 32
          %436 = vsyncadd [#allocation12], %s435
          %s438 = sshll.u32 [#allocation13], 4
          %s439 = int_to_ptr.vmem [resolvable:$true] %s438
          %441 = dma.hbm_to_vmem [thread:$0]  %s9, 32, %s439, [#allocation12]
        $region48: #{detector_cnn_forward.1} parent=11 // pred_fallthru
          _
        // Predicated region
        $region49: #{detector_cnn_forward.1} parent=11 // pred_check
          %p442 = pneg %p264
        $region50: #{detector_cnn_forward.1} parent=11 // pred_check_branch
          %444 = sbr.rel (%p442) target = $region52
        $region51: #{detector_cnn_forward.1} parent=11 // pred_region
          %s446 = ssub.s32 32, 32
          %447 = vsyncadd [#allocation15], %s446
          %s449 = sshll.u32 [#allocation14], 4
          %s450 = int_to_ptr.vmem [resolvable:$true] %s449
          %452 = dma.hbm_to_vmem [thread:$0]  %s10, 32, %s450, [#allocation15]
        $region52: #{detector_cnn_forward.1} parent=11 // pred_fallthru
          _
        // Predicated region
        $region53: #{detector_cnn_forward.1} parent=11 // pred_check
          %p453 = pneg %p285
        $region54: #{detector_cnn_forward.1} parent=11 // pred_check_branch
          %455 = sbr.rel (%p453) target = $region56
        $region55: #{detector_cnn_forward.1} parent=11 // pred_region
          %s457 = ssub.s32 32, 32
          %458 = vsyncadd [#allocation15], %s457
          %s460 = sshll.u32 [#allocation16], 4
          %s461 = int_to_ptr.vmem [resolvable:$true] %s460
          %463 = dma.hbm_to_vmem [thread:$0]  %s11, 32, %s461, [#allocation15]
        $region56: #{detector_cnn_forward.1} parent=11 // pred_fallthru
          _
        // Predicated region
        $region57: #{detector_cnn_forward.1} parent=11 // pred_check
          %p464 = pneg %p306
        $region58: #{detector_cnn_forward.1} parent=11 // pred_check_branch
          %466 = sbr.rel (%p464) target = $region60
        $region59: #{detector_cnn_forward.1} parent=11 // pred_region
          %s468 = ssub.s32 32, 32
          %469 = vsyncadd [#allocation18], %s468
          %s471 = sshll.u32 [#allocation17], 4
          %s472 = int_to_ptr.vmem [resolvable:$true] %s471
          %474 = dma.hbm_to_vmem [thread:$0]  %s12, 32, %s472, [#allocation18]
        $region60: #{detector_cnn_forward.1} parent=11 // pred_fallthru
          _
        // Predicated region
        $region61: #{detector_cnn_forward.1} parent=11 // pred_check
          %p475 = pneg %p327
        $region62: #{detector_cnn_forward.1} parent=11 // pred_check_branch
          %477 = sbr.rel (%p475) target = $region64
        $region63: #{detector_cnn_forward.1} parent=11 // pred_region
          _
        $region64: #{detector_cnn_forward.1} parent=11 // pred_fallthru
          _
        // Predicated region
        $region65: #{detector_cnn_forward.1} parent=11 // pred_check
          %p478 = pneg %p348
        $region66: #{detector_cnn_forward.1} parent=11 // pred_check_branch
          %480 = sbr.rel (%p478) target = $region68
        $region67: #{detector_cnn_forward.1} parent=11 // pred_region
          _
        $region68: #{detector_cnn_forward.1} parent=11 // pred_fallthru
          _
      $region12: #{detector_cnn_forward.1} parent=5 // pred_fallthru
        _
      %p481 = scmp.lt.s32.totalorder %s28, 2
      // Predicated region
      $region69: #{detector_cnn_forward.1} parent=5 // pred_check
        %p482 = pneg %p481
      $region70: #{detector_cnn_forward.1} parent=5 // pred_check_branch
        %484 = sbr.rel (%p482) target = $region72
      $region71: #{detector_cnn_forward.1} parent=5 // pred_region
        // Predicated region
        $region73: #{detector_cnn_forward.1} parent=71 // pred_check
          %p485 = pneg %p48
        $region74: #{detector_cnn_forward.1} parent=71 // pred_check_branch
          %487 = sbr.rel (%p485) target = $region76
        $region75: #{detector_cnn_forward.1} parent=71 // pred_region
          %p488 = scmp.lt.s32.totalorder %s28, 1
          %s489 = scalar_select %p488, %s28, 1
          %s490 = smul.addr %s489, 32
          %s491 = smul.addr %s490, 4
          %s492 = scalar_lea.vmem %s0, %s491
        $region76: #{detector_cnn_forward.1} parent=71 // pred_fallthru
          _
      $region72: #{detector_cnn_forward.1} parent=5 // pred_fallthru
        _
      %p493 = scmp.le.s32.totalorder 1, %s28
      %p494 = scmp.lt.s32.totalorder %s28, 3
      %p495 = pnand %p493, %p494
      %p496 = pneg %p495
      // Predicated region
      $region77: #{detector_cnn_forward.1} parent=5 // pred_check
        _
      $region78: #{detector_cnn_forward.1} parent=5 // pred_check_branch
        %498 = sbr.rel (%p495) target = $region80
      $region79: #{detector_cnn_forward.1} parent=5 // pred_region
        %s499 = ssub.s32 %s28, 1
        // Predicated region
        $region81: #{detector_cnn_forward.1} parent=79 // pred_check
          %p500 = pneg %p75
        $region82: #{detector_cnn_forward.1} parent=79 // pred_check_branch
          %502 = sbr.rel (%p500) target = $region84
        $region83: #{detector_cnn_forward.1} parent=79 // pred_region
          %503 = dma.done [#allocation9], 256
        $region84: #{detector_cnn_forward.1} parent=79 // pred_fallthru
          _
        // Predicated region
        $region85: #{detector_cnn_forward.1} parent=79 // pred_check
          %p504 = pneg %p222
        $region86: #{detector_cnn_forward.1} parent=79 // pred_check_branch
          %506 = sbr.rel (%p504) target = $region88
        $region87: #{detector_cnn_forward.1} parent=79 // pred_region
          %507 = dma.done [#allocation12], 32
        $region88: #{detector_cnn_forward.1} parent=79 // pred_fallthru
          _
        // Predicated region
        $region89: #{detector_cnn_forward.1} parent=79 // pred_check
          %p508 = pneg %p243
        $region90: #{detector_cnn_forward.1} parent=79 // pred_check_branch
          %510 = sbr.rel (%p508) target = $region92
        $region91: #{detector_cnn_forward.1} parent=79 // pred_region
          %511 = dma.done [#allocation12], 32
        $region92: #{detector_cnn_forward.1} parent=79 // pred_fallthru
          _
        // Predicated region
        $region93: #{detector_cnn_forward.1} parent=79 // pred_check
          %p512 = pneg %p264
        $region94: #{detector_cnn_forward.1} parent=79 // pred_check_branch
          %514 = sbr.rel (%p512) target = $region96
        $region95: #{detector_cnn_forward.1} parent=79 // pred_region
          %515 = dma.done [#allocation15], 32
        $region96: #{detector_cnn_forward.1} parent=79 // pred_fallthru
          _
        // Predicated region
        $region97: #{detector_cnn_forward.1} parent=79 // pred_check
          %p516 = pneg %p285
        $region98: #{detector_cnn_forward.1} parent=79 // pred_check_branch
          %518 = sbr.rel (%p516) target = $region100
        $region99: #{detector_cnn_forward.1} parent=79 // pred_region
          %519 = dma.done [#allocation15], 32
        $region100: #{detector_cnn_forward.1} parent=79 // pred_fallthru
          _
        // Predicated region
        $region101: #{detector_cnn_forward.1} parent=79 // pred_check
          %p520 = pneg %p306
        $region102: #{detector_cnn_forward.1} parent=79 // pred_check_branch
          %522 = sbr.rel (%p520) target = $region104
        $region103: #{detector_cnn_forward.1} parent=79 // pred_region
          %523 = dma.done [#allocation18], 32
        $region104: #{detector_cnn_forward.1} parent=79 // pred_fallthru
          _
        %p524 = scmp.lt.s32.totalorder %s33, 1
        %s525 = scalar_select %p524, %s33, 1
        %s526 = smul.addr %s525, 32
        %s527 = smul.addr %s526, 4
        %s528 = scalar_lea.vmem %s0, %s527
        %p529 = pneg %p54
        %p530 = pneg %p51
        %p531 = pneg %p75
        %p532 = pneg %p72
        %p533 = pneg %p96
        %p534 = pneg %p93
        %p535 = pneg %p117
        %p536 = pneg %p114
        %p537 = pneg %p138
        %p538 = pneg %p135
        %p539 = pneg %p159
        %p540 = pneg %p156
        %p541 = pneg %p180
        %p542 = pneg %p177
        %p543 = pneg %p201
        %p544 = pneg %p198
        %p545 = pneg %p222
        %p546 = pneg %p219
        %p547 = pneg %p243
        %p548 = pneg %p240
        %p549 = pneg %p264
        %p550 = pneg %p261
        %p551 = pneg %p285
        %p552 = pneg %p282
        %p553 = pneg %p306
        %p554 = pneg %p303
        %p555 = pneg %p327
        %p556 = pneg %p324
        %p557 = pneg %p348
        %p558 = pneg %p345
        %p559 = pneg %p374
        %p560 = pneg %p371
        %s561 = sand.u32 %s361, 1
        %s562 = scalar_lea.sflag [#allocation10], %s561
        %s563 = sand.u32 %s361, 1
        %s564 = scalar_lea.vmem [#allocation19], %s563
        %p565 = scmp.lt.s32.totalorder %s33, 1
        %s566 = scalar_select %p565, %s33, 1
        %s567 = smul.addr %s566, 32
        %s568 = smul.addr %s567, 4
        %s569 = scalar_lea.vmem %s0, %s568
        %v571 = vld [vmem:[%s569] sm:$0xf]
        %v572 = vld [vmem:[%s569 + $0x4] sm:$0xf]
        %v573 = vld [vmem:[%s569 + $0x8] sm:$0xf]
        %v574 = vld [vmem:[%s569 + $0xc] sm:$0xf]
        %v575 = vld [vmem:[%s569 + $0x10] sm:$0xf]
        %v576 = vld [vmem:[%s569 + $0x14] sm:$0xf]
        %v577 = vld [vmem:[%s569 + $0x18] sm:$0xf]
        %v578 = vld [vmem:[%s569 + $0x1c] sm:$0xf]
        %v579 = vld [vmem:[%s569 + $0x20] sm:$0xf]
        %v580 = vld [vmem:[%s569 + $0x24] sm:$0xf]
        %v581 = vld [vmem:[%s569 + $0x28] sm:$0xf]
        %v582 = vld [vmem:[%s569 + $0x2c] sm:$0xf]
        %v583 = vld [vmem:[%s569 + $0x30] sm:$0xf]
        %v584 = vld [vmem:[%s569 + $0x34] sm:$0xf]
        %v585 = vld [vmem:[%s569 + $0x38] sm:$0xf]
        %v586 = vld [vmem:[%s569 + $0x3c] sm:$0xf]
        %v587 = vld [vmem:[%s569 + $0x40] sm:$0xf]
        %v588 = vld [vmem:[%s569 + $0x44] sm:$0xf]
        %v589 = vld [vmem:[%s569 + $0x48] sm:$0xf]
        %v590 = vld [vmem:[%s569 + $0x4c] sm:$0xf]
        %v591 = vld [vmem:[%s569 + $0x50] sm:$0xf]
        %v592 = vld [vmem:[%s569 + $0x54] sm:$0xf]
        %v593 = vld [vmem:[%s569 + $0x58] sm:$0xf]
        %v594 = vld [vmem:[%s569 + $0x5c] sm:$0xf]
        %v595 = vld [vmem:[%s569 + $0x60] sm:$0xf]
        %v596 = vld [vmem:[%s569 + $0x64] sm:$0xf]
        %v597 = vld [vmem:[%s569 + $0x68] sm:$0xf]
        %v598 = vld [vmem:[%s569 + $0x6c] sm:$0xf]
        %v599 = vld [vmem:[%s569 + $0x70] sm:$0xf]
        %v600 = vld [vmem:[%s569 + $0x74] sm:$0xf]
        %v601 = vld [vmem:[%s569 + $0x78] sm:$0xf]
        %v602 = vld [vmem:[%s569 + $0x7c] sm:$0xf]
        %v603 = vunpack.c.l.bf16 %v571
        %v604 = vunpack.c.l.bf16 %v572
        %v605 = vunpack.c.l.bf16 %v573
        %v606 = vunpack.c.l.bf16 %v574
        %v607 = vunpack.c.l.bf16 %v575
        %v608 = vunpack.c.l.bf16 %v576
        %v609 = vunpack.c.l.bf16 %v577
        %v610 = vunpack.c.l.bf16 %v578
        %v611 = vunpack.c.l.bf16 %v579
        %v612 = vunpack.c.l.bf16 %v580
        %v613 = vunpack.c.l.bf16 %v581
        %v614 = vunpack.c.l.bf16 %v582
        %v615 = vunpack.c.l.bf16 %v583
        %v616 = vunpack.c.l.bf16 %v584
        %v617 = vunpack.c.l.bf16 %v585
        %v618 = vunpack.c.l.bf16 %v586
        %v619 = vunpack.c.l.bf16 %v587
        %v620 = vunpack.c.l.bf16 %v588
        %v621 = vunpack.c.l.bf16 %v589
        %v622 = vunpack.c.l.bf16 %v590
        %v623 = vunpack.c.l.bf16 %v591
        %v624 = vunpack.c.l.bf16 %v592
        %v625 = vunpack.c.l.bf16 %v593
        %v626 = vunpack.c.l.bf16 %v594
        %v627 = vunpack.c.l.bf16 %v595
        %v628 = vunpack.c.l.bf16 %v596
        %v629 = vunpack.c.l.bf16 %v597
        %v630 = vunpack.c.l.bf16 %v598
        %v631 = vunpack.c.l.bf16 %v599
        %v632 = vunpack.c.l.bf16 %v600
        %v633 = vunpack.c.l.bf16 %v601
        %v634 = vunpack.c.l.bf16 %v602
        %vm635 = vcmask 23552
        %636 = vst.msk [vmem:[#allocation2] sm:$0xff] %vm635, 0.0
        %637 = vst.msk [vmem:[#allocation2 + $0x8] sm:$0xff] %vm635, 0.0
        %vm638 = vcmask 17408
        %639 = vst.msk [vmem:[#allocation2 + $0x10] sm:$0x3] %vm638, 0.0
        %s640 = scalar_lea.vmem [#allocation2], 408
        %641 = vst.msk [vmem:[%s640] sm:$0xff] %vm635, 0.0
        %642 = vst.msk [vmem:[%s640 + $0x8] sm:$0xff] %vm635, 0.0
        %643 = vst.msk [vmem:[%s640 + $0x10] sm:$0x3] %vm638, 0.0
        %vm644 = vcmask 16384
        %645 = vst.msk [vmem:[#allocation2] sm:$0x1] %vm644, 0.0
        %646 = vst.msk [vmem:[#allocation2 + $0x18] sm:$0x1] %vm644, 0.0
        %647 = vst.msk [vmem:[#allocation2 + $0x30] sm:$0x1] %vm644, 0.0
        %648 = vst.msk [vmem:[#allocation2 + $0x48] sm:$0x1] %vm644, 0.0
        %649 = vst.msk [vmem:[#allocation2 + $0x60] sm:$0x1] %vm644, 0.0
        %650 = vst.msk [vmem:[#allocation2 + $0x78] sm:$0x1] %vm644, 0.0
        %651 = vst.msk [vmem:[#allocation2 + $0x90] sm:$0x1] %vm644, 0.0
        %652 = vst.msk [vmem:[#allocation2 + $0xa8] sm:$0x1] %vm644, 0.0
        %653 = vst.msk [vmem:[#allocation2 + $0xc0] sm:$0x1] %vm644, 0.0
        %654 = vst.msk [vmem:[#allocation2 + $0xd8] sm:$0x1] %vm644, 0.0
        %655 = vst.msk [vmem:[#allocation2 + $0xf0] sm:$0x1] %vm644, 0.0
        %656 = vst.msk [vmem:[#allocation2 + $0x108] sm:$0x1] %vm644, 0.0
        %657 = vst.msk [vmem:[#allocation2 + $0x120] sm:$0x1] %vm644, 0.0
        %658 = vst.msk [vmem:[#allocation2 + $0x138] sm:$0x1] %vm644, 0.0
        %659 = vst.msk [vmem:[#allocation2 + $0x150] sm:$0x1] %vm644, 0.0
        %660 = vst.msk [vmem:[#allocation2 + $0x168] sm:$0x1] %vm644, 0.0
        %661 = vst.msk [vmem:[#allocation2 + $0x180] sm:$0x1] %vm644, 0.0
        %662 = vst.msk [vmem:[#allocation2 + $0x198] sm:$0x1] %vm644, 0.0
        %663 = vst.msk [vmem:[#allocation2 + $0x11] sm:$0x1] %vm644, 0.0
        %664 = vst.msk [vmem:[#allocation2 + $0x29] sm:$0x1] %vm644, 0.0
        %665 = vst.msk [vmem:[#allocation2 + $0x41] sm:$0x1] %vm644, 0.0
        %666 = vst.msk [vmem:[#allocation2 + $0x59] sm:$0x1] %vm644, 0.0
        %667 = vst.msk [vmem:[#allocation2 + $0x71] sm:$0x1] %vm644, 0.0
        %668 = vst.msk [vmem:[#allocation2 + $0x89] sm:$0x1] %vm644, 0.0
        %669 = vst.msk [vmem:[#allocation2 + $0xa1] sm:$0x1] %vm644, 0.0
        %670 = vst.msk [vmem:[#allocation2 + $0xb9] sm:$0x1] %vm644, 0.0
        %671 = vst.msk [vmem:[#allocation2 + $0xd1] sm:$0x1] %vm644, 0.0
        %672 = vst.msk [vmem:[#allocation2 + $0xe9] sm:$0x1] %vm644, 0.0
        %673 = vst.msk [vmem:[#allocation2 + $0x101] sm:$0x1] %vm644, 0.0
        %674 = vst.msk [vmem:[#allocation2 + $0x119] sm:$0x1] %vm644, 0.0
        %675 = vst.msk [vmem:[#allocation2 + $0x131] sm:$0x1] %vm644, 0.0
        %676 = vst.msk [vmem:[#allocation2 + $0x149] sm:$0x1] %vm644, 0.0
        %677 = vst.msk [vmem:[#allocation2 + $0x161] sm:$0x1] %vm644, 0.0
        %678 = vst.msk [vmem:[#allocation2 + $0x179] sm:$0x1] %vm644, 0.0
        %679 = vst.msk [vmem:[#allocation2 + $0x191] sm:$0x1] %vm644, 0.0
        %680 = vst.msk [vmem:[#allocation2 + $0x1a9] sm:$0x1] %vm644, 0.0
        %s681 = scalar_lea.vmem [#allocation2], 24
        %682 = vst.msk [vmem:[%s681 + $0x1] sm:$0xff] %vm635, %v603
        %683 = vst.msk [vmem:[%s681 + $0x9] sm:$0xff] %vm635, %v604
        %684 = vst.msk [vmem:[%s681 + $0x19] sm:$0xff] %vm635, %v605
        %685 = vst.msk [vmem:[%s681 + $0x21] sm:$0xff] %vm635, %v606
        %686 = vst.msk [vmem:[%s681 + $0x31] sm:$0xff] %vm635, %v607
        %687 = vst.msk [vmem:[%s681 + $0x39] sm:$0xff] %vm635, %v608
        %688 = vst.msk [vmem:[%s681 + $0x49] sm:$0xff] %vm635, %v609
        %689 = vst.msk [vmem:[%s681 + $0x51] sm:$0xff] %vm635, %v610
        %690 = vst.msk [vmem:[%s681 + $0x61] sm:$0xff] %vm635, %v611
        %691 = vst.msk [vmem:[%s681 + $0x69] sm:$0xff] %vm635, %v612
        %692 = vst.msk [vmem:[%s681 + $0x79] sm:$0xff] %vm635, %v613
        %693 = vst.msk [vmem:[%s681 + $0x81] sm:$0xff] %vm635, %v614
        %694 = vst.msk [vmem:[%s681 + $0x91] sm:$0xff] %vm635, %v615
        %695 = vst.msk [vmem:[%s681 + $0x99] sm:$0xff] %vm635, %v616
        %696 = vst.msk [vmem:[%s681 + $0xa9] sm:$0xff] %vm635, %v617
        %697 = vst.msk [vmem:[%s681 + $0xb1] sm:$0xff] %vm635, %v618
        %698 = vst.msk [vmem:[%s681 + $0xc1] sm:$0xff] %vm635, %v619
        %699 = vst.msk [vmem:[%s681 + $0xc9] sm:$0xff] %vm635, %v620
        %700 = vst.msk [vmem:[%s681 + $0xd9] sm:$0xff] %vm635, %v621
        %701 = vst.msk [vmem:[%s681 + $0xe1] sm:$0xff] %vm635, %v622
        %702 = vst.msk [vmem:[%s681 + $0xf1] sm:$0xff] %vm635, %v623
        %703 = vst.msk [vmem:[%s681 + $0xf9] sm:$0xff] %vm635, %v624
        %704 = vst.msk [vmem:[%s681 + $0x109] sm:$0xff] %vm635, %v625
        %705 = vst.msk [vmem:[%s681 + $0x111] sm:$0xff] %vm635, %v626
        %706 = vst.msk [vmem:[%s681 + $0x121] sm:$0xff] %vm635, %v627
        %707 = vst.msk [vmem:[%s681 + $0x129] sm:$0xff] %vm635, %v628
        %708 = vst.msk [vmem:[%s681 + $0x139] sm:$0xff] %vm635, %v629
        %709 = vst.msk [vmem:[%s681 + $0x141] sm:$0xff] %vm635, %v630
        %710 = vst.msk [vmem:[%s681 + $0x151] sm:$0xff] %vm635, %v631
        %711 = vst.msk [vmem:[%s681 + $0x159] sm:$0xff] %vm635, %v632
        %712 = vst.msk [vmem:[%s681 + $0x169] sm:$0xff] %vm635, %v633
        %713 = vst.msk [vmem:[%s681 + $0x171] sm:$0xff] %vm635, %v634
        %v714 = vld [vmem:[#allocation2] sm:$0xff]
        %v715 = vld [vmem:[#allocation2 + $0x8] sm:$0xff]
        %v716 = vld [vmem:[#allocation2 + $0x10] sm:$0x3]
        %v717 = vld [vmem:[#allocation2 + $0x18] sm:$0xff]
        %v718 = vld [vmem:[#allocation2 + $0x20] sm:$0xff]
        %v719 = vld [vmem:[#allocation2 + $0x28] sm:$0x3]
        %v720 = vld [vmem:[#allocation2 + $0x30] sm:$0xff]
        %v721 = vld [vmem:[#allocation2 + $0x38] sm:$0xff]
        %v722 = vld [vmem:[#allocation2 + $0x40] sm:$0x3]
        %v723 = vld [vmem:[#allocation2 + $0x48] sm:$0xff]
        %v724 = vld [vmem:[#allocation2 + $0x50] sm:$0xff]
        %v725 = vld [vmem:[#allocation2 + $0x58] sm:$0x3]
        %v726 = vld [vmem:[#allocation2 + $0x60] sm:$0xff]
        %v727 = vld [vmem:[#allocation2 + $0x68] sm:$0xff]
        %v728 = vld [vmem:[#allocation2 + $0x70] sm:$0x3]
        %v729 = vld [vmem:[#allocation2 + $0x78] sm:$0xff]
        %v730 = vld [vmem:[#allocation2 + $0x80] sm:$0xff]
        %v731 = vld [vmem:[#allocation2 + $0x88] sm:$0x3]
        %v732 = vld [vmem:[#allocation2 + $0x90] sm:$0xff]
        %v733 = vld [vmem:[#allocation2 + $0x98] sm:$0xff]
        %v734 = vld [vmem:[#allocation2 + $0xa0] sm:$0x3]
        %v735 = vld [vmem:[#allocation2 + $0xa8] sm:$0xff]
        %v736 = vld [vmem:[#allocation2 + $0xb0] sm:$0xff]
        %v737 = vld [vmem:[#allocation2 + $0xb8] sm:$0x3]
        %v738 = vld [vmem:[#allocation2 + $0xc0] sm:$0xff]
        %v739 = vld [vmem:[#allocation2 + $0xc8] sm:$0xff]
        %v740 = vld [vmem:[#allocation2 + $0xd0] sm:$0x3]
        %v741 = vld [vmem:[#allocation2 + $0xd8] sm:$0xff]
        %v742 = vld [vmem:[#allocation2 + $0xe0] sm:$0xff]
        %v743 = vld [vmem:[#allocation2 + $0xe8] sm:$0x3]
        %v744 = vld [vmem:[#allocation2 + $0xf0] sm:$0xff]
        %v745 = vld [vmem:[#allocation2 + $0xf8] sm:$0xff]
        %v746 = vld [vmem:[#allocation2 + $0x100] sm:$0x3]
        %v747 = vld [vmem:[#allocation2 + $0x108] sm:$0xff]
        %v748 = vld [vmem:[#allocation2 + $0x110] sm:$0xff]
        %v749 = vld [vmem:[#allocation2 + $0x118] sm:$0x3]
        %v750 = vld [vmem:[#allocation2 + $0x120] sm:$0xff]
        %v751 = vld [vmem:[#allocation2 + $0x128] sm:$0xff]
        %v752 = vld [vmem:[#allocation2 + $0x130] sm:$0x3]
        %v753 = vld [vmem:[#allocation2 + $0x138] sm:$0xff]
        %v754 = vld [vmem:[#allocation2 + $0x140] sm:$0xff]
        %v755 = vld [vmem:[#allocation2 + $0x148] sm:$0x3]
        %v756 = vld [vmem:[#allocation2 + $0x150] sm:$0xff]
        %v757 = vld [vmem:[#allocation2 + $0x158] sm:$0xff]
        %v758 = vld [vmem:[#allocation2 + $0x160] sm:$0x3]
        %v759 = vld [vmem:[#allocation2 + $0x168] sm:$0xff]
        %v760 = vld [vmem:[#allocation2 + $0x170] sm:$0xff]
        %v761 = vld [vmem:[#allocation2 + $0x178] sm:$0x3]
        %v762 = vld [vmem:[#allocation2 + $0x180] sm:$0xff]
        %v763 = vld [vmem:[#allocation2 + $0x188] sm:$0xff]
        %v764 = vld [vmem:[#allocation2 + $0x190] sm:$0x3]
        %v765 = vld [vmem:[#allocation2 + $0x198] sm:$0xff]
        %v766 = vld [vmem:[#allocation2 + $0x1a0] sm:$0xff]
        %v767 = vld [vmem:[#allocation2 + $0x1a8] sm:$0x3]
        %vm816 = vcmask 1046528
        %v817 = vrot.slane %v714, 1
        %v818 = vrot.slane %v715, 1
        %v819 = vsel %vm816, %v817, %v818
        %v820 = vrot.slane %v716, 1
        %v821 = vsel %vm816, %v818, %v820
        %v822 = vrot.slane %v717, 1
        %v823 = vrot.slane %v718, 1
        %v824 = vsel %vm816, %v822, %v823
        %v825 = vrot.slane %v719, 1
        %v826 = vsel %vm816, %v823, %v825
        %v827 = vrot.slane %v720, 1
        %v828 = vrot.slane %v721, 1
        %v829 = vsel %vm816, %v827, %v828
        %v830 = vrot.slane %v722, 1
        %v831 = vsel %vm816, %v828, %v830
        %v832 = vrot.slane %v723, 1
        %v833 = vrot.slane %v724, 1
        %v834 = vsel %vm816, %v832, %v833
        %v835 = vrot.slane %v725, 1
        %v836 = vsel %vm816, %v833, %v835
        %v837 = vrot.slane %v726, 1
        %v838 = vrot.slane %v727, 1
        %v839 = vsel %vm816, %v837, %v838
        %v840 = vrot.slane %v728, 1
        %v841 = vsel %vm816, %v838, %v840
        %v842 = vrot.slane %v729, 1
        %v843 = vrot.slane %v730, 1
        %v844 = vsel %vm816, %v842, %v843
        %v845 = vrot.slane %v731, 1
        %v846 = vsel %vm816, %v843, %v845
        %v847 = vrot.slane %v732, 1
        %v848 = vrot.slane %v733, 1
        %v849 = vsel %vm816, %v847, %v848
        %v850 = vrot.slane %v734, 1
        %v851 = vsel %vm816, %v848, %v850
        %v852 = vrot.slane %v735, 1
        %v853 = vrot.slane %v736, 1
        %v854 = vsel %vm816, %v852, %v853
        %v855 = vrot.slane %v737, 1
        %v856 = vsel %vm816, %v853, %v855
        %v857 = vrot.slane %v738, 1
        %v858 = vrot.slane %v739, 1
        %v859 = vsel %vm816, %v857, %v858
        %v860 = vrot.slane %v740, 1
        %v861 = vsel %vm816, %v858, %v860
        %v862 = vrot.slane %v741, 1
        %v863 = vrot.slane %v742, 1
        %v864 = vsel %vm816, %v862, %v863
        %v865 = vrot.slane %v743, 1
        %v866 = vsel %vm816, %v863, %v865
        %v867 = vrot.slane %v744, 1
        %v868 = vrot.slane %v745, 1
        %v869 = vsel %vm816, %v867, %v868
        %v870 = vrot.slane %v746, 1
        %v871 = vsel %vm816, %v868, %v870
        %v872 = vrot.slane %v747, 1
        %v873 = vrot.slane %v748, 1
        %v874 = vsel %vm816, %v872, %v873
        %v875 = vrot.slane %v749, 1
        %v876 = vsel %vm816, %v873, %v875
        %v877 = vrot.slane %v750, 1
        %v878 = vrot.slane %v751, 1
        %v879 = vsel %vm816, %v877, %v878
        %v880 = vrot.slane %v752, 1
        %v881 = vsel %vm816, %v878, %v880
        %v882 = vrot.slane %v753, 1
        %v883 = vrot.slane %v754, 1
        %v884 = vsel %vm816, %v882, %v883
        %v885 = vrot.slane %v755, 1
        %v886 = vsel %vm816, %v883, %v885
        %v887 = vrot.slane %v756, 1
        %v888 = vrot.slane %v757, 1
        %v889 = vsel %vm816, %v887, %v888
        %v890 = vrot.slane %v758, 1
        %v891 = vsel %vm816, %v888, %v890
        %v892 = vrot.slane %v759, 1
        %v893 = vrot.slane %v760, 1
        %v894 = vsel %vm816, %v892, %v893
        %v895 = vrot.slane %v761, 1
        %v896 = vsel %vm816, %v893, %v895
        %897 = vrot.lane.b32.xlu0 %v819, 3
        %v898 = vpop.permute.xlu0 %897
        %899 = vrot.lane.b32.xlu0 %v821, 3
        %v900 = vpop.permute.xlu0 %899
        %901 = vrot.lane.b32.xlu0 %v824, 3
        %v902 = vpop.permute.xlu0 %901
        %903 = vrot.lane.b32.xlu0 %v826, 3
        %v904 = vpop.permute.xlu0 %903
        %905 = vrot.lane.b32.xlu0 %v829, 3
        %v906 = vpop.permute.xlu0 %905
        %907 = vrot.lane.b32.xlu0 %v831, 3
        %v908 = vpop.permute.xlu0 %907
        %909 = vrot.lane.b32.xlu0 %v834, 3
        %v910 = vpop.permute.xlu0 %909
        %911 = vrot.lane.b32.xlu0 %v836, 3
        %v912 = vpop.permute.xlu0 %911
        %913 = vrot.lane.b32.xlu0 %v839, 3
        %v914 = vpop.permute.xlu0 %913
        %915 = vrot.lane.b32.xlu0 %v841, 3
        %v916 = vpop.permute.xlu0 %915
        %917 = vrot.lane.b32.xlu0 %v844, 3
        %v918 = vpop.permute.xlu0 %917
        %919 = vrot.lane.b32.xlu0 %v846, 3
        %v920 = vpop.permute.xlu0 %919
        %921 = vrot.lane.b32.xlu0 %v849, 3
        %v922 = vpop.permute.xlu0 %921
        %923 = vrot.lane.b32.xlu0 %v851, 3
        %v924 = vpop.permute.xlu0 %923
        %925 = vrot.lane.b32.xlu0 %v854, 3
        %v926 = vpop.permute.xlu0 %925
        %927 = vrot.lane.b32.xlu0 %v856, 3
        %v928 = vpop.permute.xlu0 %927
        %929 = vrot.lane.b32.xlu0 %v859, 3
        %v930 = vpop.permute.xlu0 %929
        %931 = vrot.lane.b32.xlu0 %v861, 3
        %v932 = vpop.permute.xlu0 %931
        %933 = vrot.lane.b32.xlu0 %v864, 3
        %v934 = vpop.permute.xlu0 %933
        %935 = vrot.lane.b32.xlu0 %v866, 3
        %v936 = vpop.permute.xlu0 %935
        %937 = vrot.lane.b32.xlu0 %v869, 3
        %v938 = vpop.permute.xlu0 %937
        %939 = vrot.lane.b32.xlu0 %v871, 3
        %v940 = vpop.permute.xlu0 %939
        %941 = vrot.lane.b32.xlu0 %v874, 3
        %v942 = vpop.permute.xlu0 %941
        %943 = vrot.lane.b32.xlu0 %v876, 3
        %v944 = vpop.permute.xlu0 %943
        %945 = vrot.lane.b32.xlu0 %v879, 3
        %v946 = vpop.permute.xlu0 %945
        %947 = vrot.lane.b32.xlu0 %v881, 3
        %v948 = vpop.permute.xlu0 %947
        %949 = vrot.lane.b32.xlu0 %v884, 3
        %v950 = vpop.permute.xlu0 %949
        %951 = vrot.lane.b32.xlu0 %v886, 3
        %v952 = vpop.permute.xlu0 %951
        %953 = vrot.lane.b32.xlu0 %v889, 3
        %v954 = vpop.permute.xlu0 %953
        %955 = vrot.lane.b32.xlu0 %v891, 3
        %v956 = vpop.permute.xlu0 %955
        %957 = vrot.lane.b32.xlu0 %v894, 3
        %v958 = vpop.permute.xlu0 %957
        %959 = vrot.lane.b32.xlu0 %v896, 3
        %v960 = vpop.permute.xlu0 %959
        %vm993 = vcmask 1045504
        %v994 = vrot.slane %v714, 2
        %v995 = vrot.slane %v715, 2
        %v996 = vsel %vm993, %v994, %v995
        %v997 = vrot.slane %v716, 2
        %v998 = vsel %vm993, %v995, %v997
        %v999 = vrot.slane %v717, 2
        %v1000 = vrot.slane %v718, 2
        %v1001 = vsel %vm993, %v999, %v1000
        %v1002 = vrot.slane %v719, 2
        %v1003 = vsel %vm993, %v1000, %v1002
        %v1004 = vrot.slane %v720, 2
        %v1005 = vrot.slane %v721, 2
        %v1006 = vsel %vm993, %v1004, %v1005
        %v1007 = vrot.slane %v722, 2
        %v1008 = vsel %vm993, %v1005, %v1007
        %v1009 = vrot.slane %v723, 2
        %v1010 = vrot.slane %v724, 2
        %v1011 = vsel %vm993, %v1009, %v1010
        %v1012 = vrot.slane %v725, 2
        %v1013 = vsel %vm993, %v1010, %v1012
        %v1014 = vrot.slane %v726, 2
        %v1015 = vrot.slane %v727, 2
        %v1016 = vsel %vm993, %v1014, %v1015
        %v1017 = vrot.slane %v728, 2
        %v1018 = vsel %vm993, %v1015, %v1017
        %v1019 = vrot.slane %v729, 2
        %v1020 = vrot.slane %v730, 2
        %v1021 = vsel %vm993, %v1019, %v1020
        %v1022 = vrot.slane %v731, 2
        %v1023 = vsel %vm993, %v1020, %v1022
        %v1024 = vrot.slane %v732, 2
        %v1025 = vrot.slane %v733, 2
        %v1026 = vsel %vm993, %v1024, %v1025
        %v1027 = vrot.slane %v734, 2
        %v1028 = vsel %vm993, %v1025, %v1027
        %v1029 = vrot.slane %v735, 2
        %v1030 = vrot.slane %v736, 2
        %v1031 = vsel %vm993, %v1029, %v1030
        %v1032 = vrot.slane %v737, 2
        %v1033 = vsel %vm993, %v1030, %v1032
        %v1034 = vrot.slane %v738, 2
        %v1035 = vrot.slane %v739, 2
        %v1036 = vsel %vm993, %v1034, %v1035
        %v1037 = vrot.slane %v740, 2
        %v1038 = vsel %vm993, %v1035, %v1037
        %v1039 = vrot.slane %v741, 2
        %v1040 = vrot.slane %v742, 2
        %v1041 = vsel %vm993, %v1039, %v1040
        %v1042 = vrot.slane %v743, 2
        %v1043 = vsel %vm993, %v1040, %v1042
        %v1044 = vrot.slane %v744, 2
        %v1045 = vrot.slane %v745, 2
        %v1046 = vsel %vm993, %v1044, %v1045
        %v1047 = vrot.slane %v746, 2
        %v1048 = vsel %vm993, %v1045, %v1047
        %v1049 = vrot.slane %v747, 2
        %v1050 = vrot.slane %v748, 2
        %v1051 = vsel %vm993, %v1049, %v1050
        %v1052 = vrot.slane %v749, 2
        %v1053 = vsel %vm993, %v1050, %v1052
        %v1054 = vrot.slane %v750, 2
        %v1055 = vrot.slane %v751, 2
        %v1056 = vsel %vm993, %v1054, %v1055
        %v1057 = vrot.slane %v752, 2
        %v1058 = vsel %vm993, %v1055, %v1057
        %v1059 = vrot.slane %v753, 2
        %v1060 = vrot.slane %v754, 2
        %v1061 = vsel %vm993, %v1059, %v1060
        %v1062 = vrot.slane %v755, 2
        %v1063 = vsel %vm993, %v1060, %v1062
        %v1064 = vrot.slane %v756, 2
        %v1065 = vrot.slane %v757, 2
        %v1066 = vsel %vm993, %v1064, %v1065
        %v1067 = vrot.slane %v758, 2
        %v1068 = vsel %vm993, %v1065, %v1067
        %v1069 = vrot.slane %v759, 2
        %v1070 = vrot.slane %v760, 2
        %v1071 = vsel %vm993, %v1069, %v1070
        %v1072 = vrot.slane %v761, 2
        %v1073 = vsel %vm993, %v1070, %v1072
        %1074 = vrot.lane.b32.xlu0 %v996, 6
        %v1075 = vpop.permute.xlu0 %1074
        %1076 = vrot.lane.b32.xlu0 %v998, 6
        %v1077 = vpop.permute.xlu0 %1076
        %1078 = vrot.lane.b32.xlu0 %v1001, 6
        %v1079 = vpop.permute.xlu0 %1078
        %1080 = vrot.lane.b32.xlu0 %v1003, 6
        %v1081 = vpop.permute.xlu0 %1080
        %1082 = vrot.lane.b32.xlu0 %v1006, 6
        %v1083 = vpop.permute.xlu0 %1082
        %1084 = vrot.lane.b32.xlu0 %v1008, 6
        %v1085 = vpop.permute.xlu0 %1084
        %1086 = vrot.lane.b32.xlu0 %v1011, 6
        %v1087 = vpop.permute.xlu0 %1086
        %1088 = vrot.lane.b32.xlu0 %v1013, 6
        %v1089 = vpop.permute.xlu0 %1088
        %1090 = vrot.lane.b32.xlu0 %v1016, 6
        %v1091 = vpop.permute.xlu0 %1090
        %1092 = vrot.lane.b32.xlu0 %v1018, 6
        %v1093 = vpop.permute.xlu0 %1092
        %1094 = vrot.lane.b32.xlu0 %v1021, 6
        %v1095 = vpop.permute.xlu0 %1094
        %1096 = vrot.lane.b32.xlu0 %v1023, 6
        %v1097 = vpop.permute.xlu0 %1096
        %1098 = vrot.lane.b32.xlu0 %v1026, 6
        %v1099 = vpop.permute.xlu0 %1098
        %1100 = vrot.lane.b32.xlu0 %v1028, 6
        %v1101 = vpop.permute.xlu0 %1100
        %1102 = vrot.lane.b32.xlu0 %v1031, 6
        %v1103 = vpop.permute.xlu0 %1102
        %1104 = vrot.lane.b32.xlu0 %v1033, 6
        %v1105 = vpop.permute.xlu0 %1104
        %1106 = vrot.lane.b32.xlu0 %v1036, 6
        %v1107 = vpop.permute.xlu0 %1106
        %1108 = vrot.lane.b32.xlu0 %v1038, 6
        %v1109 = vpop.permute.xlu0 %1108
        %1110 = vrot.lane.b32.xlu0 %v1041, 6
        %v1111 = vpop.permute.xlu0 %1110
        %1112 = vrot.lane.b32.xlu0 %v1043, 6
        %v1113 = vpop.permute.xlu0 %1112
        %1114 = vrot.lane.b32.xlu0 %v1046, 6
        %v1115 = vpop.permute.xlu0 %1114
        %1116 = vrot.lane.b32.xlu0 %v1048, 6
        %v1117 = vpop.permute.xlu0 %1116
        %1118 = vrot.lane.b32.xlu0 %v1051, 6
        %v1119 = vpop.permute.xlu0 %1118
        %1120 = vrot.lane.b32.xlu0 %v1053, 6
        %v1121 = vpop.permute.xlu0 %1120
        %1122 = vrot.lane.b32.xlu0 %v1056, 6
        %v1123 = vpop.permute.xlu0 %1122
        %1124 = vrot.lane.b32.xlu0 %v1058, 6
        %v1125 = vpop.permute.xlu0 %1124
        %1126 = vrot.lane.b32.xlu0 %v1061, 6
        %v1127 = vpop.permute.xlu0 %1126
        %1128 = vrot.lane.b32.xlu0 %v1063, 6
        %v1129 = vpop.permute.xlu0 %1128
        %1130 = vrot.lane.b32.xlu0 %v1066, 6
        %v1131 = vpop.permute.xlu0 %1130
        %1132 = vrot.lane.b32.xlu0 %v1068, 6
        %v1133 = vpop.permute.xlu0 %1132
        %1134 = vrot.lane.b32.xlu0 %v1071, 6
        %v1135 = vpop.permute.xlu0 %1134
        %1136 = vrot.lane.b32.xlu0 %v1073, 6
        %v1137 = vpop.permute.xlu0 %1136
        %1172 = vrot.lane.b32.xlu0 %v717, 9
        %v1173 = vpop.permute.xlu0 %1172
        %1174 = vrot.lane.b32.xlu0 %v718, 9
        %v1175 = vpop.permute.xlu0 %1174
        %1176 = vrot.lane.b32.xlu0 %v720, 9
        %v1177 = vpop.permute.xlu0 %1176
        %1178 = vrot.lane.b32.xlu0 %v721, 9
        %v1179 = vpop.permute.xlu0 %1178
        %1180 = vrot.lane.b32.xlu0 %v723, 9
        %v1181 = vpop.permute.xlu0 %1180
        %1182 = vrot.lane.b32.xlu0 %v724, 9
        %v1183 = vpop.permute.xlu0 %1182
        %1184 = vrot.lane.b32.xlu0 %v726, 9
        %v1185 = vpop.permute.xlu0 %1184
        %1186 = vrot.lane.b32.xlu0 %v727, 9
        %v1187 = vpop.permute.xlu0 %1186
        %1188 = vrot.lane.b32.xlu0 %v729, 9
        %v1189 = vpop.permute.xlu0 %1188
        %1190 = vrot.lane.b32.xlu0 %v730, 9
        %v1191 = vpop.permute.xlu0 %1190
        %1192 = vrot.lane.b32.xlu0 %v732, 9
        %v1193 = vpop.permute.xlu0 %1192
        %1194 = vrot.lane.b32.xlu0 %v733, 9
        %v1195 = vpop.permute.xlu0 %1194
        %1196 = vrot.lane.b32.xlu0 %v735, 9
        %v1197 = vpop.permute.xlu0 %1196
        %1198 = vrot.lane.b32.xlu0 %v736, 9
        %v1199 = vpop.permute.xlu0 %1198
        %1200 = vrot.lane.b32.xlu0 %v738, 9
        %v1201 = vpop.permute.xlu0 %1200
        %1202 = vrot.lane.b32.xlu0 %v739, 9
        %v1203 = vpop.permute.xlu0 %1202
        %1204 = vrot.lane.b32.xlu0 %v741, 9
        %v1205 = vpop.permute.xlu0 %1204
        %1206 = vrot.lane.b32.xlu0 %v742, 9
        %v1207 = vpop.permute.xlu0 %1206
        %1208 = vrot.lane.b32.xlu0 %v744, 9
        %v1209 = vpop.permute.xlu0 %1208
        %1210 = vrot.lane.b32.xlu0 %v745, 9
        %v1211 = vpop.permute.xlu0 %1210
        %1212 = vrot.lane.b32.xlu0 %v747, 9
        %v1213 = vpop.permute.xlu0 %1212
        %1214 = vrot.lane.b32.xlu0 %v748, 9
        %v1215 = vpop.permute.xlu0 %1214
        %1216 = vrot.lane.b32.xlu0 %v750, 9
        %v1217 = vpop.permute.xlu0 %1216
        %1218 = vrot.lane.b32.xlu0 %v751, 9
        %v1219 = vpop.permute.xlu0 %1218
        %1220 = vrot.lane.b32.xlu0 %v753, 9
        %v1221 = vpop.permute.xlu0 %1220
        %1222 = vrot.lane.b32.xlu0 %v754, 9
        %v1223 = vpop.permute.xlu0 %1222
        %1224 = vrot.lane.b32.xlu0 %v756, 9
        %v1225 = vpop.permute.xlu0 %1224
        %1226 = vrot.lane.b32.xlu0 %v757, 9
        %v1227 = vpop.permute.xlu0 %1226
        %1228 = vrot.lane.b32.xlu0 %v759, 9
        %v1229 = vpop.permute.xlu0 %1228
        %1230 = vrot.lane.b32.xlu0 %v760, 9
        %v1231 = vpop.permute.xlu0 %1230
        %1232 = vrot.lane.b32.xlu0 %v762, 9
        %v1233 = vpop.permute.xlu0 %1232
        %1234 = vrot.lane.b32.xlu0 %v763, 9
        %v1235 = vpop.permute.xlu0 %1234
        %v1269 = vrot.slane %v762, 1
        %v1270 = vrot.slane %v763, 1
        %v1271 = vsel %vm816, %v1269, %v1270
        %v1272 = vrot.slane %v764, 1
        %v1273 = vsel %vm816, %v1270, %v1272
        %1274 = vrot.lane.b32.xlu0 %v824, 12
        %v1275 = vpop.permute.xlu0 %1274
        %1276 = vrot.lane.b32.xlu0 %v826, 12
        %v1277 = vpop.permute.xlu0 %1276
        %1278 = vrot.lane.b32.xlu0 %v829, 12
        %v1279 = vpop.permute.xlu0 %1278
        %1280 = vrot.lane.b32.xlu0 %v831, 12
        %v1281 = vpop.permute.xlu0 %1280
        %1282 = vrot.lane.b32.xlu0 %v834, 12
        %v1283 = vpop.permute.xlu0 %1282
        %1284 = vrot.lane.b32.xlu0 %v836, 12
        %v1285 = vpop.permute.xlu0 %1284
        %1286 = vrot.lane.b32.xlu0 %v839, 12
        %v1287 = vpop.permute.xlu0 %1286
        %1288 = vrot.lane.b32.xlu0 %v841, 12
        %v1289 = vpop.permute.xlu0 %1288
        %1290 = vrot.lane.b32.xlu0 %v844, 12
        %v1291 = vpop.permute.xlu0 %1290
        %1292 = vrot.lane.b32.xlu0 %v846, 12
        %v1293 = vpop.permute.xlu0 %1292
        %1294 = vrot.lane.b32.xlu0 %v849, 12
        %v1295 = vpop.permute.xlu0 %1294
        %1296 = vrot.lane.b32.xlu0 %v851, 12
        %v1297 = vpop.permute.xlu0 %1296
        %1298 = vrot.lane.b32.xlu0 %v854, 12
        %v1299 = vpop.permute.xlu0 %1298
        %1300 = vrot.lane.b32.xlu0 %v856, 12
        %v1301 = vpop.permute.xlu0 %1300
        %1302 = vrot.lane.b32.xlu0 %v859, 12
        %v1303 = vpop.permute.xlu0 %1302
        %1304 = vrot.lane.b32.xlu0 %v861, 12
        %v1305 = vpop.permute.xlu0 %1304
        %1306 = vrot.lane.b32.xlu0 %v864, 12
        %v1307 = vpop.permute.xlu0 %1306
        %1308 = vrot.lane.b32.xlu0 %v866, 12
        %v1309 = vpop.permute.xlu0 %1308
        %1310 = vrot.lane.b32.xlu0 %v869, 12
        %v1311 = vpop.permute.xlu0 %1310
        %1312 = vrot.lane.b32.xlu0 %v871, 12
        %v1313 = vpop.permute.xlu0 %1312
        %1314 = vrot.lane.b32.xlu0 %v874, 12
        %v1315 = vpop.permute.xlu0 %1314
        %1316 = vrot.lane.b32.xlu0 %v876, 12
        %v1317 = vpop.permute.xlu0 %1316
        %1318 = vrot.lane.b32.xlu0 %v879, 12
        %v1319 = vpop.permute.xlu0 %1318
        %1320 = vrot.lane.b32.xlu0 %v881, 12
        %v1321 = vpop.permute.xlu0 %1320
        %1322 = vrot.lane.b32.xlu0 %v884, 12
        %v1323 = vpop.permute.xlu0 %1322
        %1324 = vrot.lane.b32.xlu0 %v886, 12
        %v1325 = vpop.permute.xlu0 %1324
        %1326 = vrot.lane.b32.xlu0 %v889, 12
        %v1327 = vpop.permute.xlu0 %1326
        %1328 = vrot.lane.b32.xlu0 %v891, 12
        %v1329 = vpop.permute.xlu0 %1328
        %1330 = vrot.lane.b32.xlu0 %v894, 12
        %v1331 = vpop.permute.xlu0 %1330
        %1332 = vrot.lane.b32.xlu0 %v896, 12
        %v1333 = vpop.permute.xlu0 %1332
        %1334 = vrot.lane.b32.xlu0 %v1271, 12
        %v1335 = vpop.permute.xlu0 %1334
        %1336 = vrot.lane.b32.xlu0 %v1273, 12
        %v1337 = vpop.permute.xlu0 %1336
        %v1370 = vrot.slane %v762, 2
        %v1371 = vrot.slane %v763, 2
        %v1372 = vsel %vm993, %v1370, %v1371
        %v1373 = vrot.slane %v764, 2
        %v1374 = vsel %vm993, %v1371, %v1373
        %1375 = vrot.lane.b32.xlu0 %v1001, 15
        %v1376 = vpop.permute.xlu0 %1375
        %1377 = vrot.lane.b32.xlu0 %v1003, 15
        %v1378 = vpop.permute.xlu0 %1377
        %1379 = vrot.lane.b32.xlu0 %v1006, 15
        %v1380 = vpop.permute.xlu0 %1379
        %1381 = vrot.lane.b32.xlu0 %v1008, 15
        %v1382 = vpop.permute.xlu0 %1381
        %1383 = vrot.lane.b32.xlu0 %v1011, 15
        %v1384 = vpop.permute.xlu0 %1383
        %1385 = vrot.lane.b32.xlu0 %v1013, 15
        %v1386 = vpop.permute.xlu0 %1385
        %1387 = vrot.lane.b32.xlu0 %v1016, 15
        %v1388 = vpop.permute.xlu0 %1387
        %1389 = vrot.lane.b32.xlu0 %v1018, 15
        %v1390 = vpop.permute.xlu0 %1389
        %1391 = vrot.lane.b32.xlu0 %v1021, 15
        %v1392 = vpop.permute.xlu0 %1391
        %1393 = vrot.lane.b32.xlu0 %v1023, 15
        %v1394 = vpop.permute.xlu0 %1393
        %1395 = vrot.lane.b32.xlu0 %v1026, 15
        %v1396 = vpop.permute.xlu0 %1395
        %1397 = vrot.lane.b32.xlu0 %v1028, 15
        %v1398 = vpop.permute.xlu0 %1397
        %1399 = vrot.lane.b32.xlu0 %v1031, 15
        %v1400 = vpop.permute.xlu0 %1399
        %1401 = vrot.lane.b32.xlu0 %v1033, 15
        %v1402 = vpop.permute.xlu0 %1401
        %1403 = vrot.lane.b32.xlu0 %v1036, 15
        %v1404 = vpop.permute.xlu0 %1403
        %1405 = vrot.lane.b32.xlu0 %v1038, 15
        %v1406 = vpop.permute.xlu0 %1405
        %1407 = vrot.lane.b32.xlu0 %v1041, 15
        %v1408 = vpop.permute.xlu0 %1407
        %1409 = vrot.lane.b32.xlu0 %v1043, 15
        %v1410 = vpop.permute.xlu0 %1409
        %1411 = vrot.lane.b32.xlu0 %v1046, 15
        %v1412 = vpop.permute.xlu0 %1411
        %1413 = vrot.lane.b32.xlu0 %v1048, 15
        %v1414 = vpop.permute.xlu0 %1413
        %1415 = vrot.lane.b32.xlu0 %v1051, 15
        %v1416 = vpop.permute.xlu0 %1415
        %1417 = vrot.lane.b32.xlu0 %v1053, 15
        %v1418 = vpop.permute.xlu0 %1417
        %1419 = vrot.lane.b32.xlu0 %v1056, 15
        %v1420 = vpop.permute.xlu0 %1419
        %1421 = vrot.lane.b32.xlu0 %v1058, 15
        %v1422 = vpop.permute.xlu0 %1421
        %1423 = vrot.lane.b32.xlu0 %v1061, 15
        %v1424 = vpop.permute.xlu0 %1423
        %1425 = vrot.lane.b32.xlu0 %v1063, 15
        %v1426 = vpop.permute.xlu0 %1425
        %1427 = vrot.lane.b32.xlu0 %v1066, 15
        %v1428 = vpop.permute.xlu0 %1427
        %1429 = vrot.lane.b32.xlu0 %v1068, 15
        %v1430 = vpop.permute.xlu0 %1429
        %1431 = vrot.lane.b32.xlu0 %v1071, 15
        %v1432 = vpop.permute.xlu0 %1431
        %1433 = vrot.lane.b32.xlu0 %v1073, 15
        %v1434 = vpop.permute.xlu0 %1433
        %1435 = vrot.lane.b32.xlu0 %v1372, 15
        %v1436 = vpop.permute.xlu0 %1435
        %1437 = vrot.lane.b32.xlu0 %v1374, 15
        %v1438 = vpop.permute.xlu0 %1437
        %1473 = vrot.lane.b32.xlu0 %v720, 18
        %v1474 = vpop.permute.xlu0 %1473
        %1475 = vrot.lane.b32.xlu0 %v721, 18
        %v1476 = vpop.permute.xlu0 %1475
        %1477 = vrot.lane.b32.xlu0 %v723, 18
        %v1478 = vpop.permute.xlu0 %1477
        %1479 = vrot.lane.b32.xlu0 %v724, 18
        %v1480 = vpop.permute.xlu0 %1479
        %1481 = vrot.lane.b32.xlu0 %v726, 18
        %v1482 = vpop.permute.xlu0 %1481
        %1483 = vrot.lane.b32.xlu0 %v727, 18
        %v1484 = vpop.permute.xlu0 %1483
        %1485 = vrot.lane.b32.xlu0 %v729, 18
        %v1486 = vpop.permute.xlu0 %1485
        %1487 = vrot.lane.b32.xlu0 %v730, 18
        %v1488 = vpop.permute.xlu0 %1487
        %1489 = vrot.lane.b32.xlu0 %v732, 18
        %v1490 = vpop.permute.xlu0 %1489
        %1491 = vrot.lane.b32.xlu0 %v733, 18
        %v1492 = vpop.permute.xlu0 %1491
        %1493 = vrot.lane.b32.xlu0 %v735, 18
        %v1494 = vpop.permute.xlu0 %1493
        %1495 = vrot.lane.b32.xlu0 %v736, 18
        %v1496 = vpop.permute.xlu0 %1495
        %1497 = vrot.lane.b32.xlu0 %v738, 18
        %v1498 = vpop.permute.xlu0 %1497
        %1499 = vrot.lane.b32.xlu0 %v739, 18
        %v1500 = vpop.permute.xlu0 %1499
        %1501 = vrot.lane.b32.xlu0 %v741, 18
        %v1502 = vpop.permute.xlu0 %1501
        %1503 = vrot.lane.b32.xlu0 %v742, 18
        %v1504 = vpop.permute.xlu0 %1503
        %1505 = vrot.lane.b32.xlu0 %v744, 18
        %v1506 = vpop.permute.xlu0 %1505
        %1507 = vrot.lane.b32.xlu0 %v745, 18
        %v1508 = vpop.permute.xlu0 %1507
        %1509 = vrot.lane.b32.xlu0 %v747, 18
        %v1510 = vpop.permute.xlu0 %1509
        %1511 = vrot.lane.b32.xlu0 %v748, 18
        %v1512 = vpop.permute.xlu0 %1511
        %1513 = vrot.lane.b32.xlu0 %v750, 18
        %v1514 = vpop.permute.xlu0 %1513
        %1515 = vrot.lane.b32.xlu0 %v751, 18
        %v1516 = vpop.permute.xlu0 %1515
        %1517 = vrot.lane.b32.xlu0 %v753, 18
        %v1518 = vpop.permute.xlu0 %1517
        %1519 = vrot.lane.b32.xlu0 %v754, 18
        %v1520 = vpop.permute.xlu0 %1519
        %1521 = vrot.lane.b32.xlu0 %v756, 18
        %v1522 = vpop.permute.xlu0 %1521
        %1523 = vrot.lane.b32.xlu0 %v757, 18
        %v1524 = vpop.permute.xlu0 %1523
        %1525 = vrot.lane.b32.xlu0 %v759, 18
        %v1526 = vpop.permute.xlu0 %1525
        %1527 = vrot.lane.b32.xlu0 %v760, 18
        %v1528 = vpop.permute.xlu0 %1527
        %1529 = vrot.lane.b32.xlu0 %v762, 18
        %v1530 = vpop.permute.xlu0 %1529
        %1531 = vrot.lane.b32.xlu0 %v763, 18
        %v1532 = vpop.permute.xlu0 %1531
        %1533 = vrot.lane.b32.xlu0 %v765, 18
        %v1534 = vpop.permute.xlu0 %1533
        %1535 = vrot.lane.b32.xlu0 %v766, 18
        %v1536 = vpop.permute.xlu0 %1535
        %v1570 = vrot.slane %v765, 1
        %v1571 = vrot.slane %v766, 1
        %v1572 = vsel %vm816, %v1570, %v1571
        %v1573 = vrot.slane %v767, 1
        %v1574 = vsel %vm816, %v1571, %v1573
        %1575 = vrot.lane.b32.xlu0 %v829, 21
        %v1576 = vpop.permute.xlu0 %1575
        %1577 = vrot.lane.b32.xlu0 %v831, 21
        %v1578 = vpop.permute.xlu0 %1577
        %1579 = vrot.lane.b32.xlu0 %v834, 21
        %v1580 = vpop.permute.xlu0 %1579
        %1581 = vrot.lane.b32.xlu0 %v836, 21
        %v1582 = vpop.permute.xlu0 %1581
        %1583 = vrot.lane.b32.xlu0 %v839, 21
        %v1584 = vpop.permute.xlu0 %1583
        %1585 = vrot.lane.b32.xlu0 %v841, 21
        %v1586 = vpop.permute.xlu0 %1585
        %1587 = vrot.lane.b32.xlu0 %v844, 21
        %v1588 = vpop.permute.xlu0 %1587
        %1589 = vrot.lane.b32.xlu0 %v846, 21
        %v1590 = vpop.permute.xlu0 %1589
        %1591 = vrot.lane.b32.xlu0 %v849, 21
        %v1592 = vpop.permute.xlu0 %1591
        %1593 = vrot.lane.b32.xlu0 %v851, 21
        %v1594 = vpop.permute.xlu0 %1593
        %1595 = vrot.lane.b32.xlu0 %v854, 21
        %v1596 = vpop.permute.xlu0 %1595
        %1597 = vrot.lane.b32.xlu0 %v856, 21
        %v1598 = vpop.permute.xlu0 %1597
        %1599 = vrot.lane.b32.xlu0 %v859, 21
        %v1600 = vpop.permute.xlu0 %1599
        %1601 = vrot.lane.b32.xlu0 %v861, 21
        %v1602 = vpop.permute.xlu0 %1601
        %1603 = vrot.lane.b32.xlu0 %v864, 21
        %v1604 = vpop.permute.xlu0 %1603
        %1605 = vrot.lane.b32.xlu0 %v866, 21
        %v1606 = vpop.permute.xlu0 %1605
        %1607 = vrot.lane.b32.xlu0 %v869, 21
        %v1608 = vpop.permute.xlu0 %1607
        %1609 = vrot.lane.b32.xlu0 %v871, 21
        %v1610 = vpop.permute.xlu0 %1609
        %1611 = vrot.lane.b32.xlu0 %v874, 21
        %v1612 = vpop.permute.xlu0 %1611
        %1613 = vrot.lane.b32.xlu0 %v876, 21
        %v1614 = vpop.permute.xlu0 %1613
        %1615 = vrot.lane.b32.xlu0 %v879, 21
        %v1616 = vpop.permute.xlu0 %1615
        %1617 = vrot.lane.b32.xlu0 %v881, 21
        %v1618 = vpop.permute.xlu0 %1617
        %1619 = vrot.lane.b32.xlu0 %v884, 21
        %v1620 = vpop.permute.xlu0 %1619
        %1621 = vrot.lane.b32.xlu0 %v886, 21
        %v1622 = vpop.permute.xlu0 %1621
        %1623 = vrot.lane.b32.xlu0 %v889, 21
        %v1624 = vpop.permute.xlu0 %1623
        %1625 = vrot.lane.b32.xlu0 %v891, 21
        %v1626 = vpop.permute.xlu0 %1625
        %1627 = vrot.lane.b32.xlu0 %v894, 21
        %v1628 = vpop.permute.xlu0 %1627
        %1629 = vrot.lane.b32.xlu0 %v896, 21
        %v1630 = vpop.permute.xlu0 %1629
        %1631 = vrot.lane.b32.xlu0 %v1271, 21
        %v1632 = vpop.permute.xlu0 %1631
        %1633 = vrot.lane.b32.xlu0 %v1273, 21
        %v1634 = vpop.permute.xlu0 %1633
        %1635 = vrot.lane.b32.xlu0 %v1572, 21
        %v1636 = vpop.permute.xlu0 %1635
        %1637 = vrot.lane.b32.xlu0 %v1574, 21
        %v1638 = vpop.permute.xlu0 %1637
        %v1671 = vrot.slane %v765, 2
        %v1672 = vrot.slane %v766, 2
        %v1673 = vsel %vm993, %v1671, %v1672
        %v1674 = vrot.slane %v767, 2
        %v1675 = vsel %vm993, %v1672, %v1674
        %1676 = vrot.lane.b32.xlu0 %v1006, 24
        %v1677 = vpop.permute.xlu0 %1676
        %1678 = vrot.lane.b32.xlu0 %v1008, 24
        %v1679 = vpop.permute.xlu0 %1678
        %1680 = vrot.lane.b32.xlu0 %v1011, 24
        %v1681 = vpop.permute.xlu0 %1680
        %1682 = vrot.lane.b32.xlu0 %v1013, 24
        %v1683 = vpop.permute.xlu0 %1682
        %1684 = vrot.lane.b32.xlu0 %v1016, 24
        %v1685 = vpop.permute.xlu0 %1684
        %1686 = vrot.lane.b32.xlu0 %v1018, 24
        %v1687 = vpop.permute.xlu0 %1686
        %1688 = vrot.lane.b32.xlu0 %v1021, 24
        %v1689 = vpop.permute.xlu0 %1688
        %1690 = vrot.lane.b32.xlu0 %v1023, 24
        %v1691 = vpop.permute.xlu0 %1690
        %1692 = vrot.lane.b32.xlu0 %v1026, 24
        %v1693 = vpop.permute.xlu0 %1692
        %1694 = vrot.lane.b32.xlu0 %v1028, 24
        %v1695 = vpop.permute.xlu0 %1694
        %1696 = vrot.lane.b32.xlu0 %v1031, 24
        %v1697 = vpop.permute.xlu0 %1696
        %1698 = vrot.lane.b32.xlu0 %v1033, 24
        %v1699 = vpop.permute.xlu0 %1698
        %1700 = vrot.lane.b32.xlu0 %v1036, 24
        %v1701 = vpop.permute.xlu0 %1700
        %1702 = vrot.lane.b32.xlu0 %v1038, 24
        %v1703 = vpop.permute.xlu0 %1702
        %1704 = vrot.lane.b32.xlu0 %v1041, 24
        %v1705 = vpop.permute.xlu0 %1704
        %1706 = vrot.lane.b32.xlu0 %v1043, 24
        %v1707 = vpop.permute.xlu0 %1706
        %1708 = vrot.lane.b32.xlu0 %v1046, 24
        %v1709 = vpop.permute.xlu0 %1708
        %1710 = vrot.lane.b32.xlu0 %v1048, 24
        %v1711 = vpop.permute.xlu0 %1710
        %1712 = vrot.lane.b32.xlu0 %v1051, 24
        %v1713 = vpop.permute.xlu0 %1712
        %1714 = vrot.lane.b32.xlu0 %v1053, 24
        %v1715 = vpop.permute.xlu0 %1714
        %1716 = vrot.lane.b32.xlu0 %v1056, 24
        %v1717 = vpop.permute.xlu0 %1716
        %1718 = vrot.lane.b32.xlu0 %v1058, 24
        %v1719 = vpop.permute.xlu0 %1718
        %1720 = vrot.lane.b32.xlu0 %v1061, 24
        %v1721 = vpop.permute.xlu0 %1720
        %1722 = vrot.lane.b32.xlu0 %v1063, 24
        %v1723 = vpop.permute.xlu0 %1722
        %1724 = vrot.lane.b32.xlu0 %v1066, 24
        %v1725 = vpop.permute.xlu0 %1724
        %1726 = vrot.lane.b32.xlu0 %v1068, 24
        %v1727 = vpop.permute.xlu0 %1726
        %1728 = vrot.lane.b32.xlu0 %v1071, 24
        %v1729 = vpop.permute.xlu0 %1728
        %1730 = vrot.lane.b32.xlu0 %v1073, 24
        %v1731 = vpop.permute.xlu0 %1730
        %1732 = vrot.lane.b32.xlu0 %v1372, 24
        %v1733 = vpop.permute.xlu0 %1732
        %1734 = vrot.lane.b32.xlu0 %v1374, 24
        %v1735 = vpop.permute.xlu0 %1734
        %1736 = vrot.lane.b32.xlu0 %v1673, 24
        %v1737 = vpop.permute.xlu0 %1736
        %1738 = vrot.lane.b32.xlu0 %v1675, 24
        %v1739 = vpop.permute.xlu0 %1738
        %v1772 = vsel %vm635, %v714, %v898
        %v1773 = vsel %vm635, %v715, %v900
        %v1774 = vsel %vm635, %v717, %v902
        %v1775 = vsel %vm635, %v718, %v904
        %v1776 = vsel %vm635, %v720, %v906
        %v1777 = vsel %vm635, %v721, %v908
        %v1778 = vsel %vm635, %v723, %v910
        %v1779 = vsel %vm635, %v724, %v912
        %v1780 = vsel %vm635, %v726, %v914
        %v1781 = vsel %vm635, %v727, %v916
        %v1782 = vsel %vm635, %v729, %v918
        %v1783 = vsel %vm635, %v730, %v920
        %v1784 = vsel %vm635, %v732, %v922
        %v1785 = vsel %vm635, %v733, %v924
        %v1786 = vsel %vm635, %v735, %v926
        %v1787 = vsel %vm635, %v736, %v928
        %v1788 = vsel %vm635, %v738, %v930
        %v1789 = vsel %vm635, %v739, %v932
        %v1790 = vsel %vm635, %v741, %v934
        %v1791 = vsel %vm635, %v742, %v936
        %v1792 = vsel %vm635, %v744, %v938
        %v1793 = vsel %vm635, %v745, %v940
        %v1794 = vsel %vm635, %v747, %v942
        %v1795 = vsel %vm635, %v748, %v944
        %v1796 = vsel %vm635, %v750, %v946
        %v1797 = vsel %vm635, %v751, %v948
        %v1798 = vsel %vm635, %v753, %v950
        %v1799 = vsel %vm635, %v754, %v952
        %v1800 = vsel %vm635, %v756, %v954
        %v1801 = vsel %vm635, %v757, %v956
        %v1802 = vsel %vm635, %v759, %v958
        %v1803 = vsel %vm635, %v760, %v960
        %vm1804 = vcmask 48128
        %v1805 = vsel %vm1804, %v1772, %v1075
        %v1806 = vsel %vm1804, %v1773, %v1077
        %v1807 = vsel %vm1804, %v1774, %v1079
        %v1808 = vsel %vm1804, %v1775, %v1081
        %v1809 = vsel %vm1804, %v1776, %v1083
        %v1810 = vsel %vm1804, %v1777, %v1085
        %v1811 = vsel %vm1804, %v1778, %v1087
        %v1812 = vsel %vm1804, %v1779, %v1089
        %v1813 = vsel %vm1804, %v1780, %v1091
        %v1814 = vsel %vm1804, %v1781, %v1093
        %v1815 = vsel %vm1804, %v1782, %v1095
        %v1816 = vsel %vm1804, %v1783, %v1097
        %v1817 = vsel %vm1804, %v1784, %v1099
        %v1818 = vsel %vm1804, %v1785, %v1101
        %v1819 = vsel %vm1804, %v1786, %v1103
        %v1820 = vsel %vm1804, %v1787, %v1105
        %v1821 = vsel %vm1804, %v1788, %v1107
        %v1822 = vsel %vm1804, %v1789, %v1109
        %v1823 = vsel %vm1804, %v1790, %v1111
        %v1824 = vsel %vm1804, %v1791, %v1113
        %v1825 = vsel %vm1804, %v1792, %v1115
        %v1826 = vsel %vm1804, %v1793, %v1117
        %v1827 = vsel %vm1804, %v1794, %v1119
        %v1828 = vsel %vm1804, %v1795, %v1121
        %v1829 = vsel %vm1804, %v1796, %v1123
        %v1830 = vsel %vm1804, %v1797, %v1125
        %v1831 = vsel %vm1804, %v1798, %v1127
        %v1832 = vsel %vm1804, %v1799, %v1129
        %v1833 = vsel %vm1804, %v1800, %v1131
        %v1834 = vsel %vm1804, %v1801, %v1133
        %v1835 = vsel %vm1804, %v1802, %v1135
        %v1836 = vsel %vm1804, %v1803, %v1137
        %vm1837 = vcmask 72704
        %v1838 = vsel %vm1837, %v1805, %v1173
        %v1839 = vsel %vm1837, %v1806, %v1175
        %v1840 = vsel %vm1837, %v1807, %v1177
        %v1841 = vsel %vm1837, %v1808, %v1179
        %v1842 = vsel %vm1837, %v1809, %v1181
        %v1843 = vsel %vm1837, %v1810, %v1183
        %v1844 = vsel %vm1837, %v1811, %v1185
        %v1845 = vsel %vm1837, %v1812, %v1187
        %v1846 = vsel %vm1837, %v1813, %v1189
        %v1847 = vsel %vm1837, %v1814, %v1191
        %v1848 = vsel %vm1837, %v1815, %v1193
        %v1849 = vsel %vm1837, %v1816, %v1195
        %v1850 = vsel %vm1837, %v1817, %v1197
        %v1851 = vsel %vm1837, %v1818, %v1199
        %v1852 = vsel %vm1837, %v1819, %v1201
        %v1853 = vsel %vm1837, %v1820, %v1203
        %v1854 = vsel %vm1837, %v1821, %v1205
        %v1855 = vsel %vm1837, %v1822, %v1207
        %v1856 = vsel %vm1837, %v1823, %v1209
        %v1857 = vsel %vm1837, %v1824, %v1211
        %v1858 = vsel %vm1837, %v1825, %v1213
        %v1859 = vsel %vm1837, %v1826, %v1215
        %v1860 = vsel %vm1837, %v1827, %v1217
        %v1861 = vsel %vm1837, %v1828, %v1219
        %v1862 = vsel %vm1837, %v1829, %v1221
        %v1863 = vsel %vm1837, %v1830, %v1223
        %v1864 = vsel %vm1837, %v1831, %v1225
        %v1865 = vsel %vm1837, %v1832, %v1227
        %v1866 = vsel %vm1837, %v1833, %v1229
        %v1867 = vsel %vm1837, %v1834, %v1231
        %v1868 = vsel %vm1837, %v1835, %v1233
        %v1869 = vsel %vm1837, %v1836, %v1235
        %vm1870 = vcmask 97280
        %v1871 = vsel %vm1870, %v1838, %v1275
        %v1872 = vsel %vm1870, %v1839, %v1277
        %v1873 = vsel %vm1870, %v1840, %v1279
        %v1874 = vsel %vm1870, %v1841, %v1281
        %v1875 = vsel %vm1870, %v1842, %v1283
        %v1876 = vsel %vm1870, %v1843, %v1285
        %v1877 = vsel %vm1870, %v1844, %v1287
        %v1878 = vsel %vm1870, %v1845, %v1289
        %v1879 = vsel %vm1870, %v1846, %v1291
        %v1880 = vsel %vm1870, %v1847, %v1293
        %v1881 = vsel %vm1870, %v1848, %v1295
        %v1882 = vsel %vm1870, %v1849, %v1297
        %v1883 = vsel %vm1870, %v1850, %v1299
        %v1884 = vsel %vm1870, %v1851, %v1301
        %v1885 = vsel %vm1870, %v1852, %v1303
        %v1886 = vsel %vm1870, %v1853, %v1305
        %v1887 = vsel %vm1870, %v1854, %v1307
        %v1888 = vsel %vm1870, %v1855, %v1309
        %v1889 = vsel %vm1870, %v1856, %v1311
        %v1890 = vsel %vm1870, %v1857, %v1313
        %v1891 = vsel %vm1870, %v1858, %v1315
        %v1892 = vsel %vm1870, %v1859, %v1317
        %v1893 = vsel %vm1870, %v1860, %v1319
        %v1894 = vsel %vm1870, %v1861, %v1321
        %v1895 = vsel %vm1870, %v1862, %v1323
        %v1896 = vsel %vm1870, %v1863, %v1325
        %v1897 = vsel %vm1870, %v1864, %v1327
        %v1898 = vsel %vm1870, %v1865, %v1329
        %v1899 = vsel %vm1870, %v1866, %v1331
        %v1900 = vsel %vm1870, %v1867, %v1333
        %v1901 = vsel %vm1870, %v1868, %v1335
        %v1902 = vsel %vm1870, %v1869, %v1337
        %vm1903 = vcmask 121856
        %v1904 = vsel %vm1903, %v1871, %v1376
        %v1905 = vsel %vm1903, %v1872, %v1378
        %v1906 = vsel %vm1903, %v1873, %v1380
        %v1907 = vsel %vm1903, %v1874, %v1382
        %v1908 = vsel %vm1903, %v1875, %v1384
        %v1909 = vsel %vm1903, %v1876, %v1386
        %v1910 = vsel %vm1903, %v1877, %v1388
        %v1911 = vsel %vm1903, %v1878, %v1390
        %v1912 = vsel %vm1903, %v1879, %v1392
        %v1913 = vsel %vm1903, %v1880, %v1394
        %v1914 = vsel %vm1903, %v1881, %v1396
        %v1915 = vsel %vm1903, %v1882, %v1398
        %v1916 = vsel %vm1903, %v1883, %v1400
        %v1917 = vsel %vm1903, %v1884, %v1402
        %v1918 = vsel %vm1903, %v1885, %v1404
        %v1919 = vsel %vm1903, %v1886, %v1406
        %v1920 = vsel %vm1903, %v1887, %v1408
        %v1921 = vsel %vm1903, %v1888, %v1410
        %v1922 = vsel %vm1903, %v1889, %v1412
        %v1923 = vsel %vm1903, %v1890, %v1414
        %v1924 = vsel %vm1903, %v1891, %v1416
        %v1925 = vsel %vm1903, %v1892, %v1418
        %v1926 = vsel %vm1903, %v1893, %v1420
        %v1927 = vsel %vm1903, %v1894, %v1422
        %v1928 = vsel %vm1903, %v1895, %v1424
        %v1929 = vsel %vm1903, %v1896, %v1426
        %v1930 = vsel %vm1903, %v1897, %v1428
        %v1931 = vsel %vm1903, %v1898, %v1430
        %v1932 = vsel %vm1903, %v1899, %v1432
        %v1933 = vsel %vm1903, %v1900, %v1434
        %v1934 = vsel %vm1903, %v1901, %v1436
        %v1935 = vsel %vm1903, %v1902, %v1438
        %vm1936 = vcmask 146432
        %v1937 = vsel %vm1936, %v1904, %v1474
        %v1938 = vsel %vm1936, %v1905, %v1476
        %v1939 = vsel %vm1936, %v1906, %v1478
        %v1940 = vsel %vm1936, %v1907, %v1480
        %v1941 = vsel %vm1936, %v1908, %v1482
        %v1942 = vsel %vm1936, %v1909, %v1484
        %v1943 = vsel %vm1936, %v1910, %v1486
        %v1944 = vsel %vm1936, %v1911, %v1488
        %v1945 = vsel %vm1936, %v1912, %v1490
        %v1946 = vsel %vm1936, %v1913, %v1492
        %v1947 = vsel %vm1936, %v1914, %v1494
        %v1948 = vsel %vm1936, %v1915, %v1496
        %v1949 = vsel %vm1936, %v1916, %v1498
        %v1950 = vsel %vm1936, %v1917, %v1500
        %v1951 = vsel %vm1936, %v1918, %v1502
        %v1952 = vsel %vm1936, %v1919, %v1504
        %v1953 = vsel %vm1936, %v1920, %v1506
        %v1954 = vsel %vm1936, %v1921, %v1508
        %v1955 = vsel %vm1936, %v1922, %v1510
        %v1956 = vsel %vm1936, %v1923, %v1512
        %v1957 = vsel %vm1936, %v1924, %v1514
        %v1958 = vsel %vm1936, %v1925, %v1516
        %v1959 = vsel %vm1936, %v1926, %v1518
        %v1960 = vsel %vm1936, %v1927, %v1520
        %v1961 = vsel %vm1936, %v1928, %v1522
        %v1962 = vsel %vm1936, %v1929, %v1524
        %v1963 = vsel %vm1936, %v1930, %v1526
        %v1964 = vsel %vm1936, %v1931, %v1528
        %v1965 = vsel %vm1936, %v1932, %v1530
        %v1966 = vsel %vm1936, %v1933, %v1532
        %v1967 = vsel %vm1936, %v1934, %v1534
        %v1968 = vsel %vm1936, %v1935, %v1536
        %vm1969 = vcmask 171008
        %v1970 = vsel %vm1969, %v1937, %v1576
        %v1971 = vsel %vm1969, %v1938, %v1578
        %v1972 = vsel %vm1969, %v1939, %v1580
        %v1973 = vsel %vm1969, %v1940, %v1582
        %v1974 = vsel %vm1969, %v1941, %v1584
        %v1975 = vsel %vm1969, %v1942, %v1586
        %v1976 = vsel %vm1969, %v1943, %v1588
        %v1977 = vsel %vm1969, %v1944, %v1590
        %v1978 = vsel %vm1969, %v1945, %v1592
        %v1979 = vsel %vm1969, %v1946, %v1594
        %v1980 = vsel %vm1969, %v1947, %v1596
        %v1981 = vsel %vm1969, %v1948, %v1598
        %v1982 = vsel %vm1969, %v1949, %v1600
        %v1983 = vsel %vm1969, %v1950, %v1602
        %v1984 = vsel %vm1969, %v1951, %v1604
        %v1985 = vsel %vm1969, %v1952, %v1606
        %v1986 = vsel %vm1969, %v1953, %v1608
        %v1987 = vsel %vm1969, %v1954, %v1610
        %v1988 = vsel %vm1969, %v1955, %v1612
        %v1989 = vsel %vm1969, %v1956, %v1614
        %v1990 = vsel %vm1969, %v1957, %v1616
        %v1991 = vsel %vm1969, %v1958, %v1618
        %v1992 = vsel %vm1969, %v1959, %v1620
        %v1993 = vsel %vm1969, %v1960, %v1622
        %v1994 = vsel %vm1969, %v1961, %v1624
        %v1995 = vsel %vm1969, %v1962, %v1626
        %v1996 = vsel %vm1969, %v1963, %v1628
        %v1997 = vsel %vm1969, %v1964, %v1630
        %v1998 = vsel %vm1969, %v1965, %v1632
        %v1999 = vsel %vm1969, %v1966, %v1634
        %v2000 = vsel %vm1969, %v1967, %v1636
        %v2001 = vsel %vm1969, %v1968, %v1638
        %vm2002 = vcmask 195584
        %v2003 = vsel %vm2002, %v1970, %v1677
        %v2004 = vsel %vm2002, %v1971, %v1679
        %v2005 = vsel %vm2002, %v1972, %v1681
        %v2006 = vsel %vm2002, %v1973, %v1683
        %v2007 = vsel %vm2002, %v1974, %v1685
        %v2008 = vsel %vm2002, %v1975, %v1687
        %v2009 = vsel %vm2002, %v1976, %v1689
        %v2010 = vsel %vm2002, %v1977, %v1691
        %v2011 = vsel %vm2002, %v1978, %v1693
        %v2012 = vsel %vm2002, %v1979, %v1695
        %v2013 = vsel %vm2002, %v1980, %v1697
        %v2014 = vsel %vm2002, %v1981, %v1699
        %v2015 = vsel %vm2002, %v1982, %v1701
        %v2016 = vsel %vm2002, %v1983, %v1703
        %v2017 = vsel %vm2002, %v1984, %v1705
        %v2018 = vsel %vm2002, %v1985, %v1707
        %v2019 = vsel %vm2002, %v1986, %v1709
        %v2020 = vsel %vm2002, %v1987, %v1711
        %v2021 = vsel %vm2002, %v1988, %v1713
        %v2022 = vsel %vm2002, %v1989, %v1715
        %v2023 = vsel %vm2002, %v1990, %v1717
        %v2024 = vsel %vm2002, %v1991, %v1719
        %v2025 = vsel %vm2002, %v1992, %v1721
        %v2026 = vsel %vm2002, %v1993, %v1723
        %v2027 = vsel %vm2002, %v1994, %v1725
        %v2028 = vsel %vm2002, %v1995, %v1727
        %v2029 = vsel %vm2002, %v1996, %v1729
        %v2030 = vsel %vm2002, %v1997, %v1731
        %v2031 = vsel %vm2002, %v1998, %v1733
        %v2032 = vsel %vm2002, %v1999, %v1735
        %v2033 = vsel %vm2002, %v2000, %v1737
        %v2034 = vsel %vm2002, %v2001, %v1739
        %v2035 = vpack.c.bf16 %v2004, %v2003
        %v2036 = vpack.c.bf16 %v2006, %v2005
        %v2037 = vpack.c.bf16 %v2008, %v2007
        %v2038 = vpack.c.bf16 %v2010, %v2009
        %v2039 = vpack.c.bf16 %v2012, %v2011
        %v2040 = vpack.c.bf16 %v2014, %v2013
        %v2041 = vpack.c.bf16 %v2016, %v2015
        %v2042 = vpack.c.bf16 %v2018, %v2017
        %v2043 = vpack.c.bf16 %v2020, %v2019
        %v2044 = vpack.c.bf16 %v2022, %v2021
        %v2045 = vpack.c.bf16 %v2024, %v2023
        %v2046 = vpack.c.bf16 %v2026, %v2025
        %v2047 = vpack.c.bf16 %v2028, %v2027
        %v2048 = vpack.c.bf16 %v2030, %v2029
        %v2049 = vpack.c.bf16 %v2032, %v2031
        %v2050 = vpack.c.bf16 %v2034, %v2033
        %v2051 = vld [vmem:[#allocation8] sm:$0xf]
        %v2052 = vld [vmem:[#allocation8 + $0x4] sm:$0xf]
        %v2053 = vld [vmem:[#allocation8 + $0x8] sm:$0xf]
        %v2054 = vld [vmem:[#allocation8 + $0xc] sm:$0x3]
        %v2059 = vunpack.c.l.b16 %v2051
        %v2060 = vunpack.c.l.b16 %v2052
        %v2061 = vunpack.c.l.b16 %v2053
        %v2062 = vunpack.c.l.b16 %v2054
        %v2063 = vpack.c.b16 %v2060, %v2059
        %v2064 = vpack.c.b16 %v2062, %v2061
        %vm2066 = vcmask 220160
        %v2068 = vsel %vm2066, %v2035, 0
        %v2071 = vsel %vm2066, %v2036, 0
        %v2074 = vsel %vm2066, %v2037, 0
        %v2077 = vsel %vm2066, %v2038, 0
        %v2080 = vsel %vm2066, %v2039, 0
        %v2083 = vsel %vm2066, %v2040, 0
        %v2086 = vsel %vm2066, %v2041, 0
        %v2089 = vsel %vm2066, %v2042, 0
        %v2092 = vsel %vm2066, %v2043, 0
        %v2095 = vsel %vm2066, %v2044, 0
        %v2098 = vsel %vm2066, %v2045, 0
        %v2101 = vsel %vm2066, %v2046, 0
        %v2104 = vsel %vm2066, %v2047, 0
        %v2107 = vsel %vm2066, %v2048, 0
        %v2110 = vsel %vm2066, %v2049, 0
        %v2113 = vsel %vm2066, %v2050, 0
        %vm2115 = vcmask 1044480
        %v2116 = vsel %vm2115, 4294967295, 65535
        %v2117 = vsel %vm993, %v2116, 0
        %v2119 = vand.u32 %v2064, %v2117
        %2121 = vmatprep.subr.bf16.mxu0 0
        %2122 = vmatpush1.bf16.msra.mxu0 0
        %2123 = vmatprep.subr.bf16.mxu0 0
        %2124 = vmatpush1.bf16.msra.mxu0 0
        %2125 = vmatprep.subr.bf16.mxu0 0
        %2126 = vmatpush1.bf16.msra.mxu0 0
        %2127 = vmatprep.subr.bf16.mxu0 0
        %2128 = vmatpush1.bf16.msra.mxu0 0
        %2129 = vmatprep.subr.bf16.mxu0 0
        %2130 = vmatpush1.bf16.msra.mxu0 0
        %2131 = vmatprep.subr.bf16.mxu0 0
        %2132 = vmatpush1.bf16.msra.mxu0 0
        %2133 = vmatprep.subr.bf16.mxu0 0
        %2134 = vmatpush1.bf16.msra.mxu0 %v2119
        %2135 = vmatprep.subr.bf16.mxu0 0
        %2136 = vmatpush1.bf16.msra.mxu0 %v2063
        %2137 = vmatprep.subr.bf16.mxu0 0
        %2138 = vmatpush2.bf16.msra.mxu0 0
        %2139 = vmatprep.subr.bf16.mxu0 0
        %2140 = vmatpush2.bf16.msra.mxu0 0
        %2141 = vmatprep.subr.bf16.mxu0 0
        %2142 = vmatpush2.bf16.msra.mxu0 0
        %2143 = vmatprep.subr.bf16.mxu0 0
        %2144 = vmatpush2.bf16.msra.mxu0 0
        %2145 = vmatprep.subr.bf16.mxu0 0
        %2146 = vmatpush2.bf16.msra.mxu0 0
        %2147 = vmatprep.subr.bf16.mxu0 0
        %2148 = vmatpush2.bf16.msra.mxu0 0
        %2149 = vmatprep.subr.bf16.mxu0 0
        %2150 = vmatpush2.bf16.msra.mxu0 0
        %2151 = vmatprep.subr.bf16.mxu0 0
        %2152 = vmatpush2.bf16.msra.mxu0 0
        %2153 = vmatprep.mubr.bf16.mxu0 0
        %2154 = vmatmul.mubr.bf16.gmra.mxu0 %v2068
        %v2155 = vpop.f32.mrf.mxu0
        %v2156 = vadd.f32 0.0, %v2155
        %v2157 = vpop.f32.mrf.mxu0
        %v2158 = vpop.f32.mrf.mxu0
        %v2159 = vadd.f32 0.0, %v2158
        %v2160 = vpop.f32.mrf.mxu0
        %2161 = vmatprep.mubr.bf16.mxu0 0
        %2162 = vmatmul.mubr.bf16.gmra.mxu0 %v2071
        %v2163 = vpop.f32.mrf.mxu0
        %v2164 = vadd.f32 0.0, %v2163
        %v2165 = vpop.f32.mrf.mxu0
        %v2166 = vpop.f32.mrf.mxu0
        %v2167 = vadd.f32 0.0, %v2166
        %v2168 = vpop.f32.mrf.mxu0
        %2169 = vmatprep.mubr.bf16.mxu0 0
        %2170 = vmatmul.mubr.bf16.gmra.mxu0 %v2074
        %v2171 = vpop.f32.mrf.mxu0
        %v2172 = vadd.f32 0.0, %v2171
        %v2173 = vpop.f32.mrf.mxu0
        %v2174 = vpop.f32.mrf.mxu0
        %v2175 = vadd.f32 0.0, %v2174
        %v2176 = vpop.f32.mrf.mxu0
        %2177 = vmatprep.mubr.bf16.mxu0 0
        %2178 = vmatmul.mubr.bf16.gmra.mxu0 %v2077
        %v2179 = vpop.f32.mrf.mxu0
        %v2180 = vadd.f32 0.0, %v2179
        %v2181 = vpop.f32.mrf.mxu0
        %v2182 = vpop.f32.mrf.mxu0
        %v2183 = vadd.f32 0.0, %v2182
        %v2184 = vpop.f32.mrf.mxu0
        %2185 = vmatprep.mubr.bf16.mxu0 0
        %2186 = vmatmul.mubr.bf16.gmra.mxu0 %v2080
        %v2187 = vpop.f32.mrf.mxu0
        %v2188 = vadd.f32 0.0, %v2187
        %v2189 = vpop.f32.mrf.mxu0
        %v2190 = vpop.f32.mrf.mxu0
        %v2191 = vadd.f32 0.0, %v2190
        %v2192 = vpop.f32.mrf.mxu0
        %2193 = vmatprep.mubr.bf16.mxu0 0
        %2194 = vmatmul.mubr.bf16.gmra.mxu0 %v2083
        %v2195 = vpop.f32.mrf.mxu0
        %v2196 = vadd.f32 0.0, %v2195
        %v2197 = vpop.f32.mrf.mxu0
        %v2198 = vpop.f32.mrf.mxu0
        %v2199 = vadd.f32 0.0, %v2198
        %v2200 = vpop.f32.mrf.mxu0
        %2201 = vmatprep.mubr.bf16.mxu0 0
        %2202 = vmatmul.mubr.bf16.gmra.mxu0 %v2086
        %v2203 = vpop.f32.mrf.mxu0
        %v2204 = vadd.f32 0.0, %v2203
        %v2205 = vpop.f32.mrf.mxu0
        %v2206 = vpop.f32.mrf.mxu0
        %v2207 = vadd.f32 0.0, %v2206
        %v2208 = vpop.f32.mrf.mxu0
        %2209 = vmatprep.mubr.bf16.mxu0 0
        %2210 = vmatmul.mubr.bf16.gmra.mxu0 %v2089
        %v2211 = vpop.f32.mrf.mxu0
        %v2212 = vadd.f32 0.0, %v2211
        %v2213 = vpop.f32.mrf.mxu0
        %v2214 = vpop.f32.mrf.mxu0
        %v2215 = vadd.f32 0.0, %v2214
        %v2216 = vpop.f32.mrf.mxu0
        %2217 = vmatprep.mubr.bf16.mxu0 0
        %2218 = vmatmul.mubr.bf16.gmra.mxu0 %v2092
        %v2219 = vpop.f32.mrf.mxu0
        %v2220 = vadd.f32 0.0, %v2219
        %v2221 = vpop.f32.mrf.mxu0
        %v2222 = vpop.f32.mrf.mxu0
        %v2223 = vadd.f32 0.0, %v2222
        %v2224 = vpop.f32.mrf.mxu0
        %2225 = vmatprep.mubr.bf16.mxu0 0
        %2226 = vmatmul.mubr.bf16.gmra.mxu0 %v2095
        %v2227 = vpop.f32.mrf.mxu0
        %v2228 = vadd.f32 0.0, %v2227
        %v2229 = vpop.f32.mrf.mxu0
        %v2230 = vpop.f32.mrf.mxu0
        %v2231 = vadd.f32 0.0, %v2230
        %v2232 = vpop.f32.mrf.mxu0
        %2233 = vmatprep.mubr.bf16.mxu0 0
        %2234 = vmatmul.mubr.bf16.gmra.mxu0 %v2098
        %v2235 = vpop.f32.mrf.mxu0
        %v2236 = vadd.f32 0.0, %v2235
        %v2237 = vpop.f32.mrf.mxu0
        %v2238 = vpop.f32.mrf.mxu0
        %v2239 = vadd.f32 0.0, %v2238
        %v2240 = vpop.f32.mrf.mxu0
        %2241 = vmatprep.mubr.bf16.mxu0 0
        %2242 = vmatmul.mubr.bf16.gmra.mxu0 %v2101
        %v2243 = vpop.f32.mrf.mxu0
        %v2244 = vadd.f32 0.0, %v2243
        %v2245 = vpop.f32.mrf.mxu0
        %v2246 = vpop.f32.mrf.mxu0
        %v2247 = vadd.f32 0.0, %v2246
        %v2248 = vpop.f32.mrf.mxu0
        %2249 = vmatprep.mubr.bf16.mxu0 0
        %2250 = vmatmul.mubr.bf16.gmra.mxu0 %v2104
        %v2251 = vpop.f32.mrf.mxu0
        %v2252 = vadd.f32 0.0, %v2251
        %v2253 = vpop.f32.mrf.mxu0
        %v2254 = vpop.f32.mrf.mxu0
        %v2255 = vadd.f32 0.0, %v2254
        %v2256 = vpop.f32.mrf.mxu0
        %2257 = vmatprep.mubr.bf16.mxu0 0
        %2258 = vmatmul.mubr.bf16.gmra.mxu0 %v2107
        %v2259 = vpop.f32.mrf.mxu0
        %v2260 = vadd.f32 0.0, %v2259
        %v2261 = vpop.f32.mrf.mxu0
        %v2262 = vpop.f32.mrf.mxu0
        %v2263 = vadd.f32 0.0, %v2262
        %v2264 = vpop.f32.mrf.mxu0
        %2265 = vmatprep.mubr.bf16.mxu0 0
        %2266 = vmatmul.mubr.bf16.gmra.mxu0 %v2110
        %v2267 = vpop.f32.mrf.mxu0
        %v2268 = vadd.f32 0.0, %v2267
        %v2269 = vpop.f32.mrf.mxu0
        %v2270 = vpop.f32.mrf.mxu0
        %v2271 = vadd.f32 0.0, %v2270
        %v2272 = vpop.f32.mrf.mxu0
        %2273 = vmatprep.mubr.bf16.mxu0 0
        %2274 = vmatmul.mubr.bf16.gmra.mxu0 %v2113
        %v2275 = vpop.f32.mrf.mxu0
        %v2276 = vadd.f32 0.0, %v2275
        %v2277 = vpop.f32.mrf.mxu0
        %v2278 = vpop.f32.mrf.mxu0
        %v2279 = vadd.f32 0.0, %v2278
        %v2280 = vpop.f32.mrf.mxu0
        %2281 = vdwg.mxu0
        %v2282 = vmin.f32 %v2156, 0.0
        %v2283 = vmin.f32 %v2159, 0.0
        %v2284 = vmin.f32 %v2164, 0.0
        %v2285 = vmin.f32 %v2167, 0.0
        %v2286 = vmin.f32 %v2172, 0.0
        %v2287 = vmin.f32 %v2175, 0.0
        %v2288 = vmin.f32 %v2180, 0.0
        %v2289 = vmin.f32 %v2183, 0.0
        %v2290 = vmin.f32 %v2188, 0.0
        %v2291 = vmin.f32 %v2191, 0.0
        %v2292 = vmin.f32 %v2196, 0.0
        %v2293 = vmin.f32 %v2199, 0.0
        %v2294 = vmin.f32 %v2204, 0.0
        %v2295 = vmin.f32 %v2207, 0.0
        %v2296 = vmin.f32 %v2212, 0.0
        %v2297 = vmin.f32 %v2215, 0.0
        %v2298 = vmin.f32 %v2220, 0.0
        %v2299 = vmin.f32 %v2223, 0.0
        %v2300 = vmin.f32 %v2228, 0.0
        %v2301 = vmin.f32 %v2231, 0.0
        %v2302 = vmin.f32 %v2236, 0.0
        %v2303 = vmin.f32 %v2239, 0.0
        %v2304 = vmin.f32 %v2244, 0.0
        %v2305 = vmin.f32 %v2247, 0.0
        %v2306 = vmin.f32 %v2252, 0.0
        %v2307 = vmin.f32 %v2255, 0.0
        %v2308 = vmin.f32 %v2260, 0.0
        %v2309 = vmin.f32 %v2263, 0.0
        %v2310 = vmin.f32 %v2268, 0.0
        %v2311 = vmin.f32 %v2271, 0.0
        %v2312 = vmin.f32 %v2276, 0.0
        %v2313 = vmin.f32 %v2279, 0.0
        %v2314 = vmul.f32 %v2282, 1.442695
        %v2315 = vpow.pop %v2314
        %v2316 = vmul.f32 %v2283, 1.442695
        %v2317 = vpow.pop %v2316
        %v2318 = vmul.f32 %v2284, 1.442695
        %v2319 = vpow.pop %v2318
        %v2320 = vmul.f32 %v2285, 1.442695
        %v2321 = vpow.pop %v2320
        %v2322 = vmul.f32 %v2286, 1.442695
        %v2323 = vpow.pop %v2322
        %v2324 = vmul.f32 %v2287, 1.442695
        %v2325 = vpow.pop %v2324
        %v2326 = vmul.f32 %v2288, 1.442695
        %v2327 = vpow.pop %v2326
        %v2328 = vmul.f32 %v2289, 1.442695
        %v2329 = vpow.pop %v2328
        %v2330 = vmul.f32 %v2290, 1.442695
        %v2331 = vpow.pop %v2330
        %v2332 = vmul.f32 %v2291, 1.442695
        %v2333 = vpow.pop %v2332
        %v2334 = vmul.f32 %v2292, 1.442695
        %v2335 = vpow.pop %v2334
        %v2336 = vmul.f32 %v2293, 1.442695
        %v2337 = vpow.pop %v2336
        %v2338 = vmul.f32 %v2294, 1.442695
        %v2339 = vpow.pop %v2338
        %v2340 = vmul.f32 %v2295, 1.442695
        %v2341 = vpow.pop %v2340
        %v2342 = vmul.f32 %v2296, 1.442695
        %v2343 = vpow.pop %v2342
        %v2344 = vmul.f32 %v2297, 1.442695
        %v2345 = vpow.pop %v2344
        %v2346 = vmul.f32 %v2298, 1.442695
        %v2347 = vpow.pop %v2346
        %v2348 = vmul.f32 %v2299, 1.442695
        %v2349 = vpow.pop %v2348
        %v2350 = vmul.f32 %v2300, 1.442695
        %v2351 = vpow.pop %v2350
        %v2352 = vmul.f32 %v2301, 1.442695
        %v2353 = vpow.pop %v2352
        %v2354 = vmul.f32 %v2302, 1.442695
        %v2355 = vpow.pop %v2354
        %v2356 = vmul.f32 %v2303, 1.442695
        %v2357 = vpow.pop %v2356
        %v2358 = vmul.f32 %v2304, 1.442695
        %v2359 = vpow.pop %v2358
        %v2360 = vmul.f32 %v2305, 1.442695
        %v2361 = vpow.pop %v2360
        %v2362 = vmul.f32 %v2306, 1.442695
        %v2363 = vpow.pop %v2362
        %v2364 = vmul.f32 %v2307, 1.442695
        %v2365 = vpow.pop %v2364
        %v2366 = vmul.f32 %v2308, 1.442695
        %v2367 = vpow.pop %v2366
        %v2368 = vmul.f32 %v2309, 1.442695
        %v2369 = vpow.pop %v2368
        %v2370 = vmul.f32 %v2310, 1.442695
        %v2371 = vpow.pop %v2370
        %v2372 = vmul.f32 %v2311, 1.442695
        %v2373 = vpow.pop %v2372
        %v2374 = vmul.f32 %v2312, 1.442695
        %v2375 = vpow.pop %v2374
        %v2376 = vmul.f32 %v2313, 1.442695
        %v2377 = vpow.pop %v2376
        %v2378 = vsub.f32 %v2315, 1.0
        %v2379 = vsub.f32 %v2317, 1.0
        %v2380 = vsub.f32 %v2319, 1.0
        %v2381 = vsub.f32 %v2321, 1.0
        %v2382 = vsub.f32 %v2323, 1.0
        %v2383 = vsub.f32 %v2325, 1.0
        %v2384 = vsub.f32 %v2327, 1.0
        %v2385 = vsub.f32 %v2329, 1.0
        %v2386 = vsub.f32 %v2331, 1.0
        %v2387 = vsub.f32 %v2333, 1.0
        %v2388 = vsub.f32 %v2335, 1.0
        %v2389 = vsub.f32 %v2337, 1.0
        %v2390 = vsub.f32 %v2339, 1.0
        %v2391 = vsub.f32 %v2341, 1.0
        %v2392 = vsub.f32 %v2343, 1.0
        %v2393 = vsub.f32 %v2345, 1.0
        %v2394 = vsub.f32 %v2347, 1.0
        %v2395 = vsub.f32 %v2349, 1.0
        %v2396 = vsub.f32 %v2351, 1.0
        %v2397 = vsub.f32 %v2353, 1.0
        %v2398 = vsub.f32 %v2355, 1.0
        %v2399 = vsub.f32 %v2357, 1.0
        %v2400 = vsub.f32 %v2359, 1.0
        %v2401 = vsub.f32 %v2361, 1.0
        %v2402 = vsub.f32 %v2363, 1.0
        %v2403 = vsub.f32 %v2365, 1.0
        %v2404 = vsub.f32 %v2367, 1.0
        %v2405 = vsub.f32 %v2369, 1.0
        %v2406 = vsub.f32 %v2371, 1.0
        %v2407 = vsub.f32 %v2373, 1.0
        %v2408 = vsub.f32 %v2375, 1.0
        %v2409 = vsub.f32 %v2377, 1.0
        %vm2410 = vcmp.gt.f32.partialorder %v2156, 0.0
        %vm2411 = vcmp.gt.f32.partialorder %v2159, 0.0
        %vm2412 = vcmp.gt.f32.partialorder %v2164, 0.0
        %vm2413 = vcmp.gt.f32.partialorder %v2167, 0.0
        %vm2414 = vcmp.gt.f32.partialorder %v2172, 0.0
        %vm2415 = vcmp.gt.f32.partialorder %v2175, 0.0
        %vm2416 = vcmp.gt.f32.partialorder %v2180, 0.0
        %vm2417 = vcmp.gt.f32.partialorder %v2183, 0.0
        %vm2418 = vcmp.gt.f32.partialorder %v2188, 0.0
        %vm2419 = vcmp.gt.f32.partialorder %v2191, 0.0
        %vm2420 = vcmp.gt.f32.partialorder %v2196, 0.0
        %vm2421 = vcmp.gt.f32.partialorder %v2199, 0.0
        %vm2422 = vcmp.gt.f32.partialorder %v2204, 0.0
        %vm2423 = vcmp.gt.f32.partialorder %v2207, 0.0
        %vm2424 = vcmp.gt.f32.partialorder %v2212, 0.0
        %vm2425 = vcmp.gt.f32.partialorder %v2215, 0.0
        %vm2426 = vcmp.gt.f32.partialorder %v2220, 0.0
        %vm2427 = vcmp.gt.f32.partialorder %v2223, 0.0
        %vm2428 = vcmp.gt.f32.partialorder %v2228, 0.0
        %vm2429 = vcmp.gt.f32.partialorder %v2231, 0.0
        %vm2430 = vcmp.gt.f32.partialorder %v2236, 0.0
        %vm2431 = vcmp.gt.f32.partialorder %v2239, 0.0
        %vm2432 = vcmp.gt.f32.partialorder %v2244, 0.0
        %vm2433 = vcmp.gt.f32.partialorder %v2247, 0.0
        %vm2434 = vcmp.gt.f32.partialorder %v2252, 0.0
        %vm2435 = vcmp.gt.f32.partialorder %v2255, 0.0
        %vm2436 = vcmp.gt.f32.partialorder %v2260, 0.0
        %vm2437 = vcmp.gt.f32.partialorder %v2263, 0.0
        %vm2438 = vcmp.gt.f32.partialorder %v2268, 0.0
        %vm2439 = vcmp.gt.f32.partialorder %v2271, 0.0
        %vm2440 = vcmp.gt.f32.partialorder %v2276, 0.0
        %vm2441 = vcmp.gt.f32.partialorder %v2279, 0.0
        %v2442 = vsel %vm2410, %v2156, %v2378
        %v2443 = vsel %vm2411, %v2159, %v2379
        %v2444 = vsel %vm2412, %v2164, %v2380
        %v2445 = vsel %vm2413, %v2167, %v2381
        %v2446 = vsel %vm2414, %v2172, %v2382
        %v2447 = vsel %vm2415, %v2175, %v2383
        %v2448 = vsel %vm2416, %v2180, %v2384
        %v2449 = vsel %vm2417, %v2183, %v2385
        %v2450 = vsel %vm2418, %v2188, %v2386
        %v2451 = vsel %vm2419, %v2191, %v2387
        %v2452 = vsel %vm2420, %v2196, %v2388
        %v2453 = vsel %vm2421, %v2199, %v2389
        %v2454 = vsel %vm2422, %v2204, %v2390
        %v2455 = vsel %vm2423, %v2207, %v2391
        %v2456 = vsel %vm2424, %v2212, %v2392
        %v2457 = vsel %vm2425, %v2215, %v2393
        %v2458 = vsel %vm2426, %v2220, %v2394
        %v2459 = vsel %vm2427, %v2223, %v2395
        %v2460 = vsel %vm2428, %v2228, %v2396
        %v2461 = vsel %vm2429, %v2231, %v2397
        %v2462 = vsel %vm2430, %v2236, %v2398
        %v2463 = vsel %vm2431, %v2239, %v2399
        %v2464 = vsel %vm2432, %v2244, %v2400
        %v2465 = vsel %vm2433, %v2247, %v2401
        %v2466 = vsel %vm2434, %v2252, %v2402
        %v2467 = vsel %vm2435, %v2255, %v2403
        %v2468 = vsel %vm2436, %v2260, %v2404
        %v2469 = vsel %vm2437, %v2263, %v2405
        %v2470 = vsel %vm2438, %v2268, %v2406
        %v2471 = vsel %vm2439, %v2271, %v2407
        %v2472 = vsel %vm2440, %v2276, %v2408
        %v2473 = vsel %vm2441, %v2279, %v2409
        %v2474 = vld [vmem:[%s7] sm:$0x1]
        %v2475 = vlaneseq
        %v2476 = vshrl.u32 %v2475, 7
        %v2477 = vsub.s32 0, %v2476
        %v2478 = vrot.slane %v2474, %v2477
        %v2479 = vmul.f32 %v2442, %v2478
        %v2480 = vmul.f32 %v2443, %v2478
        %v2481 = vmul.f32 %v2444, %v2478
        %v2482 = vmul.f32 %v2445, %v2478
        %v2483 = vmul.f32 %v2446, %v2478
        %v2484 = vmul.f32 %v2447, %v2478
        %v2485 = vmul.f32 %v2448, %v2478
        %v2486 = vmul.f32 %v2449, %v2478
        %v2487 = vmul.f32 %v2450, %v2478
        %v2488 = vmul.f32 %v2451, %v2478
        %v2489 = vmul.f32 %v2452, %v2478
        %v2490 = vmul.f32 %v2453, %v2478
        %v2491 = vmul.f32 %v2454, %v2478
        %v2492 = vmul.f32 %v2455, %v2478
        %v2493 = vmul.f32 %v2456, %v2478
        %v2494 = vmul.f32 %v2457, %v2478
        %v2495 = vmul.f32 %v2458, %v2478
        %v2496 = vmul.f32 %v2459, %v2478
        %v2497 = vmul.f32 %v2460, %v2478
        %v2498 = vmul.f32 %v2461, %v2478
        %v2499 = vmul.f32 %v2462, %v2478
        %v2500 = vmul.f32 %v2463, %v2478
        %v2501 = vmul.f32 %v2464, %v2478
        %v2502 = vmul.f32 %v2465, %v2478
        %v2503 = vmul.f32 %v2466, %v2478
        %v2504 = vmul.f32 %v2467, %v2478
        %v2505 = vmul.f32 %v2468, %v2478
        %v2506 = vmul.f32 %v2469, %v2478
        %v2507 = vmul.f32 %v2470, %v2478
        %v2508 = vmul.f32 %v2471, %v2478
        %v2509 = vmul.f32 %v2472, %v2478
        %v2510 = vmul.f32 %v2473, %v2478
        %v2511 = vld [vmem:[%s7 + $0x1] sm:$0x1]
        %v2512 = vlaneseq
        %v2513 = vshrl.u32 %v2512, 7
        %v2514 = vsub.s32 0, %v2513
        %v2515 = vrot.slane %v2511, %v2514
        %v2516 = vadd.f32 %v2479, %v2515
        %v2517 = vadd.f32 %v2480, %v2515
        %v2518 = vadd.f32 %v2481, %v2515
        %v2519 = vadd.f32 %v2482, %v2515
        %v2520 = vadd.f32 %v2483, %v2515
        %v2521 = vadd.f32 %v2484, %v2515
        %v2522 = vadd.f32 %v2485, %v2515
        %v2523 = vadd.f32 %v2486, %v2515
        %v2524 = vadd.f32 %v2487, %v2515
        %v2525 = vadd.f32 %v2488, %v2515
        %v2526 = vadd.f32 %v2489, %v2515
        %v2527 = vadd.f32 %v2490, %v2515
        %v2528 = vadd.f32 %v2491, %v2515
        %v2529 = vadd.f32 %v2492, %v2515
        %v2530 = vadd.f32 %v2493, %v2515
        %v2531 = vadd.f32 %v2494, %v2515
        %v2532 = vadd.f32 %v2495, %v2515
        %v2533 = vadd.f32 %v2496, %v2515
        %v2534 = vadd.f32 %v2497, %v2515
        %v2535 = vadd.f32 %v2498, %v2515
        %v2536 = vadd.f32 %v2499, %v2515
        %v2537 = vadd.f32 %v2500, %v2515
        %v2538 = vadd.f32 %v2501, %v2515
        %v2539 = vadd.f32 %v2502, %v2515
        %v2540 = vadd.f32 %v2503, %v2515
        %v2541 = vadd.f32 %v2504, %v2515
        %v2542 = vadd.f32 %v2505, %v2515
        %v2543 = vadd.f32 %v2506, %v2515
        %v2544 = vadd.f32 %v2507, %v2515
        %v2545 = vadd.f32 %v2508, %v2515
        %v2546 = vadd.f32 %v2509, %v2515
        %v2547 = vadd.f32 %v2510, %v2515
        %vm2548 = vcmask 261120
        %2549 = vst.msk [vmem:[#allocation3] sm:$0xff] %vm2548, 0.0
        %2550 = vst.msk [vmem:[#allocation3 + $0x8] sm:$0xff] %vm2548, 0.0
        %vm2551 = vcmask 254976
        %2552 = vst.msk [vmem:[#allocation3 + $0x10] sm:$0x3] %vm2551, 0.0
        %s2553 = scalar_lea.vmem [#allocation3], 408
        %2554 = vst.msk [vmem:[%s2553] sm:$0xff] %vm2548, 0.0
        %2555 = vst.msk [vmem:[%s2553 + $0x8] sm:$0xff] %vm2548, 0.0
        %2556 = vst.msk [vmem:[%s2553 + $0x10] sm:$0x3] %vm2551, 0.0
        %vm2557 = vcmask 253952
        %2558 = vst.msk [vmem:[#allocation3] sm:$0x1] %vm2557, 0.0
        %2559 = vst.msk [vmem:[#allocation3 + $0x18] sm:$0x1] %vm2557, 0.0
        %2560 = vst.msk [vmem:[#allocation3 + $0x30] sm:$0x1] %vm2557, 0.0
        %2561 = vst.msk [vmem:[#allocation3 + $0x48] sm:$0x1] %vm2557, 0.0
        %2562 = vst.msk [vmem:[#allocation3 + $0x60] sm:$0x1] %vm2557, 0.0
        %2563 = vst.msk [vmem:[#allocation3 + $0x78] sm:$0x1] %vm2557, 0.0
        %2564 = vst.msk [vmem:[#allocation3 + $0x90] sm:$0x1] %vm2557, 0.0
        %2565 = vst.msk [vmem:[#allocation3 + $0xa8] sm:$0x1] %vm2557, 0.0
        %2566 = vst.msk [vmem:[#allocation3 + $0xc0] sm:$0x1] %vm2557, 0.0
        %2567 = vst.msk [vmem:[#allocation3 + $0xd8] sm:$0x1] %vm2557, 0.0
        %2568 = vst.msk [vmem:[#allocation3 + $0xf0] sm:$0x1] %vm2557, 0.0
        %2569 = vst.msk [vmem:[#allocation3 + $0x108] sm:$0x1] %vm2557, 0.0
        %2570 = vst.msk [vmem:[#allocation3 + $0x120] sm:$0x1] %vm2557, 0.0
        %2571 = vst.msk [vmem:[#allocation3 + $0x138] sm:$0x1] %vm2557, 0.0
        %2572 = vst.msk [vmem:[#allocation3 + $0x150] sm:$0x1] %vm2557, 0.0
        %2573 = vst.msk [vmem:[#allocation3 + $0x168] sm:$0x1] %vm2557, 0.0
        %2574 = vst.msk [vmem:[#allocation3 + $0x180] sm:$0x1] %vm2557, 0.0
        %2575 = vst.msk [vmem:[#allocation3 + $0x198] sm:$0x1] %vm2557, 0.0
        %2576 = vst.msk [vmem:[#allocation3 + $0x11] sm:$0x1] %vm2557, 0.0
        %2577 = vst.msk [vmem:[#allocation3 + $0x29] sm:$0x1] %vm2557, 0.0
        %2578 = vst.msk [vmem:[#allocation3 + $0x41] sm:$0x1] %vm2557, 0.0
        %2579 = vst.msk [vmem:[#allocation3 + $0x59] sm:$0x1] %vm2557, 0.0
        %2580 = vst.msk [vmem:[#allocation3 + $0x71] sm:$0x1] %vm2557, 0.0
        %2581 = vst.msk [vmem:[#allocation3 + $0x89] sm:$0x1] %vm2557, 0.0
        %2582 = vst.msk [vmem:[#allocation3 + $0xa1] sm:$0x1] %vm2557, 0.0
        %2583 = vst.msk [vmem:[#allocation3 + $0xb9] sm:$0x1] %vm2557, 0.0
        %2584 = vst.msk [vmem:[#allocation3 + $0xd1] sm:$0x1] %vm2557, 0.0
        %2585 = vst.msk [vmem:[#allocation3 + $0xe9] sm:$0x1] %vm2557, 0.0
        %2586 = vst.msk [vmem:[#allocation3 + $0x101] sm:$0x1] %vm2557, 0.0
        %2587 = vst.msk [vmem:[#allocation3 + $0x119] sm:$0x1] %vm2557, 0.0
        %2588 = vst.msk [vmem:[#allocation3 + $0x131] sm:$0x1] %vm2557, 0.0
        %2589 = vst.msk [vmem:[#allocation3 + $0x149] sm:$0x1] %vm2557, 0.0
        %2590 = vst.msk [vmem:[#allocation3 + $0x161] sm:$0x1] %vm2557, 0.0
        %2591 = vst.msk [vmem:[#allocation3 + $0x179] sm:$0x1] %vm2557, 0.0
        %2592 = vst.msk [vmem:[#allocation3 + $0x191] sm:$0x1] %vm2557, 0.0
        %2593 = vst.msk [vmem:[#allocation3 + $0x1a9] sm:$0x1] %vm2557, 0.0
        %s2594 = scalar_lea.vmem [#allocation3], 24
        %2595 = vst.msk [vmem:[%s2594 + $0x1] sm:$0xff] %vm2548, %v2516
        %2596 = vst.msk [vmem:[%s2594 + $0x9] sm:$0xff] %vm2548, %v2517
        %2597 = vst.msk [vmem:[%s2594 + $0x19] sm:$0xff] %vm2548, %v2518
        %2598 = vst.msk [vmem:[%s2594 + $0x21] sm:$0xff] %vm2548, %v2519
        %2599 = vst.msk [vmem:[%s2594 + $0x31] sm:$0xff] %vm2548, %v2520
        %2600 = vst.msk [vmem:[%s2594 + $0x39] sm:$0xff] %vm2548, %v2521
        %2601 = vst.msk [vmem:[%s2594 + $0x49] sm:$0xff] %vm2548, %v2522
        %2602 = vst.msk [vmem:[%s2594 + $0x51] sm:$0xff] %vm2548, %v2523
        %2603 = vst.msk [vmem:[%s2594 + $0x61] sm:$0xff] %vm2548, %v2524
        %2604 = vst.msk [vmem:[%s2594 + $0x69] sm:$0xff] %vm2548, %v2525
        %2605 = vst.msk [vmem:[%s2594 + $0x79] sm:$0xff] %vm2548, %v2526
        %2606 = vst.msk [vmem:[%s2594 + $0x81] sm:$0xff] %vm2548, %v2527
        %2607 = vst.msk [vmem:[%s2594 + $0x91] sm:$0xff] %vm2548, %v2528
        %2608 = vst.msk [vmem:[%s2594 + $0x99] sm:$0xff] %vm2548, %v2529
        %2609 = vst.msk [vmem:[%s2594 + $0xa9] sm:$0xff] %vm2548, %v2530
        %2610 = vst.msk [vmem:[%s2594 + $0xb1] sm:$0xff] %vm2548, %v2531
        %2611 = vst.msk [vmem:[%s2594 + $0xc1] sm:$0xff] %vm2548, %v2532
        %2612 = vst.msk [vmem:[%s2594 + $0xc9] sm:$0xff] %vm2548, %v2533
        %2613 = vst.msk [vmem:[%s2594 + $0xd9] sm:$0xff] %vm2548, %v2534
        %2614 = vst.msk [vmem:[%s2594 + $0xe1] sm:$0xff] %vm2548, %v2535
        %2615 = vst.msk [vmem:[%s2594 + $0xf1] sm:$0xff] %vm2548, %v2536
        %2616 = vst.msk [vmem:[%s2594 + $0xf9] sm:$0xff] %vm2548, %v2537
        %2617 = vst.msk [vmem:[%s2594 + $0x109] sm:$0xff] %vm2548, %v2538
        %2618 = vst.msk [vmem:[%s2594 + $0x111] sm:$0xff] %vm2548, %v2539
        %2619 = vst.msk [vmem:[%s2594 + $0x121] sm:$0xff] %vm2548, %v2540
        %2620 = vst.msk [vmem:[%s2594 + $0x129] sm:$0xff] %vm2548, %v2541
        %2621 = vst.msk [vmem:[%s2594 + $0x139] sm:$0xff] %vm2548, %v2542
        %2622 = vst.msk [vmem:[%s2594 + $0x141] sm:$0xff] %vm2548, %v2543
        %2623 = vst.msk [vmem:[%s2594 + $0x151] sm:$0xff] %vm2548, %v2544
        %2624 = vst.msk [vmem:[%s2594 + $0x159] sm:$0xff] %vm2548, %v2545
        %2625 = vst.msk [vmem:[%s2594 + $0x169] sm:$0xff] %vm2548, %v2546
        %2626 = vst.msk [vmem:[%s2594 + $0x171] sm:$0xff] %vm2548, %v2547
        %v2627 = vld [vmem:[#allocation3] sm:$0xff]
        %v2628 = vld [vmem:[#allocation3 + $0x8] sm:$0xff]
        %v2629 = vld [vmem:[#allocation3 + $0x10] sm:$0x3]
        %v2630 = vld [vmem:[#allocation3 + $0x18] sm:$0xff]
        %v2631 = vld [vmem:[#allocation3 + $0x20] sm:$0xff]
        %v2632 = vld [vmem:[#allocation3 + $0x28] sm:$0x3]
        %v2633 = vld [vmem:[#allocation3 + $0x30] sm:$0xff]
        %v2634 = vld [vmem:[#allocation3 + $0x38] sm:$0xff]
        %v2635 = vld [vmem:[#allocation3 + $0x40] sm:$0x3]
        %v2636 = vld [vmem:[#allocation3 + $0x48] sm:$0xff]
        %v2637 = vld [vmem:[#allocation3 + $0x50] sm:$0xff]
        %v2638 = vld [vmem:[#allocation3 + $0x58] sm:$0x3]
        %v2639 = vld [vmem:[#allocation3 + $0x60] sm:$0xff]
        %v2640 = vld [vmem:[#allocation3 + $0x68] sm:$0xff]
        %v2641 = vld [vmem:[#allocation3 + $0x70] sm:$0x3]
        %v2642 = vld [vmem:[#allocation3 + $0x78] sm:$0xff]
        %v2643 = vld [vmem:[#allocation3 + $0x80] sm:$0xff]
        %v2644 = vld [vmem:[#allocation3 + $0x88] sm:$0x3]
        %v2645 = vld [vmem:[#allocation3 + $0x90] sm:$0xff]
        %v2646 = vld [vmem:[#allocation3 + $0x98] sm:$0xff]
        %v2647 = vld [vmem:[#allocation3 + $0xa0] sm:$0x3]
        %v2648 = vld [vmem:[#allocation3 + $0xa8] sm:$0xff]
        %v2649 = vld [vmem:[#allocation3 + $0xb0] sm:$0xff]
        %v2650 = vld [vmem:[#allocation3 + $0xb8] sm:$0x3]
        %v2651 = vld [vmem:[#allocation3 + $0xc0] sm:$0xff]
        %v2652 = vld [vmem:[#allocation3 + $0xc8] sm:$0xff]
        %v2653 = vld [vmem:[#allocation3 + $0xd0] sm:$0x3]
        %v2654 = vld [vmem:[#allocation3 + $0xd8] sm:$0xff]
        %v2655 = vld [vmem:[#allocation3 + $0xe0] sm:$0xff]
        %v2656 = vld [vmem:[#allocation3 + $0xe8] sm:$0x3]
        %v2657 = vld [vmem:[#allocation3 + $0xf0] sm:$0xff]
        %v2658 = vld [vmem:[#allocation3 + $0xf8] sm:$0xff]
        %v2659 = vld [vmem:[#allocation3 + $0x100] sm:$0x3]
        %v2660 = vld [vmem:[#allocation3 + $0x108] sm:$0xff]
        %v2661 = vld [vmem:[#allocation3 + $0x110] sm:$0xff]
        %v2662 = vld [vmem:[#allocation3 + $0x118] sm:$0x3]
        %v2663 = vld [vmem:[#allocation3 + $0x120] sm:$0xff]
        %v2664 = vld [vmem:[#allocation3 + $0x128] sm:$0xff]
        %v2665 = vld [vmem:[#allocation3 + $0x130] sm:$0x3]
        %v2666 = vld [vmem:[#allocation3 + $0x138] sm:$0xff]
        %v2667 = vld [vmem:[#allocation3 + $0x140] sm:$0xff]
        %v2668 = vld [vmem:[#allocation3 + $0x148] sm:$0x3]
        %v2669 = vld [vmem:[#allocation3 + $0x150] sm:$0xff]
        %v2670 = vld [vmem:[#allocation3 + $0x158] sm:$0xff]
        %v2671 = vld [vmem:[#allocation3 + $0x160] sm:$0x3]
        %v2672 = vld [vmem:[#allocation3 + $0x168] sm:$0xff]
        %v2673 = vld [vmem:[#allocation3 + $0x170] sm:$0xff]
        %v2674 = vld [vmem:[#allocation3 + $0x178] sm:$0x3]
        %v2675 = vld [vmem:[#allocation3 + $0x180] sm:$0xff]
        %v2676 = vld [vmem:[#allocation3 + $0x188] sm:$0xff]
        %v2677 = vld [vmem:[#allocation3 + $0x190] sm:$0x3]
        %v2678 = vld [vmem:[#allocation3 + $0x198] sm:$0xff]
        %v2679 = vld [vmem:[#allocation3 + $0x1a0] sm:$0xff]
        %v2680 = vld [vmem:[#allocation3 + $0x1a8] sm:$0x3]
        %v2729 = vrot.slane %v2627, 1
        %v2730 = vrot.slane %v2628, 1
        %v2731 = vsel %vm816, %v2729, %v2730
        %v2732 = vrot.slane %v2629, 1
        %v2733 = vsel %vm816, %v2730, %v2732
        %v2734 = vrot.slane %v2630, 1
        %v2735 = vrot.slane %v2631, 1
        %v2736 = vsel %vm816, %v2734, %v2735
        %v2737 = vrot.slane %v2632, 1
        %v2738 = vsel %vm816, %v2735, %v2737
        %v2739 = vrot.slane %v2633, 1
        %v2740 = vrot.slane %v2634, 1
        %v2741 = vsel %vm816, %v2739, %v2740
        %v2742 = vrot.slane %v2635, 1
        %v2743 = vsel %vm816, %v2740, %v2742
        %v2744 = vrot.slane %v2636, 1
        %v2745 = vrot.slane %v2637, 1
        %v2746 = vsel %vm816, %v2744, %v2745
        %v2747 = vrot.slane %v2638, 1
        %v2748 = vsel %vm816, %v2745, %v2747
        %v2749 = vrot.slane %v2639, 1
        %v2750 = vrot.slane %v2640, 1
        %v2751 = vsel %vm816, %v2749, %v2750
        %v2752 = vrot.slane %v2641, 1
        %v2753 = vsel %vm816, %v2750, %v2752
        %v2754 = vrot.slane %v2642, 1
        %v2755 = vrot.slane %v2643, 1
        %v2756 = vsel %vm816, %v2754, %v2755
        %v2757 = vrot.slane %v2644, 1
        %v2758 = vsel %vm816, %v2755, %v2757
        %v2759 = vrot.slane %v2645, 1
        %v2760 = vrot.slane %v2646, 1
        %v2761 = vsel %vm816, %v2759, %v2760
        %v2762 = vrot.slane %v2647, 1
        %v2763 = vsel %vm816, %v2760, %v2762
        %v2764 = vrot.slane %v2648, 1
        %v2765 = vrot.slane %v2649, 1
        %v2766 = vsel %vm816, %v2764, %v2765
        %v2767 = vrot.slane %v2650, 1
        %v2768 = vsel %vm816, %v2765, %v2767
        %v2769 = vrot.slane %v2651, 1
        %v2770 = vrot.slane %v2652, 1
        %v2771 = vsel %vm816, %v2769, %v2770
        %v2772 = vrot.slane %v2653, 1
        %v2773 = vsel %vm816, %v2770, %v2772
        %v2774 = vrot.slane %v2654, 1
        %v2775 = vrot.slane %v2655, 1
        %v2776 = vsel %vm816, %v2774, %v2775
        %v2777 = vrot.slane %v2656, 1
        %v2778 = vsel %vm816, %v2775, %v2777
        %v2779 = vrot.slane %v2657, 1
        %v2780 = vrot.slane %v2658, 1
        %v2781 = vsel %vm816, %v2779, %v2780
        %v2782 = vrot.slane %v2659, 1
        %v2783 = vsel %vm816, %v2780, %v2782
        %v2784 = vrot.slane %v2660, 1
        %v2785 = vrot.slane %v2661, 1
        %v2786 = vsel %vm816, %v2784, %v2785
        %v2787 = vrot.slane %v2662, 1
        %v2788 = vsel %vm816, %v2785, %v2787
        %v2789 = vrot.slane %v2663, 1
        %v2790 = vrot.slane %v2664, 1
        %v2791 = vsel %vm816, %v2789, %v2790
        %v2792 = vrot.slane %v2665, 1
        %v2793 = vsel %vm816, %v2790, %v2792
        %v2794 = vrot.slane %v2666, 1
        %v2795 = vrot.slane %v2667, 1
        %v2796 = vsel %vm816, %v2794, %v2795
        %v2797 = vrot.slane %v2668, 1
        %v2798 = vsel %vm816, %v2795, %v2797
        %v2799 = vrot.slane %v2669, 1
        %v2800 = vrot.slane %v2670, 1
        %v2801 = vsel %vm816, %v2799, %v2800
        %v2802 = vrot.slane %v2671, 1
        %v2803 = vsel %vm816, %v2800, %v2802
        %v2804 = vrot.slane %v2672, 1
        %v2805 = vrot.slane %v2673, 1
        %v2806 = vsel %vm816, %v2804, %v2805
        %v2807 = vrot.slane %v2674, 1
        %v2808 = vsel %vm816, %v2805, %v2807
        %2809 = vrot.lane.b32.xlu0 %v2731, 32
        %v2810 = vpop.permute.xlu0 %2809
        %2811 = vrot.lane.b32.xlu0 %v2733, 32
        %v2812 = vpop.permute.xlu0 %2811
        %2813 = vrot.lane.b32.xlu0 %v2736, 32
        %v2814 = vpop.permute.xlu0 %2813
        %2815 = vrot.lane.b32.xlu0 %v2738, 32
        %v2816 = vpop.permute.xlu0 %2815
        %2817 = vrot.lane.b32.xlu0 %v2741, 32
        %v2818 = vpop.permute.xlu0 %2817
        %2819 = vrot.lane.b32.xlu0 %v2743, 32
        %v2820 = vpop.permute.xlu0 %2819
        %2821 = vrot.lane.b32.xlu0 %v2746, 32
        %v2822 = vpop.permute.xlu0 %2821
        %2823 = vrot.lane.b32.xlu0 %v2748, 32
        %v2824 = vpop.permute.xlu0 %2823
        %2825 = vrot.lane.b32.xlu0 %v2751, 32
        %v2826 = vpop.permute.xlu0 %2825
        %2827 = vrot.lane.b32.xlu0 %v2753, 32
        %v2828 = vpop.permute.xlu0 %2827
        %2829 = vrot.lane.b32.xlu0 %v2756, 32
        %v2830 = vpop.permute.xlu0 %2829
        %2831 = vrot.lane.b32.xlu0 %v2758, 32
        %v2832 = vpop.permute.xlu0 %2831
        %2833 = vrot.lane.b32.xlu0 %v2761, 32
        %v2834 = vpop.permute.xlu0 %2833
        %2835 = vrot.lane.b32.xlu0 %v2763, 32
        %v2836 = vpop.permute.xlu0 %2835
        %2837 = vrot.lane.b32.xlu0 %v2766, 32
        %v2838 = vpop.permute.xlu0 %2837
        %2839 = vrot.lane.b32.xlu0 %v2768, 32
        %v2840 = vpop.permute.xlu0 %2839
        %2841 = vrot.lane.b32.xlu0 %v2771, 32
        %v2842 = vpop.permute.xlu0 %2841
        %2843 = vrot.lane.b32.xlu0 %v2773, 32
        %v2844 = vpop.permute.xlu0 %2843
        %2845 = vrot.lane.b32.xlu0 %v2776, 32
        %v2846 = vpop.permute.xlu0 %2845
        %2847 = vrot.lane.b32.xlu0 %v2778, 32
        %v2848 = vpop.permute.xlu0 %2847
        %2849 = vrot.lane.b32.xlu0 %v2781, 32
        %v2850 = vpop.permute.xlu0 %2849
        %2851 = vrot.lane.b32.xlu0 %v2783, 32
        %v2852 = vpop.permute.xlu0 %2851
        %2853 = vrot.lane.b32.xlu0 %v2786, 32
        %v2854 = vpop.permute.xlu0 %2853
        %2855 = vrot.lane.b32.xlu0 %v2788, 32
        %v2856 = vpop.permute.xlu0 %2855
        %2857 = vrot.lane.b32.xlu0 %v2791, 32
        %v2858 = vpop.permute.xlu0 %2857
        %2859 = vrot.lane.b32.xlu0 %v2793, 32
        %v2860 = vpop.permute.xlu0 %2859
        %2861 = vrot.lane.b32.xlu0 %v2796, 32
        %v2862 = vpop.permute.xlu0 %2861
        %2863 = vrot.lane.b32.xlu0 %v2798, 32
        %v2864 = vpop.permute.xlu0 %2863
        %2865 = vrot.lane.b32.xlu0 %v2801, 32
        %v2866 = vpop.permute.xlu0 %2865
        %2867 = vrot.lane.b32.xlu0 %v2803, 32
        %v2868 = vpop.permute.xlu0 %2867
        %2869 = vrot.lane.b32.xlu0 %v2806, 32
        %v2870 = vpop.permute.xlu0 %2869
        %2871 = vrot.lane.b32.xlu0 %v2808, 32
        %v2872 = vpop.permute.xlu0 %2871
        %v2905 = vrot.slane %v2627, 2
        %v2906 = vrot.slane %v2628, 2
        %v2907 = vsel %vm993, %v2905, %v2906
        %v2908 = vrot.slane %v2629, 2
        %v2909 = vsel %vm993, %v2906, %v2908
        %v2910 = vrot.slane %v2630, 2
        %v2911 = vrot.slane %v2631, 2
        %v2912 = vsel %vm993, %v2910, %v2911
        %v2913 = vrot.slane %v2632, 2
        %v2914 = vsel %vm993, %v2911, %v2913
        %v2915 = vrot.slane %v2633, 2
        %v2916 = vrot.slane %v2634, 2
        %v2917 = vsel %vm993, %v2915, %v2916
        %v2918 = vrot.slane %v2635, 2
        %v2919 = vsel %vm993, %v2916, %v2918
        %v2920 = vrot.slane %v2636, 2
        %v2921 = vrot.slane %v2637, 2
        %v2922 = vsel %vm993, %v2920, %v2921
        %v2923 = vrot.slane %v2638, 2
        %v2924 = vsel %vm993, %v2921, %v2923
        %v2925 = vrot.slane %v2639, 2
        %v2926 = vrot.slane %v2640, 2
        %v2927 = vsel %vm993, %v2925, %v2926
        %v2928 = vrot.slane %v2641, 2
        %v2929 = vsel %vm993, %v2926, %v2928
        %v2930 = vrot.slane %v2642, 2
        %v2931 = vrot.slane %v2643, 2
        %v2932 = vsel %vm993, %v2930, %v2931
        %v2933 = vrot.slane %v2644, 2
        %v2934 = vsel %vm993, %v2931, %v2933
        %v2935 = vrot.slane %v2645, 2
        %v2936 = vrot.slane %v2646, 2
        %v2937 = vsel %vm993, %v2935, %v2936
        %v2938 = vrot.slane %v2647, 2
        %v2939 = vsel %vm993, %v2936, %v2938
        %v2940 = vrot.slane %v2648, 2
        %v2941 = vrot.slane %v2649, 2
        %v2942 = vsel %vm993, %v2940, %v2941
        %v2943 = vrot.slane %v2650, 2
        %v2944 = vsel %vm993, %v2941, %v2943
        %v2945 = vrot.slane %v2651, 2
        %v2946 = vrot.slane %v2652, 2
        %v2947 = vsel %vm993, %v2945, %v2946
        %v2948 = vrot.slane %v2653, 2
        %v2949 = vsel %vm993, %v2946, %v2948
        %v2950 = vrot.slane %v2654, 2
        %v2951 = vrot.slane %v2655, 2
        %v2952 = vsel %vm993, %v2950, %v2951
        %v2953 = vrot.slane %v2656, 2
        %v2954 = vsel %vm993, %v2951, %v2953
        %v2955 = vrot.slane %v2657, 2
        %v2956 = vrot.slane %v2658, 2
        %v2957 = vsel %vm993, %v2955, %v2956
        %v2958 = vrot.slane %v2659, 2
        %v2959 = vsel %vm993, %v2956, %v2958
        %v2960 = vrot.slane %v2660, 2
        %v2961 = vrot.slane %v2661, 2
        %v2962 = vsel %vm993, %v2960, %v2961
        %v2963 = vrot.slane %v2662, 2
        %v2964 = vsel %vm993, %v2961, %v2963
        %v2965 = vrot.slane %v2663, 2
        %v2966 = vrot.slane %v2664, 2
        %v2967 = vsel %vm993, %v2965, %v2966
        %v2968 = vrot.slane %v2665, 2
        %v2969 = vsel %vm993, %v2966, %v2968
        %v2970 = vrot.slane %v2666, 2
        %v2971 = vrot.slane %v2667, 2
        %v2972 = vsel %vm993, %v2970, %v2971
        %v2973 = vrot.slane %v2668, 2
        %v2974 = vsel %vm993, %v2971, %v2973
        %v2975 = vrot.slane %v2669, 2
        %v2976 = vrot.slane %v2670, 2
        %v2977 = vsel %vm993, %v2975, %v2976
        %v2978 = vrot.slane %v2671, 2
        %v2979 = vsel %vm993, %v2976, %v2978
        %v2980 = vrot.slane %v2672, 2
        %v2981 = vrot.slane %v2673, 2
        %v2982 = vsel %vm993, %v2980, %v2981
        %v2983 = vrot.slane %v2674, 2
        %v2984 = vsel %vm993, %v2981, %v2983
        %2985 = vrot.lane.b32.xlu0 %v2907, 64
        %v2986 = vpop.permute.xlu0 %2985
        %2987 = vrot.lane.b32.xlu0 %v2909, 64
        %v2988 = vpop.permute.xlu0 %2987
        %2989 = vrot.lane.b32.xlu0 %v2912, 64
        %v2990 = vpop.permute.xlu0 %2989
        %2991 = vrot.lane.b32.xlu0 %v2914, 64
        %v2992 = vpop.permute.xlu0 %2991
        %2993 = vrot.lane.b32.xlu0 %v2917, 64
        %v2994 = vpop.permute.xlu0 %2993
        %2995 = vrot.lane.b32.xlu0 %v2919, 64
        %v2996 = vpop.permute.xlu0 %2995
        %2997 = vrot.lane.b32.xlu0 %v2922, 64
        %v2998 = vpop.permute.xlu0 %2997
        %2999 = vrot.lane.b32.xlu0 %v2924, 64
        %v3000 = vpop.permute.xlu0 %2999
        %3001 = vrot.lane.b32.xlu0 %v2927, 64
        %v3002 = vpop.permute.xlu0 %3001
        %3003 = vrot.lane.b32.xlu0 %v2929, 64
        %v3004 = vpop.permute.xlu0 %3003
        %3005 = vrot.lane.b32.xlu0 %v2932, 64
        %v3006 = vpop.permute.xlu0 %3005
        %3007 = vrot.lane.b32.xlu0 %v2934, 64
        %v3008 = vpop.permute.xlu0 %3007
        %3009 = vrot.lane.b32.xlu0 %v2937, 64
        %v3010 = vpop.permute.xlu0 %3009
        %3011 = vrot.lane.b32.xlu0 %v2939, 64
        %v3012 = vpop.permute.xlu0 %3011
        %3013 = vrot.lane.b32.xlu0 %v2942, 64
        %v3014 = vpop.permute.xlu0 %3013
        %3015 = vrot.lane.b32.xlu0 %v2944, 64
        %v3016 = vpop.permute.xlu0 %3015
        %3017 = vrot.lane.b32.xlu0 %v2947, 64
        %v3018 = vpop.permute.xlu0 %3017
        %3019 = vrot.lane.b32.xlu0 %v2949, 64
        %v3020 = vpop.permute.xlu0 %3019
        %3021 = vrot.lane.b32.xlu0 %v2952, 64
        %v3022 = vpop.permute.xlu0 %3021
        %3023 = vrot.lane.b32.xlu0 %v2954, 64
        %v3024 = vpop.permute.xlu0 %3023
        %3025 = vrot.lane.b32.xlu0 %v2957, 64
        %v3026 = vpop.permute.xlu0 %3025
        %3027 = vrot.lane.b32.xlu0 %v2959, 64
        %v3028 = vpop.permute.xlu0 %3027
        %3029 = vrot.lane.b32.xlu0 %v2962, 64
        %v3030 = vpop.permute.xlu0 %3029
        %3031 = vrot.lane.b32.xlu0 %v2964, 64
        %v3032 = vpop.permute.xlu0 %3031
        %3033 = vrot.lane.b32.xlu0 %v2967, 64
        %v3034 = vpop.permute.xlu0 %3033
        %3035 = vrot.lane.b32.xlu0 %v2969, 64
        %v3036 = vpop.permute.xlu0 %3035
        %3037 = vrot.lane.b32.xlu0 %v2972, 64
        %v3038 = vpop.permute.xlu0 %3037
        %3039 = vrot.lane.b32.xlu0 %v2974, 64
        %v3040 = vpop.permute.xlu0 %3039
        %3041 = vrot.lane.b32.xlu0 %v2977, 64
        %v3042 = vpop.permute.xlu0 %3041
        %3043 = vrot.lane.b32.xlu0 %v2979, 64
        %v3044 = vpop.permute.xlu0 %3043
        %3045 = vrot.lane.b32.xlu0 %v2982, 64
        %v3046 = vpop.permute.xlu0 %3045
        %3047 = vrot.lane.b32.xlu0 %v2984, 64
        %v3048 = vpop.permute.xlu0 %3047
        %3083 = vrot.lane.b32.xlu0 %v2630, 96
        %v3084 = vpop.permute.xlu0 %3083
        %3085 = vrot.lane.b32.xlu0 %v2631, 96
        %v3086 = vpop.permute.xlu0 %3085
        %3087 = vrot.lane.b32.xlu0 %v2633, 96
        %v3088 = vpop.permute.xlu0 %3087
        %3089 = vrot.lane.b32.xlu0 %v2634, 96
        %v3090 = vpop.permute.xlu0 %3089
        %3091 = vrot.lane.b32.xlu0 %v2636, 96
        %v3092 = vpop.permute.xlu0 %3091
        %3093 = vrot.lane.b32.xlu0 %v2637, 96
        %v3094 = vpop.permute.xlu0 %3093
        %3095 = vrot.lane.b32.xlu0 %v2639, 96
        %v3096 = vpop.permute.xlu0 %3095
        %3097 = vrot.lane.b32.xlu0 %v2640, 96
        %v3098 = vpop.permute.xlu0 %3097
        %3099 = vrot.lane.b32.xlu0 %v2642, 96
        %v3100 = vpop.permute.xlu0 %3099
        %3101 = vrot.lane.b32.xlu0 %v2643, 96
        %v3102 = vpop.permute.xlu0 %3101
        %3103 = vrot.lane.b32.xlu0 %v2645, 96
        %v3104 = vpop.permute.xlu0 %3103
        %3105 = vrot.lane.b32.xlu0 %v2646, 96
        %v3106 = vpop.permute.xlu0 %3105
        %3107 = vrot.lane.b32.xlu0 %v2648, 96
        %v3108 = vpop.permute.xlu0 %3107
        %3109 = vrot.lane.b32.xlu0 %v2649, 96
        %v3110 = vpop.permute.xlu0 %3109
        %3111 = vrot.lane.b32.xlu0 %v2651, 96
        %v3112 = vpop.permute.xlu0 %3111
        %3113 = vrot.lane.b32.xlu0 %v2652, 96
        %v3114 = vpop.permute.xlu0 %3113
        %3115 = vrot.lane.b32.xlu0 %v2654, 96
        %v3116 = vpop.permute.xlu0 %3115
        %3117 = vrot.lane.b32.xlu0 %v2655, 96
        %v3118 = vpop.permute.xlu0 %3117
        %3119 = vrot.lane.b32.xlu0 %v2657, 96
        %v3120 = vpop.permute.xlu0 %3119
        %3121 = vrot.lane.b32.xlu0 %v2658, 96
        %v3122 = vpop.permute.xlu0 %3121
        %3123 = vrot.lane.b32.xlu0 %v2660, 96
        %v3124 = vpop.permute.xlu0 %3123
        %3125 = vrot.lane.b32.xlu0 %v2661, 96
        %v3126 = vpop.permute.xlu0 %3125
        %3127 = vrot.lane.b32.xlu0 %v2663, 96
        %v3128 = vpop.permute.xlu0 %3127
        %3129 = vrot.lane.b32.xlu0 %v2664, 96
        %v3130 = vpop.permute.xlu0 %3129
        %3131 = vrot.lane.b32.xlu0 %v2666, 96
        %v3132 = vpop.permute.xlu0 %3131
        %3133 = vrot.lane.b32.xlu0 %v2667, 96
        %v3134 = vpop.permute.xlu0 %3133
        %3135 = vrot.lane.b32.xlu0 %v2669, 96
        %v3136 = vpop.permute.xlu0 %3135
        %3137 = vrot.lane.b32.xlu0 %v2670, 96
        %v3138 = vpop.permute.xlu0 %3137
        %3139 = vrot.lane.b32.xlu0 %v2672, 96
        %v3140 = vpop.permute.xlu0 %3139
        %3141 = vrot.lane.b32.xlu0 %v2673, 96
        %v3142 = vpop.permute.xlu0 %3141
        %3143 = vrot.lane.b32.xlu0 %v2675, 96
        %v3144 = vpop.permute.xlu0 %3143
        %3145 = vrot.lane.b32.xlu0 %v2676, 96
        %v3146 = vpop.permute.xlu0 %3145
        %v3180 = vrot.slane %v2675, 1
        %v3181 = vrot.slane %v2676, 1
        %v3182 = vsel %vm816, %v3180, %v3181
        %v3183 = vrot.slane %v2677, 1
        %v3184 = vsel %vm816, %v3181, %v3183
        %v3217 = vrot.slane %v2675, 2
        %v3218 = vrot.slane %v2676, 2
        %v3219 = vsel %vm993, %v3217, %v3218
        %v3220 = vrot.slane %v2677, 2
        %v3221 = vsel %vm993, %v3218, %v3220
        %3222 = vrot.lane.b32.xlu0 %v2912, 32
        %v3223 = vpop.permute.xlu0 %3222
        %3224 = vrot.lane.b32.xlu0 %v2914, 32
        %v3225 = vpop.permute.xlu0 %3224
        %3226 = vrot.lane.b32.xlu0 %v2917, 32
        %v3227 = vpop.permute.xlu0 %3226
        %3228 = vrot.lane.b32.xlu0 %v2919, 32
        %v3229 = vpop.permute.xlu0 %3228
        %3230 = vrot.lane.b32.xlu0 %v2922, 32
        %v3231 = vpop.permute.xlu0 %3230
        %3232 = vrot.lane.b32.xlu0 %v2924, 32
        %v3233 = vpop.permute.xlu0 %3232
        %3234 = vrot.lane.b32.xlu0 %v2927, 32
        %v3235 = vpop.permute.xlu0 %3234
        %3236 = vrot.lane.b32.xlu0 %v2929, 32
        %v3237 = vpop.permute.xlu0 %3236
        %3238 = vrot.lane.b32.xlu0 %v2932, 32
        %v3239 = vpop.permute.xlu0 %3238
        %3240 = vrot.lane.b32.xlu0 %v2934, 32
        %v3241 = vpop.permute.xlu0 %3240
        %3242 = vrot.lane.b32.xlu0 %v2937, 32
        %v3243 = vpop.permute.xlu0 %3242
        %3244 = vrot.lane.b32.xlu0 %v2939, 32
        %v3245 = vpop.permute.xlu0 %3244
        %3246 = vrot.lane.b32.xlu0 %v2942, 32
        %v3247 = vpop.permute.xlu0 %3246
        %3248 = vrot.lane.b32.xlu0 %v2944, 32
        %v3249 = vpop.permute.xlu0 %3248
        %3250 = vrot.lane.b32.xlu0 %v2947, 32
        %v3251 = vpop.permute.xlu0 %3250
        %3252 = vrot.lane.b32.xlu0 %v2949, 32
        %v3253 = vpop.permute.xlu0 %3252
        %3254 = vrot.lane.b32.xlu0 %v2952, 32
        %v3255 = vpop.permute.xlu0 %3254
        %3256 = vrot.lane.b32.xlu0 %v2954, 32
        %v3257 = vpop.permute.xlu0 %3256
        %3258 = vrot.lane.b32.xlu0 %v2957, 32
        %v3259 = vpop.permute.xlu0 %3258
        %3260 = vrot.lane.b32.xlu0 %v2959, 32
        %v3261 = vpop.permute.xlu0 %3260
        %3262 = vrot.lane.b32.xlu0 %v2962, 32
        %v3263 = vpop.permute.xlu0 %3262
        %3264 = vrot.lane.b32.xlu0 %v2964, 32
        %v3265 = vpop.permute.xlu0 %3264
        %3266 = vrot.lane.b32.xlu0 %v2967, 32
        %v3267 = vpop.permute.xlu0 %3266
        %3268 = vrot.lane.b32.xlu0 %v2969, 32
        %v3269 = vpop.permute.xlu0 %3268
        %3270 = vrot.lane.b32.xlu0 %v2972, 32
        %v3271 = vpop.permute.xlu0 %3270
        %3272 = vrot.lane.b32.xlu0 %v2974, 32
        %v3273 = vpop.permute.xlu0 %3272
        %3274 = vrot.lane.b32.xlu0 %v2977, 32
        %v3275 = vpop.permute.xlu0 %3274
        %3276 = vrot.lane.b32.xlu0 %v2979, 32
        %v3277 = vpop.permute.xlu0 %3276
        %3278 = vrot.lane.b32.xlu0 %v2982, 32
        %v3279 = vpop.permute.xlu0 %3278
        %3280 = vrot.lane.b32.xlu0 %v2984, 32
        %v3281 = vpop.permute.xlu0 %3280
        %3282 = vrot.lane.b32.xlu0 %v3219, 32
        %v3283 = vpop.permute.xlu0 %3282
        %3284 = vrot.lane.b32.xlu0 %v3221, 32
        %v3285 = vpop.permute.xlu0 %3284
        %3320 = vrot.lane.b32.xlu0 %v2633, 64
        %v3321 = vpop.permute.xlu0 %3320
        %3322 = vrot.lane.b32.xlu0 %v2634, 64
        %v3323 = vpop.permute.xlu0 %3322
        %3324 = vrot.lane.b32.xlu0 %v2636, 64
        %v3325 = vpop.permute.xlu0 %3324
        %3326 = vrot.lane.b32.xlu0 %v2637, 64
        %v3327 = vpop.permute.xlu0 %3326
        %3328 = vrot.lane.b32.xlu0 %v2639, 64
        %v3329 = vpop.permute.xlu0 %3328
        %3330 = vrot.lane.b32.xlu0 %v2640, 64
        %v3331 = vpop.permute.xlu0 %3330
        %3332 = vrot.lane.b32.xlu0 %v2642, 64
        %v3333 = vpop.permute.xlu0 %3332
        %3334 = vrot.lane.b32.xlu0 %v2643, 64
        %v3335 = vpop.permute.xlu0 %3334
        %3336 = vrot.lane.b32.xlu0 %v2645, 64
        %v3337 = vpop.permute.xlu0 %3336
        %3338 = vrot.lane.b32.xlu0 %v2646, 64
        %v3339 = vpop.permute.xlu0 %3338
        %3340 = vrot.lane.b32.xlu0 %v2648, 64
        %v3341 = vpop.permute.xlu0 %3340
        %3342 = vrot.lane.b32.xlu0 %v2649, 64
        %v3343 = vpop.permute.xlu0 %3342
        %3344 = vrot.lane.b32.xlu0 %v2651, 64
        %v3345 = vpop.permute.xlu0 %3344
        %3346 = vrot.lane.b32.xlu0 %v2652, 64
        %v3347 = vpop.permute.xlu0 %3346
        %3348 = vrot.lane.b32.xlu0 %v2654, 64
        %v3349 = vpop.permute.xlu0 %3348
        %3350 = vrot.lane.b32.xlu0 %v2655, 64
        %v3351 = vpop.permute.xlu0 %3350
        %3352 = vrot.lane.b32.xlu0 %v2657, 64
        %v3353 = vpop.permute.xlu0 %3352
        %3354 = vrot.lane.b32.xlu0 %v2658, 64
        %v3355 = vpop.permute.xlu0 %3354
        %3356 = vrot.lane.b32.xlu0 %v2660, 64
        %v3357 = vpop.permute.xlu0 %3356
        %3358 = vrot.lane.b32.xlu0 %v2661, 64
        %v3359 = vpop.permute.xlu0 %3358
        %3360 = vrot.lane.b32.xlu0 %v2663, 64
        %v3361 = vpop.permute.xlu0 %3360
        %3362 = vrot.lane.b32.xlu0 %v2664, 64
        %v3363 = vpop.permute.xlu0 %3362
        %3364 = vrot.lane.b32.xlu0 %v2666, 64
        %v3365 = vpop.permute.xlu0 %3364
        %3366 = vrot.lane.b32.xlu0 %v2667, 64
        %v3367 = vpop.permute.xlu0 %3366
        %3368 = vrot.lane.b32.xlu0 %v2669, 64
        %v3369 = vpop.permute.xlu0 %3368
        %3370 = vrot.lane.b32.xlu0 %v2670, 64
        %v3371 = vpop.permute.xlu0 %3370
        %3372 = vrot.lane.b32.xlu0 %v2672, 64
        %v3373 = vpop.permute.xlu0 %3372
        %3374 = vrot.lane.b32.xlu0 %v2673, 64
        %v3375 = vpop.permute.xlu0 %3374
        %3376 = vrot.lane.b32.xlu0 %v2675, 64
        %v3377 = vpop.permute.xlu0 %3376
        %3378 = vrot.lane.b32.xlu0 %v2676, 64
        %v3379 = vpop.permute.xlu0 %3378
        %3380 = vrot.lane.b32.xlu0 %v2678, 64
        %v3381 = vpop.permute.xlu0 %3380
        %3382 = vrot.lane.b32.xlu0 %v2679, 64
        %v3383 = vpop.permute.xlu0 %3382
        %v3417 = vrot.slane %v2678, 1
        %v3418 = vrot.slane %v2679, 1
        %v3419 = vsel %vm816, %v3417, %v3418
        %v3420 = vrot.slane %v2680, 1
        %v3421 = vsel %vm816, %v3418, %v3420
        %3422 = vrot.lane.b32.xlu0 %v2741, 96
        %v3423 = vpop.permute.xlu0 %3422
        %3424 = vrot.lane.b32.xlu0 %v2743, 96
        %v3425 = vpop.permute.xlu0 %3424
        %3426 = vrot.lane.b32.xlu0 %v2746, 96
        %v3427 = vpop.permute.xlu0 %3426
        %3428 = vrot.lane.b32.xlu0 %v2748, 96
        %v3429 = vpop.permute.xlu0 %3428
        %3430 = vrot.lane.b32.xlu0 %v2751, 96
        %v3431 = vpop.permute.xlu0 %3430
        %3432 = vrot.lane.b32.xlu0 %v2753, 96
        %v3433 = vpop.permute.xlu0 %3432
        %3434 = vrot.lane.b32.xlu0 %v2756, 96
        %v3435 = vpop.permute.xlu0 %3434
        %3436 = vrot.lane.b32.xlu0 %v2758, 96
        %v3437 = vpop.permute.xlu0 %3436
        %3438 = vrot.lane.b32.xlu0 %v2761, 96
        %v3439 = vpop.permute.xlu0 %3438
        %3440 = vrot.lane.b32.xlu0 %v2763, 96
        %v3441 = vpop.permute.xlu0 %3440
        %3442 = vrot.lane.b32.xlu0 %v2766, 96
        %v3443 = vpop.permute.xlu0 %3442
        %3444 = vrot.lane.b32.xlu0 %v2768, 96
        %v3445 = vpop.permute.xlu0 %3444
        %3446 = vrot.lane.b32.xlu0 %v2771, 96
        %v3447 = vpop.permute.xlu0 %3446
        %3448 = vrot.lane.b32.xlu0 %v2773, 96
        %v3449 = vpop.permute.xlu0 %3448
        %3450 = vrot.lane.b32.xlu0 %v2776, 96
        %v3451 = vpop.permute.xlu0 %3450
        %3452 = vrot.lane.b32.xlu0 %v2778, 96
        %v3453 = vpop.permute.xlu0 %3452
        %3454 = vrot.lane.b32.xlu0 %v2781, 96
        %v3455 = vpop.permute.xlu0 %3454
        %3456 = vrot.lane.b32.xlu0 %v2783, 96
        %v3457 = vpop.permute.xlu0 %3456
        %3458 = vrot.lane.b32.xlu0 %v2786, 96
        %v3459 = vpop.permute.xlu0 %3458
        %3460 = vrot.lane.b32.xlu0 %v2788, 96
        %v3461 = vpop.permute.xlu0 %3460
        %3462 = vrot.lane.b32.xlu0 %v2791, 96
        %v3463 = vpop.permute.xlu0 %3462
        %3464 = vrot.lane.b32.xlu0 %v2793, 96
        %v3465 = vpop.permute.xlu0 %3464
        %3466 = vrot.lane.b32.xlu0 %v2796, 96
        %v3467 = vpop.permute.xlu0 %3466
        %3468 = vrot.lane.b32.xlu0 %v2798, 96
        %v3469 = vpop.permute.xlu0 %3468
        %3470 = vrot.lane.b32.xlu0 %v2801, 96
        %v3471 = vpop.permute.xlu0 %3470
        %3472 = vrot.lane.b32.xlu0 %v2803, 96
        %v3473 = vpop.permute.xlu0 %3472
        %3474 = vrot.lane.b32.xlu0 %v2806, 96
        %v3475 = vpop.permute.xlu0 %3474
        %3476 = vrot.lane.b32.xlu0 %v2808, 96
        %v3477 = vpop.permute.xlu0 %3476
        %3478 = vrot.lane.b32.xlu0 %v3182, 96
        %v3479 = vpop.permute.xlu0 %3478
        %3480 = vrot.lane.b32.xlu0 %v3184, 96
        %v3481 = vpop.permute.xlu0 %3480
        %3482 = vrot.lane.b32.xlu0 %v3419, 96
        %v3483 = vpop.permute.xlu0 %3482
        %3484 = vrot.lane.b32.xlu0 %v3421, 96
        %v3485 = vpop.permute.xlu0 %3484
        %v3518 = vrot.slane %v2678, 2
        %v3519 = vrot.slane %v2679, 2
        %v3520 = vsel %vm993, %v3518, %v3519
        %v3521 = vrot.slane %v2680, 2
        %v3522 = vsel %vm993, %v3519, %v3521
        %v3555 = vsel %vm2548, %v2627, %v2810
        %v3556 = vsel %vm2548, %v2628, %v2812
        %v3557 = vsel %vm2548, %v2630, %v2814
        %v3558 = vsel %vm2548, %v2631, %v2816
        %v3559 = vsel %vm2548, %v2633, %v2818
        %v3560 = vsel %vm2548, %v2634, %v2820
        %v3561 = vsel %vm2548, %v2636, %v2822
        %v3562 = vsel %vm2548, %v2637, %v2824
        %v3563 = vsel %vm2548, %v2639, %v2826
        %v3564 = vsel %vm2548, %v2640, %v2828
        %v3565 = vsel %vm2548, %v2642, %v2830
        %v3566 = vsel %vm2548, %v2643, %v2832
        %v3567 = vsel %vm2548, %v2645, %v2834
        %v3568 = vsel %vm2548, %v2646, %v2836
        %v3569 = vsel %vm2548, %v2648, %v2838
        %v3570 = vsel %vm2548, %v2649, %v2840
        %v3571 = vsel %vm2548, %v2651, %v2842
        %v3572 = vsel %vm2548, %v2652, %v2844
        %v3573 = vsel %vm2548, %v2654, %v2846
        %v3574 = vsel %vm2548, %v2655, %v2848
        %v3575 = vsel %vm2548, %v2657, %v2850
        %v3576 = vsel %vm2548, %v2658, %v2852
        %v3577 = vsel %vm2548, %v2660, %v2854
        %v3578 = vsel %vm2548, %v2661, %v2856
        %v3579 = vsel %vm2548, %v2663, %v2858
        %v3580 = vsel %vm2548, %v2664, %v2860
        %v3581 = vsel %vm2548, %v2666, %v2862
        %v3582 = vsel %vm2548, %v2667, %v2864
        %v3583 = vsel %vm2548, %v2669, %v2866
        %v3584 = vsel %vm2548, %v2670, %v2868
        %v3585 = vsel %vm2548, %v2672, %v2870
        %v3586 = vsel %vm2548, %v2673, %v2872
        %vm3587 = vcmask 523264
        %v3588 = vsel %vm3587, %v3555, %v2986
        %v3589 = vsel %vm3587, %v3556, %v2988
        %v3590 = vsel %vm3587, %v3557, %v2990
        %v3591 = vsel %vm3587, %v3558, %v2992
        %v3592 = vsel %vm3587, %v3559, %v2994
        %v3593 = vsel %vm3587, %v3560, %v2996
        %v3594 = vsel %vm3587, %v3561, %v2998
        %v3595 = vsel %vm3587, %v3562, %v3000
        %v3596 = vsel %vm3587, %v3563, %v3002
        %v3597 = vsel %vm3587, %v3564, %v3004
        %v3598 = vsel %vm3587, %v3565, %v3006
        %v3599 = vsel %vm3587, %v3566, %v3008
        %v3600 = vsel %vm3587, %v3567, %v3010
        %v3601 = vsel %vm3587, %v3568, %v3012
        %v3602 = vsel %vm3587, %v3569, %v3014
        %v3603 = vsel %vm3587, %v3570, %v3016
        %v3604 = vsel %vm3587, %v3571, %v3018
        %v3605 = vsel %vm3587, %v3572, %v3020
        %v3606 = vsel %vm3587, %v3573, %v3022
        %v3607 = vsel %vm3587, %v3574, %v3024
        %v3608 = vsel %vm3587, %v3575, %v3026
        %v3609 = vsel %vm3587, %v3576, %v3028
        %v3610 = vsel %vm3587, %v3577, %v3030
        %v3611 = vsel %vm3587, %v3578, %v3032
        %v3612 = vsel %vm3587, %v3579, %v3034
        %v3613 = vsel %vm3587, %v3580, %v3036
        %v3614 = vsel %vm3587, %v3581, %v3038
        %v3615 = vsel %vm3587, %v3582, %v3040
        %v3616 = vsel %vm3587, %v3583, %v3042
        %v3617 = vsel %vm3587, %v3584, %v3044
        %v3618 = vsel %vm3587, %v3585, %v3046
        %v3619 = vsel %vm3587, %v3586, %v3048
        %vm3620 = vcmask 785408
        %v3621 = vsel %vm3620, %v3588, %v3084
        %v3622 = vsel %vm3620, %v3589, %v3086
        %v3623 = vsel %vm3620, %v3590, %v3088
        %v3624 = vsel %vm3620, %v3591, %v3090
        %v3625 = vsel %vm3620, %v3592, %v3092
        %v3626 = vsel %vm3620, %v3593, %v3094
        %v3627 = vsel %vm3620, %v3594, %v3096
        %v3628 = vsel %vm3620, %v3595, %v3098
        %v3629 = vsel %vm3620, %v3596, %v3100
        %v3630 = vsel %vm3620, %v3597, %v3102
        %v3631 = vsel %vm3620, %v3598, %v3104
        %v3632 = vsel %vm3620, %v3599, %v3106
        %v3633 = vsel %vm3620, %v3600, %v3108
        %v3634 = vsel %vm3620, %v3601, %v3110
        %v3635 = vsel %vm3620, %v3602, %v3112
        %v3636 = vsel %vm3620, %v3603, %v3114
        %v3637 = vsel %vm3620, %v3604, %v3116
        %v3638 = vsel %vm3620, %v3605, %v3118
        %v3639 = vsel %vm3620, %v3606, %v3120
        %v3640 = vsel %vm3620, %v3607, %v3122
        %v3641 = vsel %vm3620, %v3608, %v3124
        %v3642 = vsel %vm3620, %v3609, %v3126
        %v3643 = vsel %vm3620, %v3610, %v3128
        %v3644 = vsel %vm3620, %v3611, %v3130
        %v3645 = vsel %vm3620, %v3612, %v3132
        %v3646 = vsel %vm3620, %v3613, %v3134
        %v3647 = vsel %vm3620, %v3614, %v3136
        %v3648 = vsel %vm3620, %v3615, %v3138
        %v3649 = vsel %vm3620, %v3616, %v3140
        %v3650 = vsel %vm3620, %v3617, %v3142
        %v3651 = vsel %vm3620, %v3618, %v3144
        %v3652 = vsel %vm3620, %v3619, %v3146
        %v3653 = vsel %vm2548, %v2736, %v3223
        %v3654 = vsel %vm2548, %v2738, %v3225
        %v3655 = vsel %vm2548, %v2741, %v3227
        %v3656 = vsel %vm2548, %v2743, %v3229
        %v3657 = vsel %vm2548, %v2746, %v3231
        %v3658 = vsel %vm2548, %v2748, %v3233
        %v3659 = vsel %vm2548, %v2751, %v3235
        %v3660 = vsel %vm2548, %v2753, %v3237
        %v3661 = vsel %vm2548, %v2756, %v3239
        %v3662 = vsel %vm2548, %v2758, %v3241
        %v3663 = vsel %vm2548, %v2761, %v3243
        %v3664 = vsel %vm2548, %v2763, %v3245
        %v3665 = vsel %vm2548, %v2766, %v3247
        %v3666 = vsel %vm2548, %v2768, %v3249
        %v3667 = vsel %vm2548, %v2771, %v3251
        %v3668 = vsel %vm2548, %v2773, %v3253
        %v3669 = vsel %vm2548, %v2776, %v3255
        %v3670 = vsel %vm2548, %v2778, %v3257
        %v3671 = vsel %vm2548, %v2781, %v3259
        %v3672 = vsel %vm2548, %v2783, %v3261
        %v3673 = vsel %vm2548, %v2786, %v3263
        %v3674 = vsel %vm2548, %v2788, %v3265
        %v3675 = vsel %vm2548, %v2791, %v3267
        %v3676 = vsel %vm2548, %v2793, %v3269
        %v3677 = vsel %vm2548, %v2796, %v3271
        %v3678 = vsel %vm2548, %v2798, %v3273
        %v3679 = vsel %vm2548, %v2801, %v3275
        %v3680 = vsel %vm2548, %v2803, %v3277
        %v3681 = vsel %vm2548, %v2806, %v3279
        %v3682 = vsel %vm2548, %v2808, %v3281
        %v3683 = vsel %vm2548, %v3182, %v3283
        %v3684 = vsel %vm2548, %v3184, %v3285
        %v3685 = vsel %vm3587, %v3653, %v3321
        %v3686 = vsel %vm3587, %v3654, %v3323
        %v3687 = vsel %vm3587, %v3655, %v3325
        %v3688 = vsel %vm3587, %v3656, %v3327
        %v3689 = vsel %vm3587, %v3657, %v3329
        %v3690 = vsel %vm3587, %v3658, %v3331
        %v3691 = vsel %vm3587, %v3659, %v3333
        %v3692 = vsel %vm3587, %v3660, %v3335
        %v3693 = vsel %vm3587, %v3661, %v3337
        %v3694 = vsel %vm3587, %v3662, %v3339
        %v3695 = vsel %vm3587, %v3663, %v3341
        %v3696 = vsel %vm3587, %v3664, %v3343
        %v3697 = vsel %vm3587, %v3665, %v3345
        %v3698 = vsel %vm3587, %v3666, %v3347
        %v3699 = vsel %vm3587, %v3667, %v3349
        %v3700 = vsel %vm3587, %v3668, %v3351
        %v3701 = vsel %vm3587, %v3669, %v3353
        %v3702 = vsel %vm3587, %v3670, %v3355
        %v3703 = vsel %vm3587, %v3671, %v3357
        %v3704 = vsel %vm3587, %v3672, %v3359
        %v3705 = vsel %vm3587, %v3673, %v3361
        %v3706 = vsel %vm3587, %v3674, %v3363
        %v3707 = vsel %vm3587, %v3675, %v3365
        %v3708 = vsel %vm3587, %v3676, %v3367
        %v3709 = vsel %vm3587, %v3677, %v3369
        %v3710 = vsel %vm3587, %v3678, %v3371
        %v3711 = vsel %vm3587, %v3679, %v3373
        %v3712 = vsel %vm3587, %v3680, %v3375
        %v3713 = vsel %vm3587, %v3681, %v3377
        %v3714 = vsel %vm3587, %v3682, %v3379
        %v3715 = vsel %vm3587, %v3683, %v3381
        %v3716 = vsel %vm3587, %v3684, %v3383
        %v3717 = vsel %vm3620, %v3685, %v3423
        %v3718 = vsel %vm3620, %v3686, %v3425
        %v3719 = vsel %vm3620, %v3687, %v3427
        %v3720 = vsel %vm3620, %v3688, %v3429
        %v3721 = vsel %vm3620, %v3689, %v3431
        %v3722 = vsel %vm3620, %v3690, %v3433
        %v3723 = vsel %vm3620, %v3691, %v3435
        %v3724 = vsel %vm3620, %v3692, %v3437
        %v3725 = vsel %vm3620, %v3693, %v3439
        %v3726 = vsel %vm3620, %v3694, %v3441
        %v3727 = vsel %vm3620, %v3695, %v3443
        %v3728 = vsel %vm3620, %v3696, %v3445
        %v3729 = vsel %vm3620, %v3697, %v3447
        %v3730 = vsel %vm3620, %v3698, %v3449
        %v3731 = vsel %vm3620, %v3699, %v3451
        %v3732 = vsel %vm3620, %v3700, %v3453
        %v3733 = vsel %vm3620, %v3701, %v3455
        %v3734 = vsel %vm3620, %v3702, %v3457
        %v3735 = vsel %vm3620, %v3703, %v3459
        %v3736 = vsel %vm3620, %v3704, %v3461
        %v3737 = vsel %vm3620, %v3705, %v3463
        %v3738 = vsel %vm3620, %v3706, %v3465
        %v3739 = vsel %vm3620, %v3707, %v3467
        %v3740 = vsel %vm3620, %v3708, %v3469
        %v3741 = vsel %vm3620, %v3709, %v3471
        %v3742 = vsel %vm3620, %v3710, %v3473
        %v3743 = vsel %vm3620, %v3711, %v3475
        %v3744 = vsel %vm3620, %v3712, %v3477
        %v3745 = vsel %vm3620, %v3713, %v3479
        %v3746 = vsel %vm3620, %v3714, %v3481
        %v3747 = vsel %vm3620, %v3715, %v3483
        %v3748 = vsel %vm3620, %v3716, %v3485
        %v3749 = vpack.c.bf16 %v3622, %v3621
        %v3750 = vpack.c.bf16 %v3718, %v3717
        %v3751 = vpack.c.bf16 %v2919, %v2917
        %v3752 = vpack.c.bf16 %v3624, %v3623
        %v3753 = vpack.c.bf16 %v3720, %v3719
        %v3754 = vpack.c.bf16 %v2924, %v2922
        %v3755 = vpack.c.bf16 %v3626, %v3625
        %v3756 = vpack.c.bf16 %v3722, %v3721
        %v3757 = vpack.c.bf16 %v2929, %v2927
        %v3758 = vpack.c.bf16 %v3628, %v3627
        %v3759 = vpack.c.bf16 %v3724, %v3723
        %v3760 = vpack.c.bf16 %v2934, %v2932
        %v3761 = vpack.c.bf16 %v3630, %v3629
        %v3762 = vpack.c.bf16 %v3726, %v3725
        %v3763 = vpack.c.bf16 %v2939, %v2937
        %v3764 = vpack.c.bf16 %v3632, %v3631
        %v3765 = vpack.c.bf16 %v3728, %v3727
        %v3766 = vpack.c.bf16 %v2944, %v2942
        %v3767 = vpack.c.bf16 %v3634, %v3633
        %v3768 = vpack.c.bf16 %v3730, %v3729
        %v3769 = vpack.c.bf16 %v2949, %v2947
        %v3770 = vpack.c.bf16 %v3636, %v3635
        %v3771 = vpack.c.bf16 %v3732, %v3731
        %v3772 = vpack.c.bf16 %v2954, %v2952
        %v3773 = vpack.c.bf16 %v3638, %v3637
        %v3774 = vpack.c.bf16 %v3734, %v3733
        %v3775 = vpack.c.bf16 %v2959, %v2957
        %v3776 = vpack.c.bf16 %v3640, %v3639
        %v3777 = vpack.c.bf16 %v3736, %v3735
        %v3778 = vpack.c.bf16 %v2964, %v2962
        %v3779 = vpack.c.bf16 %v3642, %v3641
        %v3780 = vpack.c.bf16 %v3738, %v3737
        %v3781 = vpack.c.bf16 %v2969, %v2967
        %v3782 = vpack.c.bf16 %v3644, %v3643
        %v3783 = vpack.c.bf16 %v3740, %v3739
        %v3784 = vpack.c.bf16 %v2974, %v2972
        %v3785 = vpack.c.bf16 %v3646, %v3645
        %v3786 = vpack.c.bf16 %v3742, %v3741
        %v3787 = vpack.c.bf16 %v2979, %v2977
        %v3788 = vpack.c.bf16 %v3648, %v3647
        %v3789 = vpack.c.bf16 %v3744, %v3743
        %v3790 = vpack.c.bf16 %v2984, %v2982
        %v3791 = vpack.c.bf16 %v3650, %v3649
        %v3792 = vpack.c.bf16 %v3746, %v3745
        %v3793 = vpack.c.bf16 %v3221, %v3219
        %v3794 = vpack.c.bf16 %v3652, %v3651
        %v3795 = vpack.c.bf16 %v3748, %v3747
        %v3796 = vpack.c.bf16 %v3522, %v3520
        %v3797 = vld [vmem:[%s2] sm:$0xf]
        %v3798 = vld [vmem:[%s2 + $0x4] sm:$0xf]
        %v3799 = vld [vmem:[%s2 + $0x8] sm:$0xf]
        %v3800 = vld [vmem:[%s2 + $0xc] sm:$0xf]
        %v3801 = vld [vmem:[%s2 + $0x10] sm:$0xf]
        %v3802 = vld [vmem:[%s2 + $0x14] sm:$0xf]
        %v3803 = vld [vmem:[%s2 + $0x18] sm:$0xf]
        %v3804 = vld [vmem:[%s2 + $0x1c] sm:$0xf]
        %v3805 = vld [vmem:[%s2 + $0x20] sm:$0xf]
        %v3806 = vld [vmem:[%s2 + $0x24] sm:$0xf]
        %v3807 = vld [vmem:[%s2 + $0x28] sm:$0xf]
        %v3808 = vld [vmem:[%s2 + $0x2c] sm:$0xf]
        %v3809 = vld [vmem:[%s2 + $0x30] sm:$0xf]
        %v3810 = vld [vmem:[%s2 + $0x34] sm:$0xf]
        %v3811 = vld [vmem:[%s2 + $0x38] sm:$0xf]
        %v3812 = vld [vmem:[%s2 + $0x3c] sm:$0xf]
        %v3813 = vld [vmem:[%s2 + $0x40] sm:$0xf]
        %v3814 = vld [vmem:[%s2 + $0x44] sm:$0xf]
        %v3815 = vld [vmem:[%s2 + $0x48] sm:$0xf]
        %v3816 = vld [vmem:[%s2 + $0x4c] sm:$0xf]
        %v3817 = vld [vmem:[%s2 + $0x50] sm:$0xf]
        %v3818 = vld [vmem:[%s2 + $0x54] sm:$0xf]
        %v3819 = vld [vmem:[%s2 + $0x58] sm:$0xf]
        %v3820 = vld [vmem:[%s2 + $0x5c] sm:$0xf]
        %v3821 = vld [vmem:[%s2 + $0x60] sm:$0xf]
        %v3822 = vld [vmem:[%s2 + $0x64] sm:$0xf]
        %v3823 = vld [vmem:[%s2 + $0x68] sm:$0xf]
        %v3824 = vld [vmem:[%s2 + $0x6c] sm:$0xf]
        %v3825 = vld [vmem:[%s2 + $0x70] sm:$0xf]
        %v3826 = vld [vmem:[%s2 + $0x74] sm:$0xf]
        %v3827 = vld [vmem:[%s2 + $0x78] sm:$0xf]
        %v3828 = vld [vmem:[%s2 + $0x7c] sm:$0xf]
        %v3829 = vld [vmem:[%s2 + $0x80] sm:$0xf]
        %v3830 = vld [vmem:[%s2 + $0x84] sm:$0xf]
        %v3831 = vld [vmem:[%s2 + $0x88] sm:$0xf]
        %v3832 = vld [vmem:[%s2 + $0x8c] sm:$0xf]
        %v3869 = vunpack.c.l.b16 %v3797
        %v3870 = vunpack.c.l.b16 %v3798
        %v3871 = vunpack.c.l.b16 %v3799
        %v3872 = vunpack.c.l.b16 %v3800
        %v3873 = vunpack.c.l.b16 %v3801
        %v3874 = vunpack.c.l.b16 %v3802
        %v3875 = vunpack.c.l.b16 %v3803
        %v3876 = vunpack.c.l.b16 %v3804
        %v3877 = vunpack.c.l.b16 %v3805
        %v3878 = vunpack.c.l.b16 %v3806
        %v3879 = vunpack.c.l.b16 %v3807
        %v3880 = vunpack.c.l.b16 %v3808
        %v3881 = vunpack.c.l.b16 %v3809
        %v3882 = vunpack.c.l.b16 %v3810
        %v3883 = vunpack.c.l.b16 %v3811
        %v3884 = vunpack.c.l.b16 %v3812
        %v3885 = vunpack.c.l.b16 %v3813
        %v3886 = vunpack.c.l.b16 %v3814
        %v3887 = vunpack.c.l.b16 %v3815
        %v3888 = vunpack.c.l.b16 %v3816
        %v3889 = vunpack.c.l.b16 %v3817
        %v3890 = vunpack.c.l.b16 %v3818
        %v3891 = vunpack.c.l.b16 %v3819
        %v3892 = vunpack.c.l.b16 %v3820
        %v3893 = vunpack.c.l.b16 %v3821
        %v3894 = vunpack.c.l.b16 %v3822
        %v3895 = vunpack.c.l.b16 %v3823
        %v3896 = vunpack.c.l.b16 %v3824
        %v3897 = vunpack.c.l.b16 %v3825
        %v3898 = vunpack.c.l.b16 %v3826
        %v3899 = vunpack.c.l.b16 %v3827
        %v3900 = vunpack.c.l.b16 %v3828
        %v3901 = vunpack.c.l.b16 %v3829
        %v3902 = vunpack.c.l.b16 %v3830
        %v3903 = vunpack.c.l.b16 %v3831
        %v3904 = vunpack.c.l.b16 %v3832
        %v3905 = vpack.c.b16 %v3870, %v3869
        %v3906 = vpack.c.b16 %v3872, %v3871
        %v3907 = vpack.c.b16 %v3874, %v3873
        %v3908 = vpack.c.b16 %v3876, %v3875
        %v3909 = vpack.c.b16 %v3878, %v3877
        %v3910 = vpack.c.b16 %v3880, %v3879
        %v3911 = vpack.c.b16 %v3882, %v3881
        %v3912 = vpack.c.b16 %v3884, %v3883
        %v3913 = vpack.c.b16 %v3886, %v3885
        %v3914 = vpack.c.b16 %v3888, %v3887
        %v3915 = vpack.c.b16 %v3890, %v3889
        %v3916 = vpack.c.b16 %v3892, %v3891
        %v3917 = vpack.c.b16 %v3894, %v3893
        %v3918 = vpack.c.b16 %v3896, %v3895
        %v3919 = vpack.c.b16 %v3898, %v3897
        %v3920 = vpack.c.b16 %v3900, %v3899
        %v3921 = vpack.c.b16 %v3902, %v3901
        %v3922 = vpack.c.b16 %v3904, %v3903
        %v3942 = vsel %vm2548, %v3751, 0
        %v3945 = vsel %vm2548, %v3754, 0
        %v3948 = vsel %vm2548, %v3757, 0
        %v3951 = vsel %vm2548, %v3760, 0
        %v3954 = vsel %vm2548, %v3763, 0
        %v3957 = vsel %vm2548, %v3766, 0
        %v3960 = vsel %vm2548, %v3769, 0
        %v3963 = vsel %vm2548, %v3772, 0
        %v3966 = vsel %vm2548, %v3775, 0
        %v3969 = vsel %vm2548, %v3778, 0
        %v3972 = vsel %vm2548, %v3781, 0
        %v3975 = vsel %vm2548, %v3784, 0
        %v3978 = vsel %vm2548, %v3787, 0
        %v3981 = vsel %vm2548, %v3790, 0
        %v3984 = vsel %vm2548, %v3793, 0
        %v3987 = vsel %vm2548, %v3796, 0
        %3989 = vmatprep.subr.bf16.mxu0 0
        %3990 = vmatpush1.bf16.msra.mxu0 %v3912
        %3991 = vmatprep.subr.bf16.mxu0 0
        %3992 = vmatpush1.bf16.msra.mxu0 %v3911
        %3993 = vmatprep.subr.bf16.mxu0 0
        %3994 = vmatpush1.bf16.msra.mxu0 %v3910
        %3995 = vmatprep.subr.bf16.mxu0 0
        %3996 = vmatpush1.bf16.msra.mxu0 %v3909
        %3997 = vmatprep.subr.bf16.mxu0 0
        %3998 = vmatpush1.bf16.msra.mxu0 %v3908
        %3999 = vmatprep.subr.bf16.mxu0 0
        %4000 = vmatpush1.bf16.msra.mxu0 %v3907
        %4001 = vmatprep.subr.bf16.mxu0 0
        %4002 = vmatpush1.bf16.msra.mxu0 %v3906
        %4003 = vmatprep.subr.bf16.mxu0 0
        %4004 = vmatpush1.bf16.msra.mxu0 %v3905
        %4005 = vmatprep.subr.bf16.mxu0 0
        %4006 = vmatpush2.bf16.msra.mxu0 %v3920
        %4007 = vmatprep.subr.bf16.mxu0 0
        %4008 = vmatpush2.bf16.msra.mxu0 %v3919
        %4009 = vmatprep.subr.bf16.mxu0 0
        %4010 = vmatpush2.bf16.msra.mxu0 %v3918
        %4011 = vmatprep.subr.bf16.mxu0 0
        %4012 = vmatpush2.bf16.msra.mxu0 %v3917
        %4013 = vmatprep.subr.bf16.mxu0 0
        %4014 = vmatpush2.bf16.msra.mxu0 %v3916
        %4015 = vmatprep.subr.bf16.mxu0 0
        %4016 = vmatpush2.bf16.msra.mxu0 %v3915
        %4017 = vmatprep.subr.bf16.mxu0 0
        %4018 = vmatpush2.bf16.msra.mxu0 %v3914
        %4019 = vmatprep.subr.bf16.mxu0 0
        %4020 = vmatpush2.bf16.msra.mxu0 %v3913
        %4021 = vmatprep.mubr.bf16.mxu0 %v3750
        %4022 = vmatmul.mubr.bf16.gmra.mxu0 %v3749
        %v4023 = vpop.f32.mrf.mxu0
        %v4024 = vadd.f32 0.0, %v4023
        %v4025 = vpop.f32.mrf.mxu0
        %v4026 = vpop.f32.mrf.mxu0
        %v4027 = vadd.f32 0.0, %v4026
        %v4028 = vpop.f32.mrf.mxu0
        %4029 = vmatprep.mubr.bf16.mxu0 %v3753
        %4030 = vmatmul.mubr.bf16.gmra.mxu0 %v3752
        %v4031 = vpop.f32.mrf.mxu0
        %v4032 = vadd.f32 0.0, %v4031
        %v4033 = vpop.f32.mrf.mxu0
        %v4034 = vpop.f32.mrf.mxu0
        %v4035 = vadd.f32 0.0, %v4034
        %v4036 = vpop.f32.mrf.mxu0
        %4037 = vmatprep.mubr.bf16.mxu0 %v3756
        %4038 = vmatmul.mubr.bf16.gmra.mxu0 %v3755
        %v4039 = vpop.f32.mrf.mxu0
        %v4040 = vadd.f32 0.0, %v4039
        %v4041 = vpop.f32.mrf.mxu0
        %v4042 = vpop.f32.mrf.mxu0
        %v4043 = vadd.f32 0.0, %v4042
        %v4044 = vpop.f32.mrf.mxu0
        %4045 = vmatprep.mubr.bf16.mxu0 %v3759
        %4046 = vmatmul.mubr.bf16.gmra.mxu0 %v3758
        %v4047 = vpop.f32.mrf.mxu0
        %v4048 = vadd.f32 0.0, %v4047
        %v4049 = vpop.f32.mrf.mxu0
        %v4050 = vpop.f32.mrf.mxu0
        %v4051 = vadd.f32 0.0, %v4050
        %v4052 = vpop.f32.mrf.mxu0
        %4053 = vmatprep.mubr.bf16.mxu0 %v3762
        %4054 = vmatmul.mubr.bf16.gmra.mxu0 %v3761
        %v4055 = vpop.f32.mrf.mxu0
        %v4056 = vadd.f32 0.0, %v4055
        %v4057 = vpop.f32.mrf.mxu0
        %v4058 = vpop.f32.mrf.mxu0
        %v4059 = vadd.f32 0.0, %v4058
        %v4060 = vpop.f32.mrf.mxu0
        %4061 = vmatprep.mubr.bf16.mxu0 %v3765
        %4062 = vmatmul.mubr.bf16.gmra.mxu0 %v3764
        %v4063 = vpop.f32.mrf.mxu0
        %v4064 = vadd.f32 0.0, %v4063
        %v4065 = vpop.f32.mrf.mxu0
        %v4066 = vpop.f32.mrf.mxu0
        %v4067 = vadd.f32 0.0, %v4066
        %v4068 = vpop.f32.mrf.mxu0
        %4069 = vmatprep.mubr.bf16.mxu0 %v3768
        %4070 = vmatmul.mubr.bf16.gmra.mxu0 %v3767
        %v4071 = vpop.f32.mrf.mxu0
        %v4072 = vadd.f32 0.0, %v4071
        %v4073 = vpop.f32.mrf.mxu0
        %v4074 = vpop.f32.mrf.mxu0
        %v4075 = vadd.f32 0.0, %v4074
        %v4076 = vpop.f32.mrf.mxu0
        %4077 = vmatprep.mubr.bf16.mxu0 %v3771
        %4078 = vmatmul.mubr.bf16.gmra.mxu0 %v3770
        %v4079 = vpop.f32.mrf.mxu0
        %v4080 = vadd.f32 0.0, %v4079
        %v4081 = vpop.f32.mrf.mxu0
        %v4082 = vpop.f32.mrf.mxu0
        %v4083 = vadd.f32 0.0, %v4082
        %v4084 = vpop.f32.mrf.mxu0
        %4085 = vmatprep.mubr.bf16.mxu0 %v3774
        %4086 = vmatmul.mubr.bf16.gmra.mxu0 %v3773
        %v4087 = vpop.f32.mrf.mxu0
        %v4088 = vadd.f32 0.0, %v4087
        %v4089 = vpop.f32.mrf.mxu0
        %v4090 = vpop.f32.mrf.mxu0
        %v4091 = vadd.f32 0.0, %v4090
        %v4092 = vpop.f32.mrf.mxu0
        %4093 = vmatprep.mubr.bf16.mxu0 %v3777
        %4094 = vmatmul.mubr.bf16.gmra.mxu0 %v3776
        %v4095 = vpop.f32.mrf.mxu0
        %v4096 = vadd.f32 0.0, %v4095
        %v4097 = vpop.f32.mrf.mxu0
        %v4098 = vpop.f32.mrf.mxu0
        %v4099 = vadd.f32 0.0, %v4098
        %v4100 = vpop.f32.mrf.mxu0
        %4101 = vmatprep.mubr.bf16.mxu0 %v3780
        %4102 = vmatmul.mubr.bf16.gmra.mxu0 %v3779
        %v4103 = vpop.f32.mrf.mxu0
        %v4104 = vadd.f32 0.0, %v4103
        %v4105 = vpop.f32.mrf.mxu0
        %v4106 = vpop.f32.mrf.mxu0
        %v4107 = vadd.f32 0.0, %v4106
        %v4108 = vpop.f32.mrf.mxu0
        %4109 = vmatprep.mubr.bf16.mxu0 %v3783
        %4110 = vmatmul.mubr.bf16.gmra.mxu0 %v3782
        %v4111 = vpop.f32.mrf.mxu0
        %v4112 = vadd.f32 0.0, %v4111
        %v4113 = vpop.f32.mrf.mxu0
        %v4114 = vpop.f32.mrf.mxu0
        %v4115 = vadd.f32 0.0, %v4114
        %v4116 = vpop.f32.mrf.mxu0
        %4117 = vmatprep.mubr.bf16.mxu0 %v3786
        %4118 = vmatmul.mubr.bf16.gmra.mxu0 %v3785
        %v4119 = vpop.f32.mrf.mxu0
        %v4120 = vadd.f32 0.0, %v4119
        %v4121 = vpop.f32.mrf.mxu0
        %v4122 = vpop.f32.mrf.mxu0
        %v4123 = vadd.f32 0.0, %v4122
        %v4124 = vpop.f32.mrf.mxu0
        %4125 = vmatprep.mubr.bf16.mxu0 %v3789
        %4126 = vmatmul.mubr.bf16.gmra.mxu0 %v3788
        %v4127 = vpop.f32.mrf.mxu0
        %v4128 = vadd.f32 0.0, %v4127
        %v4129 = vpop.f32.mrf.mxu0
        %v4130 = vpop.f32.mrf.mxu0
        %v4131 = vadd.f32 0.0, %v4130
        %v4132 = vpop.f32.mrf.mxu0
        %4133 = vmatprep.mubr.bf16.mxu0 %v3792
        %4134 = vmatmul.mubr.bf16.gmra.mxu0 %v3791
        %v4135 = vpop.f32.mrf.mxu0
        %v4136 = vadd.f32 0.0, %v4135
        %v4137 = vpop.f32.mrf.mxu0
        %v4138 = vpop.f32.mrf.mxu0
        %v4139 = vadd.f32 0.0, %v4138
        %v4140 = vpop.f32.mrf.mxu0
        %4141 = vmatprep.mubr.bf16.mxu0 %v3795
        %4142 = vmatmul.mubr.bf16.gmra.mxu0 %v3794
        %v4143 = vpop.f32.mrf.mxu0
        %v4144 = vadd.f32 0.0, %v4143
        %v4145 = vpop.f32.mrf.mxu0
        %v4146 = vpop.f32.mrf.mxu0
        %v4147 = vadd.f32 0.0, %v4146
        %v4148 = vpop.f32.mrf.mxu0
        %4149 = vdwg.mxu0
        %4150 = vmatprep.subr.bf16.mxu0 0
        %4151 = vmatpush1.bf16.msra.mxu0 0
        %4152 = vmatprep.subr.bf16.mxu0 0
        %4153 = vmatpush1.bf16.msra.mxu0 0
        %4154 = vmatprep.subr.bf16.mxu0 0
        %4155 = vmatpush1.bf16.msra.mxu0 0
        %4156 = vmatprep.subr.bf16.mxu0 0
        %4157 = vmatpush1.bf16.msra.mxu0 0
        %4158 = vmatprep.subr.bf16.mxu0 0
        %4159 = vmatpush1.bf16.msra.mxu0 0
        %4160 = vmatprep.subr.bf16.mxu0 0
        %4161 = vmatpush1.bf16.msra.mxu0 0
        %4162 = vmatprep.subr.bf16.mxu0 0
        %4163 = vmatpush1.bf16.msra.mxu0 %v3922
        %4164 = vmatprep.subr.bf16.mxu0 0
        %4165 = vmatpush1.bf16.msra.mxu0 %v3921
        %4166 = vmatprep.subr.bf16.mxu0 0
        %4167 = vmatpush2.bf16.msra.mxu0 0
        %4168 = vmatprep.subr.bf16.mxu0 0
        %4169 = vmatpush2.bf16.msra.mxu0 0
        %4170 = vmatprep.subr.bf16.mxu0 0
        %4171 = vmatpush2.bf16.msra.mxu0 0
        %4172 = vmatprep.subr.bf16.mxu0 0
        %4173 = vmatpush2.bf16.msra.mxu0 0
        %4174 = vmatprep.subr.bf16.mxu0 0
        %4175 = vmatpush2.bf16.msra.mxu0 0
        %4176 = vmatprep.subr.bf16.mxu0 0
        %4177 = vmatpush2.bf16.msra.mxu0 0
        %4178 = vmatprep.subr.bf16.mxu0 0
        %4179 = vmatpush2.bf16.msra.mxu0 0
        %4180 = vmatprep.subr.bf16.mxu0 0
        %4181 = vmatpush2.bf16.msra.mxu0 0
        %4182 = vmatprep.mubr.bf16.mxu0 0
        %4183 = vmatmul.mubr.bf16.gmra.mxu0 %v3942
        %v4184 = vpop.f32.mrf.mxu0
        %v4185 = vadd.f32 %v4024, %v4184
        %v4186 = vpop.f32.mrf.mxu0
        %v4187 = vpop.f32.mrf.mxu0
        %v4188 = vadd.f32 %v4027, %v4187
        %v4189 = vpop.f32.mrf.mxu0
        %4190 = vmatprep.mubr.bf16.mxu0 0
        %4191 = vmatmul.mubr.bf16.gmra.mxu0 %v3945
        %v4192 = vpop.f32.mrf.mxu0
        %v4193 = vadd.f32 %v4032, %v4192
        %v4194 = vpop.f32.mrf.mxu0
        %v4195 = vpop.f32.mrf.mxu0
        %v4196 = vadd.f32 %v4035, %v4195
        %v4197 = vpop.f32.mrf.mxu0
        %4198 = vmatprep.mubr.bf16.mxu0 0
        %4199 = vmatmul.mubr.bf16.gmra.mxu0 %v3948
        %v4200 = vpop.f32.mrf.mxu0
        %v4201 = vadd.f32 %v4040, %v4200
        %v4202 = vpop.f32.mrf.mxu0
        %v4203 = vpop.f32.mrf.mxu0
        %v4204 = vadd.f32 %v4043, %v4203
        %v4205 = vpop.f32.mrf.mxu0
        %4206 = vmatprep.mubr.bf16.mxu0 0
        %4207 = vmatmul.mubr.bf16.gmra.mxu0 %v3951
        %v4208 = vpop.f32.mrf.mxu0
        %v4209 = vadd.f32 %v4048, %v4208
        %v4210 = vpop.f32.mrf.mxu0
        %v4211 = vpop.f32.mrf.mxu0
        %v4212 = vadd.f32 %v4051, %v4211
        %v4213 = vpop.f32.mrf.mxu0
        %4214 = vmatprep.mubr.bf16.mxu0 0
        %4215 = vmatmul.mubr.bf16.gmra.mxu0 %v3954
        %v4216 = vpop.f32.mrf.mxu0
        %v4217 = vadd.f32 %v4056, %v4216
        %v4218 = vpop.f32.mrf.mxu0
        %v4219 = vpop.f32.mrf.mxu0
        %v4220 = vadd.f32 %v4059, %v4219
        %v4221 = vpop.f32.mrf.mxu0
        %4222 = vmatprep.mubr.bf16.mxu0 0
        %4223 = vmatmul.mubr.bf16.gmra.mxu0 %v3957
        %v4224 = vpop.f32.mrf.mxu0
        %v4225 = vadd.f32 %v4064, %v4224
        %v4226 = vpop.f32.mrf.mxu0
        %v4227 = vpop.f32.mrf.mxu0
        %v4228 = vadd.f32 %v4067, %v4227
        %v4229 = vpop.f32.mrf.mxu0
        %4230 = vmatprep.mubr.bf16.mxu0 0
        %4231 = vmatmul.mubr.bf16.gmra.mxu0 %v3960
        %v4232 = vpop.f32.mrf.mxu0
        %v4233 = vadd.f32 %v4072, %v4232
        %v4234 = vpop.f32.mrf.mxu0
        %v4235 = vpop.f32.mrf.mxu0
        %v4236 = vadd.f32 %v4075, %v4235
        %v4237 = vpop.f32.mrf.mxu0
        %4238 = vmatprep.mubr.bf16.mxu0 0
        %4239 = vmatmul.mubr.bf16.gmra.mxu0 %v3963
        %v4240 = vpop.f32.mrf.mxu0
        %v4241 = vadd.f32 %v4080, %v4240
        %v4242 = vpop.f32.mrf.mxu0
        %v4243 = vpop.f32.mrf.mxu0
        %v4244 = vadd.f32 %v4083, %v4243
        %v4245 = vpop.f32.mrf.mxu0
        %4246 = vmatprep.mubr.bf16.mxu0 0
        %4247 = vmatmul.mubr.bf16.gmra.mxu0 %v3966
        %v4248 = vpop.f32.mrf.mxu0
        %v4249 = vadd.f32 %v4088, %v4248
        %v4250 = vpop.f32.mrf.mxu0
        %v4251 = vpop.f32.mrf.mxu0
        %v4252 = vadd.f32 %v4091, %v4251
        %v4253 = vpop.f32.mrf.mxu0
        %4254 = vmatprep.mubr.bf16.mxu0 0
        %4255 = vmatmul.mubr.bf16.gmra.mxu0 %v3969
        %v4256 = vpop.f32.mrf.mxu0
        %v4257 = vadd.f32 %v4096, %v4256
        %v4258 = vpop.f32.mrf.mxu0
        %v4259 = vpop.f32.mrf.mxu0
        %v4260 = vadd.f32 %v4099, %v4259
        %v4261 = vpop.f32.mrf.mxu0
        %4262 = vmatprep.mubr.bf16.mxu0 0
        %4263 = vmatmul.mubr.bf16.gmra.mxu0 %v3972
        %v4264 = vpop.f32.mrf.mxu0
        %v4265 = vadd.f32 %v4104, %v4264
        %v4266 = vpop.f32.mrf.mxu0
        %v4267 = vpop.f32.mrf.mxu0
        %v4268 = vadd.f32 %v4107, %v4267
        %v4269 = vpop.f32.mrf.mxu0
        %4270 = vmatprep.mubr.bf16.mxu0 0
        %4271 = vmatmul.mubr.bf16.gmra.mxu0 %v3975
        %v4272 = vpop.f32.mrf.mxu0
        %v4273 = vadd.f32 %v4112, %v4272
        %v4274 = vpop.f32.mrf.mxu0
        %v4275 = vpop.f32.mrf.mxu0
        %v4276 = vadd.f32 %v4115, %v4275
        %v4277 = vpop.f32.mrf.mxu0
        %4278 = vmatprep.mubr.bf16.mxu0 0
        %4279 = vmatmul.mubr.bf16.gmra.mxu0 %v3978
        %v4280 = vpop.f32.mrf.mxu0
        %v4281 = vadd.f32 %v4120, %v4280
        %v4282 = vpop.f32.mrf.mxu0
        %v4283 = vpop.f32.mrf.mxu0
        %v4284 = vadd.f32 %v4123, %v4283
        %v4285 = vpop.f32.mrf.mxu0
        %4286 = vmatprep.mubr.bf16.mxu0 0
        %4287 = vmatmul.mubr.bf16.gmra.mxu0 %v3981
        %v4288 = vpop.f32.mrf.mxu0
        %v4289 = vadd.f32 %v4128, %v4288
        %v4290 = vpop.f32.mrf.mxu0
        %v4291 = vpop.f32.mrf.mxu0
        %v4292 = vadd.f32 %v4131, %v4291
        %v4293 = vpop.f32.mrf.mxu0
        %4294 = vmatprep.mubr.bf16.mxu0 0
        %4295 = vmatmul.mubr.bf16.gmra.mxu0 %v3984
        %v4296 = vpop.f32.mrf.mxu0
        %v4297 = vadd.f32 %v4136, %v4296
        %v4298 = vpop.f32.mrf.mxu0
        %v4299 = vpop.f32.mrf.mxu0
        %v4300 = vadd.f32 %v4139, %v4299
        %v4301 = vpop.f32.mrf.mxu0
        %4302 = vmatprep.mubr.bf16.mxu0 0
        %4303 = vmatmul.mubr.bf16.gmra.mxu0 %v3987
        %v4304 = vpop.f32.mrf.mxu0
        %v4305 = vadd.f32 %v4144, %v4304
        %v4306 = vpop.f32.mrf.mxu0
        %v4307 = vpop.f32.mrf.mxu0
        %v4308 = vadd.f32 %v4147, %v4307
        %v4309 = vpop.f32.mrf.mxu0
        %4310 = vdwg.mxu0
        %v4311 = vmin.f32 %v4185, 0.0
        %v4312 = vmin.f32 %v4188, 0.0
        %v4313 = vmin.f32 %v4193, 0.0
        %v4314 = vmin.f32 %v4196, 0.0
        %v4315 = vmin.f32 %v4201, 0.0
        %v4316 = vmin.f32 %v4204, 0.0
        %v4317 = vmin.f32 %v4209, 0.0
        %v4318 = vmin.f32 %v4212, 0.0
        %v4319 = vmin.f32 %v4217, 0.0
        %v4320 = vmin.f32 %v4220, 0.0
        %v4321 = vmin.f32 %v4225, 0.0
        %v4322 = vmin.f32 %v4228, 0.0
        %v4323 = vmin.f32 %v4233, 0.0
        %v4324 = vmin.f32 %v4236, 0.0
        %v4325 = vmin.f32 %v4241, 0.0
        %v4326 = vmin.f32 %v4244, 0.0
        %v4327 = vmin.f32 %v4249, 0.0
        %v4328 = vmin.f32 %v4252, 0.0
        %v4329 = vmin.f32 %v4257, 0.0
        %v4330 = vmin.f32 %v4260, 0.0
        %v4331 = vmin.f32 %v4265, 0.0
        %v4332 = vmin.f32 %v4268, 0.0
        %v4333 = vmin.f32 %v4273, 0.0
        %v4334 = vmin.f32 %v4276, 0.0
        %v4335 = vmin.f32 %v4281, 0.0
        %v4336 = vmin.f32 %v4284, 0.0
        %v4337 = vmin.f32 %v4289, 0.0
        %v4338 = vmin.f32 %v4292, 0.0
        %v4339 = vmin.f32 %v4297, 0.0
        %v4340 = vmin.f32 %v4300, 0.0
        %v4341 = vmin.f32 %v4305, 0.0
        %v4342 = vmin.f32 %v4308, 0.0
        %v4343 = vmul.f32 %v4311, 1.442695
        %v4344 = vpow.pop %v4343
        %v4345 = vmul.f32 %v4312, 1.442695
        %v4346 = vpow.pop %v4345
        %v4347 = vmul.f32 %v4313, 1.442695
        %v4348 = vpow.pop %v4347
        %v4349 = vmul.f32 %v4314, 1.442695
        %v4350 = vpow.pop %v4349
        %v4351 = vmul.f32 %v4315, 1.442695
        %v4352 = vpow.pop %v4351
        %v4353 = vmul.f32 %v4316, 1.442695
        %v4354 = vpow.pop %v4353
        %v4355 = vmul.f32 %v4317, 1.442695
        %v4356 = vpow.pop %v4355
        %v4357 = vmul.f32 %v4318, 1.442695
        %v4358 = vpow.pop %v4357
        %v4359 = vmul.f32 %v4319, 1.442695
        %v4360 = vpow.pop %v4359
        %v4361 = vmul.f32 %v4320, 1.442695
        %v4362 = vpow.pop %v4361
        %v4363 = vmul.f32 %v4321, 1.442695
        %v4364 = vpow.pop %v4363
        %v4365 = vmul.f32 %v4322, 1.442695
        %v4366 = vpow.pop %v4365
        %v4367 = vmul.f32 %v4323, 1.442695
        %v4368 = vpow.pop %v4367
        %v4369 = vmul.f32 %v4324, 1.442695
        %v4370 = vpow.pop %v4369
        %v4371 = vmul.f32 %v4325, 1.442695
        %v4372 = vpow.pop %v4371
        %v4373 = vmul.f32 %v4326, 1.442695
        %v4374 = vpow.pop %v4373
        %v4375 = vmul.f32 %v4327, 1.442695
        %v4376 = vpow.pop %v4375
        %v4377 = vmul.f32 %v4328, 1.442695
        %v4378 = vpow.pop %v4377
        %v4379 = vmul.f32 %v4329, 1.442695
        %v4380 = vpow.pop %v4379
        %v4381 = vmul.f32 %v4330, 1.442695
        %v4382 = vpow.pop %v4381
        %v4383 = vmul.f32 %v4331, 1.442695
        %v4384 = vpow.pop %v4383
        %v4385 = vmul.f32 %v4332, 1.442695
        %v4386 = vpow.pop %v4385
        %v4387 = vmul.f32 %v4333, 1.442695
        %v4388 = vpow.pop %v4387
        %v4389 = vmul.f32 %v4334, 1.442695
        %v4390 = vpow.pop %v4389
        %v4391 = vmul.f32 %v4335, 1.442695
        %v4392 = vpow.pop %v4391
        %v4393 = vmul.f32 %v4336, 1.442695
        %v4394 = vpow.pop %v4393
        %v4395 = vmul.f32 %v4337, 1.442695
        %v4396 = vpow.pop %v4395
        %v4397 = vmul.f32 %v4338, 1.442695
        %v4398 = vpow.pop %v4397
        %v4399 = vmul.f32 %v4339, 1.442695
        %v4400 = vpow.pop %v4399
        %v4401 = vmul.f32 %v4340, 1.442695
        %v4402 = vpow.pop %v4401
        %v4403 = vmul.f32 %v4341, 1.442695
        %v4404 = vpow.pop %v4403
        %v4405 = vmul.f32 %v4342, 1.442695
        %v4406 = vpow.pop %v4405
        %v4407 = vsub.f32 %v4344, 1.0
        %v4408 = vsub.f32 %v4346, 1.0
        %v4409 = vsub.f32 %v4348, 1.0
        %v4410 = vsub.f32 %v4350, 1.0
        %v4411 = vsub.f32 %v4352, 1.0
        %v4412 = vsub.f32 %v4354, 1.0
        %v4413 = vsub.f32 %v4356, 1.0
        %v4414 = vsub.f32 %v4358, 1.0
        %v4415 = vsub.f32 %v4360, 1.0
        %v4416 = vsub.f32 %v4362, 1.0
        %v4417 = vsub.f32 %v4364, 1.0
        %v4418 = vsub.f32 %v4366, 1.0
        %v4419 = vsub.f32 %v4368, 1.0
        %v4420 = vsub.f32 %v4370, 1.0
        %v4421 = vsub.f32 %v4372, 1.0
        %v4422 = vsub.f32 %v4374, 1.0
        %v4423 = vsub.f32 %v4376, 1.0
        %v4424 = vsub.f32 %v4378, 1.0
        %v4425 = vsub.f32 %v4380, 1.0
        %v4426 = vsub.f32 %v4382, 1.0
        %v4427 = vsub.f32 %v4384, 1.0
        %v4428 = vsub.f32 %v4386, 1.0
        %v4429 = vsub.f32 %v4388, 1.0
        %v4430 = vsub.f32 %v4390, 1.0
        %v4431 = vsub.f32 %v4392, 1.0
        %v4432 = vsub.f32 %v4394, 1.0
        %v4433 = vsub.f32 %v4396, 1.0
        %v4434 = vsub.f32 %v4398, 1.0
        %v4435 = vsub.f32 %v4400, 1.0
        %v4436 = vsub.f32 %v4402, 1.0
        %v4437 = vsub.f32 %v4404, 1.0
        %v4438 = vsub.f32 %v4406, 1.0
        %vm4439 = vcmp.gt.f32.partialorder %v4185, 0.0
        %vm4440 = vcmp.gt.f32.partialorder %v4188, 0.0
        %vm4441 = vcmp.gt.f32.partialorder %v4193, 0.0
        %vm4442 = vcmp.gt.f32.partialorder %v4196, 0.0
        %vm4443 = vcmp.gt.f32.partialorder %v4201, 0.0
        %vm4444 = vcmp.gt.f32.partialorder %v4204, 0.0
        %vm4445 = vcmp.gt.f32.partialorder %v4209, 0.0
        %vm4446 = vcmp.gt.f32.partialorder %v4212, 0.0
        %vm4447 = vcmp.gt.f32.partialorder %v4217, 0.0
        %vm4448 = vcmp.gt.f32.partialorder %v4220, 0.0
        %vm4449 = vcmp.gt.f32.partialorder %v4225, 0.0
        %vm4450 = vcmp.gt.f32.partialorder %v4228, 0.0
        %vm4451 = vcmp.gt.f32.partialorder %v4233, 0.0
        %vm4452 = vcmp.gt.f32.partialorder %v4236, 0.0
        %vm4453 = vcmp.gt.f32.partialorder %v4241, 0.0
        %vm4454 = vcmp.gt.f32.partialorder %v4244, 0.0
        %vm4455 = vcmp.gt.f32.partialorder %v4249, 0.0
        %vm4456 = vcmp.gt.f32.partialorder %v4252, 0.0
        %vm4457 = vcmp.gt.f32.partialorder %v4257, 0.0
        %vm4458 = vcmp.gt.f32.partialorder %v4260, 0.0
        %vm4459 = vcmp.gt.f32.partialorder %v4265, 0.0
        %vm4460 = vcmp.gt.f32.partialorder %v4268, 0.0
        %vm4461 = vcmp.gt.f32.partialorder %v4273, 0.0
        %vm4462 = vcmp.gt.f32.partialorder %v4276, 0.0
        %vm4463 = vcmp.gt.f32.partialorder %v4281, 0.0
        %vm4464 = vcmp.gt.f32.partialorder %v4284, 0.0
        %vm4465 = vcmp.gt.f32.partialorder %v4289, 0.0
        %vm4466 = vcmp.gt.f32.partialorder %v4292, 0.0
        %vm4467 = vcmp.gt.f32.partialorder %v4297, 0.0
        %vm4468 = vcmp.gt.f32.partialorder %v4300, 0.0
        %vm4469 = vcmp.gt.f32.partialorder %v4305, 0.0
        %vm4470 = vcmp.gt.f32.partialorder %v4308, 0.0
        %v4471 = vsel %vm4439, %v4185, %v4407
        %v4472 = vsel %vm4440, %v4188, %v4408
        %v4473 = vsel %vm4441, %v4193, %v4409
        %v4474 = vsel %vm4442, %v4196, %v4410
        %v4475 = vsel %vm4443, %v4201, %v4411
        %v4476 = vsel %vm4444, %v4204, %v4412
        %v4477 = vsel %vm4445, %v4209, %v4413
        %v4478 = vsel %vm4446, %v4212, %v4414
        %v4479 = vsel %vm4447, %v4217, %v4415
        %v4480 = vsel %vm4448, %v4220, %v4416
        %v4481 = vsel %vm4449, %v4225, %v4417
        %v4482 = vsel %vm4450, %v4228, %v4418
        %v4483 = vsel %vm4451, %v4233, %v4419
        %v4484 = vsel %vm4452, %v4236, %v4420
        %v4485 = vsel %vm4453, %v4241, %v4421
        %v4486 = vsel %vm4454, %v4244, %v4422
        %v4487 = vsel %vm4455, %v4249, %v4423
        %v4488 = vsel %vm4456, %v4252, %v4424
        %v4489 = vsel %vm4457, %v4257, %v4425
        %v4490 = vsel %vm4458, %v4260, %v4426
        %v4491 = vsel %vm4459, %v4265, %v4427
        %v4492 = vsel %vm4460, %v4268, %v4428
        %v4493 = vsel %vm4461, %v4273, %v4429
        %v4494 = vsel %vm4462, %v4276, %v4430
        %v4495 = vsel %vm4463, %v4281, %v4431
        %v4496 = vsel %vm4464, %v4284, %v4432
        %v4497 = vsel %vm4465, %v4289, %v4433
        %v4498 = vsel %vm4466, %v4292, %v4434
        %v4499 = vsel %vm4467, %v4297, %v4435
        %v4500 = vsel %vm4468, %v4300, %v4436
        %v4501 = vsel %vm4469, %v4305, %v4437
        %v4502 = vsel %vm4470, %v4308, %v4438
        %v4503 = vld [vmem:[#allocation11] sm:$0x1]
        %v4504 = vlaneseq
        %v4505 = vshrl.u32 %v4504, 7
        %v4506 = vsub.s32 0, %v4505
        %v4507 = vrot.slane %v4503, %v4506
        %v4508 = vmul.f32 %v4471, %v4507
        %v4509 = vmul.f32 %v4472, %v4507
        %v4510 = vmul.f32 %v4473, %v4507
        %v4511 = vmul.f32 %v4474, %v4507
        %v4512 = vmul.f32 %v4475, %v4507
        %v4513 = vmul.f32 %v4476, %v4507
        %v4514 = vmul.f32 %v4477, %v4507
        %v4515 = vmul.f32 %v4478, %v4507
        %v4516 = vmul.f32 %v4479, %v4507
        %v4517 = vmul.f32 %v4480, %v4507
        %v4518 = vmul.f32 %v4481, %v4507
        %v4519 = vmul.f32 %v4482, %v4507
        %v4520 = vmul.f32 %v4483, %v4507
        %v4521 = vmul.f32 %v4484, %v4507
        %v4522 = vmul.f32 %v4485, %v4507
        %v4523 = vmul.f32 %v4486, %v4507
        %v4524 = vmul.f32 %v4487, %v4507
        %v4525 = vmul.f32 %v4488, %v4507
        %v4526 = vmul.f32 %v4489, %v4507
        %v4527 = vmul.f32 %v4490, %v4507
        %v4528 = vmul.f32 %v4491, %v4507
        %v4529 = vmul.f32 %v4492, %v4507
        %v4530 = vmul.f32 %v4493, %v4507
        %v4531 = vmul.f32 %v4494, %v4507
        %v4532 = vmul.f32 %v4495, %v4507
        %v4533 = vmul.f32 %v4496, %v4507
        %v4534 = vmul.f32 %v4497, %v4507
        %v4535 = vmul.f32 %v4498, %v4507
        %v4536 = vmul.f32 %v4499, %v4507
        %v4537 = vmul.f32 %v4500, %v4507
        %v4538 = vmul.f32 %v4501, %v4507
        %v4539 = vmul.f32 %v4502, %v4507
        %v4540 = vld [vmem:[#allocation11 + $0x1] sm:$0x1]
        %v4541 = vlaneseq
        %v4542 = vshrl.u32 %v4541, 7
        %v4543 = vsub.s32 0, %v4542
        %v4544 = vrot.slane %v4540, %v4543
        %v4545 = vadd.f32 %v4508, %v4544
        %v4546 = vadd.f32 %v4509, %v4544
        %v4547 = vadd.f32 %v4510, %v4544
        %v4548 = vadd.f32 %v4511, %v4544
        %v4549 = vadd.f32 %v4512, %v4544
        %v4550 = vadd.f32 %v4513, %v4544
        %v4551 = vadd.f32 %v4514, %v4544
        %v4552 = vadd.f32 %v4515, %v4544
        %v4553 = vadd.f32 %v4516, %v4544
        %v4554 = vadd.f32 %v4517, %v4544
        %v4555 = vadd.f32 %v4518, %v4544
        %v4556 = vadd.f32 %v4519, %v4544
        %v4557 = vadd.f32 %v4520, %v4544
        %v4558 = vadd.f32 %v4521, %v4544
        %v4559 = vadd.f32 %v4522, %v4544
        %v4560 = vadd.f32 %v4523, %v4544
        %v4561 = vadd.f32 %v4524, %v4544
        %v4562 = vadd.f32 %v4525, %v4544
        %v4563 = vadd.f32 %v4526, %v4544
        %v4564 = vadd.f32 %v4527, %v4544
        %v4565 = vadd.f32 %v4528, %v4544
        %v4566 = vadd.f32 %v4529, %v4544
        %v4567 = vadd.f32 %v4530, %v4544
        %v4568 = vadd.f32 %v4531, %v4544
        %v4569 = vadd.f32 %v4532, %v4544
        %v4570 = vadd.f32 %v4533, %v4544
        %v4571 = vadd.f32 %v4534, %v4544
        %v4572 = vadd.f32 %v4535, %v4544
        %v4573 = vadd.f32 %v4536, %v4544
        %v4574 = vadd.f32 %v4537, %v4544
        %v4575 = vadd.f32 %v4538, %v4544
        %v4576 = vadd.f32 %v4539, %v4544
        %v4577 = vsel %vm2548, %v4545, -inf
        %v4578 = vsel %vm2548, %v4547, -inf
        %v4579 = vmax.f32 %v4577, %v4578
        %v4580 = vsel %vm2548, %v4546, -inf
        %v4581 = vsel %vm2548, %v4548, -inf
        %v4582 = vmax.f32 %v4580, %v4581
        %v4583 = vsel %vm2548, %v4549, -inf
        %v4584 = vsel %vm2548, %v4551, -inf
        %v4585 = vmax.f32 %v4583, %v4584
        %v4586 = vsel %vm2548, %v4550, -inf
        %v4587 = vsel %vm2548, %v4552, -inf
        %v4588 = vmax.f32 %v4586, %v4587
        %v4589 = vsel %vm2548, %v4553, -inf
        %v4590 = vsel %vm2548, %v4555, -inf
        %v4591 = vmax.f32 %v4589, %v4590
        %v4592 = vsel %vm2548, %v4554, -inf
        %v4593 = vsel %vm2548, %v4556, -inf
        %v4594 = vmax.f32 %v4592, %v4593
        %v4595 = vsel %vm2548, %v4557, -inf
        %v4596 = vsel %vm2548, %v4559, -inf
        %v4597 = vmax.f32 %v4595, %v4596
        %v4598 = vsel %vm2548, %v4558, -inf
        %v4599 = vsel %vm2548, %v4560, -inf
        %v4600 = vmax.f32 %v4598, %v4599
        %v4601 = vsel %vm2548, %v4561, -inf
        %v4602 = vsel %vm2548, %v4563, -inf
        %v4603 = vmax.f32 %v4601, %v4602
        %v4604 = vsel %vm2548, %v4562, -inf
        %v4605 = vsel %vm2548, %v4564, -inf
        %v4606 = vmax.f32 %v4604, %v4605
        %v4607 = vsel %vm2548, %v4565, -inf
        %v4608 = vsel %vm2548, %v4567, -inf
        %v4609 = vmax.f32 %v4607, %v4608
        %v4610 = vsel %vm2548, %v4566, -inf
        %v4611 = vsel %vm2548, %v4568, -inf
        %v4612 = vmax.f32 %v4610, %v4611
        %v4613 = vsel %vm2548, %v4569, -inf
        %v4614 = vsel %vm2548, %v4571, -inf
        %v4615 = vmax.f32 %v4613, %v4614
        %v4616 = vsel %vm2548, %v4570, -inf
        %v4617 = vsel %vm2548, %v4572, -inf
        %v4618 = vmax.f32 %v4616, %v4617
        %v4619 = vsel %vm2548, %v4573, -inf
        %v4620 = vsel %vm2548, %v4575, -inf
        %v4621 = vmax.f32 %v4619, %v4620
        %v4622 = vsel %vm2548, %v4574, -inf
        %v4623 = vsel %vm2548, %v4576, -inf
        %v4624 = vmax.f32 %v4622, %v4623
        %v4641 = vcombine.high %v4579, %v4579
        %v4643 = vunpack.c.l.s4 1983009808
        %v4644 = vunpack.c.0.s8 %v4643
        %v4645 = vlaneseq
        %v4646 = vshrl.u32 %v4645, 7
        %v4647 = vsub.s32 %v4644, %v4646
        %v4648 = vrot.slane %v4579, %v4647
        %v4650 = vunpack.c.l.s4 1983009808
        %v4651 = vunpack.c.0.s8 %v4650
        %v4652 = vlaneseq
        %v4653 = vshrl.u32 %v4652, 7
        %v4654 = vsub.s32 %v4651, %v4653
        %v4655 = vrot.slane %v4641, %v4654
        %v4656 = vcombine.high %v4648, %v4648
        %v4657 = vcombine.high %v4655, %v4655
        %v4658 = vcombine.high %v4582, %v4582
        %v4660 = vunpack.c.l.s4 1983009808
        %v4661 = vunpack.c.0.s8 %v4660
        %v4662 = vlaneseq
        %v4663 = vshrl.u32 %v4662, 7
        %v4664 = vsub.s32 %v4661, %v4663
        %v4665 = vrot.slane %v4582, %v4664
        %v4667 = vunpack.c.l.s4 1983009808
        %v4668 = vunpack.c.0.s8 %v4667
        %v4669 = vlaneseq
        %v4670 = vshrl.u32 %v4669, 7
        %v4671 = vsub.s32 %v4668, %v4670
        %v4672 = vrot.slane %v4658, %v4671
        %v4673 = vcombine.high %v4665, %v4665
        %v4674 = vcombine.high %v4672, %v4672
        %v4675 = vcombine.high %v4585, %v4585
        %v4677 = vunpack.c.l.s4 1983009808
        %v4678 = vunpack.c.0.s8 %v4677
        %v4679 = vlaneseq
        %v4680 = vshrl.u32 %v4679, 7
        %v4681 = vsub.s32 %v4678, %v4680
        %v4682 = vrot.slane %v4585, %v4681
        %v4684 = vunpack.c.l.s4 1983009808
        %v4685 = vunpack.c.0.s8 %v4684
        %v4686 = vlaneseq
        %v4687 = vshrl.u32 %v4686, 7
        %v4688 = vsub.s32 %v4685, %v4687
        %v4689 = vrot.slane %v4675, %v4688
        %v4690 = vcombine.high %v4682, %v4682
        %v4691 = vcombine.high %v4689, %v4689
        %v4692 = vcombine.high %v4588, %v4588
        %v4694 = vunpack.c.l.s4 1983009808
        %v4695 = vunpack.c.0.s8 %v4694
        %v4696 = vlaneseq
        %v4697 = vshrl.u32 %v4696, 7
        %v4698 = vsub.s32 %v4695, %v4697
        %v4699 = vrot.slane %v4588, %v4698
        %v4701 = vunpack.c.l.s4 1983009808
        %v4702 = vunpack.c.0.s8 %v4701
        %v4703 = vlaneseq
        %v4704 = vshrl.u32 %v4703, 7
        %v4705 = vsub.s32 %v4702, %v4704
        %v4706 = vrot.slane %v4692, %v4705
        %v4707 = vcombine.high %v4699, %v4699
        %v4708 = vcombine.high %v4706, %v4706
        %v4709 = vcombine.high %v4591, %v4591
        %v4711 = vunpack.c.l.s4 1983009808
        %v4712 = vunpack.c.0.s8 %v4711
        %v4713 = vlaneseq
        %v4714 = vshrl.u32 %v4713, 7
        %v4715 = vsub.s32 %v4712, %v4714
        %v4716 = vrot.slane %v4591, %v4715
        %v4718 = vunpack.c.l.s4 1983009808
        %v4719 = vunpack.c.0.s8 %v4718
        %v4720 = vlaneseq
        %v4721 = vshrl.u32 %v4720, 7
        %v4722 = vsub.s32 %v4719, %v4721
        %v4723 = vrot.slane %v4709, %v4722
        %v4724 = vcombine.high %v4716, %v4716
        %v4725 = vcombine.high %v4723, %v4723
        %v4726 = vcombine.high %v4594, %v4594
        %v4728 = vunpack.c.l.s4 1983009808
        %v4729 = vunpack.c.0.s8 %v4728
        %v4730 = vlaneseq
        %v4731 = vshrl.u32 %v4730, 7
        %v4732 = vsub.s32 %v4729, %v4731
        %v4733 = vrot.slane %v4594, %v4732
        %v4735 = vunpack.c.l.s4 1983009808
        %v4736 = vunpack.c.0.s8 %v4735
        %v4737 = vlaneseq
        %v4738 = vshrl.u32 %v4737, 7
        %v4739 = vsub.s32 %v4736, %v4738
        %v4740 = vrot.slane %v4726, %v4739
        %v4741 = vcombine.high %v4733, %v4733
        %v4742 = vcombine.high %v4740, %v4740
        %v4743 = vcombine.high %v4597, %v4597
        %v4745 = vunpack.c.l.s4 1983009808
        %v4746 = vunpack.c.0.s8 %v4745
        %v4747 = vlaneseq
        %v4748 = vshrl.u32 %v4747, 7
        %v4749 = vsub.s32 %v4746, %v4748
        %v4750 = vrot.slane %v4597, %v4749
        %v4752 = vunpack.c.l.s4 1983009808
        %v4753 = vunpack.c.0.s8 %v4752
        %v4754 = vlaneseq
        %v4755 = vshrl.u32 %v4754, 7
        %v4756 = vsub.s32 %v4753, %v4755
        %v4757 = vrot.slane %v4743, %v4756
        %v4758 = vcombine.high %v4750, %v4750
        %v4759 = vcombine.high %v4757, %v4757
        %v4760 = vcombine.high %v4600, %v4600
        %v4762 = vunpack.c.l.s4 1983009808
        %v4763 = vunpack.c.0.s8 %v4762
        %v4764 = vlaneseq
        %v4765 = vshrl.u32 %v4764, 7
        %v4766 = vsub.s32 %v4763, %v4765
        %v4767 = vrot.slane %v4600, %v4766
        %v4769 = vunpack.c.l.s4 1983009808
        %v4770 = vunpack.c.0.s8 %v4769
        %v4771 = vlaneseq
        %v4772 = vshrl.u32 %v4771, 7
        %v4773 = vsub.s32 %v4770, %v4772
        %v4774 = vrot.slane %v4760, %v4773
        %v4775 = vcombine.high %v4767, %v4767
        %v4776 = vcombine.high %v4774, %v4774
        %v4777 = vcombine.high %v4603, %v4603
        %v4779 = vunpack.c.l.s4 1983009808
        %v4780 = vunpack.c.0.s8 %v4779
        %v4781 = vlaneseq
        %v4782 = vshrl.u32 %v4781, 7
        %v4783 = vsub.s32 %v4780, %v4782
        %v4784 = vrot.slane %v4603, %v4783
        %v4786 = vunpack.c.l.s4 1983009808
        %v4787 = vunpack.c.0.s8 %v4786
        %v4788 = vlaneseq
        %v4789 = vshrl.u32 %v4788, 7
        %v4790 = vsub.s32 %v4787, %v4789
        %v4791 = vrot.slane %v4777, %v4790
        %v4792 = vcombine.high %v4784, %v4784
        %v4793 = vcombine.high %v4791, %v4791
        %v4794 = vcombine.high %v4606, %v4606
        %v4796 = vunpack.c.l.s4 1983009808
        %v4797 = vunpack.c.0.s8 %v4796
        %v4798 = vlaneseq
        %v4799 = vshrl.u32 %v4798, 7
        %v4800 = vsub.s32 %v4797, %v4799
        %v4801 = vrot.slane %v4606, %v4800
        %v4803 = vunpack.c.l.s4 1983009808
        %v4804 = vunpack.c.0.s8 %v4803
        %v4805 = vlaneseq
        %v4806 = vshrl.u32 %v4805, 7
        %v4807 = vsub.s32 %v4804, %v4806
        %v4808 = vrot.slane %v4794, %v4807
        %v4809 = vcombine.high %v4801, %v4801
        %v4810 = vcombine.high %v4808, %v4808
        %v4811 = vcombine.high %v4609, %v4609
        %v4813 = vunpack.c.l.s4 1983009808
        %v4814 = vunpack.c.0.s8 %v4813
        %v4815 = vlaneseq
        %v4816 = vshrl.u32 %v4815, 7
        %v4817 = vsub.s32 %v4814, %v4816
        %v4818 = vrot.slane %v4609, %v4817
        %v4820 = vunpack.c.l.s4 1983009808
        %v4821 = vunpack.c.0.s8 %v4820
        %v4822 = vlaneseq
        %v4823 = vshrl.u32 %v4822, 7
        %v4824 = vsub.s32 %v4821, %v4823
        %v4825 = vrot.slane %v4811, %v4824
        %v4826 = vcombine.high %v4818, %v4818
        %v4827 = vcombine.high %v4825, %v4825
        %v4828 = vcombine.high %v4612, %v4612
        %v4830 = vunpack.c.l.s4 1983009808
        %v4831 = vunpack.c.0.s8 %v4830
        %v4832 = vlaneseq
        %v4833 = vshrl.u32 %v4832, 7
        %v4834 = vsub.s32 %v4831, %v4833
        %v4835 = vrot.slane %v4612, %v4834
        %v4837 = vunpack.c.l.s4 1983009808
        %v4838 = vunpack.c.0.s8 %v4837
        %v4839 = vlaneseq
        %v4840 = vshrl.u32 %v4839, 7
        %v4841 = vsub.s32 %v4838, %v4840
        %v4842 = vrot.slane %v4828, %v4841
        %v4843 = vcombine.high %v4835, %v4835
        %v4844 = vcombine.high %v4842, %v4842
        %v4845 = vcombine.high %v4615, %v4615
        %v4847 = vunpack.c.l.s4 1983009808
        %v4848 = vunpack.c.0.s8 %v4847
        %v4849 = vlaneseq
        %v4850 = vshrl.u32 %v4849, 7
        %v4851 = vsub.s32 %v4848, %v4850
        %v4852 = vrot.slane %v4615, %v4851
        %v4854 = vunpack.c.l.s4 1983009808
        %v4855 = vunpack.c.0.s8 %v4854
        %v4856 = vlaneseq
        %v4857 = vshrl.u32 %v4856, 7
        %v4858 = vsub.s32 %v4855, %v4857
        %v4859 = vrot.slane %v4845, %v4858
        %v4860 = vcombine.high %v4852, %v4852
        %v4861 = vcombine.high %v4859, %v4859
        %v4862 = vcombine.high %v4618, %v4618
        %v4864 = vunpack.c.l.s4 1983009808
        %v4865 = vunpack.c.0.s8 %v4864
        %v4866 = vlaneseq
        %v4867 = vshrl.u32 %v4866, 7
        %v4868 = vsub.s32 %v4865, %v4867
        %v4869 = vrot.slane %v4618, %v4868
        %v4871 = vunpack.c.l.s4 1983009808
        %v4872 = vunpack.c.0.s8 %v4871
        %v4873 = vlaneseq
        %v4874 = vshrl.u32 %v4873, 7
        %v4875 = vsub.s32 %v4872, %v4874
        %v4876 = vrot.slane %v4862, %v4875
        %v4877 = vcombine.high %v4869, %v4869
        %v4878 = vcombine.high %v4876, %v4876
        %v4879 = vcombine.high %v4621, %v4621
        %v4881 = vunpack.c.l.s4 1983009808
        %v4882 = vunpack.c.0.s8 %v4881
        %v4883 = vlaneseq
        %v4884 = vshrl.u32 %v4883, 7
        %v4885 = vsub.s32 %v4882, %v4884
        %v4886 = vrot.slane %v4621, %v4885
        %v4888 = vunpack.c.l.s4 1983009808
        %v4889 = vunpack.c.0.s8 %v4888
        %v4890 = vlaneseq
        %v4891 = vshrl.u32 %v4890, 7
        %v4892 = vsub.s32 %v4889, %v4891
        %v4893 = vrot.slane %v4879, %v4892
        %v4894 = vcombine.high %v4886, %v4886
        %v4895 = vcombine.high %v4893, %v4893
        %v4896 = vcombine.high %v4624, %v4624
        %v4898 = vunpack.c.l.s4 1983009808
        %v4899 = vunpack.c.0.s8 %v4898
        %v4900 = vlaneseq
        %v4901 = vshrl.u32 %v4900, 7
        %v4902 = vsub.s32 %v4899, %v4901
        %v4903 = vrot.slane %v4624, %v4902
        %v4905 = vunpack.c.l.s4 1983009808
        %v4906 = vunpack.c.0.s8 %v4905
        %v4907 = vlaneseq
        %v4908 = vshrl.u32 %v4907, 7
        %v4909 = vsub.s32 %v4906, %v4908
        %v4910 = vrot.slane %v4896, %v4909
        %v4911 = vcombine.high %v4903, %v4903
        %v4912 = vcombine.high %v4910, %v4910
        %v4977 = vsel %vm2551, %v4648, -inf
        %v4978 = vrot.slane %v4977, 4
        %v4979 = vmax.f32 %v4977, %v4978
        %v4980 = vrot.slane %v4979, 2
        %v4981 = vmax.f32 %v4979, %v4980
        %v4982 = vrot.slane %v4981, 1
        %v4983 = vmax.f32 %v4981, %v4982
        %v4984 = vsel %vm2551, %v4656, -inf
        %v4985 = vrot.slane %v4984, 4
        %v4986 = vmax.f32 %v4984, %v4985
        %v4987 = vrot.slane %v4986, 2
        %v4988 = vmax.f32 %v4986, %v4987
        %v4989 = vrot.slane %v4988, 1
        %v4990 = vmax.f32 %v4988, %v4989
        %v4991 = vsel %vm2551, %v4655, -inf
        %v4992 = vrot.slane %v4991, 4
        %v4993 = vmax.f32 %v4991, %v4992
        %v4994 = vrot.slane %v4993, 2
        %v4995 = vmax.f32 %v4993, %v4994
        %v4996 = vrot.slane %v4995, 1
        %v4997 = vmax.f32 %v4995, %v4996
        %v4998 = vsel %vm2551, %v4657, -inf
        %v4999 = vrot.slane %v4998, 4
        %v5000 = vmax.f32 %v4998, %v4999
        %v5001 = vrot.slane %v5000, 2
        %v5002 = vmax.f32 %v5000, %v5001
        %v5003 = vrot.slane %v5002, 1
        %v5004 = vmax.f32 %v5002, %v5003
        %v5005 = vsel %vm2551, %v4665, -inf
        %v5006 = vrot.slane %v5005, 4
        %v5007 = vmax.f32 %v5005, %v5006
        %v5008 = vrot.slane %v5007, 2
        %v5009 = vmax.f32 %v5007, %v5008
        %v5010 = vrot.slane %v5009, 1
        %v5011 = vmax.f32 %v5009, %v5010
        %v5012 = vsel %vm2551, %v4673, -inf
        %v5013 = vrot.slane %v5012, 4
        %v5014 = vmax.f32 %v5012, %v5013
        %v5015 = vrot.slane %v5014, 2
        %v5016 = vmax.f32 %v5014, %v5015
        %v5017 = vrot.slane %v5016, 1
        %v5018 = vmax.f32 %v5016, %v5017
        %v5019 = vsel %vm2551, %v4672, -inf
        %v5020 = vrot.slane %v5019, 4
        %v5021 = vmax.f32 %v5019, %v5020
        %v5022 = vrot.slane %v5021, 2
        %v5023 = vmax.f32 %v5021, %v5022
        %v5024 = vrot.slane %v5023, 1
        %v5025 = vmax.f32 %v5023, %v5024
        %v5026 = vsel %vm2551, %v4674, -inf
        %v5027 = vrot.slane %v5026, 4
        %v5028 = vmax.f32 %v5026, %v5027
        %v5029 = vrot.slane %v5028, 2
        %v5030 = vmax.f32 %v5028, %v5029
        %v5031 = vrot.slane %v5030, 1
        %v5032 = vmax.f32 %v5030, %v5031
        %v5033 = vsel %vm2551, %v4682, -inf
        %v5034 = vrot.slane %v5033, 4
        %v5035 = vmax.f32 %v5033, %v5034
        %v5036 = vrot.slane %v5035, 2
        %v5037 = vmax.f32 %v5035, %v5036
        %v5038 = vrot.slane %v5037, 1
        %v5039 = vmax.f32 %v5037, %v5038
        %v5040 = vsel %vm2551, %v4690, -inf
        %v5041 = vrot.slane %v5040, 4
        %v5042 = vmax.f32 %v5040, %v5041
        %v5043 = vrot.slane %v5042, 2
        %v5044 = vmax.f32 %v5042, %v5043
        %v5045 = vrot.slane %v5044, 1
        %v5046 = vmax.f32 %v5044, %v5045
        %v5047 = vsel %vm2551, %v4689, -inf
        %v5048 = vrot.slane %v5047, 4
        %v5049 = vmax.f32 %v5047, %v5048
        %v5050 = vrot.slane %v5049, 2
        %v5051 = vmax.f32 %v5049, %v5050
        %v5052 = vrot.slane %v5051, 1
        %v5053 = vmax.f32 %v5051, %v5052
        %v5054 = vsel %vm2551, %v4691, -inf
        %v5055 = vrot.slane %v5054, 4
        %v5056 = vmax.f32 %v5054, %v5055
        %v5057 = vrot.slane %v5056, 2
        %v5058 = vmax.f32 %v5056, %v5057
        %v5059 = vrot.slane %v5058, 1
        %v5060 = vmax.f32 %v5058, %v5059
        %v5061 = vsel %vm2551, %v4699, -inf
        %v5062 = vrot.slane %v5061, 4
        %v5063 = vmax.f32 %v5061, %v5062
        %v5064 = vrot.slane %v5063, 2
        %v5065 = vmax.f32 %v5063, %v5064
        %v5066 = vrot.slane %v5065, 1
        %v5067 = vmax.f32 %v5065, %v5066
        %v5068 = vsel %vm2551, %v4707, -inf
        %v5069 = vrot.slane %v5068, 4
        %v5070 = vmax.f32 %v5068, %v5069
        %v5071 = vrot.slane %v5070, 2
        %v5072 = vmax.f32 %v5070, %v5071
        %v5073 = vrot.slane %v5072, 1
        %v5074 = vmax.f32 %v5072, %v5073
        %v5075 = vsel %vm2551, %v4706, -inf
        %v5076 = vrot.slane %v5075, 4
        %v5077 = vmax.f32 %v5075, %v5076
        %v5078 = vrot.slane %v5077, 2
        %v5079 = vmax.f32 %v5077, %v5078
        %v5080 = vrot.slane %v5079, 1
        %v5081 = vmax.f32 %v5079, %v5080
        %v5082 = vsel %vm2551, %v4708, -inf
        %v5083 = vrot.slane %v5082, 4
        %v5084 = vmax.f32 %v5082, %v5083
        %v5085 = vrot.slane %v5084, 2
        %v5086 = vmax.f32 %v5084, %v5085
        %v5087 = vrot.slane %v5086, 1
        %v5088 = vmax.f32 %v5086, %v5087
        %v5089 = vsel %vm2551, %v4716, -inf
        %v5090 = vrot.slane %v5089, 4
        %v5091 = vmax.f32 %v5089, %v5090
        %v5092 = vrot.slane %v5091, 2
        %v5093 = vmax.f32 %v5091, %v5092
        %v5094 = vrot.slane %v5093, 1
        %v5095 = vmax.f32 %v5093, %v5094
        %v5096 = vsel %vm2551, %v4724, -inf
        %v5097 = vrot.slane %v5096, 4
        %v5098 = vmax.f32 %v5096, %v5097
        %v5099 = vrot.slane %v5098, 2
        %v5100 = vmax.f32 %v5098, %v5099
        %v5101 = vrot.slane %v5100, 1
        %v5102 = vmax.f32 %v5100, %v5101
        %v5103 = vsel %vm2551, %v4723, -inf
        %v5104 = vrot.slane %v5103, 4
        %v5105 = vmax.f32 %v5103, %v5104
        %v5106 = vrot.slane %v5105, 2
        %v5107 = vmax.f32 %v5105, %v5106
        %v5108 = vrot.slane %v5107, 1
        %v5109 = vmax.f32 %v5107, %v5108
        %v5110 = vsel %vm2551, %v4725, -inf
        %v5111 = vrot.slane %v5110, 4
        %v5112 = vmax.f32 %v5110, %v5111
        %v5113 = vrot.slane %v5112, 2
        %v5114 = vmax.f32 %v5112, %v5113
        %v5115 = vrot.slane %v5114, 1
        %v5116 = vmax.f32 %v5114, %v5115
        %v5117 = vsel %vm2551, %v4733, -inf
        %v5118 = vrot.slane %v5117, 4
        %v5119 = vmax.f32 %v5117, %v5118
        %v5120 = vrot.slane %v5119, 2
        %v5121 = vmax.f32 %v5119, %v5120
        %v5122 = vrot.slane %v5121, 1
        %v5123 = vmax.f32 %v5121, %v5122
        %v5124 = vsel %vm2551, %v4741, -inf
        %v5125 = vrot.slane %v5124, 4
        %v5126 = vmax.f32 %v5124, %v5125
        %v5127 = vrot.slane %v5126, 2
        %v5128 = vmax.f32 %v5126, %v5127
        %v5129 = vrot.slane %v5128, 1
        %v5130 = vmax.f32 %v5128, %v5129
        %v5131 = vsel %vm2551, %v4740, -inf
        %v5132 = vrot.slane %v5131, 4
        %v5133 = vmax.f32 %v5131, %v5132
        %v5134 = vrot.slane %v5133, 2
        %v5135 = vmax.f32 %v5133, %v5134
        %v5136 = vrot.slane %v5135, 1
        %v5137 = vmax.f32 %v5135, %v5136
        %v5138 = vsel %vm2551, %v4742, -inf
        %v5139 = vrot.slane %v5138, 4
        %v5140 = vmax.f32 %v5138, %v5139
        %v5141 = vrot.slane %v5140, 2
        %v5142 = vmax.f32 %v5140, %v5141
        %v5143 = vrot.slane %v5142, 1
        %v5144 = vmax.f32 %v5142, %v5143
        %v5145 = vsel %vm2551, %v4750, -inf
        %v5146 = vrot.slane %v5145, 4
        %v5147 = vmax.f32 %v5145, %v5146
        %v5148 = vrot.slane %v5147, 2
        %v5149 = vmax.f32 %v5147, %v5148
        %v5150 = vrot.slane %v5149, 1
        %v5151 = vmax.f32 %v5149, %v5150
        %v5152 = vsel %vm2551, %v4758, -inf
        %v5153 = vrot.slane %v5152, 4
        %v5154 = vmax.f32 %v5152, %v5153
        %v5155 = vrot.slane %v5154, 2
        %v5156 = vmax.f32 %v5154, %v5155
        %v5157 = vrot.slane %v5156, 1
        %v5158 = vmax.f32 %v5156, %v5157
        %v5159 = vsel %vm2551, %v4757, -inf
        %v5160 = vrot.slane %v5159, 4
        %v5161 = vmax.f32 %v5159, %v5160
        %v5162 = vrot.slane %v5161, 2
        %v5163 = vmax.f32 %v5161, %v5162
        %v5164 = vrot.slane %v5163, 1
        %v5165 = vmax.f32 %v5163, %v5164
        %v5166 = vsel %vm2551, %v4759, -inf
        %v5167 = vrot.slane %v5166, 4
        %v5168 = vmax.f32 %v5166, %v5167
        %v5169 = vrot.slane %v5168, 2
        %v5170 = vmax.f32 %v5168, %v5169
        %v5171 = vrot.slane %v5170, 1
        %v5172 = vmax.f32 %v5170, %v5171
        %v5173 = vsel %vm2551, %v4767, -inf
        %v5174 = vrot.slane %v5173, 4
        %v5175 = vmax.f32 %v5173, %v5174
        %v5176 = vrot.slane %v5175, 2
        %v5177 = vmax.f32 %v5175, %v5176
        %v5178 = vrot.slane %v5177, 1
        %v5179 = vmax.f32 %v5177, %v5178
        %v5180 = vsel %vm2551, %v4775, -inf
        %v5181 = vrot.slane %v5180, 4
        %v5182 = vmax.f32 %v5180, %v5181
        %v5183 = vrot.slane %v5182, 2
        %v5184 = vmax.f32 %v5182, %v5183
        %v5185 = vrot.slane %v5184, 1
        %v5186 = vmax.f32 %v5184, %v5185
        %v5187 = vsel %vm2551, %v4774, -inf
        %v5188 = vrot.slane %v5187, 4
        %v5189 = vmax.f32 %v5187, %v5188
        %v5190 = vrot.slane %v5189, 2
        %v5191 = vmax.f32 %v5189, %v5190
        %v5192 = vrot.slane %v5191, 1
        %v5193 = vmax.f32 %v5191, %v5192
        %v5194 = vsel %vm2551, %v4776, -inf
        %v5195 = vrot.slane %v5194, 4
        %v5196 = vmax.f32 %v5194, %v5195
        %v5197 = vrot.slane %v5196, 2
        %v5198 = vmax.f32 %v5196, %v5197
        %v5199 = vrot.slane %v5198, 1
        %v5200 = vmax.f32 %v5198, %v5199
        %v5201 = vsel %vm2551, %v4784, -inf
        %v5202 = vrot.slane %v5201, 4
        %v5203 = vmax.f32 %v5201, %v5202
        %v5204 = vrot.slane %v5203, 2
        %v5205 = vmax.f32 %v5203, %v5204
        %v5206 = vrot.slane %v5205, 1
        %v5207 = vmax.f32 %v5205, %v5206
        %v5208 = vsel %vm2551, %v4792, -inf
        %v5209 = vrot.slane %v5208, 4
        %v5210 = vmax.f32 %v5208, %v5209
        %v5211 = vrot.slane %v5210, 2
        %v5212 = vmax.f32 %v5210, %v5211
        %v5213 = vrot.slane %v5212, 1
        %v5214 = vmax.f32 %v5212, %v5213
        %v5215 = vsel %vm2551, %v4791, -inf
        %v5216 = vrot.slane %v5215, 4
        %v5217 = vmax.f32 %v5215, %v5216
        %v5218 = vrot.slane %v5217, 2
        %v5219 = vmax.f32 %v5217, %v5218
        %v5220 = vrot.slane %v5219, 1
        %v5221 = vmax.f32 %v5219, %v5220
        %v5222 = vsel %vm2551, %v4793, -inf
        %v5223 = vrot.slane %v5222, 4
        %v5224 = vmax.f32 %v5222, %v5223
        %v5225 = vrot.slane %v5224, 2
        %v5226 = vmax.f32 %v5224, %v5225
        %v5227 = vrot.slane %v5226, 1
        %v5228 = vmax.f32 %v5226, %v5227
        %v5229 = vsel %vm2551, %v4801, -inf
        %v5230 = vrot.slane %v5229, 4
        %v5231 = vmax.f32 %v5229, %v5230
        %v5232 = vrot.slane %v5231, 2
        %v5233 = vmax.f32 %v5231, %v5232
        %v5234 = vrot.slane %v5233, 1
        %v5235 = vmax.f32 %v5233, %v5234
        %v5236 = vsel %vm2551, %v4809, -inf
        %v5237 = vrot.slane %v5236, 4
        %v5238 = vmax.f32 %v5236, %v5237
        %v5239 = vrot.slane %v5238, 2
        %v5240 = vmax.f32 %v5238, %v5239
        %v5241 = vrot.slane %v5240, 1
        %v5242 = vmax.f32 %v5240, %v5241
        %v5243 = vsel %vm2551, %v4808, -inf
        %v5244 = vrot.slane %v5243, 4
        %v5245 = vmax.f32 %v5243, %v5244
        %v5246 = vrot.slane %v5245, 2
        %v5247 = vmax.f32 %v5245, %v5246
        %v5248 = vrot.slane %v5247, 1
        %v5249 = vmax.f32 %v5247, %v5248
        %v5250 = vsel %vm2551, %v4810, -inf
        %v5251 = vrot.slane %v5250, 4
        %v5252 = vmax.f32 %v5250, %v5251
        %v5253 = vrot.slane %v5252, 2
        %v5254 = vmax.f32 %v5252, %v5253
        %v5255 = vrot.slane %v5254, 1
        %v5256 = vmax.f32 %v5254, %v5255
        %v5257 = vsel %vm2551, %v4818, -inf
        %v5258 = vrot.slane %v5257, 4
        %v5259 = vmax.f32 %v5257, %v5258
        %v5260 = vrot.slane %v5259, 2
        %v5261 = vmax.f32 %v5259, %v5260
        %v5262 = vrot.slane %v5261, 1
        %v5263 = vmax.f32 %v5261, %v5262
        %v5264 = vsel %vm2551, %v4826, -inf
        %v5265 = vrot.slane %v5264, 4
        %v5266 = vmax.f32 %v5264, %v5265
        %v5267 = vrot.slane %v5266, 2
        %v5268 = vmax.f32 %v5266, %v5267
        %v5269 = vrot.slane %v5268, 1
        %v5270 = vmax.f32 %v5268, %v5269
        %v5271 = vsel %vm2551, %v4825, -inf
        %v5272 = vrot.slane %v5271, 4
        %v5273 = vmax.f32 %v5271, %v5272
        %v5274 = vrot.slane %v5273, 2
        %v5275 = vmax.f32 %v5273, %v5274
        %v5276 = vrot.slane %v5275, 1
        %v5277 = vmax.f32 %v5275, %v5276
        %v5278 = vsel %vm2551, %v4827, -inf
        %v5279 = vrot.slane %v5278, 4
        %v5280 = vmax.f32 %v5278, %v5279
        %v5281 = vrot.slane %v5280, 2
        %v5282 = vmax.f32 %v5280, %v5281
        %v5283 = vrot.slane %v5282, 1
        %v5284 = vmax.f32 %v5282, %v5283
        %v5285 = vsel %vm2551, %v4835, -inf
        %v5286 = vrot.slane %v5285, 4
        %v5287 = vmax.f32 %v5285, %v5286
        %v5288 = vrot.slane %v5287, 2
        %v5289 = vmax.f32 %v5287, %v5288
        %v5290 = vrot.slane %v5289, 1
        %v5291 = vmax.f32 %v5289, %v5290
        %v5292 = vsel %vm2551, %v4843, -inf
        %v5293 = vrot.slane %v5292, 4
        %v5294 = vmax.f32 %v5292, %v5293
        %v5295 = vrot.slane %v5294, 2
        %v5296 = vmax.f32 %v5294, %v5295
        %v5297 = vrot.slane %v5296, 1
        %v5298 = vmax.f32 %v5296, %v5297
        %v5299 = vsel %vm2551, %v4842, -inf
        %v5300 = vrot.slane %v5299, 4
        %v5301 = vmax.f32 %v5299, %v5300
        %v5302 = vrot.slane %v5301, 2
        %v5303 = vmax.f32 %v5301, %v5302
        %v5304 = vrot.slane %v5303, 1
        %v5305 = vmax.f32 %v5303, %v5304
        %v5306 = vsel %vm2551, %v4844, -inf
        %v5307 = vrot.slane %v5306, 4
        %v5308 = vmax.f32 %v5306, %v5307
        %v5309 = vrot.slane %v5308, 2
        %v5310 = vmax.f32 %v5308, %v5309
        %v5311 = vrot.slane %v5310, 1
        %v5312 = vmax.f32 %v5310, %v5311
        %v5313 = vsel %vm2551, %v4852, -inf
        %v5314 = vrot.slane %v5313, 4
        %v5315 = vmax.f32 %v5313, %v5314
        %v5316 = vrot.slane %v5315, 2
        %v5317 = vmax.f32 %v5315, %v5316
        %v5318 = vrot.slane %v5317, 1
        %v5319 = vmax.f32 %v5317, %v5318
        %v5320 = vsel %vm2551, %v4860, -inf
        %v5321 = vrot.slane %v5320, 4
        %v5322 = vmax.f32 %v5320, %v5321
        %v5323 = vrot.slane %v5322, 2
        %v5324 = vmax.f32 %v5322, %v5323
        %v5325 = vrot.slane %v5324, 1
        %v5326 = vmax.f32 %v5324, %v5325
        %v5327 = vsel %vm2551, %v4859, -inf
        %v5328 = vrot.slane %v5327, 4
        %v5329 = vmax.f32 %v5327, %v5328
        %v5330 = vrot.slane %v5329, 2
        %v5331 = vmax.f32 %v5329, %v5330
        %v5332 = vrot.slane %v5331, 1
        %v5333 = vmax.f32 %v5331, %v5332
        %v5334 = vsel %vm2551, %v4861, -inf
        %v5335 = vrot.slane %v5334, 4
        %v5336 = vmax.f32 %v5334, %v5335
        %v5337 = vrot.slane %v5336, 2
        %v5338 = vmax.f32 %v5336, %v5337
        %v5339 = vrot.slane %v5338, 1
        %v5340 = vmax.f32 %v5338, %v5339
        %v5341 = vsel %vm2551, %v4869, -inf
        %v5342 = vrot.slane %v5341, 4
        %v5343 = vmax.f32 %v5341, %v5342
        %v5344 = vrot.slane %v5343, 2
        %v5345 = vmax.f32 %v5343, %v5344
        %v5346 = vrot.slane %v5345, 1
        %v5347 = vmax.f32 %v5345, %v5346
        %v5348 = vsel %vm2551, %v4877, -inf
        %v5349 = vrot.slane %v5348, 4
        %v5350 = vmax.f32 %v5348, %v5349
        %v5351 = vrot.slane %v5350, 2
        %v5352 = vmax.f32 %v5350, %v5351
        %v5353 = vrot.slane %v5352, 1
        %v5354 = vmax.f32 %v5352, %v5353
        %v5355 = vsel %vm2551, %v4876, -inf
        %v5356 = vrot.slane %v5355, 4
        %v5357 = vmax.f32 %v5355, %v5356
        %v5358 = vrot.slane %v5357, 2
        %v5359 = vmax.f32 %v5357, %v5358
        %v5360 = vrot.slane %v5359, 1
        %v5361 = vmax.f32 %v5359, %v5360
        %v5362 = vsel %vm2551, %v4878, -inf
        %v5363 = vrot.slane %v5362, 4
        %v5364 = vmax.f32 %v5362, %v5363
        %v5365 = vrot.slane %v5364, 2
        %v5366 = vmax.f32 %v5364, %v5365
        %v5367 = vrot.slane %v5366, 1
        %v5368 = vmax.f32 %v5366, %v5367
        %v5369 = vsel %vm2551, %v4886, -inf
        %v5370 = vrot.slane %v5369, 4
        %v5371 = vmax.f32 %v5369, %v5370
        %v5372 = vrot.slane %v5371, 2
        %v5373 = vmax.f32 %v5371, %v5372
        %v5374 = vrot.slane %v5373, 1
        %v5375 = vmax.f32 %v5373, %v5374
        %v5376 = vsel %vm2551, %v4894, -inf
        %v5377 = vrot.slane %v5376, 4
        %v5378 = vmax.f32 %v5376, %v5377
        %v5379 = vrot.slane %v5378, 2
        %v5380 = vmax.f32 %v5378, %v5379
        %v5381 = vrot.slane %v5380, 1
        %v5382 = vmax.f32 %v5380, %v5381
        %v5383 = vsel %vm2551, %v4893, -inf
        %v5384 = vrot.slane %v5383, 4
        %v5385 = vmax.f32 %v5383, %v5384
        %v5386 = vrot.slane %v5385, 2
        %v5387 = vmax.f32 %v5385, %v5386
        %v5388 = vrot.slane %v5387, 1
        %v5389 = vmax.f32 %v5387, %v5388
        %v5390 = vsel %vm2551, %v4895, -inf
        %v5391 = vrot.slane %v5390, 4
        %v5392 = vmax.f32 %v5390, %v5391
        %v5393 = vrot.slane %v5392, 2
        %v5394 = vmax.f32 %v5392, %v5393
        %v5395 = vrot.slane %v5394, 1
        %v5396 = vmax.f32 %v5394, %v5395
        %v5397 = vsel %vm2551, %v4903, -inf
        %v5398 = vrot.slane %v5397, 4
        %v5399 = vmax.f32 %v5397, %v5398
        %v5400 = vrot.slane %v5399, 2
        %v5401 = vmax.f32 %v5399, %v5400
        %v5402 = vrot.slane %v5401, 1
        %v5403 = vmax.f32 %v5401, %v5402
        %v5404 = vsel %vm2551, %v4911, -inf
        %v5405 = vrot.slane %v5404, 4
        %v5406 = vmax.f32 %v5404, %v5405
        %v5407 = vrot.slane %v5406, 2
        %v5408 = vmax.f32 %v5406, %v5407
        %v5409 = vrot.slane %v5408, 1
        %v5410 = vmax.f32 %v5408, %v5409
        %v5411 = vsel %vm2551, %v4910, -inf
        %v5412 = vrot.slane %v5411, 4
        %v5413 = vmax.f32 %v5411, %v5412
        %v5414 = vrot.slane %v5413, 2
        %v5415 = vmax.f32 %v5413, %v5414
        %v5416 = vrot.slane %v5415, 1
        %v5417 = vmax.f32 %v5415, %v5416
        %v5418 = vsel %vm2551, %v4912, -inf
        %v5419 = vrot.slane %v5418, 4
        %v5420 = vmax.f32 %v5418, %v5419
        %v5421 = vrot.slane %v5420, 2
        %v5422 = vmax.f32 %v5420, %v5421
        %v5423 = vrot.slane %v5422, 1
        %v5424 = vmax.f32 %v5422, %v5423
        %5425 = vst.msk [vmem:[#allocation4] sm:$0xff] %vm2548, 0.0
        %5426 = vst.msk [vmem:[#allocation4 + $0x8] sm:$0x3] %vm2551, 0.0
        %s5427 = scalar_lea.vmem [#allocation4], 144
        %5428 = vst.msk [vmem:[%s5427] sm:$0xff] %vm2548, 0.0
        %5429 = vst.msk [vmem:[%s5427 + $0x8] sm:$0x3] %vm2551, 0.0
        %5430 = vst.msk [vmem:[#allocation4] sm:$0x1] %vm2557, 0.0
        %5431 = vst.msk [vmem:[#allocation4 + $0x10] sm:$0x1] %vm2557, 0.0
        %5432 = vst.msk [vmem:[#allocation4 + $0x20] sm:$0x1] %vm2557, 0.0
        %5433 = vst.msk [vmem:[#allocation4 + $0x30] sm:$0x1] %vm2557, 0.0
        %5434 = vst.msk [vmem:[#allocation4 + $0x40] sm:$0x1] %vm2557, 0.0
        %5435 = vst.msk [vmem:[#allocation4 + $0x50] sm:$0x1] %vm2557, 0.0
        %5436 = vst.msk [vmem:[#allocation4 + $0x60] sm:$0x1] %vm2557, 0.0
        %5437 = vst.msk [vmem:[#allocation4 + $0x70] sm:$0x1] %vm2557, 0.0
        %5438 = vst.msk [vmem:[#allocation4 + $0x80] sm:$0x1] %vm2557, 0.0
        %5439 = vst.msk [vmem:[#allocation4 + $0x90] sm:$0x1] %vm2557, 0.0
        %5440 = vst.msk [vmem:[#allocation4 + $0x9] sm:$0x1] %vm2557, 0.0
        %5441 = vst.msk [vmem:[#allocation4 + $0x19] sm:$0x1] %vm2557, 0.0
        %5442 = vst.msk [vmem:[#allocation4 + $0x29] sm:$0x1] %vm2557, 0.0
        %5443 = vst.msk [vmem:[#allocation4 + $0x39] sm:$0x1] %vm2557, 0.0
        %5444 = vst.msk [vmem:[#allocation4 + $0x49] sm:$0x1] %vm2557, 0.0
        %5445 = vst.msk [vmem:[#allocation4 + $0x59] sm:$0x1] %vm2557, 0.0
        %5446 = vst.msk [vmem:[#allocation4 + $0x69] sm:$0x1] %vm2557, 0.0
        %5447 = vst.msk [vmem:[#allocation4 + $0x79] sm:$0x1] %vm2557, 0.0
        %5448 = vst.msk [vmem:[#allocation4 + $0x89] sm:$0x1] %vm2557, 0.0
        %5449 = vst.msk [vmem:[#allocation4 + $0x99] sm:$0x1] %vm2557, 0.0
        %vm5514 = vcmask 1041409
        %v5515 = vsel %vm5514, %v4990, %v4983
        %vm5516 = vcmask 1042434
        %v5517 = vsel %vm5516, %v4997, %v5515
        %vm5518 = vcmask 1043459
        %v5519 = vsel %vm5518, %v5004, %v5517
        %vm5520 = vcmask 1044484
        %v5521 = vsel %vm5520, %v5011, %v5519
        %vm5522 = vcmask 1045509
        %v5523 = vsel %vm5522, %v5018, %v5521
        %vm5524 = vcmask 1046534
        %v5525 = vsel %vm5524, %v5025, %v5523
        %vm5526 = vcmask 1047559
        %v5527 = vsel %vm5526, %v5032, %v5525
        %v5528 = vsel %vm5514, %v5046, %v5039
        %v5529 = vsel %vm5516, %v5053, %v5528
        %v5530 = vsel %vm5518, %v5060, %v5529
        %v5531 = vsel %vm5520, %v5067, %v5530
        %v5532 = vsel %vm5522, %v5074, %v5531
        %v5533 = vsel %vm5524, %v5081, %v5532
        %v5534 = vsel %vm5526, %v5088, %v5533
        %v5535 = vsel %vm5514, %v5102, %v5095
        %v5536 = vsel %vm5516, %v5109, %v5535
        %v5537 = vsel %vm5518, %v5116, %v5536
        %v5538 = vsel %vm5520, %v5123, %v5537
        %v5539 = vsel %vm5522, %v5130, %v5538
        %v5540 = vsel %vm5524, %v5137, %v5539
        %v5541 = vsel %vm5526, %v5144, %v5540
        %v5542 = vsel %vm5514, %v5158, %v5151
        %v5543 = vsel %vm5516, %v5165, %v5542
        %v5544 = vsel %vm5518, %v5172, %v5543
        %v5545 = vsel %vm5520, %v5179, %v5544
        %v5546 = vsel %vm5522, %v5186, %v5545
        %v5547 = vsel %vm5524, %v5193, %v5546
        %v5548 = vsel %vm5526, %v5200, %v5547
        %v5549 = vsel %vm5514, %v5214, %v5207
        %v5550 = vsel %vm5516, %v5221, %v5549
        %v5551 = vsel %vm5518, %v5228, %v5550
        %v5552 = vsel %vm5520, %v5235, %v5551
        %v5553 = vsel %vm5522, %v5242, %v5552
        %v5554 = vsel %vm5524, %v5249, %v5553
        %v5555 = vsel %vm5526, %v5256, %v5554
        %v5556 = vsel %vm5514, %v5270, %v5263
        %v5557 = vsel %vm5516, %v5277, %v5556
        %v5558 = vsel %vm5518, %v5284, %v5557
        %v5559 = vsel %vm5520, %v5291, %v5558
        %v5560 = vsel %vm5522, %v5298, %v5559
        %v5561 = vsel %vm5524, %v5305, %v5560
        %v5562 = vsel %vm5526, %v5312, %v5561
        %v5563 = vsel %vm5514, %v5326, %v5319
        %v5564 = vsel %vm5516, %v5333, %v5563
        %v5565 = vsel %vm5518, %v5340, %v5564
        %v5566 = vsel %vm5520, %v5347, %v5565
        %v5567 = vsel %vm5522, %v5354, %v5566
        %v5568 = vsel %vm5524, %v5361, %v5567
        %v5569 = vsel %vm5526, %v5368, %v5568
        %v5570 = vsel %vm5514, %v5382, %v5375
        %v5571 = vsel %vm5516, %v5389, %v5570
        %v5572 = vsel %vm5518, %v5396, %v5571
        %v5573 = vsel %vm5520, %v5403, %v5572
        %v5574 = vsel %vm5522, %v5410, %v5573
        %v5575 = vsel %vm5524, %v5417, %v5574
        %v5576 = vsel %vm5526, %v5424, %v5575
        %s5585 = scalar_lea.vmem [#allocation4], 16
        %5586 = vst.msk [vmem:[%s5585 + $0x1] sm:$0xff] %vm2548, %v5527
        %5587 = vst.msk [vmem:[%s5585 + $0x11] sm:$0xff] %vm2548, %v5534
        %5588 = vst.msk [vmem:[%s5585 + $0x21] sm:$0xff] %vm2548, %v5541
        %5589 = vst.msk [vmem:[%s5585 + $0x31] sm:$0xff] %vm2548, %v5548
        %5590 = vst.msk [vmem:[%s5585 + $0x41] sm:$0xff] %vm2548, %v5555
        %5591 = vst.msk [vmem:[%s5585 + $0x51] sm:$0xff] %vm2548, %v5562
        %5592 = vst.msk [vmem:[%s5585 + $0x61] sm:$0xff] %vm2548, %v5569
        %5593 = vst.msk [vmem:[%s5585 + $0x71] sm:$0xff] %vm2548, %v5576
        %v5594 = vld [vmem:[#allocation4] sm:$0xff]
        %v5595 = vld [vmem:[#allocation4 + $0x8] sm:$0x3]
        %v5596 = vld [vmem:[#allocation4 + $0x10] sm:$0xff]
        %v5597 = vld [vmem:[#allocation4 + $0x18] sm:$0x3]
        %v5598 = vld [vmem:[#allocation4 + $0x20] sm:$0xff]
        %v5599 = vld [vmem:[#allocation4 + $0x28] sm:$0x3]
        %v5600 = vld [vmem:[#allocation4 + $0x30] sm:$0xff]
        %v5601 = vld [vmem:[#allocation4 + $0x38] sm:$0x3]
        %v5602 = vld [vmem:[#allocation4 + $0x40] sm:$0xff]
        %v5603 = vld [vmem:[#allocation4 + $0x48] sm:$0x3]
        %v5604 = vld [vmem:[#allocation4 + $0x50] sm:$0xff]
        %v5605 = vld [vmem:[#allocation4 + $0x58] sm:$0x3]
        %v5606 = vld [vmem:[#allocation4 + $0x60] sm:$0xff]
        %v5607 = vld [vmem:[#allocation4 + $0x68] sm:$0x3]
        %v5608 = vld [vmem:[#allocation4 + $0x70] sm:$0xff]
        %v5609 = vld [vmem:[#allocation4 + $0x78] sm:$0x3]
        %v5610 = vld [vmem:[#allocation4 + $0x80] sm:$0xff]
        %v5611 = vld [vmem:[#allocation4 + $0x88] sm:$0x3]
        %v5612 = vld [vmem:[#allocation4 + $0x90] sm:$0xff]
        %v5613 = vld [vmem:[#allocation4 + $0x98] sm:$0x3]
        %v5630 = vrot.slane %v5594, 1
        %v5631 = vrot.slane %v5595, 1
        %v5632 = vsel %vm816, %v5630, %v5631
        %v5633 = vrot.slane %v5596, 1
        %v5634 = vrot.slane %v5597, 1
        %v5635 = vsel %vm816, %v5633, %v5634
        %v5636 = vrot.slane %v5598, 1
        %v5637 = vrot.slane %v5599, 1
        %v5638 = vsel %vm816, %v5636, %v5637
        %v5639 = vrot.slane %v5600, 1
        %v5640 = vrot.slane %v5601, 1
        %v5641 = vsel %vm816, %v5639, %v5640
        %v5642 = vrot.slane %v5602, 1
        %v5643 = vrot.slane %v5603, 1
        %v5644 = vsel %vm816, %v5642, %v5643
        %v5645 = vrot.slane %v5604, 1
        %v5646 = vrot.slane %v5605, 1
        %v5647 = vsel %vm816, %v5645, %v5646
        %v5648 = vrot.slane %v5606, 1
        %v5649 = vrot.slane %v5607, 1
        %v5650 = vsel %vm816, %v5648, %v5649
        %v5651 = vrot.slane %v5608, 1
        %v5652 = vrot.slane %v5609, 1
        %v5653 = vsel %vm816, %v5651, %v5652
        %5654 = vrot.lane.b32.xlu0 %v5632, 32
        %v5655 = vpop.permute.xlu0 %5654
        %5656 = vrot.lane.b32.xlu0 %v5635, 32
        %v5657 = vpop.permute.xlu0 %5656
        %5658 = vrot.lane.b32.xlu0 %v5638, 32
        %v5659 = vpop.permute.xlu0 %5658
        %5660 = vrot.lane.b32.xlu0 %v5641, 32
        %v5661 = vpop.permute.xlu0 %5660
        %5662 = vrot.lane.b32.xlu0 %v5644, 32
        %v5663 = vpop.permute.xlu0 %5662
        %5664 = vrot.lane.b32.xlu0 %v5647, 32
        %v5665 = vpop.permute.xlu0 %5664
        %5666 = vrot.lane.b32.xlu0 %v5650, 32
        %v5667 = vpop.permute.xlu0 %5666
        %5668 = vrot.lane.b32.xlu0 %v5653, 32
        %v5669 = vpop.permute.xlu0 %5668
        %v5678 = vrot.slane %v5594, 2
        %v5679 = vrot.slane %v5595, 2
        %v5680 = vsel %vm993, %v5678, %v5679
        %v5681 = vrot.slane %v5596, 2
        %v5682 = vrot.slane %v5597, 2
        %v5683 = vsel %vm993, %v5681, %v5682
        %v5684 = vrot.slane %v5598, 2
        %v5685 = vrot.slane %v5599, 2
        %v5686 = vsel %vm993, %v5684, %v5685
        %v5687 = vrot.slane %v5600, 2
        %v5688 = vrot.slane %v5601, 2
        %v5689 = vsel %vm993, %v5687, %v5688
        %v5690 = vrot.slane %v5602, 2
        %v5691 = vrot.slane %v5603, 2
        %v5692 = vsel %vm993, %v5690, %v5691
        %v5693 = vrot.slane %v5604, 2
        %v5694 = vrot.slane %v5605, 2
        %v5695 = vsel %vm993, %v5693, %v5694
        %v5696 = vrot.slane %v5606, 2
        %v5697 = vrot.slane %v5607, 2
        %v5698 = vsel %vm993, %v5696, %v5697
        %v5699 = vrot.slane %v5608, 2
        %v5700 = vrot.slane %v5609, 2
        %v5701 = vsel %vm993, %v5699, %v5700
        %5702 = vrot.lane.b32.xlu0 %v5680, 64
        %v5703 = vpop.permute.xlu0 %5702
        %5704 = vrot.lane.b32.xlu0 %v5683, 64
        %v5705 = vpop.permute.xlu0 %5704
        %5706 = vrot.lane.b32.xlu0 %v5686, 64
        %v5707 = vpop.permute.xlu0 %5706
        %5708 = vrot.lane.b32.xlu0 %v5689, 64
        %v5709 = vpop.permute.xlu0 %5708
        %5710 = vrot.lane.b32.xlu0 %v5692, 64
        %v5711 = vpop.permute.xlu0 %5710
        %5712 = vrot.lane.b32.xlu0 %v5695, 64
        %v5713 = vpop.permute.xlu0 %5712
        %5714 = vrot.lane.b32.xlu0 %v5698, 64
        %v5715 = vpop.permute.xlu0 %5714
        %5716 = vrot.lane.b32.xlu0 %v5701, 64
        %v5717 = vpop.permute.xlu0 %5716
        %5727 = vrot.lane.b32.xlu0 %v5596, 96
        %v5728 = vpop.permute.xlu0 %5727
        %5729 = vrot.lane.b32.xlu0 %v5598, 96
        %v5730 = vpop.permute.xlu0 %5729
        %5731 = vrot.lane.b32.xlu0 %v5600, 96
        %v5732 = vpop.permute.xlu0 %5731
        %5733 = vrot.lane.b32.xlu0 %v5602, 96
        %v5734 = vpop.permute.xlu0 %5733
        %5735 = vrot.lane.b32.xlu0 %v5604, 96
        %v5736 = vpop.permute.xlu0 %5735
        %5737 = vrot.lane.b32.xlu0 %v5606, 96
        %v5738 = vpop.permute.xlu0 %5737
        %5739 = vrot.lane.b32.xlu0 %v5608, 96
        %v5740 = vpop.permute.xlu0 %5739
        %5741 = vrot.lane.b32.xlu0 %v5610, 96
        %v5742 = vpop.permute.xlu0 %5741
        %v5752 = vrot.slane %v5610, 1
        %v5753 = vrot.slane %v5611, 1
        %v5754 = vsel %vm816, %v5752, %v5753
        %v5763 = vrot.slane %v5610, 2
        %v5764 = vrot.slane %v5611, 2
        %v5765 = vsel %vm993, %v5763, %v5764
        %5766 = vrot.lane.b32.xlu0 %v5683, 32
        %v5767 = vpop.permute.xlu0 %5766
        %5768 = vrot.lane.b32.xlu0 %v5686, 32
        %v5769 = vpop.permute.xlu0 %5768
        %5770 = vrot.lane.b32.xlu0 %v5689, 32
        %v5771 = vpop.permute.xlu0 %5770
        %5772 = vrot.lane.b32.xlu0 %v5692, 32
        %v5773 = vpop.permute.xlu0 %5772
        %5774 = vrot.lane.b32.xlu0 %v5695, 32
        %v5775 = vpop.permute.xlu0 %5774
        %5776 = vrot.lane.b32.xlu0 %v5698, 32
        %v5777 = vpop.permute.xlu0 %5776
        %5778 = vrot.lane.b32.xlu0 %v5701, 32
        %v5779 = vpop.permute.xlu0 %5778
        %5780 = vrot.lane.b32.xlu0 %v5765, 32
        %v5781 = vpop.permute.xlu0 %5780
        %5791 = vrot.lane.b32.xlu0 %v5598, 64
        %v5792 = vpop.permute.xlu0 %5791
        %5793 = vrot.lane.b32.xlu0 %v5600, 64
        %v5794 = vpop.permute.xlu0 %5793
        %5795 = vrot.lane.b32.xlu0 %v5602, 64
        %v5796 = vpop.permute.xlu0 %5795
        %5797 = vrot.lane.b32.xlu0 %v5604, 64
        %v5798 = vpop.permute.xlu0 %5797
        %5799 = vrot.lane.b32.xlu0 %v5606, 64
        %v5800 = vpop.permute.xlu0 %5799
        %5801 = vrot.lane.b32.xlu0 %v5608, 64
        %v5802 = vpop.permute.xlu0 %5801
        %5803 = vrot.lane.b32.xlu0 %v5610, 64
        %v5804 = vpop.permute.xlu0 %5803
        %5805 = vrot.lane.b32.xlu0 %v5612, 64
        %v5806 = vpop.permute.xlu0 %5805
        %v5816 = vrot.slane %v5612, 1
        %v5817 = vrot.slane %v5613, 1
        %v5818 = vsel %vm816, %v5816, %v5817
        %5819 = vrot.lane.b32.xlu0 %v5638, 96
        %v5820 = vpop.permute.xlu0 %5819
        %5821 = vrot.lane.b32.xlu0 %v5641, 96
        %v5822 = vpop.permute.xlu0 %5821
        %5823 = vrot.lane.b32.xlu0 %v5644, 96
        %v5824 = vpop.permute.xlu0 %5823
        %5825 = vrot.lane.b32.xlu0 %v5647, 96
        %v5826 = vpop.permute.xlu0 %5825
        %5827 = vrot.lane.b32.xlu0 %v5650, 96
        %v5828 = vpop.permute.xlu0 %5827
        %5829 = vrot.lane.b32.xlu0 %v5653, 96
        %v5830 = vpop.permute.xlu0 %5829
        %5831 = vrot.lane.b32.xlu0 %v5754, 96
        %v5832 = vpop.permute.xlu0 %5831
        %5833 = vrot.lane.b32.xlu0 %v5818, 96
        %v5834 = vpop.permute.xlu0 %5833
        %v5843 = vrot.slane %v5612, 2
        %v5844 = vrot.slane %v5613, 2
        %v5845 = vsel %vm993, %v5843, %v5844
        %v5854 = vsel %vm2548, %v5594, %v5655
        %v5855 = vsel %vm2548, %v5596, %v5657
        %v5856 = vsel %vm2548, %v5598, %v5659
        %v5857 = vsel %vm2548, %v5600, %v5661
        %v5858 = vsel %vm2548, %v5602, %v5663
        %v5859 = vsel %vm2548, %v5604, %v5665
        %v5860 = vsel %vm2548, %v5606, %v5667
        %v5861 = vsel %vm2548, %v5608, %v5669
        %v5862 = vsel %vm3587, %v5854, %v5703
        %v5863 = vsel %vm3587, %v5855, %v5705
        %v5864 = vsel %vm3587, %v5856, %v5707
        %v5865 = vsel %vm3587, %v5857, %v5709
        %v5866 = vsel %vm3587, %v5858, %v5711
        %v5867 = vsel %vm3587, %v5859, %v5713
        %v5868 = vsel %vm3587, %v5860, %v5715
        %v5869 = vsel %vm3587, %v5861, %v5717
        %v5870 = vsel %vm3620, %v5862, %v5728
        %v5871 = vsel %vm3620, %v5863, %v5730
        %v5872 = vsel %vm3620, %v5864, %v5732
        %v5873 = vsel %vm3620, %v5865, %v5734
        %v5874 = vsel %vm3620, %v5866, %v5736
        %v5875 = vsel %vm3620, %v5867, %v5738
        %v5876 = vsel %vm3620, %v5868, %v5740
        %v5877 = vsel %vm3620, %v5869, %v5742
        %v5878 = vsel %vm2548, %v5635, %v5767
        %v5879 = vsel %vm2548, %v5638, %v5769
        %v5880 = vsel %vm2548, %v5641, %v5771
        %v5881 = vsel %vm2548, %v5644, %v5773
        %v5882 = vsel %vm2548, %v5647, %v5775
        %v5883 = vsel %vm2548, %v5650, %v5777
        %v5884 = vsel %vm2548, %v5653, %v5779
        %v5885 = vsel %vm2548, %v5754, %v5781
        %v5886 = vsel %vm3587, %v5878, %v5792
        %v5887 = vsel %vm3587, %v5879, %v5794
        %v5888 = vsel %vm3587, %v5880, %v5796
        %v5889 = vsel %vm3587, %v5881, %v5798
        %v5890 = vsel %vm3587, %v5882, %v5800
        %v5891 = vsel %vm3587, %v5883, %v5802
        %v5892 = vsel %vm3587, %v5884, %v5804
        %v5893 = vsel %vm3587, %v5885, %v5806
        %v5894 = vsel %vm3620, %v5886, %v5820
        %v5895 = vsel %vm3620, %v5887, %v5822
        %v5896 = vsel %vm3620, %v5888, %v5824
        %v5897 = vsel %vm3620, %v5889, %v5826
        %v5898 = vsel %vm3620, %v5890, %v5828
        %v5899 = vsel %vm3620, %v5891, %v5830
        %v5900 = vsel %vm3620, %v5892, %v5832
        %v5901 = vsel %vm3620, %v5893, %v5834
        %v5902 = vpack.c.bf16 %v5870, %v5870
        %v5903 = vpack.c.bf16 %v5894, %v5894
        %v5904 = vpack.c.bf16 %v5686, %v5686
        %v5905 = vpack.c.bf16 %v5871, %v5871
        %v5906 = vpack.c.bf16 %v5895, %v5895
        %v5907 = vpack.c.bf16 %v5689, %v5689
        %v5908 = vpack.c.bf16 %v5872, %v5872
        %v5909 = vpack.c.bf16 %v5896, %v5896
        %v5910 = vpack.c.bf16 %v5692, %v5692
        %v5911 = vpack.c.bf16 %v5873, %v5873
        %v5912 = vpack.c.bf16 %v5897, %v5897
        %v5913 = vpack.c.bf16 %v5695, %v5695
        %v5914 = vpack.c.bf16 %v5874, %v5874
        %v5915 = vpack.c.bf16 %v5898, %v5898
        %v5916 = vpack.c.bf16 %v5698, %v5698
        %v5917 = vpack.c.bf16 %v5875, %v5875
        %v5918 = vpack.c.bf16 %v5899, %v5899
        %v5919 = vpack.c.bf16 %v5701, %v5701
        %v5920 = vpack.c.bf16 %v5876, %v5876
        %v5921 = vpack.c.bf16 %v5900, %v5900
        %v5922 = vpack.c.bf16 %v5765, %v5765
        %v5923 = vpack.c.bf16 %v5877, %v5877
        %v5924 = vpack.c.bf16 %v5901, %v5901
        %v5925 = vpack.c.bf16 %v5845, %v5845
        %v5950 = vunpack.c.l.b16 %v5902
        %v5951 = vunpack.c.l.b16 %v5903
        %v5952 = vunpack.c.l.b16 %v5904
        %v5953 = vunpack.c.l.b16 %v5905
        %v5954 = vunpack.c.l.b16 %v5906
        %v5955 = vunpack.c.l.b16 %v5907
        %v5956 = vunpack.c.l.b16 %v5908
        %v5957 = vunpack.c.l.b16 %v5909
        %v5958 = vunpack.c.l.b16 %v5910
        %v5959 = vunpack.c.l.b16 %v5911
        %v5960 = vunpack.c.l.b16 %v5912
        %v5961 = vunpack.c.l.b16 %v5913
        %v5962 = vunpack.c.l.b16 %v5914
        %v5963 = vunpack.c.l.b16 %v5915
        %v5964 = vunpack.c.l.b16 %v5916
        %v5965 = vunpack.c.l.b16 %v5917
        %v5966 = vunpack.c.l.b16 %v5918
        %v5967 = vunpack.c.l.b16 %v5919
        %v5968 = vunpack.c.l.b16 %v5920
        %v5969 = vunpack.c.l.b16 %v5921
        %v5970 = vunpack.c.l.b16 %v5922
        %v5971 = vunpack.c.l.b16 %v5923
        %v5972 = vunpack.c.l.b16 %v5924
        %v5973 = vunpack.c.l.b16 %v5925
        %v5974 = vld [vmem:[%s3] sm:$0xf]
        %v5975 = vld [vmem:[%s3 + $0x4] sm:$0xf]
        %v5976 = vld [vmem:[%s3 + $0x8] sm:$0xf]
        %v5977 = vld [vmem:[%s3 + $0xc] sm:$0xf]
        %v5978 = vld [vmem:[%s3 + $0x10] sm:$0xf]
        %v5979 = vld [vmem:[%s3 + $0x14] sm:$0xf]
        %v5980 = vld [vmem:[%s3 + $0x18] sm:$0xf]
        %v5981 = vld [vmem:[%s3 + $0x1c] sm:$0xf]
        %v5982 = vld [vmem:[%s3 + $0x20] sm:$0xf]
        %v5983 = vld [vmem:[%s3 + $0x24] sm:$0xf]
        %v5984 = vld [vmem:[%s3 + $0x28] sm:$0xf]
        %v5985 = vld [vmem:[%s3 + $0x2c] sm:$0xf]
        %v5986 = vld [vmem:[%s3 + $0x30] sm:$0xf]
        %v5987 = vld [vmem:[%s3 + $0x34] sm:$0xf]
        %v5988 = vld [vmem:[%s3 + $0x38] sm:$0xf]
        %v5989 = vld [vmem:[%s3 + $0x3c] sm:$0xf]
        %v5990 = vld [vmem:[%s3 + $0x40] sm:$0xf]
        %v5991 = vld [vmem:[%s3 + $0x44] sm:$0xf]
        %v5992 = vld [vmem:[%s3 + $0x48] sm:$0xf]
        %v5993 = vld [vmem:[%s3 + $0x4c] sm:$0xf]
        %v5994 = vld [vmem:[%s3 + $0x50] sm:$0xf]
        %v5995 = vld [vmem:[%s3 + $0x54] sm:$0xf]
        %v5996 = vld [vmem:[%s3 + $0x58] sm:$0xf]
        %v5997 = vld [vmem:[%s3 + $0x5c] sm:$0xf]
        %v5998 = vld [vmem:[%s3 + $0x60] sm:$0xf]
        %v5999 = vld [vmem:[%s3 + $0x64] sm:$0xf]
        %v6000 = vld [vmem:[%s3 + $0x68] sm:$0xf]
        %v6001 = vld [vmem:[%s3 + $0x6c] sm:$0xf]
        %v6002 = vld [vmem:[%s3 + $0x70] sm:$0xf]
        %v6003 = vld [vmem:[%s3 + $0x74] sm:$0xf]
        %v6004 = vld [vmem:[%s3 + $0x78] sm:$0xf]
        %v6005 = vld [vmem:[%s3 + $0x7c] sm:$0xf]
        %v6006 = vld [vmem:[%s3 + $0x80] sm:$0xf]
        %v6007 = vld [vmem:[%s3 + $0x84] sm:$0xf]
        %v6008 = vld [vmem:[%s3 + $0x88] sm:$0xf]
        %v6009 = vld [vmem:[%s3 + $0x8c] sm:$0xf]
        %v6010 = vpack.c.b16 %v5953, %v5950
        %v6011 = vpack.c.b16 %v5954, %v5951
        %v6012 = vpack.c.b16 %v5955, %v5952
        %v6013 = vpack.c.b16 %v5959, %v5956
        %v6014 = vpack.c.b16 %v5960, %v5957
        %v6015 = vpack.c.b16 %v5961, %v5958
        %v6016 = vpack.c.b16 %v5965, %v5962
        %v6017 = vpack.c.b16 %v5966, %v5963
        %v6018 = vpack.c.b16 %v5967, %v5964
        %v6019 = vpack.c.b16 %v5971, %v5968
        %v6020 = vpack.c.b16 %v5972, %v5969
        %v6021 = vpack.c.b16 %v5973, %v5970
        %v6066 = vunpack.c.l.b16 %v5974
        %v6067 = vunpack.c.l.b16 %v5975
        %v6068 = vunpack.c.l.b16 %v5976
        %v6069 = vunpack.c.l.b16 %v5977
        %v6070 = vunpack.c.l.b16 %v5978
        %v6071 = vunpack.c.l.b16 %v5979
        %v6072 = vunpack.c.l.b16 %v5980
        %v6073 = vunpack.c.l.b16 %v5981
        %v6074 = vunpack.c.l.b16 %v5982
        %v6075 = vunpack.c.l.b16 %v5983
        %v6076 = vunpack.c.l.b16 %v5984
        %v6077 = vunpack.c.l.b16 %v5985
        %v6078 = vunpack.c.l.b16 %v5986
        %v6079 = vunpack.c.l.b16 %v5987
        %v6080 = vunpack.c.l.b16 %v5988
        %v6081 = vunpack.c.l.b16 %v5989
        %v6082 = vunpack.c.l.b16 %v5990
        %v6083 = vunpack.c.l.b16 %v5991
        %v6084 = vunpack.c.l.b16 %v5992
        %v6085 = vunpack.c.l.b16 %v5993
        %v6086 = vunpack.c.l.b16 %v5994
        %v6087 = vunpack.c.l.b16 %v5995
        %v6088 = vunpack.c.l.b16 %v5996
        %v6089 = vunpack.c.l.b16 %v5997
        %v6090 = vunpack.c.l.b16 %v5998
        %v6091 = vunpack.c.l.b16 %v5999
        %v6092 = vunpack.c.l.b16 %v6000
        %v6093 = vunpack.c.l.b16 %v6001
        %v6094 = vunpack.c.l.b16 %v6002
        %v6095 = vunpack.c.l.b16 %v6003
        %v6096 = vunpack.c.l.b16 %v6004
        %v6097 = vunpack.c.l.b16 %v6005
        %v6098 = vunpack.c.l.b16 %v6006
        %v6099 = vunpack.c.l.b16 %v6007
        %v6100 = vunpack.c.l.b16 %v6008
        %v6101 = vunpack.c.l.b16 %v6009
        %v6102 = vpack.c.b16 %v6067, %v6066
        %v6103 = vpack.c.b16 %v6069, %v6068
        %v6104 = vpack.c.b16 %v6071, %v6070
        %v6105 = vpack.c.b16 %v6073, %v6072
        %v6106 = vpack.c.b16 %v6075, %v6074
        %v6107 = vpack.c.b16 %v6077, %v6076
        %v6108 = vpack.c.b16 %v6079, %v6078
        %v6109 = vpack.c.b16 %v6081, %v6080
        %v6110 = vpack.c.b16 %v6083, %v6082
        %v6111 = vpack.c.b16 %v6085, %v6084
        %v6112 = vpack.c.b16 %v6087, %v6086
        %v6113 = vpack.c.b16 %v6089, %v6088
        %v6114 = vpack.c.b16 %v6091, %v6090
        %v6115 = vpack.c.b16 %v6093, %v6092
        %v6116 = vpack.c.b16 %v6095, %v6094
        %v6117 = vpack.c.b16 %v6097, %v6096
        %v6118 = vpack.c.b16 %v6099, %v6098
        %v6119 = vpack.c.b16 %v6101, %v6100
        %v6139 = vsel %vm2548, %v6012, 0
        %v6142 = vsel %vm2548, %v6015, 0
        %v6145 = vsel %vm2548, %v6018, 0
        %v6148 = vsel %vm2548, %v6021, 0
        %6150 = vmatprep.subr.bf16.mxu0 0
        %6151 = vmatpush1.bf16.msra.mxu0 %v6109
        %6152 = vmatprep.subr.bf16.mxu0 0
        %6153 = vmatpush1.bf16.msra.mxu0 %v6108
        %6154 = vmatprep.subr.bf16.mxu0 0
        %6155 = vmatpush1.bf16.msra.mxu0 %v6107
        %6156 = vmatprep.subr.bf16.mxu0 0
        %6157 = vmatpush1.bf16.msra.mxu0 %v6106
        %6158 = vmatprep.subr.bf16.mxu0 0
        %6159 = vmatpush1.bf16.msra.mxu0 %v6105
        %6160 = vmatprep.subr.bf16.mxu0 0
        %6161 = vmatpush1.bf16.msra.mxu0 %v6104
        %6162 = vmatprep.subr.bf16.mxu0 0
        %6163 = vmatpush1.bf16.msra.mxu0 %v6103
        %6164 = vmatprep.subr.bf16.mxu0 0
        %6165 = vmatpush1.bf16.msra.mxu0 %v6102
        %6166 = vmatprep.subr.bf16.mxu0 0
        %6167 = vmatpush2.bf16.msra.mxu0 %v6117
        %6168 = vmatprep.subr.bf16.mxu0 0
        %6169 = vmatpush2.bf16.msra.mxu0 %v6116
        %6170 = vmatprep.subr.bf16.mxu0 0
        %6171 = vmatpush2.bf16.msra.mxu0 %v6115
        %6172 = vmatprep.subr.bf16.mxu0 0
        %6173 = vmatpush2.bf16.msra.mxu0 %v6114
        %6174 = vmatprep.subr.bf16.mxu0 0
        %6175 = vmatpush2.bf16.msra.mxu0 %v6113
        %6176 = vmatprep.subr.bf16.mxu0 0
        %6177 = vmatpush2.bf16.msra.mxu0 %v6112
        %6178 = vmatprep.subr.bf16.mxu0 0
        %6179 = vmatpush2.bf16.msra.mxu0 %v6111
        %6180 = vmatprep.subr.bf16.mxu0 0
        %6181 = vmatpush2.bf16.msra.mxu0 %v6110
        %6182 = vmatprep.mubr.bf16.mxu0 %v6011
        %6183 = vmatmul.mubr.bf16.gmra.mxu0 %v6010
        %v6184 = vpop.f32.mrf.mxu0
        %v6185 = vadd.f32 0.0, %v6184
        %v6186 = vpop.f32.mrf.mxu0
        %v6187 = vpop.f32.mrf.mxu0
        %v6188 = vadd.f32 0.0, %v6187
        %v6189 = vpop.f32.mrf.mxu0
        %6190 = vmatprep.mubr.bf16.mxu0 %v6014
        %6191 = vmatmul.mubr.bf16.gmra.mxu0 %v6013
        %v6192 = vpop.f32.mrf.mxu0
        %v6193 = vadd.f32 0.0, %v6192
        %v6194 = vpop.f32.mrf.mxu0
        %v6195 = vpop.f32.mrf.mxu0
        %v6196 = vadd.f32 0.0, %v6195
        %v6197 = vpop.f32.mrf.mxu0
        %6198 = vmatprep.mubr.bf16.mxu0 %v6017
        %6199 = vmatmul.mubr.bf16.gmra.mxu0 %v6016
        %v6200 = vpop.f32.mrf.mxu0
        %v6201 = vadd.f32 0.0, %v6200
        %v6202 = vpop.f32.mrf.mxu0
        %v6203 = vpop.f32.mrf.mxu0
        %v6204 = vadd.f32 0.0, %v6203
        %v6205 = vpop.f32.mrf.mxu0
        %6206 = vmatprep.mubr.bf16.mxu0 %v6020
        %6207 = vmatmul.mubr.bf16.gmra.mxu0 %v6019
        %v6208 = vpop.f32.mrf.mxu0
        %v6209 = vadd.f32 0.0, %v6208
        %v6210 = vpop.f32.mrf.mxu0
        %v6211 = vpop.f32.mrf.mxu0
        %v6212 = vadd.f32 0.0, %v6211
        %v6213 = vpop.f32.mrf.mxu0
        %6214 = vdwg.mxu0
        %6215 = vmatprep.subr.bf16.mxu0 0
        %6216 = vmatpush1.bf16.msra.mxu0 0
        %6217 = vmatprep.subr.bf16.mxu0 0
        %6218 = vmatpush1.bf16.msra.mxu0 0
        %6219 = vmatprep.subr.bf16.mxu0 0
        %6220 = vmatpush1.bf16.msra.mxu0 0
        %6221 = vmatprep.subr.bf16.mxu0 0
        %6222 = vmatpush1.bf16.msra.mxu0 0
        %6223 = vmatprep.subr.bf16.mxu0 0
        %6224 = vmatpush1.bf16.msra.mxu0 0
        %6225 = vmatprep.subr.bf16.mxu0 0
        %6226 = vmatpush1.bf16.msra.mxu0 0
        %6227 = vmatprep.subr.bf16.mxu0 0
        %6228 = vmatpush1.bf16.msra.mxu0 %v6119
        %6229 = vmatprep.subr.bf16.mxu0 0
        %6230 = vmatpush1.bf16.msra.mxu0 %v6118
        %6231 = vmatprep.subr.bf16.mxu0 0
        %6232 = vmatpush2.bf16.msra.mxu0 0
        %6233 = vmatprep.subr.bf16.mxu0 0
        %6234 = vmatpush2.bf16.msra.mxu0 0
        %6235 = vmatprep.subr.bf16.mxu0 0
        %6236 = vmatpush2.bf16.msra.mxu0 0
        %6237 = vmatprep.subr.bf16.mxu0 0
        %6238 = vmatpush2.bf16.msra.mxu0 0
        %6239 = vmatprep.subr.bf16.mxu0 0
        %6240 = vmatpush2.bf16.msra.mxu0 0
        %6241 = vmatprep.subr.bf16.mxu0 0
        %6242 = vmatpush2.bf16.msra.mxu0 0
        %6243 = vmatprep.subr.bf16.mxu0 0
        %6244 = vmatpush2.bf16.msra.mxu0 0
        %6245 = vmatprep.subr.bf16.mxu0 0
        %6246 = vmatpush2.bf16.msra.mxu0 0
        %6247 = vmatprep.mubr.bf16.mxu0 0
        %6248 = vmatmul.mubr.bf16.gmra.mxu0 %v6139
        %v6249 = vpop.f32.mrf.mxu0
        %v6250 = vadd.f32 %v6185, %v6249
        %v6251 = vpop.f32.mrf.mxu0
        %v6252 = vpop.f32.mrf.mxu0
        %v6253 = vadd.f32 %v6188, %v6252
        %v6254 = vpop.f32.mrf.mxu0
        %6255 = vmatprep.mubr.bf16.mxu0 0
        %6256 = vmatmul.mubr.bf16.gmra.mxu0 %v6142
        %v6257 = vpop.f32.mrf.mxu0
        %v6258 = vadd.f32 %v6193, %v6257
        %v6259 = vpop.f32.mrf.mxu0
        %v6260 = vpop.f32.mrf.mxu0
        %v6261 = vadd.f32 %v6196, %v6260
        %v6262 = vpop.f32.mrf.mxu0
        %6263 = vmatprep.mubr.bf16.mxu0 0
        %6264 = vmatmul.mubr.bf16.gmra.mxu0 %v6145
        %v6265 = vpop.f32.mrf.mxu0
        %v6266 = vadd.f32 %v6201, %v6265
        %v6267 = vpop.f32.mrf.mxu0
        %v6268 = vpop.f32.mrf.mxu0
        %v6269 = vadd.f32 %v6204, %v6268
        %v6270 = vpop.f32.mrf.mxu0
        %6271 = vmatprep.mubr.bf16.mxu0 0
        %6272 = vmatmul.mubr.bf16.gmra.mxu0 %v6148
        %v6273 = vpop.f32.mrf.mxu0
        %v6274 = vadd.f32 %v6209, %v6273
        %v6275 = vpop.f32.mrf.mxu0
        %v6276 = vpop.f32.mrf.mxu0
        %v6277 = vadd.f32 %v6212, %v6276
        %v6278 = vpop.f32.mrf.mxu0
        %6279 = vdwg.mxu0
        %v6280 = vmin.f32 %v6250, 0.0
        %v6281 = vmin.f32 %v6253, 0.0
        %v6282 = vmin.f32 %v6258, 0.0
        %v6283 = vmin.f32 %v6261, 0.0
        %v6284 = vmin.f32 %v6266, 0.0
        %v6285 = vmin.f32 %v6269, 0.0
        %v6286 = vmin.f32 %v6274, 0.0
        %v6287 = vmin.f32 %v6277, 0.0
        %v6288 = vmul.f32 %v6280, 1.442695
        %v6289 = vpow.pop %v6288
        %v6290 = vmul.f32 %v6281, 1.442695
        %v6291 = vpow.pop %v6290
        %v6292 = vmul.f32 %v6282, 1.442695
        %v6293 = vpow.pop %v6292
        %v6294 = vmul.f32 %v6283, 1.442695
        %v6295 = vpow.pop %v6294
        %v6296 = vmul.f32 %v6284, 1.442695
        %v6297 = vpow.pop %v6296
        %v6298 = vmul.f32 %v6285, 1.442695
        %v6299 = vpow.pop %v6298
        %v6300 = vmul.f32 %v6286, 1.442695
        %v6301 = vpow.pop %v6300
        %v6302 = vmul.f32 %v6287, 1.442695
        %v6303 = vpow.pop %v6302
        %v6304 = vsub.f32 %v6289, 1.0
        %v6305 = vsub.f32 %v6291, 1.0
        %v6306 = vsub.f32 %v6293, 1.0
        %v6307 = vsub.f32 %v6295, 1.0
        %v6308 = vsub.f32 %v6297, 1.0
        %v6309 = vsub.f32 %v6299, 1.0
        %v6310 = vsub.f32 %v6301, 1.0
        %v6311 = vsub.f32 %v6303, 1.0
        %vm6312 = vcmp.gt.f32.partialorder %v6250, 0.0
        %vm6313 = vcmp.gt.f32.partialorder %v6253, 0.0
        %vm6314 = vcmp.gt.f32.partialorder %v6258, 0.0
        %vm6315 = vcmp.gt.f32.partialorder %v6261, 0.0
        %vm6316 = vcmp.gt.f32.partialorder %v6266, 0.0
        %vm6317 = vcmp.gt.f32.partialorder %v6269, 0.0
        %vm6318 = vcmp.gt.f32.partialorder %v6274, 0.0
        %vm6319 = vcmp.gt.f32.partialorder %v6277, 0.0
        %v6320 = vsel %vm6312, %v6250, %v6304
        %v6321 = vsel %vm6313, %v6253, %v6305
        %v6322 = vsel %vm6314, %v6258, %v6306
        %v6323 = vsel %vm6315, %v6261, %v6307
        %v6324 = vsel %vm6316, %v6266, %v6308
        %v6325 = vsel %vm6317, %v6269, %v6309
        %v6326 = vsel %vm6318, %v6274, %v6310
        %v6327 = vsel %vm6319, %v6277, %v6311
        %v6328 = vld [vmem:[#allocation13] sm:$0x1]
        %v6329 = vlaneseq
        %v6330 = vshrl.u32 %v6329, 7
        %v6331 = vsub.s32 0, %v6330
        %v6332 = vrot.slane %v6328, %v6331
        %v6333 = vmul.f32 %v6320, %v6332
        %v6334 = vmul.f32 %v6321, %v6332
        %v6335 = vmul.f32 %v6322, %v6332
        %v6336 = vmul.f32 %v6323, %v6332
        %v6337 = vmul.f32 %v6324, %v6332
        %v6338 = vmul.f32 %v6325, %v6332
        %v6339 = vmul.f32 %v6326, %v6332
        %v6340 = vmul.f32 %v6327, %v6332
        %v6341 = vld [vmem:[#allocation13 + $0x1] sm:$0x1]
        %v6342 = vlaneseq
        %v6343 = vshrl.u32 %v6342, 7
        %v6344 = vsub.s32 0, %v6343
        %v6345 = vrot.slane %v6341, %v6344
        %v6346 = vadd.f32 %v6333, %v6345
        %v6347 = vadd.f32 %v6334, %v6345
        %v6348 = vadd.f32 %v6335, %v6345
        %v6349 = vadd.f32 %v6336, %v6345
        %v6350 = vadd.f32 %v6337, %v6345
        %v6351 = vadd.f32 %v6338, %v6345
        %v6352 = vadd.f32 %v6339, %v6345
        %v6353 = vadd.f32 %v6340, %v6345
        %6354 = vst.msk [vmem:[#allocation5] sm:$0xff] %vm3587, 0.0
        %vm6355 = vcmask 517120
        %6356 = vst.msk [vmem:[#allocation5 + $0x8] sm:$0x3] %vm6355, 0.0
        %s6357 = scalar_lea.vmem [#allocation5], 144
        %6358 = vst.msk [vmem:[%s6357] sm:$0xff] %vm3587, 0.0
        %6359 = vst.msk [vmem:[%s6357 + $0x8] sm:$0x3] %vm6355, 0.0
        %vm6360 = vcmask 516096
        %6361 = vst.msk [vmem:[#allocation5] sm:$0x1] %vm6360, 0.0
        %6362 = vst.msk [vmem:[#allocation5 + $0x10] sm:$0x1] %vm6360, 0.0
        %6363 = vst.msk [vmem:[#allocation5 + $0x20] sm:$0x1] %vm6360, 0.0
        %6364 = vst.msk [vmem:[#allocation5 + $0x30] sm:$0x1] %vm6360, 0.0
        %6365 = vst.msk [vmem:[#allocation5 + $0x40] sm:$0x1] %vm6360, 0.0
        %6366 = vst.msk [vmem:[#allocation5 + $0x50] sm:$0x1] %vm6360, 0.0
        %6367 = vst.msk [vmem:[#allocation5 + $0x60] sm:$0x1] %vm6360, 0.0
        %6368 = vst.msk [vmem:[#allocation5 + $0x70] sm:$0x1] %vm6360, 0.0
        %6369 = vst.msk [vmem:[#allocation5 + $0x80] sm:$0x1] %vm6360, 0.0
        %6370 = vst.msk [vmem:[#allocation5 + $0x90] sm:$0x1] %vm6360, 0.0
        %6371 = vst.msk [vmem:[#allocation5 + $0x9] sm:$0x1] %vm6360, 0.0
        %6372 = vst.msk [vmem:[#allocation5 + $0x19] sm:$0x1] %vm6360, 0.0
        %6373 = vst.msk [vmem:[#allocation5 + $0x29] sm:$0x1] %vm6360, 0.0
        %6374 = vst.msk [vmem:[#allocation5 + $0x39] sm:$0x1] %vm6360, 0.0
        %6375 = vst.msk [vmem:[#allocation5 + $0x49] sm:$0x1] %vm6360, 0.0
        %6376 = vst.msk [vmem:[#allocation5 + $0x59] sm:$0x1] %vm6360, 0.0
        %6377 = vst.msk [vmem:[#allocation5 + $0x69] sm:$0x1] %vm6360, 0.0
        %6378 = vst.msk [vmem:[#allocation5 + $0x79] sm:$0x1] %vm6360, 0.0
        %6379 = vst.msk [vmem:[#allocation5 + $0x89] sm:$0x1] %vm6360, 0.0
        %6380 = vst.msk [vmem:[#allocation5 + $0x99] sm:$0x1] %vm6360, 0.0
        %s6381 = scalar_lea.vmem [#allocation5], 16
        %6382 = vst.msk [vmem:[%s6381 + $0x1] sm:$0xff] %vm3587, %v6346
        %6383 = vst.msk [vmem:[%s6381 + $0x11] sm:$0xff] %vm3587, %v6347
        %6384 = vst.msk [vmem:[%s6381 + $0x21] sm:$0xff] %vm3587, %v6348
        %6385 = vst.msk [vmem:[%s6381 + $0x31] sm:$0xff] %vm3587, %v6349
        %6386 = vst.msk [vmem:[%s6381 + $0x41] sm:$0xff] %vm3587, %v6350
        %6387 = vst.msk [vmem:[%s6381 + $0x51] sm:$0xff] %vm3587, %v6351
        %6388 = vst.msk [vmem:[%s6381 + $0x61] sm:$0xff] %vm3587, %v6352
        %6389 = vst.msk [vmem:[%s6381 + $0x71] sm:$0xff] %vm3587, %v6353
        %v6390 = vld [vmem:[#allocation5] sm:$0xff]
        %v6391 = vld [vmem:[#allocation5 + $0x8] sm:$0x3]
        %v6392 = vld [vmem:[#allocation5 + $0x10] sm:$0xff]
        %v6393 = vld [vmem:[#allocation5 + $0x18] sm:$0x3]
        %v6394 = vld [vmem:[#allocation5 + $0x20] sm:$0xff]
        %v6395 = vld [vmem:[#allocation5 + $0x28] sm:$0x3]
        %v6396 = vld [vmem:[#allocation5 + $0x30] sm:$0xff]
        %v6397 = vld [vmem:[#allocation5 + $0x38] sm:$0x3]
        %v6398 = vld [vmem:[#allocation5 + $0x40] sm:$0xff]
        %v6399 = vld [vmem:[#allocation5 + $0x48] sm:$0x3]
        %v6400 = vld [vmem:[#allocation5 + $0x50] sm:$0xff]
        %v6401 = vld [vmem:[#allocation5 + $0x58] sm:$0x3]
        %v6402 = vld [vmem:[#allocation5 + $0x60] sm:$0xff]
        %v6403 = vld [vmem:[#allocation5 + $0x68] sm:$0x3]
        %v6404 = vld [vmem:[#allocation5 + $0x70] sm:$0xff]
        %v6405 = vld [vmem:[#allocation5 + $0x78] sm:$0x3]
        %v6406 = vld [vmem:[#allocation5 + $0x80] sm:$0xff]
        %v6407 = vld [vmem:[#allocation5 + $0x88] sm:$0x3]
        %v6408 = vld [vmem:[#allocation5 + $0x90] sm:$0xff]
        %v6409 = vld [vmem:[#allocation5 + $0x98] sm:$0x3]
        %v6426 = vrot.slane %v6390, 1
        %v6427 = vrot.slane %v6391, 1
        %v6428 = vsel %vm816, %v6426, %v6427
        %v6429 = vrot.slane %v6392, 1
        %v6430 = vrot.slane %v6393, 1
        %v6431 = vsel %vm816, %v6429, %v6430
        %v6432 = vrot.slane %v6394, 1
        %v6433 = vrot.slane %v6395, 1
        %v6434 = vsel %vm816, %v6432, %v6433
        %v6435 = vrot.slane %v6396, 1
        %v6436 = vrot.slane %v6397, 1
        %v6437 = vsel %vm816, %v6435, %v6436
        %v6438 = vrot.slane %v6398, 1
        %v6439 = vrot.slane %v6399, 1
        %v6440 = vsel %vm816, %v6438, %v6439
        %v6441 = vrot.slane %v6400, 1
        %v6442 = vrot.slane %v6401, 1
        %v6443 = vsel %vm816, %v6441, %v6442
        %v6444 = vrot.slane %v6402, 1
        %v6445 = vrot.slane %v6403, 1
        %v6446 = vsel %vm816, %v6444, %v6445
        %v6447 = vrot.slane %v6404, 1
        %v6448 = vrot.slane %v6405, 1
        %v6449 = vsel %vm816, %v6447, %v6448
        %6450 = vrot.lane.b32.xlu0 %v6428, 64
        %v6451 = vpop.permute.xlu0 %6450
        %6452 = vrot.lane.b32.xlu0 %v6431, 64
        %v6453 = vpop.permute.xlu0 %6452
        %6454 = vrot.lane.b32.xlu0 %v6434, 64
        %v6455 = vpop.permute.xlu0 %6454
        %6456 = vrot.lane.b32.xlu0 %v6437, 64
        %v6457 = vpop.permute.xlu0 %6456
        %6458 = vrot.lane.b32.xlu0 %v6440, 64
        %v6459 = vpop.permute.xlu0 %6458
        %6460 = vrot.lane.b32.xlu0 %v6443, 64
        %v6461 = vpop.permute.xlu0 %6460
        %6462 = vrot.lane.b32.xlu0 %v6446, 64
        %v6463 = vpop.permute.xlu0 %6462
        %6464 = vrot.lane.b32.xlu0 %v6449, 64
        %v6465 = vpop.permute.xlu0 %6464
        %v6474 = vrot.slane %v6390, 2
        %v6475 = vrot.slane %v6391, 2
        %v6476 = vsel %vm993, %v6474, %v6475
        %v6477 = vrot.slane %v6392, 2
        %v6478 = vrot.slane %v6393, 2
        %v6479 = vsel %vm993, %v6477, %v6478
        %v6480 = vrot.slane %v6394, 2
        %v6481 = vrot.slane %v6395, 2
        %v6482 = vsel %vm993, %v6480, %v6481
        %v6483 = vrot.slane %v6396, 2
        %v6484 = vrot.slane %v6397, 2
        %v6485 = vsel %vm993, %v6483, %v6484
        %v6486 = vrot.slane %v6398, 2
        %v6487 = vrot.slane %v6399, 2
        %v6488 = vsel %vm993, %v6486, %v6487
        %v6489 = vrot.slane %v6400, 2
        %v6490 = vrot.slane %v6401, 2
        %v6491 = vsel %vm993, %v6489, %v6490
        %v6492 = vrot.slane %v6402, 2
        %v6493 = vrot.slane %v6403, 2
        %v6494 = vsel %vm993, %v6492, %v6493
        %v6495 = vrot.slane %v6404, 2
        %v6496 = vrot.slane %v6405, 2
        %v6497 = vsel %vm993, %v6495, %v6496
        %6507 = vrot.lane.b32.xlu0 %v6392, 64
        %v6508 = vpop.permute.xlu0 %6507
        %6509 = vrot.lane.b32.xlu0 %v6394, 64
        %v6510 = vpop.permute.xlu0 %6509
        %6511 = vrot.lane.b32.xlu0 %v6396, 64
        %v6512 = vpop.permute.xlu0 %6511
        %6513 = vrot.lane.b32.xlu0 %v6398, 64
        %v6514 = vpop.permute.xlu0 %6513
        %6515 = vrot.lane.b32.xlu0 %v6400, 64
        %v6516 = vpop.permute.xlu0 %6515
        %6517 = vrot.lane.b32.xlu0 %v6402, 64
        %v6518 = vpop.permute.xlu0 %6517
        %6519 = vrot.lane.b32.xlu0 %v6404, 64
        %v6520 = vpop.permute.xlu0 %6519
        %6521 = vrot.lane.b32.xlu0 %v6406, 64
        %v6522 = vpop.permute.xlu0 %6521
        %v6532 = vrot.slane %v6406, 1
        %v6533 = vrot.slane %v6407, 1
        %v6534 = vsel %vm816, %v6532, %v6533
        %v6543 = vrot.slane %v6406, 2
        %v6544 = vrot.slane %v6407, 2
        %v6545 = vsel %vm993, %v6543, %v6544
        %6546 = vrot.lane.b32.xlu0 %v6479, 64
        %v6547 = vpop.permute.xlu0 %6546
        %6548 = vrot.lane.b32.xlu0 %v6482, 64
        %v6549 = vpop.permute.xlu0 %6548
        %6550 = vrot.lane.b32.xlu0 %v6485, 64
        %v6551 = vpop.permute.xlu0 %6550
        %6552 = vrot.lane.b32.xlu0 %v6488, 64
        %v6553 = vpop.permute.xlu0 %6552
        %6554 = vrot.lane.b32.xlu0 %v6491, 64
        %v6555 = vpop.permute.xlu0 %6554
        %6556 = vrot.lane.b32.xlu0 %v6494, 64
        %v6557 = vpop.permute.xlu0 %6556
        %6558 = vrot.lane.b32.xlu0 %v6497, 64
        %v6559 = vpop.permute.xlu0 %6558
        %6560 = vrot.lane.b32.xlu0 %v6545, 64
        %v6561 = vpop.permute.xlu0 %6560
        %v6572 = vrot.slane %v6408, 1
        %v6573 = vrot.slane %v6409, 1
        %v6574 = vsel %vm816, %v6572, %v6573
        %6575 = vrot.lane.b32.xlu0 %v6534, 64
        %v6576 = vpop.permute.xlu0 %6575
        %6577 = vrot.lane.b32.xlu0 %v6574, 64
        %v6578 = vpop.permute.xlu0 %6577
        %v6581 = vrot.slane %v6408, 2
        %v6582 = vrot.slane %v6409, 2
        %v6583 = vsel %vm993, %v6581, %v6582
        %v6586 = vsel %vm3587, %v6390, %v6451
        %v6587 = vsel %vm3587, %v6392, %v6453
        %v6588 = vsel %vm3587, %v6394, %v6455
        %v6589 = vsel %vm3587, %v6396, %v6457
        %v6590 = vsel %vm3587, %v6398, %v6459
        %v6591 = vsel %vm3587, %v6400, %v6461
        %v6592 = vsel %vm3587, %v6402, %v6463
        %v6593 = vsel %vm3587, %v6404, %v6465
        %v6594 = vsel %vm3587, %v6476, %v6508
        %v6595 = vsel %vm3587, %v6479, %v6510
        %v6596 = vsel %vm3587, %v6482, %v6512
        %v6597 = vsel %vm3587, %v6485, %v6514
        %v6598 = vsel %vm3587, %v6488, %v6516
        %v6599 = vsel %vm3587, %v6491, %v6518
        %v6600 = vsel %vm3587, %v6494, %v6520
        %v6601 = vsel %vm3587, %v6497, %v6522
        %v6602 = vsel %vm3587, %v6431, %v6547
        %v6603 = vsel %vm3587, %v6434, %v6549
        %v6604 = vsel %vm3587, %v6437, %v6551
        %v6605 = vsel %vm3587, %v6440, %v6553
        %v6606 = vsel %vm3587, %v6443, %v6555
        %v6607 = vsel %vm3587, %v6446, %v6557
        %v6608 = vsel %vm3587, %v6449, %v6559
        %v6609 = vsel %vm3587, %v6534, %v6561
        %v6610 = vsel %vm3587, %v6406, %v6576
        %v6611 = vsel %vm3587, %v6408, %v6578
        %v6612 = vpack.c.bf16 %v6586, %v6586
        %v6613 = vpack.c.bf16 %v6594, %v6594
        %v6614 = vpack.c.bf16 %v6602, %v6602
        %v6615 = vpack.c.bf16 %v6588, %v6588
        %v6616 = vpack.c.bf16 %v6482, %v6482
        %v6617 = vpack.c.bf16 %v6587, %v6587
        %v6618 = vpack.c.bf16 %v6595, %v6595
        %v6619 = vpack.c.bf16 %v6603, %v6603
        %v6620 = vpack.c.bf16 %v6589, %v6589
        %v6621 = vpack.c.bf16 %v6485, %v6485
        %v6622 = vpack.c.bf16 %v6596, %v6596
        %v6623 = vpack.c.bf16 %v6604, %v6604
        %v6624 = vpack.c.bf16 %v6590, %v6590
        %v6625 = vpack.c.bf16 %v6488, %v6488
        %v6626 = vpack.c.bf16 %v6597, %v6597
        %v6627 = vpack.c.bf16 %v6605, %v6605
        %v6628 = vpack.c.bf16 %v6591, %v6591
        %v6629 = vpack.c.bf16 %v6491, %v6491
        %v6630 = vpack.c.bf16 %v6598, %v6598
        %v6631 = vpack.c.bf16 %v6606, %v6606
        %v6632 = vpack.c.bf16 %v6592, %v6592
        %v6633 = vpack.c.bf16 %v6494, %v6494
        %v6634 = vpack.c.bf16 %v6599, %v6599
        %v6635 = vpack.c.bf16 %v6607, %v6607
        %v6636 = vpack.c.bf16 %v6593, %v6593
        %v6637 = vpack.c.bf16 %v6497, %v6497
        %v6638 = vpack.c.bf16 %v6600, %v6600
        %v6639 = vpack.c.bf16 %v6608, %v6608
        %v6640 = vpack.c.bf16 %v6610, %v6610
        %v6641 = vpack.c.bf16 %v6545, %v6545
        %v6642 = vpack.c.bf16 %v6601, %v6601
        %v6643 = vpack.c.bf16 %v6609, %v6609
        %v6644 = vpack.c.bf16 %v6611, %v6611
        %v6645 = vpack.c.bf16 %v6583, %v6583
        %v6680 = vunpack.c.l.b16 %v6612
        %v6681 = vunpack.c.l.b16 %v6613
        %v6682 = vunpack.c.l.b16 %v6614
        %v6683 = vunpack.c.l.b16 %v6615
        %v6684 = vunpack.c.l.b16 %v6616
        %v6685 = vunpack.c.l.b16 %v6617
        %v6686 = vunpack.c.l.b16 %v6618
        %v6687 = vunpack.c.l.b16 %v6619
        %v6688 = vunpack.c.l.b16 %v6620
        %v6689 = vunpack.c.l.b16 %v6621
        %v6690 = vunpack.c.l.b16 %v6622
        %v6691 = vunpack.c.l.b16 %v6623
        %v6692 = vunpack.c.l.b16 %v6624
        %v6693 = vunpack.c.l.b16 %v6625
        %v6694 = vunpack.c.l.b16 %v6626
        %v6695 = vunpack.c.l.b16 %v6627
        %v6696 = vunpack.c.l.b16 %v6628
        %v6697 = vunpack.c.l.b16 %v6629
        %v6698 = vunpack.c.l.b16 %v6630
        %v6699 = vunpack.c.l.b16 %v6631
        %v6700 = vunpack.c.l.b16 %v6632
        %v6701 = vunpack.c.l.b16 %v6633
        %v6702 = vunpack.c.l.b16 %v6634
        %v6703 = vunpack.c.l.b16 %v6635
        %v6704 = vunpack.c.l.b16 %v6636
        %v6705 = vunpack.c.l.b16 %v6637
        %v6706 = vunpack.c.l.b16 %v6638
        %v6707 = vunpack.c.l.b16 %v6639
        %v6708 = vunpack.c.l.b16 %v6640
        %v6709 = vunpack.c.l.b16 %v6641
        %v6710 = vunpack.c.l.b16 %v6642
        %v6711 = vunpack.c.l.b16 %v6643
        %v6712 = vunpack.c.l.b16 %v6644
        %v6713 = vunpack.c.l.b16 %v6645
        %v6714 = vld [vmem:[%s4] sm:$0xf]
        %v6715 = vld [vmem:[%s4 + $0x4] sm:$0xf]
        %v6716 = vld [vmem:[%s4 + $0x8] sm:$0xf]
        %v6717 = vld [vmem:[%s4 + $0xc] sm:$0xf]
        %v6718 = vld [vmem:[%s4 + $0x10] sm:$0xf]
        %v6719 = vld [vmem:[%s4 + $0x14] sm:$0xf]
        %v6720 = vld [vmem:[%s4 + $0x18] sm:$0xf]
        %v6721 = vld [vmem:[%s4 + $0x1c] sm:$0xf]
        %v6722 = vld [vmem:[%s4 + $0x20] sm:$0xf]
        %v6723 = vld [vmem:[%s4 + $0x24] sm:$0xf]
        %v6724 = vld [vmem:[%s4 + $0x28] sm:$0xf]
        %v6725 = vld [vmem:[%s4 + $0x2c] sm:$0xf]
        %v6726 = vld [vmem:[%s4 + $0x30] sm:$0xf]
        %v6727 = vld [vmem:[%s4 + $0x34] sm:$0xf]
        %v6728 = vld [vmem:[%s4 + $0x38] sm:$0xf]
        %v6729 = vld [vmem:[%s4 + $0x3c] sm:$0xf]
        %v6730 = vld [vmem:[%s4 + $0x40] sm:$0xf]
        %v6731 = vld [vmem:[%s4 + $0x44] sm:$0xf]
        %v6732 = vld [vmem:[%s4 + $0x48] sm:$0xf]
        %v6733 = vld [vmem:[%s4 + $0x4c] sm:$0xf]
        %v6734 = vld [vmem:[%s4 + $0x50] sm:$0xf]
        %v6735 = vld [vmem:[%s4 + $0x54] sm:$0xf]
        %v6736 = vld [vmem:[%s4 + $0x58] sm:$0xf]
        %v6737 = vld [vmem:[%s4 + $0x5c] sm:$0xf]
        %v6738 = vld [vmem:[%s4 + $0x60] sm:$0xf]
        %v6739 = vld [vmem:[%s4 + $0x64] sm:$0xf]
        %v6740 = vld [vmem:[%s4 + $0x68] sm:$0xf]
        %v6741 = vld [vmem:[%s4 + $0x6c] sm:$0xf]
        %v6742 = vld [vmem:[%s4 + $0x70] sm:$0xf]
        %v6743 = vld [vmem:[%s4 + $0x74] sm:$0xf]
        %v6744 = vld [vmem:[%s4 + $0x78] sm:$0xf]
        %v6745 = vld [vmem:[%s4 + $0x7c] sm:$0xf]
        %v6746 = vld [vmem:[%s4 + $0x80] sm:$0xf]
        %v6747 = vld [vmem:[%s4 + $0x84] sm:$0xf]
        %v6748 = vld [vmem:[%s4 + $0x88] sm:$0xf]
        %v6749 = vld [vmem:[%s4 + $0x8c] sm:$0xf]
        %v6750 = vld [vmem:[%s4 + $0x90] sm:$0xf]
        %v6751 = vld [vmem:[%s4 + $0x94] sm:$0xf]
        %v6752 = vld [vmem:[%s4 + $0x98] sm:$0xf]
        %v6753 = vld [vmem:[%s4 + $0x9c] sm:$0xf]
        %v6754 = vld [vmem:[%s4 + $0xa0] sm:$0xf]
        %v6755 = vld [vmem:[%s4 + $0xa4] sm:$0xf]
        %v6756 = vld [vmem:[%s4 + $0xa8] sm:$0xf]
        %v6757 = vld [vmem:[%s4 + $0xac] sm:$0xf]
        %v6758 = vld [vmem:[%s4 + $0xb0] sm:$0xf]
        %v6759 = vld [vmem:[%s4 + $0xb4] sm:$0xf]
        %v6760 = vld [vmem:[%s4 + $0xb8] sm:$0xf]
        %v6761 = vld [vmem:[%s4 + $0xbc] sm:$0xf]
        %v6762 = vld [vmem:[%s4 + $0xc0] sm:$0xf]
        %v6763 = vld [vmem:[%s4 + $0xc4] sm:$0xf]
        %v6764 = vld [vmem:[%s4 + $0xc8] sm:$0xf]
        %v6765 = vld [vmem:[%s4 + $0xcc] sm:$0xf]
        %v6766 = vld [vmem:[%s4 + $0xd0] sm:$0xf]
        %v6767 = vld [vmem:[%s4 + $0xd4] sm:$0xf]
        %v6768 = vld [vmem:[%s4 + $0xd8] sm:$0xf]
        %v6769 = vld [vmem:[%s4 + $0xdc] sm:$0xf]
        %v6770 = vld [vmem:[%s4 + $0xe0] sm:$0xf]
        %v6771 = vld [vmem:[%s4 + $0xe4] sm:$0xf]
        %v6772 = vld [vmem:[%s4 + $0xe8] sm:$0xf]
        %v6773 = vld [vmem:[%s4 + $0xec] sm:$0xf]
        %v6774 = vld [vmem:[%s4 + $0xf0] sm:$0xf]
        %v6775 = vld [vmem:[%s4 + $0xf4] sm:$0xf]
        %v6776 = vld [vmem:[%s4 + $0xf8] sm:$0xf]
        %v6777 = vld [vmem:[%s4 + $0xfc] sm:$0xf]
        %v6778 = vld [vmem:[%s4 + $0x100] sm:$0xf]
        %v6779 = vld [vmem:[%s4 + $0x104] sm:$0xf]
        %v6780 = vld [vmem:[%s4 + $0x108] sm:$0xf]
        %v6781 = vld [vmem:[%s4 + $0x10c] sm:$0xf]
        %v6782 = vld [vmem:[%s4 + $0x110] sm:$0xf]
        %v6783 = vld [vmem:[%s4 + $0x114] sm:$0xf]
        %v6784 = vld [vmem:[%s4 + $0x118] sm:$0xf]
        %v6785 = vld [vmem:[%s4 + $0x11c] sm:$0xf]
        %v6786 = vpack.c.b16 %v6685, %v6680
        %v6787 = vpack.c.b16 %v6686, %v6681
        %v6788 = vpack.c.b16 %v6687, %v6682
        %v6789 = vpack.c.b16 %v6688, %v6683
        %v6790 = vpack.c.b16 %v6689, %v6684
        %v6791 = vpack.c.b16 %v6694, %v6690
        %v6792 = vpack.c.b16 %v6695, %v6691
        %v6793 = vpack.c.b16 %v6696, %v6692
        %v6794 = vpack.c.b16 %v6697, %v6693
        %v6795 = vpack.c.b16 %v6702, %v6698
        %v6796 = vpack.c.b16 %v6703, %v6699
        %v6797 = vpack.c.b16 %v6704, %v6700
        %v6798 = vpack.c.b16 %v6705, %v6701
        %v6799 = vpack.c.b16 %v6710, %v6706
        %v6800 = vpack.c.b16 %v6711, %v6707
        %v6801 = vpack.c.b16 %v6712, %v6708
        %v6802 = vpack.c.b16 %v6713, %v6709
        %v6888 = vunpack.c.l.b16 %v6714
        %v6889 = vunpack.c.l.b16 %v6715
        %v6890 = vunpack.c.l.b16 %v6716
        %v6891 = vunpack.c.l.b16 %v6717
        %v6892 = vunpack.c.l.b16 %v6718
        %v6893 = vunpack.c.l.b16 %v6719
        %v6894 = vunpack.c.l.b16 %v6720
        %v6895 = vunpack.c.l.b16 %v6721
        %v6896 = vunpack.c.l.b16 %v6722
        %v6897 = vunpack.c.l.b16 %v6723
        %v6898 = vunpack.c.l.b16 %v6724
        %v6899 = vunpack.c.l.b16 %v6725
        %v6900 = vunpack.c.l.b16 %v6726
        %v6901 = vunpack.c.l.b16 %v6727
        %v6902 = vunpack.c.l.b16 %v6728
        %v6903 = vunpack.c.l.b16 %v6729
        %v6904 = vunpack.c.l.b16 %v6730
        %v6905 = vunpack.c.l.b16 %v6731
        %v6906 = vunpack.c.l.b16 %v6732
        %v6907 = vunpack.c.l.b16 %v6733
        %v6908 = vunpack.c.l.b16 %v6734
        %v6909 = vunpack.c.l.b16 %v6735
        %v6910 = vunpack.c.l.b16 %v6736
        %v6911 = vunpack.c.l.b16 %v6737
        %v6912 = vunpack.c.l.b16 %v6738
        %v6913 = vunpack.c.l.b16 %v6739
        %v6914 = vunpack.c.l.b16 %v6740
        %v6915 = vunpack.c.l.b16 %v6741
        %v6916 = vunpack.c.l.b16 %v6742
        %v6917 = vunpack.c.l.b16 %v6743
        %v6918 = vunpack.c.l.b16 %v6744
        %v6919 = vunpack.c.l.b16 %v6745
        %v6920 = vunpack.c.l.b16 %v6746
        %v6921 = vunpack.c.l.b16 %v6747
        %v6922 = vunpack.c.l.b16 %v6748
        %v6923 = vunpack.c.l.b16 %v6749
        %v6924 = vunpack.c.l.b16 %v6750
        %v6925 = vunpack.c.l.b16 %v6751
        %v6926 = vunpack.c.l.b16 %v6752
        %v6927 = vunpack.c.l.b16 %v6753
        %v6928 = vunpack.c.l.b16 %v6754
        %v6929 = vunpack.c.l.b16 %v6755
        %v6930 = vunpack.c.l.b16 %v6756
        %v6931 = vunpack.c.l.b16 %v6757
        %v6932 = vunpack.c.l.b16 %v6758
        %v6933 = vunpack.c.l.b16 %v6759
        %v6934 = vunpack.c.l.b16 %v6760
        %v6935 = vunpack.c.l.b16 %v6761
        %v6936 = vunpack.c.l.b16 %v6762
        %v6937 = vunpack.c.l.b16 %v6763
        %v6938 = vunpack.c.l.b16 %v6764
        %v6939 = vunpack.c.l.b16 %v6765
        %v6940 = vunpack.c.l.b16 %v6766
        %v6941 = vunpack.c.l.b16 %v6767
        %v6942 = vunpack.c.l.b16 %v6768
        %v6943 = vunpack.c.l.b16 %v6769
        %v6944 = vunpack.c.l.b16 %v6770
        %v6945 = vunpack.c.l.b16 %v6771
        %v6946 = vunpack.c.l.b16 %v6772
        %v6947 = vunpack.c.l.b16 %v6773
        %v6948 = vunpack.c.l.b16 %v6774
        %v6949 = vunpack.c.l.b16 %v6775
        %v6950 = vunpack.c.l.b16 %v6776
        %v6951 = vunpack.c.l.b16 %v6777
        %v6952 = vunpack.c.l.b16 %v6778
        %v6953 = vunpack.c.l.b16 %v6779
        %v6954 = vunpack.c.l.b16 %v6780
        %v6955 = vunpack.c.l.b16 %v6781
        %v6956 = vunpack.c.l.b16 %v6782
        %v6957 = vunpack.c.l.b16 %v6783
        %v6958 = vunpack.c.l.b16 %v6784
        %v6959 = vunpack.c.l.b16 %v6785
        %v6960 = vpack.c.b16 %v6889, %v6888
        %v6961 = vpack.c.b16 %v6891, %v6890
        %v6962 = vpack.c.b16 %v6893, %v6892
        %v6963 = vpack.c.b16 %v6895, %v6894
        %v6964 = vpack.c.b16 %v6897, %v6896
        %v6965 = vpack.c.b16 %v6899, %v6898
        %v6966 = vpack.c.b16 %v6901, %v6900
        %v6967 = vpack.c.b16 %v6903, %v6902
        %v6968 = vpack.c.b16 %v6905, %v6904
        %v6969 = vpack.c.b16 %v6907, %v6906
        %v6970 = vpack.c.b16 %v6909, %v6908
        %v6971 = vpack.c.b16 %v6911, %v6910
        %v6972 = vpack.c.b16 %v6913, %v6912
        %v6973 = vpack.c.b16 %v6915, %v6914
        %v6974 = vpack.c.b16 %v6917, %v6916
        %v6975 = vpack.c.b16 %v6919, %v6918
        %v6976 = vpack.c.b16 %v6921, %v6920
        %v6977 = vpack.c.b16 %v6923, %v6922
        %v6978 = vpack.c.b16 %v6925, %v6924
        %v6979 = vpack.c.b16 %v6927, %v6926
        %v6980 = vpack.c.b16 %v6929, %v6928
        %v6981 = vpack.c.b16 %v6931, %v6930
        %v6982 = vpack.c.b16 %v6933, %v6932
        %v6983 = vpack.c.b16 %v6935, %v6934
        %v6984 = vpack.c.b16 %v6937, %v6936
        %v6985 = vpack.c.b16 %v6939, %v6938
        %v6986 = vpack.c.b16 %v6941, %v6940
        %v6987 = vpack.c.b16 %v6943, %v6942
        %v6988 = vpack.c.b16 %v6945, %v6944
        %v6989 = vpack.c.b16 %v6947, %v6946
        %v6990 = vpack.c.b16 %v6949, %v6948
        %v6991 = vpack.c.b16 %v6951, %v6950
        %v6992 = vpack.c.b16 %v6953, %v6952
        %v6993 = vpack.c.b16 %v6955, %v6954
        %v6994 = vpack.c.b16 %v6957, %v6956
        %v6995 = vpack.c.b16 %v6959, %v6958
        %v7033 = vsel %vm3587, %v6790, 0
        %v7036 = vsel %vm3587, %v6794, 0
        %v7039 = vsel %vm3587, %v6798, 0
        %v7042 = vsel %vm3587, %v6802, 0
        %7044 = vmatprep.subr.bf16.mxu0 0
        %7045 = vmatpush1.bf16.msra.mxu0 %v6967
        %7046 = vmatprep.subr.bf16.mxu0 0
        %7047 = vmatpush1.bf16.msra.mxu0 %v6966
        %7048 = vmatprep.subr.bf16.mxu0 0
        %7049 = vmatpush1.bf16.msra.mxu0 %v6965
        %7050 = vmatprep.subr.bf16.mxu0 0
        %7051 = vmatpush1.bf16.msra.mxu0 %v6964
        %7052 = vmatprep.subr.bf16.mxu0 0
        %7053 = vmatpush1.bf16.msra.mxu0 %v6963
        %7054 = vmatprep.subr.bf16.mxu0 0
        %7055 = vmatpush1.bf16.msra.mxu0 %v6962
        %7056 = vmatprep.subr.bf16.mxu0 0
        %7057 = vmatpush1.bf16.msra.mxu0 %v6961
        %7058 = vmatprep.subr.bf16.mxu0 0
        %7059 = vmatpush1.bf16.msra.mxu0 %v6960
        %7060 = vmatprep.subr.bf16.mxu0 0
        %7061 = vmatpush2.bf16.msra.mxu0 %v6975
        %7062 = vmatprep.subr.bf16.mxu0 0
        %7063 = vmatpush2.bf16.msra.mxu0 %v6974
        %7064 = vmatprep.subr.bf16.mxu0 0
        %7065 = vmatpush2.bf16.msra.mxu0 %v6973
        %7066 = vmatprep.subr.bf16.mxu0 0
        %7067 = vmatpush2.bf16.msra.mxu0 %v6972
        %7068 = vmatprep.subr.bf16.mxu0 0
        %7069 = vmatpush2.bf16.msra.mxu0 %v6971
        %7070 = vmatprep.subr.bf16.mxu0 0
        %7071 = vmatpush2.bf16.msra.mxu0 %v6970
        %7072 = vmatprep.subr.bf16.mxu0 0
        %7073 = vmatpush2.bf16.msra.mxu0 %v6969
        %7074 = vmatprep.subr.bf16.mxu0 0
        %7075 = vmatpush2.bf16.msra.mxu0 %v6968
        %7076 = vmatprep.mubr.bf16.mxu0 %v6787
        %7077 = vmatmul.mubr.bf16.gmra.mxu0 %v6786
        %v7078 = vpop.f32.mrf.mxu0
        %v7079 = vadd.f32 0.0, %v7078
        %v7080 = vpop.f32.mrf.mxu0
        %v7081 = vpop.f32.mrf.mxu0
        %v7082 = vadd.f32 0.0, %v7081
        %v7083 = vpop.f32.mrf.mxu0
        %7084 = vmatprep.mubr.bf16.mxu0 %v6791
        %7085 = vmatmul.mubr.bf16.gmra.mxu0 %v6789
        %v7086 = vpop.f32.mrf.mxu0
        %v7087 = vadd.f32 0.0, %v7086
        %v7088 = vpop.f32.mrf.mxu0
        %v7089 = vpop.f32.mrf.mxu0
        %v7090 = vadd.f32 0.0, %v7089
        %v7091 = vpop.f32.mrf.mxu0
        %7092 = vmatprep.mubr.bf16.mxu0 %v6795
        %7093 = vmatmul.mubr.bf16.gmra.mxu0 %v6793
        %v7094 = vpop.f32.mrf.mxu0
        %v7095 = vadd.f32 0.0, %v7094
        %v7096 = vpop.f32.mrf.mxu0
        %v7097 = vpop.f32.mrf.mxu0
        %v7098 = vadd.f32 0.0, %v7097
        %v7099 = vpop.f32.mrf.mxu0
        %7100 = vmatprep.mubr.bf16.mxu0 %v6799
        %7101 = vmatmul.mubr.bf16.gmra.mxu0 %v6797
        %v7102 = vpop.f32.mrf.mxu0
        %v7103 = vadd.f32 0.0, %v7102
        %v7104 = vpop.f32.mrf.mxu0
        %v7105 = vpop.f32.mrf.mxu0
        %v7106 = vadd.f32 0.0, %v7105
        %v7107 = vpop.f32.mrf.mxu0
        %7108 = vdwg.mxu0
        %7109 = vmatprep.subr.bf16.mxu0 0
        %7110 = vmatpush1.bf16.msra.mxu0 %v6983
        %7111 = vmatprep.subr.bf16.mxu0 0
        %7112 = vmatpush1.bf16.msra.mxu0 %v6982
        %7113 = vmatprep.subr.bf16.mxu0 0
        %7114 = vmatpush1.bf16.msra.mxu0 %v6981
        %7115 = vmatprep.subr.bf16.mxu0 0
        %7116 = vmatpush1.bf16.msra.mxu0 %v6980
        %7117 = vmatprep.subr.bf16.mxu0 0
        %7118 = vmatpush1.bf16.msra.mxu0 %v6979
        %7119 = vmatprep.subr.bf16.mxu0 0
        %7120 = vmatpush1.bf16.msra.mxu0 %v6978
        %7121 = vmatprep.subr.bf16.mxu0 0
        %7122 = vmatpush1.bf16.msra.mxu0 %v6977
        %7123 = vmatprep.subr.bf16.mxu0 0
        %7124 = vmatpush1.bf16.msra.mxu0 %v6976
        %7125 = vmatprep.subr.bf16.mxu0 0
        %7126 = vmatpush2.bf16.msra.mxu0 %v6991
        %7127 = vmatprep.subr.bf16.mxu0 0
        %7128 = vmatpush2.bf16.msra.mxu0 %v6990
        %7129 = vmatprep.subr.bf16.mxu0 0
        %7130 = vmatpush2.bf16.msra.mxu0 %v6989
        %7131 = vmatprep.subr.bf16.mxu0 0
        %7132 = vmatpush2.bf16.msra.mxu0 %v6988
        %7133 = vmatprep.subr.bf16.mxu0 0
        %7134 = vmatpush2.bf16.msra.mxu0 %v6987
        %7135 = vmatprep.subr.bf16.mxu0 0
        %7136 = vmatpush2.bf16.msra.mxu0 %v6986
        %7137 = vmatprep.subr.bf16.mxu0 0
        %7138 = vmatpush2.bf16.msra.mxu0 %v6985
        %7139 = vmatprep.subr.bf16.mxu0 0
        %7140 = vmatpush2.bf16.msra.mxu0 %v6984
        %7141 = vmatprep.mubr.bf16.mxu0 %v6789
        %7142 = vmatmul.mubr.bf16.gmra.mxu0 %v6788
        %v7143 = vpop.f32.mrf.mxu0
        %v7144 = vadd.f32 %v7079, %v7143
        %v7145 = vpop.f32.mrf.mxu0
        %v7146 = vpop.f32.mrf.mxu0
        %v7147 = vadd.f32 %v7082, %v7146
        %v7148 = vpop.f32.mrf.mxu0
        %7149 = vmatprep.mubr.bf16.mxu0 %v6793
        %7150 = vmatmul.mubr.bf16.gmra.mxu0 %v6792
        %v7151 = vpop.f32.mrf.mxu0
        %v7152 = vadd.f32 %v7087, %v7151
        %v7153 = vpop.f32.mrf.mxu0
        %v7154 = vpop.f32.mrf.mxu0
        %v7155 = vadd.f32 %v7090, %v7154
        %v7156 = vpop.f32.mrf.mxu0
        %7157 = vmatprep.mubr.bf16.mxu0 %v6797
        %7158 = vmatmul.mubr.bf16.gmra.mxu0 %v6796
        %v7159 = vpop.f32.mrf.mxu0
        %v7160 = vadd.f32 %v7095, %v7159
        %v7161 = vpop.f32.mrf.mxu0
        %v7162 = vpop.f32.mrf.mxu0
        %v7163 = vadd.f32 %v7098, %v7162
        %v7164 = vpop.f32.mrf.mxu0
        %7165 = vmatprep.mubr.bf16.mxu0 %v6801
        %7166 = vmatmul.mubr.bf16.gmra.mxu0 %v6800
        %v7167 = vpop.f32.mrf.mxu0
        %v7168 = vadd.f32 %v7103, %v7167
        %v7169 = vpop.f32.mrf.mxu0
        %v7170 = vpop.f32.mrf.mxu0
        %v7171 = vadd.f32 %v7106, %v7170
        %v7172 = vpop.f32.mrf.mxu0
        %7173 = vdwg.mxu0
        %7174 = vmatprep.subr.bf16.mxu0 0
        %7175 = vmatpush1.bf16.msra.mxu0 0
        %7176 = vmatprep.subr.bf16.mxu0 0
        %7177 = vmatpush1.bf16.msra.mxu0 0
        %7178 = vmatprep.subr.bf16.mxu0 0
        %7179 = vmatpush1.bf16.msra.mxu0 0
        %7180 = vmatprep.subr.bf16.mxu0 0
        %7181 = vmatpush1.bf16.msra.mxu0 0
        %7182 = vmatprep.subr.bf16.mxu0 0
        %7183 = vmatpush1.bf16.msra.mxu0 %v6995
        %7184 = vmatprep.subr.bf16.mxu0 0
        %7185 = vmatpush1.bf16.msra.mxu0 %v6994
        %7186 = vmatprep.subr.bf16.mxu0 0
        %7187 = vmatpush1.bf16.msra.mxu0 %v6993
        %7188 = vmatprep.subr.bf16.mxu0 0
        %7189 = vmatpush1.bf16.msra.mxu0 %v6992
        %7190 = vmatprep.subr.bf16.mxu0 0
        %7191 = vmatpush2.bf16.msra.mxu0 0
        %7192 = vmatprep.subr.bf16.mxu0 0
        %7193 = vmatpush2.bf16.msra.mxu0 0
        %7194 = vmatprep.subr.bf16.mxu0 0
        %7195 = vmatpush2.bf16.msra.mxu0 0
        %7196 = vmatprep.subr.bf16.mxu0 0
        %7197 = vmatpush2.bf16.msra.mxu0 0
        %7198 = vmatprep.subr.bf16.mxu0 0
        %7199 = vmatpush2.bf16.msra.mxu0 0
        %7200 = vmatprep.subr.bf16.mxu0 0
        %7201 = vmatpush2.bf16.msra.mxu0 0
        %7202 = vmatprep.subr.bf16.mxu0 0
        %7203 = vmatpush2.bf16.msra.mxu0 0
        %7204 = vmatprep.subr.bf16.mxu0 0
        %7205 = vmatpush2.bf16.msra.mxu0 0
        %7206 = vmatprep.mubr.bf16.mxu0 0
        %7207 = vmatmul.mubr.bf16.gmra.mxu0 %v7033
        %v7208 = vpop.f32.mrf.mxu0
        %v7209 = vadd.f32 %v7144, %v7208
        %v7210 = vpop.f32.mrf.mxu0
        %v7211 = vpop.f32.mrf.mxu0
        %v7212 = vadd.f32 %v7147, %v7211
        %v7213 = vpop.f32.mrf.mxu0
        %7214 = vmatprep.mubr.bf16.mxu0 0
        %7215 = vmatmul.mubr.bf16.gmra.mxu0 %v7036
        %v7216 = vpop.f32.mrf.mxu0
        %v7217 = vadd.f32 %v7152, %v7216
        %v7218 = vpop.f32.mrf.mxu0
        %v7219 = vpop.f32.mrf.mxu0
        %v7220 = vadd.f32 %v7155, %v7219
        %v7221 = vpop.f32.mrf.mxu0
        %7222 = vmatprep.mubr.bf16.mxu0 0
        %7223 = vmatmul.mubr.bf16.gmra.mxu0 %v7039
        %v7224 = vpop.f32.mrf.mxu0
        %v7225 = vadd.f32 %v7160, %v7224
        %v7226 = vpop.f32.mrf.mxu0
        %v7227 = vpop.f32.mrf.mxu0
        %v7228 = vadd.f32 %v7163, %v7227
        %v7229 = vpop.f32.mrf.mxu0
        %7230 = vmatprep.mubr.bf16.mxu0 0
        %7231 = vmatmul.mubr.bf16.gmra.mxu0 %v7042
        %v7232 = vpop.f32.mrf.mxu0
        %v7233 = vadd.f32 %v7168, %v7232
        %v7234 = vpop.f32.mrf.mxu0
        %v7235 = vpop.f32.mrf.mxu0
        %v7236 = vadd.f32 %v7171, %v7235
        %v7237 = vpop.f32.mrf.mxu0
        %7238 = vdwg.mxu0
        %v7239 = vmin.f32 %v7209, 0.0
        %v7240 = vmin.f32 %v7212, 0.0
        %v7241 = vmin.f32 %v7217, 0.0
        %v7242 = vmin.f32 %v7220, 0.0
        %v7243 = vmin.f32 %v7225, 0.0
        %v7244 = vmin.f32 %v7228, 0.0
        %v7245 = vmin.f32 %v7233, 0.0
        %v7246 = vmin.f32 %v7236, 0.0
        %v7247 = vmul.f32 %v7239, 1.442695
        %v7248 = vpow.pop %v7247
        %v7249 = vmul.f32 %v7240, 1.442695
        %v7250 = vpow.pop %v7249
        %v7251 = vmul.f32 %v7241, 1.442695
        %v7252 = vpow.pop %v7251
        %v7253 = vmul.f32 %v7242, 1.442695
        %v7254 = vpow.pop %v7253
        %v7255 = vmul.f32 %v7243, 1.442695
        %v7256 = vpow.pop %v7255
        %v7257 = vmul.f32 %v7244, 1.442695
        %v7258 = vpow.pop %v7257
        %v7259 = vmul.f32 %v7245, 1.442695
        %v7260 = vpow.pop %v7259
        %v7261 = vmul.f32 %v7246, 1.442695
        %v7262 = vpow.pop %v7261
        %v7263 = vsub.f32 %v7248, 1.0
        %v7264 = vsub.f32 %v7250, 1.0
        %v7265 = vsub.f32 %v7252, 1.0
        %v7266 = vsub.f32 %v7254, 1.0
        %v7267 = vsub.f32 %v7256, 1.0
        %v7268 = vsub.f32 %v7258, 1.0
        %v7269 = vsub.f32 %v7260, 1.0
        %v7270 = vsub.f32 %v7262, 1.0
        %vm7271 = vcmp.gt.f32.partialorder %v7209, 0.0
        %vm7272 = vcmp.gt.f32.partialorder %v7212, 0.0
        %vm7273 = vcmp.gt.f32.partialorder %v7217, 0.0
        %vm7274 = vcmp.gt.f32.partialorder %v7220, 0.0
        %vm7275 = vcmp.gt.f32.partialorder %v7225, 0.0
        %vm7276 = vcmp.gt.f32.partialorder %v7228, 0.0
        %vm7277 = vcmp.gt.f32.partialorder %v7233, 0.0
        %vm7278 = vcmp.gt.f32.partialorder %v7236, 0.0
        %v7279 = vsel %vm7271, %v7209, %v7263
        %v7280 = vsel %vm7272, %v7212, %v7264
        %v7281 = vsel %vm7273, %v7217, %v7265
        %v7282 = vsel %vm7274, %v7220, %v7266
        %v7283 = vsel %vm7275, %v7225, %v7267
        %v7284 = vsel %vm7276, %v7228, %v7268
        %v7285 = vsel %vm7277, %v7233, %v7269
        %v7286 = vsel %vm7278, %v7236, %v7270
        %v7287 = vld [vmem:[#allocation14] sm:$0x1]
        %v7288 = vlaneseq
        %v7289 = vshrl.u32 %v7288, 7
        %v7290 = vsub.s32 0, %v7289
        %v7291 = vrot.slane %v7287, %v7290
        %v7292 = vmul.f32 %v7279, %v7291
        %v7293 = vmul.f32 %v7280, %v7291
        %v7294 = vmul.f32 %v7281, %v7291
        %v7295 = vmul.f32 %v7282, %v7291
        %v7296 = vmul.f32 %v7283, %v7291
        %v7297 = vmul.f32 %v7284, %v7291
        %v7298 = vmul.f32 %v7285, %v7291
        %v7299 = vmul.f32 %v7286, %v7291
        %v7300 = vld [vmem:[#allocation14 + $0x1] sm:$0x1]
        %v7301 = vlaneseq
        %v7302 = vshrl.u32 %v7301, 7
        %v7303 = vsub.s32 0, %v7302
        %v7304 = vrot.slane %v7300, %v7303
        %v7305 = vadd.f32 %v7292, %v7304
        %v7306 = vadd.f32 %v7293, %v7304
        %v7307 = vadd.f32 %v7294, %v7304
        %v7308 = vadd.f32 %v7295, %v7304
        %v7309 = vadd.f32 %v7296, %v7304
        %v7310 = vadd.f32 %v7297, %v7304
        %v7311 = vadd.f32 %v7298, %v7304
        %v7312 = vadd.f32 %v7299, %v7304
        %v7313 = vsel %vm3587, %v7305, -inf
        %v7314 = vsel %vm3587, %v7306, -inf
        %v7315 = vmax.f32 %v7313, %v7314
        %v7316 = vsel %vm3587, %v7307, -inf
        %v7317 = vsel %vm3587, %v7308, -inf
        %v7318 = vmax.f32 %v7316, %v7317
        %v7319 = vsel %vm3587, %v7309, -inf
        %v7320 = vsel %vm3587, %v7310, -inf
        %v7321 = vmax.f32 %v7319, %v7320
        %v7322 = vsel %vm3587, %v7311, -inf
        %v7323 = vsel %vm3587, %v7312, -inf
        %v7324 = vmax.f32 %v7322, %v7323
        %v7329 = vcombine.high %v7315, %v7315
        %v7331 = vunpack.c.l.s4 1983009808
        %v7332 = vunpack.c.0.s8 %v7331
        %v7333 = vlaneseq
        %v7334 = vshrl.u32 %v7333, 7
        %v7335 = vsub.s32 %v7332, %v7334
        %v7336 = vrot.slane %v7315, %v7335
        %v7338 = vunpack.c.l.s4 1983009808
        %v7339 = vunpack.c.0.s8 %v7338
        %v7340 = vlaneseq
        %v7341 = vshrl.u32 %v7340, 7
        %v7342 = vsub.s32 %v7339, %v7341
        %v7343 = vrot.slane %v7329, %v7342
        %v7344 = vcombine.high %v7336, %v7336
        %v7345 = vcombine.high %v7343, %v7343
        %v7346 = vcombine.high %v7318, %v7318
        %v7348 = vunpack.c.l.s4 1983009808
        %v7349 = vunpack.c.0.s8 %v7348
        %v7350 = vlaneseq
        %v7351 = vshrl.u32 %v7350, 7
        %v7352 = vsub.s32 %v7349, %v7351
        %v7353 = vrot.slane %v7318, %v7352
        %v7355 = vunpack.c.l.s4 1983009808
        %v7356 = vunpack.c.0.s8 %v7355
        %v7357 = vlaneseq
        %v7358 = vshrl.u32 %v7357, 7
        %v7359 = vsub.s32 %v7356, %v7358
        %v7360 = vrot.slane %v7346, %v7359
        %v7361 = vcombine.high %v7353, %v7353
        %v7362 = vcombine.high %v7360, %v7360
        %v7363 = vcombine.high %v7321, %v7321
        %v7365 = vunpack.c.l.s4 1983009808
        %v7366 = vunpack.c.0.s8 %v7365
        %v7367 = vlaneseq
        %v7368 = vshrl.u32 %v7367, 7
        %v7369 = vsub.s32 %v7366, %v7368
        %v7370 = vrot.slane %v7321, %v7369
        %v7372 = vunpack.c.l.s4 1983009808
        %v7373 = vunpack.c.0.s8 %v7372
        %v7374 = vlaneseq
        %v7375 = vshrl.u32 %v7374, 7
        %v7376 = vsub.s32 %v7373, %v7375
        %v7377 = vrot.slane %v7363, %v7376
        %v7378 = vcombine.high %v7370, %v7370
        %v7379 = vcombine.high %v7377, %v7377
        %v7380 = vcombine.high %v7324, %v7324
        %v7382 = vunpack.c.l.s4 1983009808
        %v7383 = vunpack.c.0.s8 %v7382
        %v7384 = vlaneseq
        %v7385 = vshrl.u32 %v7384, 7
        %v7386 = vsub.s32 %v7383, %v7385
        %v7387 = vrot.slane %v7324, %v7386
        %v7389 = vunpack.c.l.s4 1983009808
        %v7390 = vunpack.c.0.s8 %v7389
        %v7391 = vlaneseq
        %v7392 = vshrl.u32 %v7391, 7
        %v7393 = vsub.s32 %v7390, %v7392
        %v7394 = vrot.slane %v7380, %v7393
        %v7395 = vcombine.high %v7387, %v7387
        %v7396 = vcombine.high %v7394, %v7394
        %v7413 = vsel %vm6355, %v7336, -inf
        %v7414 = vrot.slane %v7413, 4
        %v7415 = vmax.f32 %v7413, %v7414
        %v7416 = vrot.slane %v7415, 2
        %v7417 = vmax.f32 %v7415, %v7416
        %v7418 = vrot.slane %v7417, 1
        %v7419 = vmax.f32 %v7417, %v7418
        %v7420 = vsel %vm6355, %v7344, -inf
        %v7421 = vrot.slane %v7420, 4
        %v7422 = vmax.f32 %v7420, %v7421
        %v7423 = vrot.slane %v7422, 2
        %v7424 = vmax.f32 %v7422, %v7423
        %v7425 = vrot.slane %v7424, 1
        %v7426 = vmax.f32 %v7424, %v7425
        %v7427 = vsel %vm6355, %v7343, -inf
        %v7428 = vrot.slane %v7427, 4
        %v7429 = vmax.f32 %v7427, %v7428
        %v7430 = vrot.slane %v7429, 2
        %v7431 = vmax.f32 %v7429, %v7430
        %v7432 = vrot.slane %v7431, 1
        %v7433 = vmax.f32 %v7431, %v7432
        %v7434 = vsel %vm6355, %v7345, -inf
        %v7435 = vrot.slane %v7434, 4
        %v7436 = vmax.f32 %v7434, %v7435
        %v7437 = vrot.slane %v7436, 2
        %v7438 = vmax.f32 %v7436, %v7437
        %v7439 = vrot.slane %v7438, 1
        %v7440 = vmax.f32 %v7438, %v7439
        %v7441 = vsel %vm6355, %v7353, -inf
        %v7442 = vrot.slane %v7441, 4
        %v7443 = vmax.f32 %v7441, %v7442
        %v7444 = vrot.slane %v7443, 2
        %v7445 = vmax.f32 %v7443, %v7444
        %v7446 = vrot.slane %v7445, 1
        %v7447 = vmax.f32 %v7445, %v7446
        %v7448 = vsel %vm6355, %v7361, -inf
        %v7449 = vrot.slane %v7448, 4
        %v7450 = vmax.f32 %v7448, %v7449
        %v7451 = vrot.slane %v7450, 2
        %v7452 = vmax.f32 %v7450, %v7451
        %v7453 = vrot.slane %v7452, 1
        %v7454 = vmax.f32 %v7452, %v7453
        %v7455 = vsel %vm6355, %v7360, -inf
        %v7456 = vrot.slane %v7455, 4
        %v7457 = vmax.f32 %v7455, %v7456
        %v7458 = vrot.slane %v7457, 2
        %v7459 = vmax.f32 %v7457, %v7458
        %v7460 = vrot.slane %v7459, 1
        %v7461 = vmax.f32 %v7459, %v7460
        %v7462 = vsel %vm6355, %v7362, -inf
        %v7463 = vrot.slane %v7462, 4
        %v7464 = vmax.f32 %v7462, %v7463
        %v7465 = vrot.slane %v7464, 2
        %v7466 = vmax.f32 %v7464, %v7465
        %v7467 = vrot.slane %v7466, 1
        %v7468 = vmax.f32 %v7466, %v7467
        %v7469 = vsel %vm6355, %v7370, -inf
        %v7470 = vrot.slane %v7469, 4
        %v7471 = vmax.f32 %v7469, %v7470
        %v7472 = vrot.slane %v7471, 2
        %v7473 = vmax.f32 %v7471, %v7472
        %v7474 = vrot.slane %v7473, 1
        %v7475 = vmax.f32 %v7473, %v7474
        %v7476 = vsel %vm6355, %v7378, -inf
        %v7477 = vrot.slane %v7476, 4
        %v7478 = vmax.f32 %v7476, %v7477
        %v7479 = vrot.slane %v7478, 2
        %v7480 = vmax.f32 %v7478, %v7479
        %v7481 = vrot.slane %v7480, 1
        %v7482 = vmax.f32 %v7480, %v7481
        %v7483 = vsel %vm6355, %v7377, -inf
        %v7484 = vrot.slane %v7483, 4
        %v7485 = vmax.f32 %v7483, %v7484
        %v7486 = vrot.slane %v7485, 2
        %v7487 = vmax.f32 %v7485, %v7486
        %v7488 = vrot.slane %v7487, 1
        %v7489 = vmax.f32 %v7487, %v7488
        %v7490 = vsel %vm6355, %v7379, -inf
        %v7491 = vrot.slane %v7490, 4
        %v7492 = vmax.f32 %v7490, %v7491
        %v7493 = vrot.slane %v7492, 2
        %v7494 = vmax.f32 %v7492, %v7493
        %v7495 = vrot.slane %v7494, 1
        %v7496 = vmax.f32 %v7494, %v7495
        %v7497 = vsel %vm6355, %v7387, -inf
        %v7498 = vrot.slane %v7497, 4
        %v7499 = vmax.f32 %v7497, %v7498
        %v7500 = vrot.slane %v7499, 2
        %v7501 = vmax.f32 %v7499, %v7500
        %v7502 = vrot.slane %v7501, 1
        %v7503 = vmax.f32 %v7501, %v7502
        %v7504 = vsel %vm6355, %v7395, -inf
        %v7505 = vrot.slane %v7504, 4
        %v7506 = vmax.f32 %v7504, %v7505
        %v7507 = vrot.slane %v7506, 2
        %v7508 = vmax.f32 %v7506, %v7507
        %v7509 = vrot.slane %v7508, 1
        %v7510 = vmax.f32 %v7508, %v7509
        %v7511 = vsel %vm6355, %v7394, -inf
        %v7512 = vrot.slane %v7511, 4
        %v7513 = vmax.f32 %v7511, %v7512
        %v7514 = vrot.slane %v7513, 2
        %v7515 = vmax.f32 %v7513, %v7514
        %v7516 = vrot.slane %v7515, 1
        %v7517 = vmax.f32 %v7515, %v7516
        %v7518 = vsel %vm6355, %v7396, -inf
        %v7519 = vrot.slane %v7518, 4
        %v7520 = vmax.f32 %v7518, %v7519
        %v7521 = vrot.slane %v7520, 2
        %v7522 = vmax.f32 %v7520, %v7521
        %v7523 = vrot.slane %v7522, 1
        %v7524 = vmax.f32 %v7522, %v7523
        %vm7525 = vcmask 521216
        %7526 = vst.msk [vmem:[#allocation6] sm:$0x3f] %vm7525, 0.0
        %s7527 = scalar_lea.vmem [#allocation6], 40
        %7528 = vst.msk [vmem:[%s7527] sm:$0x3f] %vm7525, 0.0
        %7529 = vst.msk [vmem:[#allocation6] sm:$0x1] %vm6360, 0.0
        %7530 = vst.msk [vmem:[#allocation6 + $0x8] sm:$0x1] %vm6360, 0.0
        %7531 = vst.msk [vmem:[#allocation6 + $0x10] sm:$0x1] %vm6360, 0.0
        %7532 = vst.msk [vmem:[#allocation6 + $0x18] sm:$0x1] %vm6360, 0.0
        %7533 = vst.msk [vmem:[#allocation6 + $0x20] sm:$0x1] %vm6360, 0.0
        %7534 = vst.msk [vmem:[#allocation6 + $0x28] sm:$0x1] %vm6360, 0.0
        %7535 = vst.msk [vmem:[#allocation6 + $0x5] sm:$0x1] %vm6360, 0.0
        %7536 = vst.msk [vmem:[#allocation6 + $0xd] sm:$0x1] %vm6360, 0.0
        %7537 = vst.msk [vmem:[#allocation6 + $0x15] sm:$0x1] %vm6360, 0.0
        %7538 = vst.msk [vmem:[#allocation6 + $0x1d] sm:$0x1] %vm6360, 0.0
        %7539 = vst.msk [vmem:[#allocation6 + $0x25] sm:$0x1] %vm6360, 0.0
        %7540 = vst.msk [vmem:[#allocation6 + $0x2d] sm:$0x1] %vm6360, 0.0
        %v7557 = vsel %vm5514, %v7426, %v7419
        %v7558 = vsel %vm5516, %v7433, %v7557
        %v7559 = vsel %vm5518, %v7440, %v7558
        %v7560 = vsel %vm5514, %v7454, %v7447
        %v7561 = vsel %vm5516, %v7461, %v7560
        %v7562 = vsel %vm5518, %v7468, %v7561
        %v7563 = vsel %vm5514, %v7482, %v7475
        %v7564 = vsel %vm5516, %v7489, %v7563
        %v7565 = vsel %vm5518, %v7496, %v7564
        %v7566 = vsel %vm5514, %v7510, %v7503
        %v7567 = vsel %vm5516, %v7517, %v7566
        %v7568 = vsel %vm5518, %v7524, %v7567
        %s7573 = scalar_lea.vmem [#allocation6], 8
        %vm7574 = vcmask 519168
        %7575 = vst.msk [vmem:[%s7573 + $0x1] sm:$0xf] %vm7574, %v7559
        %7576 = vst.msk [vmem:[%s7573 + $0x9] sm:$0xf] %vm7574, %v7562
        %7577 = vst.msk [vmem:[%s7573 + $0x11] sm:$0xf] %vm7574, %v7565
        %7578 = vst.msk [vmem:[%s7573 + $0x19] sm:$0xf] %vm7574, %v7568
        %v7579 = vld [vmem:[#allocation6] sm:$0x3f]
        %v7580 = vld [vmem:[#allocation6 + $0x8] sm:$0x3f]
        %v7581 = vld [vmem:[#allocation6 + $0x10] sm:$0x3f]
        %v7582 = vld [vmem:[#allocation6 + $0x18] sm:$0x3f]
        %v7583 = vld [vmem:[#allocation6 + $0x20] sm:$0x3f]
        %v7584 = vld [vmem:[#allocation6 + $0x28] sm:$0x3f]
        %v7589 = vrot.slane %v7579, 1
        %v7590 = vrot.slane %v7580, 1
        %v7591 = vrot.slane %v7581, 1
        %v7592 = vrot.slane %v7582, 1
        %7593 = vrot.lane.b32.xlu0 %v7589, 64
        %v7594 = vpop.permute.xlu0 %7593
        %7595 = vrot.lane.b32.xlu0 %v7590, 64
        %v7596 = vpop.permute.xlu0 %7595
        %7597 = vrot.lane.b32.xlu0 %v7591, 64
        %v7598 = vpop.permute.xlu0 %7597
        %7599 = vrot.lane.b32.xlu0 %v7592, 64
        %v7600 = vpop.permute.xlu0 %7599
        %v7605 = vrot.slane %v7579, 2
        %v7606 = vrot.slane %v7580, 2
        %v7607 = vrot.slane %v7581, 2
        %v7608 = vrot.slane %v7582, 2
        %7614 = vrot.lane.b32.xlu0 %v7580, 64
        %v7615 = vpop.permute.xlu0 %7614
        %7616 = vrot.lane.b32.xlu0 %v7581, 64
        %v7617 = vpop.permute.xlu0 %7616
        %7618 = vrot.lane.b32.xlu0 %v7582, 64
        %v7619 = vpop.permute.xlu0 %7618
        %7620 = vrot.lane.b32.xlu0 %v7583, 64
        %v7621 = vpop.permute.xlu0 %7620
        %v7626 = vrot.slane %v7583, 1
        %v7631 = vrot.slane %v7583, 2
        %7632 = vrot.lane.b32.xlu0 %v7606, 64
        %v7633 = vpop.permute.xlu0 %7632
        %7634 = vrot.lane.b32.xlu0 %v7607, 64
        %v7635 = vpop.permute.xlu0 %7634
        %7636 = vrot.lane.b32.xlu0 %v7608, 64
        %v7637 = vpop.permute.xlu0 %7636
        %7638 = vrot.lane.b32.xlu0 %v7631, 64
        %v7639 = vpop.permute.xlu0 %7638
        %v7645 = vrot.slane %v7584, 1
        %7646 = vrot.lane.b32.xlu0 %v7626, 64
        %v7647 = vpop.permute.xlu0 %7646
        %7648 = vrot.lane.b32.xlu0 %v7645, 64
        %v7649 = vpop.permute.xlu0 %7648
        %v7652 = vrot.slane %v7584, 2
        %v7655 = vsel %vm3587, %v7579, %v7594
        %v7656 = vsel %vm3587, %v7580, %v7596
        %v7657 = vsel %vm3587, %v7581, %v7598
        %v7658 = vsel %vm3587, %v7582, %v7600
        %v7659 = vsel %vm3587, %v7605, %v7615
        %v7660 = vsel %vm3587, %v7606, %v7617
        %v7661 = vsel %vm3587, %v7607, %v7619
        %v7662 = vsel %vm3587, %v7608, %v7621
        %v7663 = vsel %vm3587, %v7590, %v7633
        %v7664 = vsel %vm3587, %v7591, %v7635
        %v7665 = vsel %vm3587, %v7592, %v7637
        %v7666 = vsel %vm3587, %v7626, %v7639
        %v7667 = vsel %vm3587, %v7583, %v7647
        %v7668 = vsel %vm3587, %v7584, %v7649
        %v7669 = vpack.c.bf16 %v7655, %v7655
        %v7670 = vpack.c.bf16 %v7659, %v7659
        %v7671 = vpack.c.bf16 %v7663, %v7663
        %v7672 = vpack.c.bf16 %v7657, %v7657
        %v7673 = vpack.c.bf16 %v7607, %v7607
        %v7674 = vpack.c.bf16 %v7656, %v7656
        %v7675 = vpack.c.bf16 %v7660, %v7660
        %v7676 = vpack.c.bf16 %v7664, %v7664
        %v7677 = vpack.c.bf16 %v7658, %v7658
        %v7678 = vpack.c.bf16 %v7608, %v7608
        %v7679 = vpack.c.bf16 %v7661, %v7661
        %v7680 = vpack.c.bf16 %v7665, %v7665
        %v7681 = vpack.c.bf16 %v7667, %v7667
        %v7682 = vpack.c.bf16 %v7631, %v7631
        %v7683 = vpack.c.bf16 %v7662, %v7662
        %v7684 = vpack.c.bf16 %v7666, %v7666
        %v7685 = vpack.c.bf16 %v7668, %v7668
        %v7686 = vpack.c.bf16 %v7652, %v7652
        %v7705 = vcombine.low %v7669, %v7670
        %v7706 = vcombine.low %v7671, %v7672
        %v7708 = vunpack.c.l.s4 1983009808
        %v7709 = vunpack.c.0.s8 %v7708
        %v7710 = vlaneseq
        %v7711 = vshrl.u32 %v7710, 7
        %v7712 = vsub.s32 %v7709, %v7711
        %v7713 = vrot.slane %v7705, %v7712
        %v7715 = vunpack.c.l.s4 1983009808
        %v7716 = vunpack.c.0.s8 %v7715
        %v7717 = vlaneseq
        %v7718 = vshrl.u32 %v7717, 7
        %v7719 = vsub.s32 %v7716, %v7718
        %v7720 = vrot.slane %v7706, %v7719
        %v7721 = vcombine.low %v7713, %v7720
        %v7723 = vunpack.c.l.s4 1983009808
        %v7724 = vunpack.c.0.s8 %v7723
        %v7725 = vlaneseq
        %v7726 = vshrl.u32 %v7725, 7
        %v7727 = vsub.s32 %v7724, %v7726
        %v7728 = vrot.slane %v7673, %v7727
        %v7729 = vcombine.low %v7674, %v7675
        %v7730 = vcombine.low %v7676, %v7677
        %v7732 = vunpack.c.l.s4 1983009808
        %v7733 = vunpack.c.0.s8 %v7732
        %v7734 = vlaneseq
        %v7735 = vshrl.u32 %v7734, 7
        %v7736 = vsub.s32 %v7733, %v7735
        %v7737 = vrot.slane %v7729, %v7736
        %v7739 = vunpack.c.l.s4 1983009808
        %v7740 = vunpack.c.0.s8 %v7739
        %v7741 = vlaneseq
        %v7742 = vshrl.u32 %v7741, 7
        %v7743 = vsub.s32 %v7740, %v7742
        %v7744 = vrot.slane %v7730, %v7743
        %v7745 = vcombine.low %v7737, %v7744
        %v7747 = vunpack.c.l.s4 1983009808
        %v7748 = vunpack.c.0.s8 %v7747
        %v7749 = vlaneseq
        %v7750 = vshrl.u32 %v7749, 7
        %v7751 = vsub.s32 %v7748, %v7750
        %v7752 = vrot.slane %v7678, %v7751
        %v7753 = vcombine.low %v7672, %v7679
        %v7754 = vcombine.low %v7680, %v7681
        %v7756 = vunpack.c.l.s4 1983009808
        %v7757 = vunpack.c.0.s8 %v7756
        %v7758 = vlaneseq
        %v7759 = vshrl.u32 %v7758, 7
        %v7760 = vsub.s32 %v7757, %v7759
        %v7761 = vrot.slane %v7753, %v7760
        %v7763 = vunpack.c.l.s4 1983009808
        %v7764 = vunpack.c.0.s8 %v7763
        %v7765 = vlaneseq
        %v7766 = vshrl.u32 %v7765, 7
        %v7767 = vsub.s32 %v7764, %v7766
        %v7768 = vrot.slane %v7754, %v7767
        %v7769 = vcombine.low %v7761, %v7768
        %v7771 = vunpack.c.l.s4 1983009808
        %v7772 = vunpack.c.0.s8 %v7771
        %v7773 = vlaneseq
        %v7774 = vshrl.u32 %v7773, 7
        %v7775 = vsub.s32 %v7772, %v7774
        %v7776 = vrot.slane %v7682, %v7775
        %v7777 = vcombine.low %v7677, %v7683
        %v7778 = vcombine.low %v7684, %v7685
        %v7780 = vunpack.c.l.s4 1983009808
        %v7781 = vunpack.c.0.s8 %v7780
        %v7782 = vlaneseq
        %v7783 = vshrl.u32 %v7782, 7
        %v7784 = vsub.s32 %v7781, %v7783
        %v7785 = vrot.slane %v7777, %v7784
        %v7787 = vunpack.c.l.s4 1983009808
        %v7788 = vunpack.c.0.s8 %v7787
        %v7789 = vlaneseq
        %v7790 = vshrl.u32 %v7789, 7
        %v7791 = vsub.s32 %v7788, %v7790
        %v7792 = vrot.slane %v7778, %v7791
        %v7793 = vcombine.low %v7785, %v7792
        %v7795 = vunpack.c.l.s4 1983009808
        %v7796 = vunpack.c.0.s8 %v7795
        %v7797 = vlaneseq
        %v7798 = vshrl.u32 %v7797, 7
        %v7799 = vsub.s32 %v7796, %v7798
        %v7800 = vrot.slane %v7686, %v7799
        %v7801 = vld [vmem:[%s5] sm:$0xf]
        %v7802 = vld [vmem:[%s5 + $0x4] sm:$0xf]
        %v7803 = vld [vmem:[%s5 + $0x8] sm:$0xf]
        %v7804 = vld [vmem:[%s5 + $0xc] sm:$0xf]
        %v7805 = vld [vmem:[%s5 + $0x10] sm:$0xf]
        %v7806 = vld [vmem:[%s5 + $0x14] sm:$0xf]
        %v7807 = vld [vmem:[%s5 + $0x18] sm:$0xf]
        %v7808 = vld [vmem:[%s5 + $0x1c] sm:$0xf]
        %v7809 = vld [vmem:[%s5 + $0x20] sm:$0xf]
        %v7810 = vld [vmem:[%s5 + $0x24] sm:$0xf]
        %v7811 = vld [vmem:[%s5 + $0x28] sm:$0xf]
        %v7812 = vld [vmem:[%s5 + $0x2c] sm:$0xf]
        %v7813 = vld [vmem:[%s5 + $0x30] sm:$0xf]
        %v7814 = vld [vmem:[%s5 + $0x34] sm:$0xf]
        %v7815 = vld [vmem:[%s5 + $0x38] sm:$0xf]
        %v7816 = vld [vmem:[%s5 + $0x3c] sm:$0xf]
        %v7817 = vld [vmem:[%s5 + $0x40] sm:$0xf]
        %v7818 = vld [vmem:[%s5 + $0x44] sm:$0xf]
        %v7819 = vld [vmem:[%s5 + $0x48] sm:$0xf]
        %v7820 = vld [vmem:[%s5 + $0x4c] sm:$0xf]
        %v7821 = vld [vmem:[%s5 + $0x50] sm:$0xf]
        %v7822 = vld [vmem:[%s5 + $0x54] sm:$0xf]
        %v7823 = vld [vmem:[%s5 + $0x58] sm:$0xf]
        %v7824 = vld [vmem:[%s5 + $0x5c] sm:$0xf]
        %v7825 = vld [vmem:[%s5 + $0x60] sm:$0xf]
        %v7826 = vld [vmem:[%s5 + $0x64] sm:$0xf]
        %v7827 = vld [vmem:[%s5 + $0x68] sm:$0xf]
        %v7828 = vld [vmem:[%s5 + $0x6c] sm:$0xf]
        %v7829 = vld [vmem:[%s5 + $0x70] sm:$0xf]
        %v7830 = vld [vmem:[%s5 + $0x74] sm:$0xf]
        %v7831 = vld [vmem:[%s5 + $0x78] sm:$0xf]
        %v7832 = vld [vmem:[%s5 + $0x7c] sm:$0xf]
        %v7833 = vld [vmem:[%s5 + $0x80] sm:$0xf]
        %v7834 = vld [vmem:[%s5 + $0x84] sm:$0xf]
        %v7835 = vld [vmem:[%s5 + $0x88] sm:$0xf]
        %v7836 = vld [vmem:[%s5 + $0x8c] sm:$0xf]
        %v7837 = vld [vmem:[%s5 + $0x90] sm:$0xf]
        %v7838 = vld [vmem:[%s5 + $0x94] sm:$0xf]
        %v7839 = vld [vmem:[%s5 + $0x98] sm:$0xf]
        %v7840 = vld [vmem:[%s5 + $0x9c] sm:$0xf]
        %v7841 = vld [vmem:[%s5 + $0xa0] sm:$0xf]
        %v7842 = vld [vmem:[%s5 + $0xa4] sm:$0xf]
        %v7843 = vld [vmem:[%s5 + $0xa8] sm:$0xf]
        %v7844 = vld [vmem:[%s5 + $0xac] sm:$0xf]
        %v7845 = vld [vmem:[%s5 + $0xb0] sm:$0xf]
        %v7846 = vld [vmem:[%s5 + $0xb4] sm:$0xf]
        %v7847 = vld [vmem:[%s5 + $0xb8] sm:$0xf]
        %v7848 = vld [vmem:[%s5 + $0xbc] sm:$0xf]
        %v7849 = vld [vmem:[%s5 + $0xc0] sm:$0xf]
        %v7850 = vld [vmem:[%s5 + $0xc4] sm:$0xf]
        %v7851 = vld [vmem:[%s5 + $0xc8] sm:$0xf]
        %v7852 = vld [vmem:[%s5 + $0xcc] sm:$0xf]
        %v7853 = vld [vmem:[%s5 + $0xd0] sm:$0xf]
        %v7854 = vld [vmem:[%s5 + $0xd4] sm:$0xf]
        %v7855 = vld [vmem:[%s5 + $0xd8] sm:$0xf]
        %v7856 = vld [vmem:[%s5 + $0xdc] sm:$0xf]
        %v7857 = vld [vmem:[%s5 + $0xe0] sm:$0xf]
        %v7858 = vld [vmem:[%s5 + $0xe4] sm:$0xf]
        %v7859 = vld [vmem:[%s5 + $0xe8] sm:$0xf]
        %v7860 = vld [vmem:[%s5 + $0xec] sm:$0xf]
        %v7861 = vld [vmem:[%s5 + $0xf0] sm:$0xf]
        %v7862 = vld [vmem:[%s5 + $0xf4] sm:$0xf]
        %v7863 = vld [vmem:[%s5 + $0xf8] sm:$0xf]
        %v7864 = vld [vmem:[%s5 + $0xfc] sm:$0xf]
        %v7865 = vld [vmem:[%s5 + $0x100] sm:$0xf]
        %v7866 = vld [vmem:[%s5 + $0x104] sm:$0xf]
        %v7867 = vld [vmem:[%s5 + $0x108] sm:$0xf]
        %v7868 = vld [vmem:[%s5 + $0x10c] sm:$0xf]
        %v7869 = vld [vmem:[%s5 + $0x110] sm:$0xf]
        %v7870 = vld [vmem:[%s5 + $0x114] sm:$0xf]
        %v7871 = vld [vmem:[%s5 + $0x118] sm:$0xf]
        %v7872 = vld [vmem:[%s5 + $0x11c] sm:$0xf]
        %v7873 = vcombine.low %v7721, %v7745
        %v7874 = vcombine.high %v7721, %v7745
        %v7875 = vcombine.low %v7769, %v7793
        %v7876 = vcombine.high %v7769, %v7793
        %v7878 = vunpack.c.l.s4 1983009808
        %v7879 = vunpack.c.0.s8 %v7878
        %v7880 = vlaneseq
        %v7881 = vshrl.u32 %v7880, 7
        %v7882 = vsub.s32 %v7879, %v7881
        %v7883 = vrot.slane %v7873, %v7882
        %v7885 = vunpack.c.l.s4 1983009808
        %v7886 = vunpack.c.0.s8 %v7885
        %v7887 = vlaneseq
        %v7888 = vshrl.u32 %v7887, 7
        %v7889 = vsub.s32 %v7886, %v7888
        %v7890 = vrot.slane %v7874, %v7889
        %v7892 = vunpack.c.l.s4 1983009808
        %v7893 = vunpack.c.0.s8 %v7892
        %v7894 = vlaneseq
        %v7895 = vshrl.u32 %v7894, 7
        %v7896 = vsub.s32 %v7893, %v7895
        %v7897 = vrot.slane %v7875, %v7896
        %v7899 = vunpack.c.l.s4 1983009808
        %v7900 = vunpack.c.0.s8 %v7899
        %v7901 = vlaneseq
        %v7902 = vshrl.u32 %v7901, 7
        %v7903 = vsub.s32 %v7900, %v7902
        %v7904 = vrot.slane %v7876, %v7903
        %v7905 = vcombine.low %v7883, %v7897
        %v7906 = vcombine.high %v7883, %v7897
        %v7907 = vcombine.low %v7890, %v7904
        %v7908 = vcombine.high %v7890, %v7904
        %v7909 = vcombine.low %v7728, %v7752
        %v7910 = vcombine.low %v7776, %v7800
        %v7912 = vunpack.c.l.s4 1983009808
        %v7913 = vunpack.c.0.s8 %v7912
        %v7914 = vlaneseq
        %v7915 = vshrl.u32 %v7914, 7
        %v7916 = vsub.s32 %v7913, %v7915
        %v7917 = vrot.slane %v7909, %v7916
        %v7919 = vunpack.c.l.s4 1983009808
        %v7920 = vunpack.c.0.s8 %v7919
        %v7921 = vlaneseq
        %v7922 = vshrl.u32 %v7921, 7
        %v7923 = vsub.s32 %v7920, %v7922
        %v7924 = vrot.slane %v7910, %v7923
        %v7925 = vcombine.low %v7917, %v7924
        %v8002 = vunpack.c.l.b16 %v7801
        %v8003 = vunpack.c.l.b16 %v7802
        %v8004 = vunpack.c.l.b16 %v7803
        %v8005 = vunpack.c.l.b16 %v7804
        %v8006 = vunpack.c.l.b16 %v7805
        %v8007 = vunpack.c.l.b16 %v7806
        %v8008 = vunpack.c.l.b16 %v7807
        %v8009 = vunpack.c.l.b16 %v7808
        %v8010 = vunpack.c.l.b16 %v7809
        %v8011 = vunpack.c.l.b16 %v7810
        %v8012 = vunpack.c.l.b16 %v7811
        %v8013 = vunpack.c.l.b16 %v7812
        %v8014 = vunpack.c.l.b16 %v7813
        %v8015 = vunpack.c.l.b16 %v7814
        %v8016 = vunpack.c.l.b16 %v7815
        %v8017 = vunpack.c.l.b16 %v7816
        %v8018 = vunpack.c.l.b16 %v7817
        %v8019 = vunpack.c.l.b16 %v7818
        %v8020 = vunpack.c.l.b16 %v7819
        %v8021 = vunpack.c.l.b16 %v7820
        %v8022 = vunpack.c.l.b16 %v7821
        %v8023 = vunpack.c.l.b16 %v7822
        %v8024 = vunpack.c.l.b16 %v7823
        %v8025 = vunpack.c.l.b16 %v7824
        %v8026 = vunpack.c.l.b16 %v7825
        %v8027 = vunpack.c.l.b16 %v7826
        %v8028 = vunpack.c.l.b16 %v7827
        %v8029 = vunpack.c.l.b16 %v7828
        %v8030 = vunpack.c.l.b16 %v7829
        %v8031 = vunpack.c.l.b16 %v7830
        %v8032 = vunpack.c.l.b16 %v7831
        %v8033 = vunpack.c.l.b16 %v7832
        %v8034 = vunpack.c.l.b16 %v7833
        %v8035 = vunpack.c.l.b16 %v7834
        %v8036 = vunpack.c.l.b16 %v7835
        %v8037 = vunpack.c.l.b16 %v7836
        %v8038 = vunpack.c.l.b16 %v7837
        %v8039 = vunpack.c.l.b16 %v7838
        %v8040 = vunpack.c.l.b16 %v7839
        %v8041 = vunpack.c.l.b16 %v7840
        %v8042 = vunpack.c.l.b16 %v7841
        %v8043 = vunpack.c.l.b16 %v7842
        %v8044 = vunpack.c.l.b16 %v7843
        %v8045 = vunpack.c.l.b16 %v7844
        %v8046 = vunpack.c.l.b16 %v7845
        %v8047 = vunpack.c.l.b16 %v7846
        %v8048 = vunpack.c.l.b16 %v7847
        %v8049 = vunpack.c.l.b16 %v7848
        %v8050 = vunpack.c.l.b16 %v7849
        %v8051 = vunpack.c.l.b16 %v7850
        %v8052 = vunpack.c.l.b16 %v7851
        %v8053 = vunpack.c.l.b16 %v7852
        %v8054 = vunpack.c.l.b16 %v7853
        %v8055 = vunpack.c.l.b16 %v7854
        %v8056 = vunpack.c.l.b16 %v7855
        %v8057 = vunpack.c.l.b16 %v7856
        %v8058 = vunpack.c.l.b16 %v7857
        %v8059 = vunpack.c.l.b16 %v7858
        %v8060 = vunpack.c.l.b16 %v7859
        %v8061 = vunpack.c.l.b16 %v7860
        %v8062 = vunpack.c.l.b16 %v7861
        %v8063 = vunpack.c.l.b16 %v7862
        %v8064 = vunpack.c.l.b16 %v7863
        %v8065 = vunpack.c.l.b16 %v7864
        %v8066 = vunpack.c.l.b16 %v7865
        %v8067 = vunpack.c.l.b16 %v7866
        %v8068 = vunpack.c.l.b16 %v7867
        %v8069 = vunpack.c.l.b16 %v7868
        %v8070 = vunpack.c.l.b16 %v7869
        %v8071 = vunpack.c.l.b16 %v7870
        %v8072 = vunpack.c.l.b16 %v7871
        %v8073 = vunpack.c.l.b16 %v7872
        %v8074 = vpack.c.b16 %v8003, %v8002
        %v8075 = vpack.c.b16 %v8005, %v8004
        %v8076 = vpack.c.b16 %v8007, %v8006
        %v8077 = vpack.c.b16 %v8009, %v8008
        %v8078 = vpack.c.b16 %v8011, %v8010
        %v8079 = vpack.c.b16 %v8013, %v8012
        %v8080 = vpack.c.b16 %v8015, %v8014
        %v8081 = vpack.c.b16 %v8017, %v8016
        %v8082 = vpack.c.b16 %v8019, %v8018
        %v8083 = vpack.c.b16 %v8021, %v8020
        %v8084 = vpack.c.b16 %v8023, %v8022
        %v8085 = vpack.c.b16 %v8025, %v8024
        %v8086 = vpack.c.b16 %v8027, %v8026
        %v8087 = vpack.c.b16 %v8029, %v8028
        %v8088 = vpack.c.b16 %v8031, %v8030
        %v8089 = vpack.c.b16 %v8033, %v8032
        %v8090 = vpack.c.b16 %v8035, %v8034
        %v8091 = vpack.c.b16 %v8037, %v8036
        %v8092 = vpack.c.b16 %v8039, %v8038
        %v8093 = vpack.c.b16 %v8041, %v8040
        %v8094 = vpack.c.b16 %v8043, %v8042
        %v8095 = vpack.c.b16 %v8045, %v8044
        %v8096 = vpack.c.b16 %v8047, %v8046
        %v8097 = vpack.c.b16 %v8049, %v8048
        %v8098 = vpack.c.b16 %v8051, %v8050
        %v8099 = vpack.c.b16 %v8053, %v8052
        %v8100 = vpack.c.b16 %v8055, %v8054
        %v8101 = vpack.c.b16 %v8057, %v8056
        %v8102 = vpack.c.b16 %v8059, %v8058
        %v8103 = vpack.c.b16 %v8061, %v8060
        %v8104 = vpack.c.b16 %v8063, %v8062
        %v8105 = vpack.c.b16 %v8065, %v8064
        %v8106 = vpack.c.b16 %v8067, %v8066
        %v8107 = vpack.c.b16 %v8069, %v8068
        %v8108 = vpack.c.b16 %v8071, %v8070
        %v8109 = vpack.c.b16 %v8073, %v8072
        %v8147 = vsel %vm3587, %v7925, 0
        %8149 = vmatprep.subr.bf16.mxu0 0
        %8150 = vmatpush1.bf16.msra.mxu0 %v8081
        %8151 = vmatprep.subr.bf16.mxu0 0
        %8152 = vmatpush1.bf16.msra.mxu0 %v8080
        %8153 = vmatprep.subr.bf16.mxu0 0
        %8154 = vmatpush1.bf16.msra.mxu0 %v8079
        %8155 = vmatprep.subr.bf16.mxu0 0
        %8156 = vmatpush1.bf16.msra.mxu0 %v8078
        %8157 = vmatprep.subr.bf16.mxu0 0
        %8158 = vmatpush1.bf16.msra.mxu0 %v8077
        %8159 = vmatprep.subr.bf16.mxu0 0
        %8160 = vmatpush1.bf16.msra.mxu0 %v8076
        %8161 = vmatprep.subr.bf16.mxu0 0
        %8162 = vmatpush1.bf16.msra.mxu0 %v8075
        %8163 = vmatprep.subr.bf16.mxu0 0
        %8164 = vmatpush1.bf16.msra.mxu0 %v8074
        %8165 = vmatprep.subr.bf16.mxu0 0
        %8166 = vmatpush2.bf16.msra.mxu0 %v8089
        %8167 = vmatprep.subr.bf16.mxu0 0
        %8168 = vmatpush2.bf16.msra.mxu0 %v8088
        %8169 = vmatprep.subr.bf16.mxu0 0
        %8170 = vmatpush2.bf16.msra.mxu0 %v8087
        %8171 = vmatprep.subr.bf16.mxu0 0
        %8172 = vmatpush2.bf16.msra.mxu0 %v8086
        %8173 = vmatprep.subr.bf16.mxu0 0
        %8174 = vmatpush2.bf16.msra.mxu0 %v8085
        %8175 = vmatprep.subr.bf16.mxu0 0
        %8176 = vmatpush2.bf16.msra.mxu0 %v8084
        %8177 = vmatprep.subr.bf16.mxu0 0
        %8178 = vmatpush2.bf16.msra.mxu0 %v8083
        %8179 = vmatprep.subr.bf16.mxu0 0
        %8180 = vmatpush2.bf16.msra.mxu0 %v8082
        %8181 = vmatprep.mubr.bf16.mxu0 %v7906
        %8182 = vmatmul.mubr.bf16.gmra.mxu0 %v7905
        %v8183 = vpop.f32.mrf.mxu0
        %v8184 = vadd.f32 0.0, %v8183
        %v8185 = vpop.f32.mrf.mxu0
        %v8186 = vpop.f32.mrf.mxu0
        %v8187 = vadd.f32 0.0, %v8186
        %v8188 = vpop.f32.mrf.mxu0
        %8189 = vdwg.mxu0
        %8190 = vmatprep.subr.bf16.mxu0 0
        %8191 = vmatpush1.bf16.msra.mxu0 %v8097
        %8192 = vmatprep.subr.bf16.mxu0 0
        %8193 = vmatpush1.bf16.msra.mxu0 %v8096
        %8194 = vmatprep.subr.bf16.mxu0 0
        %8195 = vmatpush1.bf16.msra.mxu0 %v8095
        %8196 = vmatprep.subr.bf16.mxu0 0
        %8197 = vmatpush1.bf16.msra.mxu0 %v8094
        %8198 = vmatprep.subr.bf16.mxu0 0
        %8199 = vmatpush1.bf16.msra.mxu0 %v8093
        %8200 = vmatprep.subr.bf16.mxu0 0
        %8201 = vmatpush1.bf16.msra.mxu0 %v8092
        %8202 = vmatprep.subr.bf16.mxu0 0
        %8203 = vmatpush1.bf16.msra.mxu0 %v8091
        %8204 = vmatprep.subr.bf16.mxu0 0
        %8205 = vmatpush1.bf16.msra.mxu0 %v8090
        %8206 = vmatprep.subr.bf16.mxu0 0
        %8207 = vmatpush2.bf16.msra.mxu0 %v8105
        %8208 = vmatprep.subr.bf16.mxu0 0
        %8209 = vmatpush2.bf16.msra.mxu0 %v8104
        %8210 = vmatprep.subr.bf16.mxu0 0
        %8211 = vmatpush2.bf16.msra.mxu0 %v8103
        %8212 = vmatprep.subr.bf16.mxu0 0
        %8213 = vmatpush2.bf16.msra.mxu0 %v8102
        %8214 = vmatprep.subr.bf16.mxu0 0
        %8215 = vmatpush2.bf16.msra.mxu0 %v8101
        %8216 = vmatprep.subr.bf16.mxu0 0
        %8217 = vmatpush2.bf16.msra.mxu0 %v8100
        %8218 = vmatprep.subr.bf16.mxu0 0
        %8219 = vmatpush2.bf16.msra.mxu0 %v8099
        %8220 = vmatprep.subr.bf16.mxu0 0
        %8221 = vmatpush2.bf16.msra.mxu0 %v8098
        %8222 = vmatprep.mubr.bf16.mxu0 %v7908
        %8223 = vmatmul.mubr.bf16.gmra.mxu0 %v7907
        %v8224 = vpop.f32.mrf.mxu0
        %v8225 = vadd.f32 %v8184, %v8224
        %v8226 = vpop.f32.mrf.mxu0
        %v8227 = vpop.f32.mrf.mxu0
        %v8228 = vadd.f32 %v8187, %v8227
        %v8229 = vpop.f32.mrf.mxu0
        %8230 = vdwg.mxu0
        %8231 = vmatprep.subr.bf16.mxu0 0
        %8232 = vmatpush1.bf16.msra.mxu0 0
        %8233 = vmatprep.subr.bf16.mxu0 0
        %8234 = vmatpush1.bf16.msra.mxu0 0
        %8235 = vmatprep.subr.bf16.mxu0 0
        %8236 = vmatpush1.bf16.msra.mxu0 0
        %8237 = vmatprep.subr.bf16.mxu0 0
        %8238 = vmatpush1.bf16.msra.mxu0 0
        %8239 = vmatprep.subr.bf16.mxu0 0
        %8240 = vmatpush1.bf16.msra.mxu0 %v8109
        %8241 = vmatprep.subr.bf16.mxu0 0
        %8242 = vmatpush1.bf16.msra.mxu0 %v8108
        %8243 = vmatprep.subr.bf16.mxu0 0
        %8244 = vmatpush1.bf16.msra.mxu0 %v8107
        %8245 = vmatprep.subr.bf16.mxu0 0
        %8246 = vmatpush1.bf16.msra.mxu0 %v8106
        %8247 = vmatprep.subr.bf16.mxu0 0
        %8248 = vmatpush2.bf16.msra.mxu0 0
        %8249 = vmatprep.subr.bf16.mxu0 0
        %8250 = vmatpush2.bf16.msra.mxu0 0
        %8251 = vmatprep.subr.bf16.mxu0 0
        %8252 = vmatpush2.bf16.msra.mxu0 0
        %8253 = vmatprep.subr.bf16.mxu0 0
        %8254 = vmatpush2.bf16.msra.mxu0 0
        %8255 = vmatprep.subr.bf16.mxu0 0
        %8256 = vmatpush2.bf16.msra.mxu0 0
        %8257 = vmatprep.subr.bf16.mxu0 0
        %8258 = vmatpush2.bf16.msra.mxu0 0
        %8259 = vmatprep.subr.bf16.mxu0 0
        %8260 = vmatpush2.bf16.msra.mxu0 0
        %8261 = vmatprep.subr.bf16.mxu0 0
        %8262 = vmatpush2.bf16.msra.mxu0 0
        %8263 = vmatprep.mubr.bf16.mxu0 0
        %8264 = vmatmul.mubr.bf16.gmra.mxu0 %v8147
        %v8265 = vpop.f32.mrf.mxu0
        %v8266 = vadd.f32 %v8225, %v8265
        %v8267 = vpop.f32.mrf.mxu0
        %v8268 = vpop.f32.mrf.mxu0
        %v8269 = vadd.f32 %v8228, %v8268
        %v8270 = vpop.f32.mrf.mxu0
        %8271 = vdwg.mxu0
        %v8272 = vmin.f32 %v8266, 0.0
        %v8273 = vmin.f32 %v8269, 0.0
        %v8274 = vmul.f32 %v8272, 1.442695
        %v8275 = vpow.pop %v8274
        %v8276 = vmul.f32 %v8273, 1.442695
        %v8277 = vpow.pop %v8276
        %v8278 = vsub.f32 %v8275, 1.0
        %v8279 = vsub.f32 %v8277, 1.0
        %vm8280 = vcmp.gt.f32.partialorder %v8266, 0.0
        %vm8281 = vcmp.gt.f32.partialorder %v8269, 0.0
        %v8282 = vsel %vm8280, %v8266, %v8278
        %v8283 = vsel %vm8281, %v8269, %v8279
        %v8284 = vld [vmem:[#allocation16] sm:$0x1]
        %v8285 = vlaneseq
        %v8286 = vshrl.u32 %v8285, 7
        %v8287 = vsub.s32 0, %v8286
        %v8288 = vrot.slane %v8284, %v8287
        %v8289 = vmul.f32 %v8282, %v8288
        %v8290 = vmul.f32 %v8283, %v8288
        %v8291 = vld [vmem:[#allocation16 + $0x1] sm:$0x1]
        %v8292 = vlaneseq
        %v8293 = vshrl.u32 %v8292, 7
        %v8294 = vsub.s32 0, %v8293
        %v8295 = vrot.slane %v8291, %v8294
        %v8296 = vadd.f32 %v8289, %v8295
        %v8297 = vadd.f32 %v8290, %v8295
        %v8300 = vcombine.high %v8296, %v8296
        %v8301 = vcombine.high %v8297, %v8297
        %8304 = vst [vmem:[#allocation7] sm:$0x3f] 0.0
        %s8305 = scalar_lea.vmem [#allocation7], 40
        %8306 = vst [vmem:[%s8305] sm:$0x3f] 0.0
        %8307 = vst [vmem:[#allocation7] sm:$0x1] 0.0
        %8308 = vst [vmem:[#allocation7 + $0x8] sm:$0x1] 0.0
        %8309 = vst [vmem:[#allocation7 + $0x10] sm:$0x1] 0.0
        %8310 = vst [vmem:[#allocation7 + $0x18] sm:$0x1] 0.0
        %8311 = vst [vmem:[#allocation7 + $0x20] sm:$0x1] 0.0
        %8312 = vst [vmem:[#allocation7 + $0x28] sm:$0x1] 0.0
        %8313 = vst [vmem:[#allocation7 + $0x5] sm:$0x1] 0.0
        %8314 = vst [vmem:[#allocation7 + $0xd] sm:$0x1] 0.0
        %8315 = vst [vmem:[#allocation7 + $0x15] sm:$0x1] 0.0
        %8316 = vst [vmem:[#allocation7 + $0x1d] sm:$0x1] 0.0
        %8317 = vst [vmem:[#allocation7 + $0x25] sm:$0x1] 0.0
        %8318 = vst [vmem:[#allocation7 + $0x2d] sm:$0x1] 0.0
        %s8319 = scalar_lea.vmem [#allocation7], 8
        %8320 = vst [vmem:[%s8319 + $0x1] sm:$0xf] %v8296
        %8321 = vst [vmem:[%s8319 + $0x9] sm:$0xf] %v8300
        %8322 = vst [vmem:[%s8319 + $0x11] sm:$0xf] %v8297
        %8323 = vst [vmem:[%s8319 + $0x19] sm:$0xf] %v8301
        %v8324 = vld [vmem:[#allocation7] sm:$0x3f]
        %v8325 = vld [vmem:[#allocation7 + $0x8] sm:$0x3f]
        %v8326 = vld [vmem:[#allocation7 + $0x10] sm:$0x3f]
        %v8327 = vld [vmem:[#allocation7 + $0x18] sm:$0x3f]
        %v8328 = vld [vmem:[#allocation7 + $0x20] sm:$0x3f]
        %v8329 = vld [vmem:[#allocation7 + $0x28] sm:$0x3f]
        %v8334 = vrot.slane %v8324, 1
        %v8335 = vrot.slane %v8325, 1
        %v8336 = vrot.slane %v8326, 1
        %v8337 = vrot.slane %v8327, 1
        %v8342 = vrot.slane %v8324, 2
        %v8343 = vrot.slane %v8325, 2
        %v8344 = vrot.slane %v8326, 2
        %v8345 = vrot.slane %v8327, 2
        %v8351 = vrot.slane %v8328, 1
        %v8353 = vrot.slane %v8328, 2
        %v8356 = vrot.slane %v8329, 1
        %v8358 = vrot.slane %v8329, 2
        %v8360 = vpack.c.bf16 %v8324, %v8324
        %v8361 = vpack.c.bf16 %v8334, %v8334
        %v8362 = vpack.c.bf16 %v8342, %v8342
        %v8363 = vpack.c.bf16 %v8325, %v8325
        %v8364 = vpack.c.bf16 %v8335, %v8335
        %v8365 = vpack.c.bf16 %v8343, %v8343
        %v8366 = vpack.c.bf16 %v8326, %v8326
        %v8367 = vpack.c.bf16 %v8336, %v8336
        %v8368 = vpack.c.bf16 %v8344, %v8344
        %v8369 = vpack.c.bf16 %v8327, %v8327
        %v8370 = vpack.c.bf16 %v8337, %v8337
        %v8371 = vpack.c.bf16 %v8345, %v8345
        %v8372 = vpack.c.bf16 %v8328, %v8328
        %v8373 = vpack.c.bf16 %v8351, %v8351
        %v8374 = vpack.c.bf16 %v8353, %v8353
        %v8375 = vpack.c.bf16 %v8329, %v8329
        %v8376 = vpack.c.bf16 %v8356, %v8356
        %v8377 = vpack.c.bf16 %v8358, %v8358
        %v8396 = vcombine.low %v8360, %v8361
        %v8397 = vcombine.low %v8362, %v8363
        %v8399 = vunpack.c.l.s4 1983009808
        %v8400 = vunpack.c.0.s8 %v8399
        %v8401 = vlaneseq
        %v8402 = vshrl.u32 %v8401, 7
        %v8403 = vsub.s32 %v8400, %v8402
        %v8404 = vrot.slane %v8396, %v8403
        %v8406 = vunpack.c.l.s4 1983009808
        %v8407 = vunpack.c.0.s8 %v8406
        %v8408 = vlaneseq
        %v8409 = vshrl.u32 %v8408, 7
        %v8410 = vsub.s32 %v8407, %v8409
        %v8411 = vrot.slane %v8397, %v8410
        %v8412 = vcombine.low %v8404, %v8411
        %v8413 = vcombine.low %v8364, %v8365
        %v8414 = vcombine.low %v8366, %v8367
        %v8416 = vunpack.c.l.s4 1983009808
        %v8417 = vunpack.c.0.s8 %v8416
        %v8418 = vlaneseq
        %v8419 = vshrl.u32 %v8418, 7
        %v8420 = vsub.s32 %v8417, %v8419
        %v8421 = vrot.slane %v8413, %v8420
        %v8423 = vunpack.c.l.s4 1983009808
        %v8424 = vunpack.c.0.s8 %v8423
        %v8425 = vlaneseq
        %v8426 = vshrl.u32 %v8425, 7
        %v8427 = vsub.s32 %v8424, %v8426
        %v8428 = vrot.slane %v8414, %v8427
        %v8429 = vcombine.low %v8421, %v8428
        %v8431 = vunpack.c.l.s4 1983009808
        %v8432 = vunpack.c.0.s8 %v8431
        %v8433 = vlaneseq
        %v8434 = vshrl.u32 %v8433, 7
        %v8435 = vsub.s32 %v8432, %v8434
        %v8436 = vrot.slane %v8368, %v8435
        %v8437 = vcombine.low %v8363, %v8364
        %v8438 = vcombine.low %v8365, %v8366
        %v8440 = vunpack.c.l.s4 1983009808
        %v8441 = vunpack.c.0.s8 %v8440
        %v8442 = vlaneseq
        %v8443 = vshrl.u32 %v8442, 7
        %v8444 = vsub.s32 %v8441, %v8443
        %v8445 = vrot.slane %v8437, %v8444
        %v8447 = vunpack.c.l.s4 1983009808
        %v8448 = vunpack.c.0.s8 %v8447
        %v8449 = vlaneseq
        %v8450 = vshrl.u32 %v8449, 7
        %v8451 = vsub.s32 %v8448, %v8450
        %v8452 = vrot.slane %v8438, %v8451
        %v8453 = vcombine.low %v8445, %v8452
        %v8454 = vcombine.low %v8367, %v8368
        %v8455 = vcombine.low %v8369, %v8370
        %v8457 = vunpack.c.l.s4 1983009808
        %v8458 = vunpack.c.0.s8 %v8457
        %v8459 = vlaneseq
        %v8460 = vshrl.u32 %v8459, 7
        %v8461 = vsub.s32 %v8458, %v8460
        %v8462 = vrot.slane %v8454, %v8461
        %v8464 = vunpack.c.l.s4 1983009808
        %v8465 = vunpack.c.0.s8 %v8464
        %v8466 = vlaneseq
        %v8467 = vshrl.u32 %v8466, 7
        %v8468 = vsub.s32 %v8465, %v8467
        %v8469 = vrot.slane %v8455, %v8468
        %v8470 = vcombine.low %v8462, %v8469
        %v8472 = vunpack.c.l.s4 1983009808
        %v8473 = vunpack.c.0.s8 %v8472
        %v8474 = vlaneseq
        %v8475 = vshrl.u32 %v8474, 7
        %v8476 = vsub.s32 %v8473, %v8475
        %v8477 = vrot.slane %v8371, %v8476
        %v8478 = vcombine.low %v8368, %v8369
        %v8480 = vunpack.c.l.s4 1983009808
        %v8481 = vunpack.c.0.s8 %v8480
        %v8482 = vlaneseq
        %v8483 = vshrl.u32 %v8482, 7
        %v8484 = vsub.s32 %v8481, %v8483
        %v8485 = vrot.slane %v8478, %v8484
        %v8486 = vcombine.low %v8428, %v8485
        %v8487 = vcombine.low %v8370, %v8371
        %v8488 = vcombine.low %v8372, %v8373
        %v8490 = vunpack.c.l.s4 1983009808
        %v8491 = vunpack.c.0.s8 %v8490
        %v8492 = vlaneseq
        %v8493 = vshrl.u32 %v8492, 7
        %v8494 = vsub.s32 %v8491, %v8493
        %v8495 = vrot.slane %v8487, %v8494
        %v8497 = vunpack.c.l.s4 1983009808
        %v8498 = vunpack.c.0.s8 %v8497
        %v8499 = vlaneseq
        %v8500 = vshrl.u32 %v8499, 7
        %v8501 = vsub.s32 %v8498, %v8500
        %v8502 = vrot.slane %v8488, %v8501
        %v8503 = vcombine.low %v8495, %v8502
        %v8505 = vunpack.c.l.s4 1983009808
        %v8506 = vunpack.c.0.s8 %v8505
        %v8507 = vlaneseq
        %v8508 = vshrl.u32 %v8507, 7
        %v8509 = vsub.s32 %v8506, %v8508
        %v8510 = vrot.slane %v8374, %v8509
        %v8511 = vcombine.low %v8371, %v8372
        %v8513 = vunpack.c.l.s4 1983009808
        %v8514 = vunpack.c.0.s8 %v8513
        %v8515 = vlaneseq
        %v8516 = vshrl.u32 %v8515, 7
        %v8517 = vsub.s32 %v8514, %v8516
        %v8518 = vrot.slane %v8511, %v8517
        %v8519 = vcombine.low %v8469, %v8518
        %v8520 = vcombine.low %v8373, %v8374
        %v8521 = vcombine.low %v8375, %v8376
        %v8523 = vunpack.c.l.s4 1983009808
        %v8524 = vunpack.c.0.s8 %v8523
        %v8525 = vlaneseq
        %v8526 = vshrl.u32 %v8525, 7
        %v8527 = vsub.s32 %v8524, %v8526
        %v8528 = vrot.slane %v8520, %v8527
        %v8530 = vunpack.c.l.s4 1983009808
        %v8531 = vunpack.c.0.s8 %v8530
        %v8532 = vlaneseq
        %v8533 = vshrl.u32 %v8532, 7
        %v8534 = vsub.s32 %v8531, %v8533
        %v8535 = vrot.slane %v8521, %v8534
        %v8536 = vcombine.low %v8528, %v8535
        %v8538 = vunpack.c.l.s4 1983009808
        %v8539 = vunpack.c.0.s8 %v8538
        %v8540 = vlaneseq
        %v8541 = vshrl.u32 %v8540, 7
        %v8542 = vsub.s32 %v8539, %v8541
        %v8543 = vrot.slane %v8377, %v8542
        %v8544 = vld [vmem:[%s6] sm:$0xf]
        %v8545 = vld [vmem:[%s6 + $0x4] sm:$0xf]
        %v8546 = vld [vmem:[%s6 + $0x8] sm:$0xf]
        %v8547 = vld [vmem:[%s6 + $0xc] sm:$0xf]
        %v8548 = vld [vmem:[%s6 + $0x10] sm:$0xf]
        %v8549 = vld [vmem:[%s6 + $0x14] sm:$0xf]
        %v8550 = vld [vmem:[%s6 + $0x18] sm:$0xf]
        %v8551 = vld [vmem:[%s6 + $0x1c] sm:$0xf]
        %v8552 = vld [vmem:[%s6 + $0x20] sm:$0xf]
        %v8553 = vld [vmem:[%s6 + $0x24] sm:$0xf]
        %v8554 = vld [vmem:[%s6 + $0x28] sm:$0xf]
        %v8555 = vld [vmem:[%s6 + $0x2c] sm:$0xf]
        %v8556 = vld [vmem:[%s6 + $0x30] sm:$0xf]
        %v8557 = vld [vmem:[%s6 + $0x34] sm:$0xf]
        %v8558 = vld [vmem:[%s6 + $0x38] sm:$0xf]
        %v8559 = vld [vmem:[%s6 + $0x3c] sm:$0xf]
        %v8560 = vld [vmem:[%s6 + $0x40] sm:$0xf]
        %v8561 = vld [vmem:[%s6 + $0x44] sm:$0xf]
        %v8562 = vld [vmem:[%s6 + $0x48] sm:$0xf]
        %v8563 = vld [vmem:[%s6 + $0x4c] sm:$0xf]
        %v8564 = vld [vmem:[%s6 + $0x50] sm:$0xf]
        %v8565 = vld [vmem:[%s6 + $0x54] sm:$0xf]
        %v8566 = vld [vmem:[%s6 + $0x58] sm:$0xf]
        %v8567 = vld [vmem:[%s6 + $0x5c] sm:$0xf]
        %v8568 = vld [vmem:[%s6 + $0x60] sm:$0xf]
        %v8569 = vld [vmem:[%s6 + $0x64] sm:$0xf]
        %v8570 = vld [vmem:[%s6 + $0x68] sm:$0xf]
        %v8571 = vld [vmem:[%s6 + $0x6c] sm:$0xf]
        %v8572 = vld [vmem:[%s6 + $0x70] sm:$0xf]
        %v8573 = vld [vmem:[%s6 + $0x74] sm:$0xf]
        %v8574 = vld [vmem:[%s6 + $0x78] sm:$0xf]
        %v8575 = vld [vmem:[%s6 + $0x7c] sm:$0xf]
        %v8576 = vld [vmem:[%s6 + $0x80] sm:$0xf]
        %v8577 = vld [vmem:[%s6 + $0x84] sm:$0xf]
        %v8578 = vld [vmem:[%s6 + $0x88] sm:$0xf]
        %v8579 = vld [vmem:[%s6 + $0x8c] sm:$0xf]
        %v8580 = vld [vmem:[%s6 + $0x90] sm:$0xf]
        %v8581 = vld [vmem:[%s6 + $0x94] sm:$0xf]
        %v8582 = vld [vmem:[%s6 + $0x98] sm:$0xf]
        %v8583 = vld [vmem:[%s6 + $0x9c] sm:$0xf]
        %v8584 = vld [vmem:[%s6 + $0xa0] sm:$0xf]
        %v8585 = vld [vmem:[%s6 + $0xa4] sm:$0xf]
        %v8586 = vld [vmem:[%s6 + $0xa8] sm:$0xf]
        %v8587 = vld [vmem:[%s6 + $0xac] sm:$0xf]
        %v8588 = vld [vmem:[%s6 + $0xb0] sm:$0xf]
        %v8589 = vld [vmem:[%s6 + $0xb4] sm:$0xf]
        %v8590 = vld [vmem:[%s6 + $0xb8] sm:$0xf]
        %v8591 = vld [vmem:[%s6 + $0xbc] sm:$0xf]
        %v8592 = vld [vmem:[%s6 + $0xc0] sm:$0xf]
        %v8593 = vld [vmem:[%s6 + $0xc4] sm:$0xf]
        %v8594 = vld [vmem:[%s6 + $0xc8] sm:$0xf]
        %v8595 = vld [vmem:[%s6 + $0xcc] sm:$0xf]
        %v8596 = vld [vmem:[%s6 + $0xd0] sm:$0xf]
        %v8597 = vld [vmem:[%s6 + $0xd4] sm:$0xf]
        %v8598 = vld [vmem:[%s6 + $0xd8] sm:$0xf]
        %v8599 = vld [vmem:[%s6 + $0xdc] sm:$0xf]
        %v8600 = vld [vmem:[%s6 + $0xe0] sm:$0xf]
        %v8601 = vld [vmem:[%s6 + $0xe4] sm:$0xf]
        %v8602 = vld [vmem:[%s6 + $0xe8] sm:$0xf]
        %v8603 = vld [vmem:[%s6 + $0xec] sm:$0xf]
        %v8604 = vld [vmem:[%s6 + $0xf0] sm:$0xf]
        %v8605 = vld [vmem:[%s6 + $0xf4] sm:$0xf]
        %v8606 = vld [vmem:[%s6 + $0xf8] sm:$0xf]
        %v8607 = vld [vmem:[%s6 + $0xfc] sm:$0xf]
        %v8608 = vld [vmem:[%s6 + $0x100] sm:$0xf]
        %v8609 = vld [vmem:[%s6 + $0x104] sm:$0xf]
        %v8610 = vld [vmem:[%s6 + $0x108] sm:$0xf]
        %v8611 = vld [vmem:[%s6 + $0x10c] sm:$0xf]
        %v8612 = vld [vmem:[%s6 + $0x110] sm:$0xf]
        %v8613 = vld [vmem:[%s6 + $0x114] sm:$0xf]
        %v8614 = vld [vmem:[%s6 + $0x118] sm:$0xf]
        %v8615 = vld [vmem:[%s6 + $0x11c] sm:$0xf]
        %v8616 = vld [vmem:[%s6 + $0x120] sm:$0xf]
        %v8617 = vld [vmem:[%s6 + $0x124] sm:$0xf]
        %v8618 = vld [vmem:[%s6 + $0x128] sm:$0xf]
        %v8619 = vld [vmem:[%s6 + $0x12c] sm:$0xf]
        %v8620 = vld [vmem:[%s6 + $0x130] sm:$0xf]
        %v8621 = vld [vmem:[%s6 + $0x134] sm:$0xf]
        %v8622 = vld [vmem:[%s6 + $0x138] sm:$0xf]
        %v8623 = vld [vmem:[%s6 + $0x13c] sm:$0xf]
        %v8624 = vld [vmem:[%s6 + $0x140] sm:$0xf]
        %v8625 = vld [vmem:[%s6 + $0x144] sm:$0xf]
        %v8626 = vld [vmem:[%s6 + $0x148] sm:$0xf]
        %v8627 = vld [vmem:[%s6 + $0x14c] sm:$0xf]
        %v8628 = vld [vmem:[%s6 + $0x150] sm:$0xf]
        %v8629 = vld [vmem:[%s6 + $0x154] sm:$0xf]
        %v8630 = vld [vmem:[%s6 + $0x158] sm:$0xf]
        %v8631 = vld [vmem:[%s6 + $0x15c] sm:$0xf]
        %v8632 = vld [vmem:[%s6 + $0x160] sm:$0xf]
        %v8633 = vld [vmem:[%s6 + $0x164] sm:$0xf]
        %v8634 = vld [vmem:[%s6 + $0x168] sm:$0xf]
        %v8635 = vld [vmem:[%s6 + $0x16c] sm:$0xf]
        %v8636 = vld [vmem:[%s6 + $0x170] sm:$0xf]
        %v8637 = vld [vmem:[%s6 + $0x174] sm:$0xf]
        %v8638 = vld [vmem:[%s6 + $0x178] sm:$0xf]
        %v8639 = vld [vmem:[%s6 + $0x17c] sm:$0xf]
        %v8640 = vld [vmem:[%s6 + $0x180] sm:$0xf]
        %v8641 = vld [vmem:[%s6 + $0x184] sm:$0xf]
        %v8642 = vld [vmem:[%s6 + $0x188] sm:$0xf]
        %v8643 = vld [vmem:[%s6 + $0x18c] sm:$0xf]
        %v8644 = vld [vmem:[%s6 + $0x190] sm:$0xf]
        %v8645 = vld [vmem:[%s6 + $0x194] sm:$0xf]
        %v8646 = vld [vmem:[%s6 + $0x198] sm:$0xf]
        %v8647 = vld [vmem:[%s6 + $0x19c] sm:$0xf]
        %v8648 = vld [vmem:[%s6 + $0x1a0] sm:$0xf]
        %v8649 = vld [vmem:[%s6 + $0x1a4] sm:$0xf]
        %v8650 = vld [vmem:[%s6 + $0x1a8] sm:$0xf]
        %v8651 = vld [vmem:[%s6 + $0x1ac] sm:$0xf]
        %v8652 = vld [vmem:[%s6 + $0x1b0] sm:$0xf]
        %v8653 = vld [vmem:[%s6 + $0x1b4] sm:$0xf]
        %v8654 = vld [vmem:[%s6 + $0x1b8] sm:$0xf]
        %v8655 = vld [vmem:[%s6 + $0x1bc] sm:$0xf]
        %v8656 = vld [vmem:[%s6 + $0x1c0] sm:$0xf]
        %v8657 = vld [vmem:[%s6 + $0x1c4] sm:$0xf]
        %v8658 = vld [vmem:[%s6 + $0x1c8] sm:$0xf]
        %v8659 = vld [vmem:[%s6 + $0x1cc] sm:$0xf]
        %v8660 = vld [vmem:[%s6 + $0x1d0] sm:$0xf]
        %v8661 = vld [vmem:[%s6 + $0x1d4] sm:$0xf]
        %v8662 = vld [vmem:[%s6 + $0x1d8] sm:$0xf]
        %v8663 = vld [vmem:[%s6 + $0x1dc] sm:$0xf]
        %v8664 = vld [vmem:[%s6 + $0x1e0] sm:$0xf]
        %v8665 = vld [vmem:[%s6 + $0x1e4] sm:$0xf]
        %v8666 = vld [vmem:[%s6 + $0x1e8] sm:$0xf]
        %v8667 = vld [vmem:[%s6 + $0x1ec] sm:$0xf]
        %v8668 = vld [vmem:[%s6 + $0x1f0] sm:$0xf]
        %v8669 = vld [vmem:[%s6 + $0x1f4] sm:$0xf]
        %v8670 = vld [vmem:[%s6 + $0x1f8] sm:$0xf]
        %v8671 = vld [vmem:[%s6 + $0x1fc] sm:$0xf]
        %v8672 = vld [vmem:[%s6 + $0x200] sm:$0xf]
        %v8673 = vld [vmem:[%s6 + $0x204] sm:$0xf]
        %v8674 = vld [vmem:[%s6 + $0x208] sm:$0xf]
        %v8675 = vld [vmem:[%s6 + $0x20c] sm:$0xf]
        %v8676 = vld [vmem:[%s6 + $0x210] sm:$0xf]
        %v8677 = vld [vmem:[%s6 + $0x214] sm:$0xf]
        %v8678 = vld [vmem:[%s6 + $0x218] sm:$0xf]
        %v8679 = vld [vmem:[%s6 + $0x21c] sm:$0xf]
        %v8680 = vld [vmem:[%s6 + $0x220] sm:$0xf]
        %v8681 = vld [vmem:[%s6 + $0x224] sm:$0xf]
        %v8682 = vld [vmem:[%s6 + $0x228] sm:$0xf]
        %v8683 = vld [vmem:[%s6 + $0x22c] sm:$0xf]
        %v8684 = vld [vmem:[%s6 + $0x230] sm:$0xf]
        %v8685 = vld [vmem:[%s6 + $0x234] sm:$0xf]
        %v8686 = vld [vmem:[%s6 + $0x238] sm:$0xf]
        %v8687 = vld [vmem:[%s6 + $0x23c] sm:$0xf]
        %v8688 = vcombine.low %v8412, %v8453
        %v8689 = vcombine.high %v8412, %v8453
        %v8690 = vcombine.low %v8486, %v8519
        %v8691 = vcombine.high %v8486, %v8519
        %v8693 = vunpack.c.l.s4 1983009808
        %v8694 = vunpack.c.0.s8 %v8693
        %v8695 = vlaneseq
        %v8696 = vshrl.u32 %v8695, 7
        %v8697 = vsub.s32 %v8694, %v8696
        %v8698 = vrot.slane %v8688, %v8697
        %v8700 = vunpack.c.l.s4 1983009808
        %v8701 = vunpack.c.0.s8 %v8700
        %v8702 = vlaneseq
        %v8703 = vshrl.u32 %v8702, 7
        %v8704 = vsub.s32 %v8701, %v8703
        %v8705 = vrot.slane %v8689, %v8704
        %v8707 = vunpack.c.l.s4 1983009808
        %v8708 = vunpack.c.0.s8 %v8707
        %v8709 = vlaneseq
        %v8710 = vshrl.u32 %v8709, 7
        %v8711 = vsub.s32 %v8708, %v8710
        %v8712 = vrot.slane %v8690, %v8711
        %v8714 = vunpack.c.l.s4 1983009808
        %v8715 = vunpack.c.0.s8 %v8714
        %v8716 = vlaneseq
        %v8717 = vshrl.u32 %v8716, 7
        %v8718 = vsub.s32 %v8715, %v8717
        %v8719 = vrot.slane %v8691, %v8718
        %v8720 = vcombine.low %v8698, %v8712
        %v8721 = vcombine.high %v8698, %v8712
        %v8722 = vcombine.low %v8705, %v8719
        %v8723 = vcombine.high %v8705, %v8719
        %v8724 = vcombine.low %v8429, %v8470
        %v8725 = vcombine.high %v8429, %v8470
        %v8726 = vcombine.low %v8503, %v8536
        %v8727 = vcombine.high %v8503, %v8536
        %v8729 = vunpack.c.l.s4 1983009808
        %v8730 = vunpack.c.0.s8 %v8729
        %v8731 = vlaneseq
        %v8732 = vshrl.u32 %v8731, 7
        %v8733 = vsub.s32 %v8730, %v8732
        %v8734 = vrot.slane %v8724, %v8733
        %v8736 = vunpack.c.l.s4 1983009808
        %v8737 = vunpack.c.0.s8 %v8736
        %v8738 = vlaneseq
        %v8739 = vshrl.u32 %v8738, 7
        %v8740 = vsub.s32 %v8737, %v8739
        %v8741 = vrot.slane %v8725, %v8740
        %v8743 = vunpack.c.l.s4 1983009808
        %v8744 = vunpack.c.0.s8 %v8743
        %v8745 = vlaneseq
        %v8746 = vshrl.u32 %v8745, 7
        %v8747 = vsub.s32 %v8744, %v8746
        %v8748 = vrot.slane %v8726, %v8747
        %v8750 = vunpack.c.l.s4 1983009808
        %v8751 = vunpack.c.0.s8 %v8750
        %v8752 = vlaneseq
        %v8753 = vshrl.u32 %v8752, 7
        %v8754 = vsub.s32 %v8751, %v8753
        %v8755 = vrot.slane %v8727, %v8754
        %v8756 = vcombine.low %v8734, %v8748
        %v8757 = vcombine.high %v8734, %v8748
        %v8758 = vcombine.low %v8741, %v8755
        %v8759 = vcombine.high %v8741, %v8755
        %v8760 = vcombine.low %v8436, %v8477
        %v8761 = vcombine.low %v8510, %v8543
        %v8763 = vunpack.c.l.s4 1983009808
        %v8764 = vunpack.c.0.s8 %v8763
        %v8765 = vlaneseq
        %v8766 = vshrl.u32 %v8765, 7
        %v8767 = vsub.s32 %v8764, %v8766
        %v8768 = vrot.slane %v8760, %v8767
        %v8770 = vunpack.c.l.s4 1983009808
        %v8771 = vunpack.c.0.s8 %v8770
        %v8772 = vlaneseq
        %v8773 = vshrl.u32 %v8772, 7
        %v8774 = vsub.s32 %v8771, %v8773
        %v8775 = vrot.slane %v8761, %v8774
        %v8776 = vcombine.low %v8768, %v8775
        %v8930 = vunpack.c.l.b16 %v8544
        %v8931 = vunpack.c.l.b16 %v8545
        %v8932 = vunpack.c.l.b16 %v8546
        %v8933 = vunpack.c.l.b16 %v8547
        %v8934 = vunpack.c.l.b16 %v8548
        %v8935 = vunpack.c.l.b16 %v8549
        %v8936 = vunpack.c.l.b16 %v8550
        %v8937 = vunpack.c.l.b16 %v8551
        %v8938 = vunpack.c.l.b16 %v8552
        %v8939 = vunpack.c.l.b16 %v8553
        %v8940 = vunpack.c.l.b16 %v8554
        %v8941 = vunpack.c.l.b16 %v8555
        %v8942 = vunpack.c.l.b16 %v8556
        %v8943 = vunpack.c.l.b16 %v8557
        %v8944 = vunpack.c.l.b16 %v8558
        %v8945 = vunpack.c.l.b16 %v8559
        %v8946 = vunpack.c.l.b16 %v8560
        %v8947 = vunpack.c.l.b16 %v8561
        %v8948 = vunpack.c.l.b16 %v8562
        %v8949 = vunpack.c.l.b16 %v8563
        %v8950 = vunpack.c.l.b16 %v8564
        %v8951 = vunpack.c.l.b16 %v8565
        %v8952 = vunpack.c.l.b16 %v8566
        %v8953 = vunpack.c.l.b16 %v8567
        %v8954 = vunpack.c.l.b16 %v8568
        %v8955 = vunpack.c.l.b16 %v8569
        %v8956 = vunpack.c.l.b16 %v8570
        %v8957 = vunpack.c.l.b16 %v8571
        %v8958 = vunpack.c.l.b16 %v8572
        %v8959 = vunpack.c.l.b16 %v8573
        %v8960 = vunpack.c.l.b16 %v8574
        %v8961 = vunpack.c.l.b16 %v8575
        %v8962 = vunpack.c.l.b16 %v8576
        %v8963 = vunpack.c.l.b16 %v8577
        %v8964 = vunpack.c.l.b16 %v8578
        %v8965 = vunpack.c.l.b16 %v8579
        %v8966 = vunpack.c.l.b16 %v8580
        %v8967 = vunpack.c.l.b16 %v8581
        %v8968 = vunpack.c.l.b16 %v8582
        %v8969 = vunpack.c.l.b16 %v8583
        %v8970 = vunpack.c.l.b16 %v8584
        %v8971 = vunpack.c.l.b16 %v8585
        %v8972 = vunpack.c.l.b16 %v8586
        %v8973 = vunpack.c.l.b16 %v8587
        %v8974 = vunpack.c.l.b16 %v8588
        %v8975 = vunpack.c.l.b16 %v8589
        %v8976 = vunpack.c.l.b16 %v8590
        %v8977 = vunpack.c.l.b16 %v8591
        %v8978 = vunpack.c.l.b16 %v8592
        %v8979 = vunpack.c.l.b16 %v8593
        %v8980 = vunpack.c.l.b16 %v8594
        %v8981 = vunpack.c.l.b16 %v8595
        %v8982 = vunpack.c.l.b16 %v8596
        %v8983 = vunpack.c.l.b16 %v8597
        %v8984 = vunpack.c.l.b16 %v8598
        %v8985 = vunpack.c.l.b16 %v8599
        %v8986 = vunpack.c.l.b16 %v8600
        %v8987 = vunpack.c.l.b16 %v8601
        %v8988 = vunpack.c.l.b16 %v8602
        %v8989 = vunpack.c.l.b16 %v8603
        %v8990 = vunpack.c.l.b16 %v8604
        %v8991 = vunpack.c.l.b16 %v8605
        %v8992 = vunpack.c.l.b16 %v8606
        %v8993 = vunpack.c.l.b16 %v8607
        %v8994 = vunpack.c.l.b16 %v8608
        %v8995 = vunpack.c.l.b16 %v8609
        %v8996 = vunpack.c.l.b16 %v8610
        %v8997 = vunpack.c.l.b16 %v8611
        %v8998 = vunpack.c.l.b16 %v8612
        %v8999 = vunpack.c.l.b16 %v8613
        %v9000 = vunpack.c.l.b16 %v8614
        %v9001 = vunpack.c.l.b16 %v8615
        %v9002 = vunpack.c.l.b16 %v8616
        %v9003 = vunpack.c.l.b16 %v8617
        %v9004 = vunpack.c.l.b16 %v8618
        %v9005 = vunpack.c.l.b16 %v8619
        %v9006 = vunpack.c.l.b16 %v8620
        %v9007 = vunpack.c.l.b16 %v8621
        %v9008 = vunpack.c.l.b16 %v8622
        %v9009 = vunpack.c.l.b16 %v8623
        %v9010 = vunpack.c.l.b16 %v8624
        %v9011 = vunpack.c.l.b16 %v8625
        %v9012 = vunpack.c.l.b16 %v8626
        %v9013 = vunpack.c.l.b16 %v8627
        %v9014 = vunpack.c.l.b16 %v8628
        %v9015 = vunpack.c.l.b16 %v8629
        %v9016 = vunpack.c.l.b16 %v8630
        %v9017 = vunpack.c.l.b16 %v8631
        %v9018 = vunpack.c.l.b16 %v8632
        %v9019 = vunpack.c.l.b16 %v8633
        %v9020 = vunpack.c.l.b16 %v8634
        %v9021 = vunpack.c.l.b16 %v8635
        %v9022 = vunpack.c.l.b16 %v8636
        %v9023 = vunpack.c.l.b16 %v8637
        %v9024 = vunpack.c.l.b16 %v8638
        %v9025 = vunpack.c.l.b16 %v8639
        %v9026 = vunpack.c.l.b16 %v8640
        %v9027 = vunpack.c.l.b16 %v8641
        %v9028 = vunpack.c.l.b16 %v8642
        %v9029 = vunpack.c.l.b16 %v8643
        %v9030 = vunpack.c.l.b16 %v8644
        %v9031 = vunpack.c.l.b16 %v8645
        %v9032 = vunpack.c.l.b16 %v8646
        %v9033 = vunpack.c.l.b16 %v8647
        %v9034 = vunpack.c.l.b16 %v8648
        %v9035 = vunpack.c.l.b16 %v8649
        %v9036 = vunpack.c.l.b16 %v8650
        %v9037 = vunpack.c.l.b16 %v8651
        %v9038 = vunpack.c.l.b16 %v8652
        %v9039 = vunpack.c.l.b16 %v8653
        %v9040 = vunpack.c.l.b16 %v8654
        %v9041 = vunpack.c.l.b16 %v8655
        %v9042 = vunpack.c.l.b16 %v8656
        %v9043 = vunpack.c.l.b16 %v8657
        %v9044 = vunpack.c.l.b16 %v8658
        %v9045 = vunpack.c.l.b16 %v8659
        %v9046 = vunpack.c.l.b16 %v8660
        %v9047 = vunpack.c.l.b16 %v8661
        %v9048 = vunpack.c.l.b16 %v8662
        %v9049 = vunpack.c.l.b16 %v8663
        %v9050 = vunpack.c.l.b16 %v8664
        %v9051 = vunpack.c.l.b16 %v8665
        %v9052 = vunpack.c.l.b16 %v8666
        %v9053 = vunpack.c.l.b16 %v8667
        %v9054 = vunpack.c.l.b16 %v8668
        %v9055 = vunpack.c.l.b16 %v8669
        %v9056 = vunpack.c.l.b16 %v8670
        %v9057 = vunpack.c.l.b16 %v8671
        %v9058 = vunpack.c.l.b16 %v8672
        %v9059 = vunpack.c.l.b16 %v8673
        %v9060 = vunpack.c.l.b16 %v8674
        %v9061 = vunpack.c.l.b16 %v8675
        %v9062 = vunpack.c.l.b16 %v8676
        %v9063 = vunpack.c.l.b16 %v8677
        %v9064 = vunpack.c.l.b16 %v8678
        %v9065 = vunpack.c.l.b16 %v8679
        %v9066 = vunpack.c.l.b16 %v8680
        %v9067 = vunpack.c.l.b16 %v8681
        %v9068 = vunpack.c.l.b16 %v8682
        %v9069 = vunpack.c.l.b16 %v8683
        %v9070 = vunpack.c.l.b16 %v8684
        %v9071 = vunpack.c.l.b16 %v8685
        %v9072 = vunpack.c.l.b16 %v8686
        %v9073 = vunpack.c.l.b16 %v8687
        %v9074 = vpack.c.b16 %v8931, %v8930
        %v9075 = vpack.c.b16 %v8933, %v8932
        %v9076 = vpack.c.b16 %v8935, %v8934
        %v9077 = vpack.c.b16 %v8937, %v8936
        %v9078 = vpack.c.b16 %v8939, %v8938
        %v9079 = vpack.c.b16 %v8941, %v8940
        %v9080 = vpack.c.b16 %v8943, %v8942
        %v9081 = vpack.c.b16 %v8945, %v8944
        %v9082 = vpack.c.b16 %v8947, %v8946
        %v9083 = vpack.c.b16 %v8949, %v8948
        %v9084 = vpack.c.b16 %v8951, %v8950
        %v9085 = vpack.c.b16 %v8953, %v8952
        %v9086 = vpack.c.b16 %v8955, %v8954
        %v9087 = vpack.c.b16 %v8957, %v8956
        %v9088 = vpack.c.b16 %v8959, %v8958
        %v9089 = vpack.c.b16 %v8961, %v8960
        %v9090 = vpack.c.b16 %v8963, %v8962
        %v9091 = vpack.c.b16 %v8965, %v8964
        %v9092 = vpack.c.b16 %v8967, %v8966
        %v9093 = vpack.c.b16 %v8969, %v8968
        %v9094 = vpack.c.b16 %v8971, %v8970
        %v9095 = vpack.c.b16 %v8973, %v8972
        %v9096 = vpack.c.b16 %v8975, %v8974
        %v9097 = vpack.c.b16 %v8977, %v8976
        %v9098 = vpack.c.b16 %v8979, %v8978
        %v9099 = vpack.c.b16 %v8981, %v8980
        %v9100 = vpack.c.b16 %v8983, %v8982
        %v9101 = vpack.c.b16 %v8985, %v8984
        %v9102 = vpack.c.b16 %v8987, %v8986
        %v9103 = vpack.c.b16 %v8989, %v8988
        %v9104 = vpack.c.b16 %v8991, %v8990
        %v9105 = vpack.c.b16 %v8993, %v8992
        %v9106 = vpack.c.b16 %v8995, %v8994
        %v9107 = vpack.c.b16 %v8997, %v8996
        %v9108 = vpack.c.b16 %v8999, %v8998
        %v9109 = vpack.c.b16 %v9001, %v9000
        %v9110 = vpack.c.b16 %v9003, %v9002
        %v9111 = vpack.c.b16 %v9005, %v9004
        %v9112 = vpack.c.b16 %v9007, %v9006
        %v9113 = vpack.c.b16 %v9009, %v9008
        %v9114 = vpack.c.b16 %v9011, %v9010
        %v9115 = vpack.c.b16 %v9013, %v9012
        %v9116 = vpack.c.b16 %v9015, %v9014
        %v9117 = vpack.c.b16 %v9017, %v9016
        %v9118 = vpack.c.b16 %v9019, %v9018
        %v9119 = vpack.c.b16 %v9021, %v9020
        %v9120 = vpack.c.b16 %v9023, %v9022
        %v9121 = vpack.c.b16 %v9025, %v9024
        %v9122 = vpack.c.b16 %v9027, %v9026
        %v9123 = vpack.c.b16 %v9029, %v9028
        %v9124 = vpack.c.b16 %v9031, %v9030
        %v9125 = vpack.c.b16 %v9033, %v9032
        %v9126 = vpack.c.b16 %v9035, %v9034
        %v9127 = vpack.c.b16 %v9037, %v9036
        %v9128 = vpack.c.b16 %v9039, %v9038
        %v9129 = vpack.c.b16 %v9041, %v9040
        %v9130 = vpack.c.b16 %v9043, %v9042
        %v9131 = vpack.c.b16 %v9045, %v9044
        %v9132 = vpack.c.b16 %v9047, %v9046
        %v9133 = vpack.c.b16 %v9049, %v9048
        %v9134 = vpack.c.b16 %v9051, %v9050
        %v9135 = vpack.c.b16 %v9053, %v9052
        %v9136 = vpack.c.b16 %v9055, %v9054
        %v9137 = vpack.c.b16 %v9057, %v9056
        %v9138 = vpack.c.b16 %v9059, %v9058
        %v9139 = vpack.c.b16 %v9061, %v9060
        %v9140 = vpack.c.b16 %v9063, %v9062
        %v9141 = vpack.c.b16 %v9065, %v9064
        %v9142 = vpack.c.b16 %v9067, %v9066
        %v9143 = vpack.c.b16 %v9069, %v9068
        %v9144 = vpack.c.b16 %v9071, %v9070
        %v9145 = vpack.c.b16 %v9073, %v9072
        %9218 = vmatprep.subr.bf16.mxu0 0
        %9219 = vmatpush1.bf16.msra.mxu0 %v9081
        %9220 = vmatprep.subr.bf16.mxu0 0
        %9221 = vmatpush1.bf16.msra.mxu0 %v9080
        %9222 = vmatprep.subr.bf16.mxu0 0
        %9223 = vmatpush1.bf16.msra.mxu0 %v9079
        %9224 = vmatprep.subr.bf16.mxu0 0
        %9225 = vmatpush1.bf16.msra.mxu0 %v9078
        %9226 = vmatprep.subr.bf16.mxu0 0
        %9227 = vmatpush1.bf16.msra.mxu0 %v9077
        %9228 = vmatprep.subr.bf16.mxu0 0
        %9229 = vmatpush1.bf16.msra.mxu0 %v9076
        %9230 = vmatprep.subr.bf16.mxu0 0
        %9231 = vmatpush1.bf16.msra.mxu0 %v9075
        %9232 = vmatprep.subr.bf16.mxu0 0
        %9233 = vmatpush1.bf16.msra.mxu0 %v9074
        %9234 = vmatprep.subr.bf16.mxu0 0
        %9235 = vmatpush2.bf16.msra.mxu0 %v9089
        %9236 = vmatprep.subr.bf16.mxu0 0
        %9237 = vmatpush2.bf16.msra.mxu0 %v9088
        %9238 = vmatprep.subr.bf16.mxu0 0
        %9239 = vmatpush2.bf16.msra.mxu0 %v9087
        %9240 = vmatprep.subr.bf16.mxu0 0
        %9241 = vmatpush2.bf16.msra.mxu0 %v9086
        %9242 = vmatprep.subr.bf16.mxu0 0
        %9243 = vmatpush2.bf16.msra.mxu0 %v9085
        %9244 = vmatprep.subr.bf16.mxu0 0
        %9245 = vmatpush2.bf16.msra.mxu0 %v9084
        %9246 = vmatprep.subr.bf16.mxu0 0
        %9247 = vmatpush2.bf16.msra.mxu0 %v9083
        %9248 = vmatprep.subr.bf16.mxu0 0
        %9249 = vmatpush2.bf16.msra.mxu0 %v9082
        %9250 = vmatprep.mubr.bf16.mxu0 %v8721
        %9251 = vmatmul.mubr.bf16.gmra.mxu0 %v8720
        %v9252 = vpop.f32.mrf.mxu0
        %v9253 = vadd.f32 0.0, %v9252
        %v9254 = vpop.f32.mrf.mxu0
        %v9255 = vpop.f32.mrf.mxu0
        %v9256 = vadd.f32 0.0, %v9255
        %v9257 = vpop.f32.mrf.mxu0
        %9258 = vdwg.mxu0
        %9259 = vmatprep.subr.bf16.mxu0 0
        %9260 = vmatpush1.bf16.msra.mxu0 %v9097
        %9261 = vmatprep.subr.bf16.mxu0 0
        %9262 = vmatpush1.bf16.msra.mxu0 %v9096
        %9263 = vmatprep.subr.bf16.mxu0 0
        %9264 = vmatpush1.bf16.msra.mxu0 %v9095
        %9265 = vmatprep.subr.bf16.mxu0 0
        %9266 = vmatpush1.bf16.msra.mxu0 %v9094
        %9267 = vmatprep.subr.bf16.mxu0 0
        %9268 = vmatpush1.bf16.msra.mxu0 %v9093
        %9269 = vmatprep.subr.bf16.mxu0 0
        %9270 = vmatpush1.bf16.msra.mxu0 %v9092
        %9271 = vmatprep.subr.bf16.mxu0 0
        %9272 = vmatpush1.bf16.msra.mxu0 %v9091
        %9273 = vmatprep.subr.bf16.mxu0 0
        %9274 = vmatpush1.bf16.msra.mxu0 %v9090
        %9275 = vmatprep.subr.bf16.mxu0 0
        %9276 = vmatpush2.bf16.msra.mxu0 %v9105
        %9277 = vmatprep.subr.bf16.mxu0 0
        %9278 = vmatpush2.bf16.msra.mxu0 %v9104
        %9279 = vmatprep.subr.bf16.mxu0 0
        %9280 = vmatpush2.bf16.msra.mxu0 %v9103
        %9281 = vmatprep.subr.bf16.mxu0 0
        %9282 = vmatpush2.bf16.msra.mxu0 %v9102
        %9283 = vmatprep.subr.bf16.mxu0 0
        %9284 = vmatpush2.bf16.msra.mxu0 %v9101
        %9285 = vmatprep.subr.bf16.mxu0 0
        %9286 = vmatpush2.bf16.msra.mxu0 %v9100
        %9287 = vmatprep.subr.bf16.mxu0 0
        %9288 = vmatpush2.bf16.msra.mxu0 %v9099
        %9289 = vmatprep.subr.bf16.mxu0 0
        %9290 = vmatpush2.bf16.msra.mxu0 %v9098
        %9291 = vmatprep.mubr.bf16.mxu0 %v8723
        %9292 = vmatmul.mubr.bf16.gmra.mxu0 %v8722
        %v9293 = vpop.f32.mrf.mxu0
        %v9294 = vadd.f32 %v9253, %v9293
        %v9295 = vpop.f32.mrf.mxu0
        %v9296 = vpop.f32.mrf.mxu0
        %v9297 = vadd.f32 %v9256, %v9296
        %v9298 = vpop.f32.mrf.mxu0
        %9299 = vdwg.mxu0
        %9300 = vmatprep.subr.bf16.mxu0 0
        %9301 = vmatpush1.bf16.msra.mxu0 %v9113
        %9302 = vmatprep.subr.bf16.mxu0 0
        %9303 = vmatpush1.bf16.msra.mxu0 %v9112
        %9304 = vmatprep.subr.bf16.mxu0 0
        %9305 = vmatpush1.bf16.msra.mxu0 %v9111
        %9306 = vmatprep.subr.bf16.mxu0 0
        %9307 = vmatpush1.bf16.msra.mxu0 %v9110
        %9308 = vmatprep.subr.bf16.mxu0 0
        %9309 = vmatpush1.bf16.msra.mxu0 %v9109
        %9310 = vmatprep.subr.bf16.mxu0 0
        %9311 = vmatpush1.bf16.msra.mxu0 %v9108
        %9312 = vmatprep.subr.bf16.mxu0 0
        %9313 = vmatpush1.bf16.msra.mxu0 %v9107
        %9314 = vmatprep.subr.bf16.mxu0 0
        %9315 = vmatpush1.bf16.msra.mxu0 %v9106
        %9316 = vmatprep.subr.bf16.mxu0 0
        %9317 = vmatpush2.bf16.msra.mxu0 %v9121
        %9318 = vmatprep.subr.bf16.mxu0 0
        %9319 = vmatpush2.bf16.msra.mxu0 %v9120
        %9320 = vmatprep.subr.bf16.mxu0 0
        %9321 = vmatpush2.bf16.msra.mxu0 %v9119
        %9322 = vmatprep.subr.bf16.mxu0 0
        %9323 = vmatpush2.bf16.msra.mxu0 %v9118
        %9324 = vmatprep.subr.bf16.mxu0 0
        %9325 = vmatpush2.bf16.msra.mxu0 %v9117
        %9326 = vmatprep.subr.bf16.mxu0 0
        %9327 = vmatpush2.bf16.msra.mxu0 %v9116
        %9328 = vmatprep.subr.bf16.mxu0 0
        %9329 = vmatpush2.bf16.msra.mxu0 %v9115
        %9330 = vmatprep.subr.bf16.mxu0 0
        %9331 = vmatpush2.bf16.msra.mxu0 %v9114
        %9332 = vmatprep.mubr.bf16.mxu0 %v8757
        %9333 = vmatmul.mubr.bf16.gmra.mxu0 %v8756
        %v9334 = vpop.f32.mrf.mxu0
        %v9335 = vadd.f32 %v9294, %v9334
        %v9336 = vpop.f32.mrf.mxu0
        %v9337 = vpop.f32.mrf.mxu0
        %v9338 = vadd.f32 %v9297, %v9337
        %v9339 = vpop.f32.mrf.mxu0
        %9340 = vdwg.mxu0
        %9341 = vmatprep.subr.bf16.mxu0 0
        %9342 = vmatpush1.bf16.msra.mxu0 %v9129
        %9343 = vmatprep.subr.bf16.mxu0 0
        %9344 = vmatpush1.bf16.msra.mxu0 %v9128
        %9345 = vmatprep.subr.bf16.mxu0 0
        %9346 = vmatpush1.bf16.msra.mxu0 %v9127
        %9347 = vmatprep.subr.bf16.mxu0 0
        %9348 = vmatpush1.bf16.msra.mxu0 %v9126
        %9349 = vmatprep.subr.bf16.mxu0 0
        %9350 = vmatpush1.bf16.msra.mxu0 %v9125
        %9351 = vmatprep.subr.bf16.mxu0 0
        %9352 = vmatpush1.bf16.msra.mxu0 %v9124
        %9353 = vmatprep.subr.bf16.mxu0 0
        %9354 = vmatpush1.bf16.msra.mxu0 %v9123
        %9355 = vmatprep.subr.bf16.mxu0 0
        %9356 = vmatpush1.bf16.msra.mxu0 %v9122
        %9357 = vmatprep.subr.bf16.mxu0 0
        %9358 = vmatpush2.bf16.msra.mxu0 %v9137
        %9359 = vmatprep.subr.bf16.mxu0 0
        %9360 = vmatpush2.bf16.msra.mxu0 %v9136
        %9361 = vmatprep.subr.bf16.mxu0 0
        %9362 = vmatpush2.bf16.msra.mxu0 %v9135
        %9363 = vmatprep.subr.bf16.mxu0 0
        %9364 = vmatpush2.bf16.msra.mxu0 %v9134
        %9365 = vmatprep.subr.bf16.mxu0 0
        %9366 = vmatpush2.bf16.msra.mxu0 %v9133
        %9367 = vmatprep.subr.bf16.mxu0 0
        %9368 = vmatpush2.bf16.msra.mxu0 %v9132
        %9369 = vmatprep.subr.bf16.mxu0 0
        %9370 = vmatpush2.bf16.msra.mxu0 %v9131
        %9371 = vmatprep.subr.bf16.mxu0 0
        %9372 = vmatpush2.bf16.msra.mxu0 %v9130
        %9373 = vmatprep.mubr.bf16.mxu0 %v8759
        %9374 = vmatmul.mubr.bf16.gmra.mxu0 %v8758
        %v9375 = vpop.f32.mrf.mxu0
        %v9376 = vadd.f32 %v9335, %v9375
        %v9377 = vpop.f32.mrf.mxu0
        %v9378 = vpop.f32.mrf.mxu0
        %v9379 = vadd.f32 %v9338, %v9378
        %v9380 = vpop.f32.mrf.mxu0
        %9381 = vdwg.mxu0
        %9382 = vmatprep.subr.bf16.mxu0 0
        %9383 = vmatpush1.bf16.msra.mxu0 %v9145
        %9384 = vmatprep.subr.bf16.mxu0 0
        %9385 = vmatpush1.bf16.msra.mxu0 %v9144
        %9386 = vmatprep.subr.bf16.mxu0 0
        %9387 = vmatpush1.bf16.msra.mxu0 %v9143
        %9388 = vmatprep.subr.bf16.mxu0 0
        %9389 = vmatpush1.bf16.msra.mxu0 %v9142
        %9390 = vmatprep.subr.bf16.mxu0 0
        %9391 = vmatpush1.bf16.msra.mxu0 %v9141
        %9392 = vmatprep.subr.bf16.mxu0 0
        %9393 = vmatpush1.bf16.msra.mxu0 %v9140
        %9394 = vmatprep.subr.bf16.mxu0 0
        %9395 = vmatpush1.bf16.msra.mxu0 %v9139
        %9396 = vmatprep.subr.bf16.mxu0 0
        %9397 = vmatpush1.bf16.msra.mxu0 %v9138
        %9398 = vmatprep.subr.bf16.mxu0 0
        %9399 = vmatpush2.bf16.msra.mxu0 0
        %9400 = vmatprep.subr.bf16.mxu0 0
        %9401 = vmatpush2.bf16.msra.mxu0 0
        %9402 = vmatprep.subr.bf16.mxu0 0
        %9403 = vmatpush2.bf16.msra.mxu0 0
        %9404 = vmatprep.subr.bf16.mxu0 0
        %9405 = vmatpush2.bf16.msra.mxu0 0
        %9406 = vmatprep.subr.bf16.mxu0 0
        %9407 = vmatpush2.bf16.msra.mxu0 0
        %9408 = vmatprep.subr.bf16.mxu0 0
        %9409 = vmatpush2.bf16.msra.mxu0 0
        %9410 = vmatprep.subr.bf16.mxu0 0
        %9411 = vmatpush2.bf16.msra.mxu0 0
        %9412 = vmatprep.subr.bf16.mxu0 0
        %9413 = vmatpush2.bf16.msra.mxu0 0
        %9414 = vmatprep.mubr.bf16.mxu0 0
        %9415 = vmatmul.mubr.bf16.gmra.mxu0 %v8776
        %v9416 = vpop.f32.mrf.mxu0
        %v9417 = vadd.f32 %v9376, %v9416
        %v9418 = vpop.f32.mrf.mxu0
        %v9419 = vpop.f32.mrf.mxu0
        %v9420 = vadd.f32 %v9379, %v9419
        %v9421 = vpop.f32.mrf.mxu0
        %9422 = vdwg.mxu0
        %v9423 = vmin.f32 %v9417, 0.0
        %v9424 = vmin.f32 %v9420, 0.0
        %v9425 = vmul.f32 %v9423, 1.442695
        %v9426 = vpow.pop %v9425
        %v9427 = vmul.f32 %v9424, 1.442695
        %v9428 = vpow.pop %v9427
        %v9429 = vsub.f32 %v9426, 1.0
        %v9430 = vsub.f32 %v9428, 1.0
        %vm9431 = vcmp.gt.f32.partialorder %v9417, 0.0
        %vm9432 = vcmp.gt.f32.partialorder %v9420, 0.0
        %v9433 = vsel %vm9431, %v9417, %v9429
        %v9434 = vsel %vm9432, %v9420, %v9430
        %v9435 = vld [vmem:[#allocation17] sm:$0x1]
        %v9436 = vlaneseq
        %v9437 = vshrl.u32 %v9436, 7
        %v9438 = vsub.s32 0, %v9437
        %v9439 = vrot.slane %v9435, %v9438
        %v9440 = vmul.f32 %v9433, %v9439
        %v9441 = vmul.f32 %v9434, %v9439
        %v9442 = vld [vmem:[#allocation17 + $0x1] sm:$0x1]
        %v9443 = vlaneseq
        %v9444 = vshrl.u32 %v9443, 7
        %v9445 = vsub.s32 0, %v9444
        %v9446 = vrot.slane %v9442, %v9445
        %v9447 = vadd.f32 %v9440, %v9446
        %v9448 = vadd.f32 %v9441, %v9446
        %v9451 = vcombine.high %v9447, %v9447
        %v9452 = vcombine.high %v9448, %v9448
        %vm9455 = vcmask 1043456
        %v9456 = vsel %vm9455, %v9447, -inf
        %v9457 = vsel %vm9455, %v9451, -inf
        %v9458 = vmax.f32 %v9456, %v9457
        %v9459 = vsel %vm9455, %v9448, -inf
        %v9460 = vsel %vm9455, %v9452, -inf
        %v9461 = vmax.f32 %v9459, %v9460
        %v9465 = vunpack.c.l.s4 1983009808
        %v9466 = vunpack.c.0.s8 %v9465
        %v9467 = vlaneseq
        %v9468 = vshrl.u32 %v9467, 7
        %v9469 = vsub.s32 %v9466, %v9468
        %v9470 = vrot.slane %v9458, %v9469
        %v9471 = vcombine.high %v9470, %v9470
        %v9473 = vunpack.c.l.s4 1983009808
        %v9474 = vunpack.c.0.s8 %v9473
        %v9475 = vlaneseq
        %v9476 = vshrl.u32 %v9475, 7
        %v9477 = vsub.s32 %v9474, %v9476
        %v9478 = vrot.slane %v9461, %v9477
        %v9479 = vcombine.high %v9478, %v9478
        %vm9484 = vcmask 1041408
        %v9485 = vsel %vm9484, %v9470, -inf
        %v9486 = vrot.slane %v9485, 4
        %v9487 = vmax.f32 %v9485, %v9486
        %v9488 = vrot.slane %v9487, 2
        %v9489 = vmax.f32 %v9487, %v9488
        %v9490 = vrot.slane %v9489, 1
        %v9491 = vmax.f32 %v9489, %v9490
        %v9492 = vsel %vm9484, %v9471, -inf
        %v9493 = vrot.slane %v9492, 4
        %v9494 = vmax.f32 %v9492, %v9493
        %v9495 = vrot.slane %v9494, 2
        %v9496 = vmax.f32 %v9494, %v9495
        %v9497 = vrot.slane %v9496, 1
        %v9498 = vmax.f32 %v9496, %v9497
        %v9499 = vsel %vm9484, %v9478, -inf
        %v9500 = vrot.slane %v9499, 4
        %v9501 = vmax.f32 %v9499, %v9500
        %v9502 = vrot.slane %v9501, 2
        %v9503 = vmax.f32 %v9501, %v9502
        %v9504 = vrot.slane %v9503, 1
        %v9505 = vmax.f32 %v9503, %v9504
        %v9506 = vsel %vm9484, %v9479, -inf
        %v9507 = vrot.slane %v9506, 4
        %v9508 = vmax.f32 %v9506, %v9507
        %v9509 = vrot.slane %v9508, 2
        %v9510 = vmax.f32 %v9508, %v9509
        %v9511 = vrot.slane %v9510, 1
        %v9512 = vmax.f32 %v9510, %v9511
        %v9513 = vpack.c.bf16 %v9491, %v9491
        %v9514 = vpack.c.bf16 %v9498, %v9498
        %v9515 = vpack.c.bf16 %v9505, %v9505
        %v9516 = vpack.c.bf16 %v9512, %v9512
        %v9517 = vld [vmem:[%s13] sm:$0xf]
        %v9518 = vld [vmem:[%s13 + $0x4] sm:$0xf]
        %v9519 = vld [vmem:[%s13 + $0x8] sm:$0xf]
        %v9520 = vld [vmem:[%s13 + $0xc] sm:$0xf]
        %v9521 = vld [vmem:[%s13 + $0x10] sm:$0xf]
        %v9522 = vld [vmem:[%s13 + $0x14] sm:$0xf]
        %v9523 = vld [vmem:[%s13 + $0x18] sm:$0xf]
        %v9524 = vld [vmem:[%s13 + $0x1c] sm:$0xf]
        %v9525 = vld [vmem:[%s13 + $0x20] sm:$0xf]
        %v9526 = vld [vmem:[%s13 + $0x24] sm:$0xf]
        %v9527 = vld [vmem:[%s13 + $0x28] sm:$0xf]
        %v9528 = vld [vmem:[%s13 + $0x2c] sm:$0xf]
        %v9529 = vld [vmem:[%s13 + $0x30] sm:$0xf]
        %v9530 = vld [vmem:[%s13 + $0x34] sm:$0xf]
        %v9531 = vld [vmem:[%s13 + $0x38] sm:$0xf]
        %v9532 = vld [vmem:[%s13 + $0x3c] sm:$0xf]
        %v9533 = vld [vmem:[%s13 + $0x40] sm:$0xf]
        %v9534 = vld [vmem:[%s13 + $0x44] sm:$0xf]
        %v9535 = vld [vmem:[%s13 + $0x48] sm:$0xf]
        %v9536 = vld [vmem:[%s13 + $0x4c] sm:$0xf]
        %v9537 = vld [vmem:[%s13 + $0x50] sm:$0xf]
        %v9538 = vld [vmem:[%s13 + $0x54] sm:$0xf]
        %v9539 = vld [vmem:[%s13 + $0x58] sm:$0xf]
        %v9540 = vld [vmem:[%s13 + $0x5c] sm:$0xf]
        %v9541 = vld [vmem:[%s13 + $0x60] sm:$0xf]
        %v9542 = vld [vmem:[%s13 + $0x64] sm:$0xf]
        %v9543 = vld [vmem:[%s13 + $0x68] sm:$0xf]
        %v9544 = vld [vmem:[%s13 + $0x6c] sm:$0xf]
        %v9545 = vld [vmem:[%s13 + $0x70] sm:$0xf]
        %v9546 = vld [vmem:[%s13 + $0x74] sm:$0xf]
        %v9547 = vld [vmem:[%s13 + $0x78] sm:$0xf]
        %v9548 = vld [vmem:[%s13 + $0x7c] sm:$0xf]
        %v9549 = vld [vmem:[%s13 + $0x80] sm:$0xf]
        %v9550 = vld [vmem:[%s13 + $0x84] sm:$0xf]
        %v9551 = vld [vmem:[%s13 + $0x88] sm:$0xf]
        %v9552 = vld [vmem:[%s13 + $0x8c] sm:$0xf]
        %v9553 = vld [vmem:[%s13 + $0x90] sm:$0xf]
        %v9554 = vld [vmem:[%s13 + $0x94] sm:$0xf]
        %v9555 = vld [vmem:[%s13 + $0x98] sm:$0xf]
        %v9556 = vld [vmem:[%s13 + $0x9c] sm:$0xf]
        %v9557 = vld [vmem:[%s13 + $0xa0] sm:$0xf]
        %v9558 = vld [vmem:[%s13 + $0xa4] sm:$0xf]
        %v9559 = vld [vmem:[%s13 + $0xa8] sm:$0xf]
        %v9560 = vld [vmem:[%s13 + $0xac] sm:$0xf]
        %v9561 = vld [vmem:[%s13 + $0xb0] sm:$0xf]
        %v9562 = vld [vmem:[%s13 + $0xb4] sm:$0xf]
        %v9563 = vld [vmem:[%s13 + $0xb8] sm:$0xf]
        %v9564 = vld [vmem:[%s13 + $0xbc] sm:$0xf]
        %v9565 = vld [vmem:[%s13 + $0xc0] sm:$0xf]
        %v9566 = vld [vmem:[%s13 + $0xc4] sm:$0xf]
        %v9567 = vld [vmem:[%s13 + $0xc8] sm:$0xf]
        %v9568 = vld [vmem:[%s13 + $0xcc] sm:$0xf]
        %v9569 = vld [vmem:[%s13 + $0xd0] sm:$0xf]
        %v9570 = vld [vmem:[%s13 + $0xd4] sm:$0xf]
        %v9571 = vld [vmem:[%s13 + $0xd8] sm:$0xf]
        %v9572 = vld [vmem:[%s13 + $0xdc] sm:$0xf]
        %v9573 = vld [vmem:[%s13 + $0xe0] sm:$0xf]
        %v9574 = vld [vmem:[%s13 + $0xe4] sm:$0xf]
        %v9575 = vld [vmem:[%s13 + $0xe8] sm:$0xf]
        %v9576 = vld [vmem:[%s13 + $0xec] sm:$0xf]
        %v9577 = vld [vmem:[%s13 + $0xf0] sm:$0xf]
        %v9578 = vld [vmem:[%s13 + $0xf4] sm:$0xf]
        %v9579 = vld [vmem:[%s13 + $0xf8] sm:$0xf]
        %v9580 = vld [vmem:[%s13 + $0xfc] sm:$0xf]
        %v9581 = vld [vmem:[%s14] sm:$0x1]
        %v9646 = vunpack.c.l.b16 %v9517
        %v9647 = vunpack.c.l.b16 %v9518
        %v9648 = vunpack.c.l.b16 %v9519
        %v9649 = vunpack.c.l.b16 %v9520
        %v9650 = vunpack.c.l.b16 %v9521
        %v9651 = vunpack.c.l.b16 %v9522
        %v9652 = vunpack.c.l.b16 %v9523
        %v9653 = vunpack.c.l.b16 %v9524
        %v9654 = vunpack.c.l.b16 %v9525
        %v9655 = vunpack.c.l.b16 %v9526
        %v9656 = vunpack.c.l.b16 %v9527
        %v9657 = vunpack.c.l.b16 %v9528
        %v9658 = vunpack.c.l.b16 %v9529
        %v9659 = vunpack.c.l.b16 %v9530
        %v9660 = vunpack.c.l.b16 %v9531
        %v9661 = vunpack.c.l.b16 %v9532
        %v9662 = vunpack.c.l.b16 %v9533
        %v9663 = vunpack.c.l.b16 %v9534
        %v9664 = vunpack.c.l.b16 %v9535
        %v9665 = vunpack.c.l.b16 %v9536
        %v9666 = vunpack.c.l.b16 %v9537
        %v9667 = vunpack.c.l.b16 %v9538
        %v9668 = vunpack.c.l.b16 %v9539
        %v9669 = vunpack.c.l.b16 %v9540
        %v9670 = vunpack.c.l.b16 %v9541
        %v9671 = vunpack.c.l.b16 %v9542
        %v9672 = vunpack.c.l.b16 %v9543
        %v9673 = vunpack.c.l.b16 %v9544
        %v9674 = vunpack.c.l.b16 %v9545
        %v9675 = vunpack.c.l.b16 %v9546
        %v9676 = vunpack.c.l.b16 %v9547
        %v9677 = vunpack.c.l.b16 %v9548
        %v9678 = vunpack.c.l.b16 %v9549
        %v9679 = vunpack.c.l.b16 %v9550
        %v9680 = vunpack.c.l.b16 %v9551
        %v9681 = vunpack.c.l.b16 %v9552
        %v9682 = vunpack.c.l.b16 %v9553
        %v9683 = vunpack.c.l.b16 %v9554
        %v9684 = vunpack.c.l.b16 %v9555
        %v9685 = vunpack.c.l.b16 %v9556
        %v9686 = vunpack.c.l.b16 %v9557
        %v9687 = vunpack.c.l.b16 %v9558
        %v9688 = vunpack.c.l.b16 %v9559
        %v9689 = vunpack.c.l.b16 %v9560
        %v9690 = vunpack.c.l.b16 %v9561
        %v9691 = vunpack.c.l.b16 %v9562
        %v9692 = vunpack.c.l.b16 %v9563
        %v9693 = vunpack.c.l.b16 %v9564
        %v9694 = vunpack.c.l.b16 %v9565
        %v9695 = vunpack.c.l.b16 %v9566
        %v9696 = vunpack.c.l.b16 %v9567
        %v9697 = vunpack.c.l.b16 %v9568
        %v9698 = vunpack.c.l.b16 %v9569
        %v9699 = vunpack.c.l.b16 %v9570
        %v9700 = vunpack.c.l.b16 %v9571
        %v9701 = vunpack.c.l.b16 %v9572
        %v9702 = vunpack.c.l.b16 %v9573
        %v9703 = vunpack.c.l.b16 %v9574
        %v9704 = vunpack.c.l.b16 %v9575
        %v9705 = vunpack.c.l.b16 %v9576
        %v9706 = vunpack.c.l.b16 %v9577
        %v9707 = vunpack.c.l.b16 %v9578
        %v9708 = vunpack.c.l.b16 %v9579
        %v9709 = vunpack.c.l.b16 %v9580
        %v9710 = vpack.c.b16 %v9647, %v9646
        %v9711 = vpack.c.b16 %v9649, %v9648
        %v9712 = vpack.c.b16 %v9651, %v9650
        %v9713 = vpack.c.b16 %v9653, %v9652
        %v9714 = vpack.c.b16 %v9655, %v9654
        %v9715 = vpack.c.b16 %v9657, %v9656
        %v9716 = vpack.c.b16 %v9659, %v9658
        %v9717 = vpack.c.b16 %v9661, %v9660
        %v9718 = vpack.c.b16 %v9663, %v9662
        %v9719 = vpack.c.b16 %v9665, %v9664
        %v9720 = vpack.c.b16 %v9667, %v9666
        %v9721 = vpack.c.b16 %v9669, %v9668
        %v9722 = vpack.c.b16 %v9671, %v9670
        %v9723 = vpack.c.b16 %v9673, %v9672
        %v9724 = vpack.c.b16 %v9675, %v9674
        %v9725 = vpack.c.b16 %v9677, %v9676
        %v9726 = vpack.c.b16 %v9679, %v9678
        %v9727 = vpack.c.b16 %v9681, %v9680
        %v9728 = vpack.c.b16 %v9683, %v9682
        %v9729 = vpack.c.b16 %v9685, %v9684
        %v9730 = vpack.c.b16 %v9687, %v9686
        %v9731 = vpack.c.b16 %v9689, %v9688
        %v9732 = vpack.c.b16 %v9691, %v9690
        %v9733 = vpack.c.b16 %v9693, %v9692
        %v9734 = vpack.c.b16 %v9695, %v9694
        %v9735 = vpack.c.b16 %v9697, %v9696
        %v9736 = vpack.c.b16 %v9699, %v9698
        %v9737 = vpack.c.b16 %v9701, %v9700
        %v9738 = vpack.c.b16 %v9703, %v9702
        %v9739 = vpack.c.b16 %v9705, %v9704
        %v9740 = vpack.c.b16 %v9707, %v9706
        %v9741 = vpack.c.b16 %v9709, %v9708
        %9774 = vmatprep.subr.bf16.mxu0 0
        %9775 = vmatpush1.bf16.msra.mxu0 %v9717
        %9776 = vmatprep.subr.bf16.mxu0 0
        %9777 = vmatpush1.bf16.msra.mxu0 %v9716
        %9778 = vmatprep.subr.bf16.mxu0 0
        %9779 = vmatpush1.bf16.msra.mxu0 %v9715
        %9780 = vmatprep.subr.bf16.mxu0 0
        %9781 = vmatpush1.bf16.msra.mxu0 %v9714
        %9782 = vmatprep.subr.bf16.mxu0 0
        %9783 = vmatpush1.bf16.msra.mxu0 %v9713
        %9784 = vmatprep.subr.bf16.mxu0 0
        %9785 = vmatpush1.bf16.msra.mxu0 %v9712
        %9786 = vmatprep.subr.bf16.mxu0 0
        %9787 = vmatpush1.bf16.msra.mxu0 %v9711
        %9788 = vmatprep.subr.bf16.mxu0 0
        %9789 = vmatpush1.bf16.msra.mxu0 %v9710
        %9790 = vmatprep.subr.bf16.mxu0 0
        %9791 = vmatpush2.bf16.msra.mxu0 %v9725
        %9792 = vmatprep.subr.bf16.mxu0 0
        %9793 = vmatpush2.bf16.msra.mxu0 %v9724
        %9794 = vmatprep.subr.bf16.mxu0 0
        %9795 = vmatpush2.bf16.msra.mxu0 %v9723
        %9796 = vmatprep.subr.bf16.mxu0 0
        %9797 = vmatpush2.bf16.msra.mxu0 %v9722
        %9798 = vmatprep.subr.bf16.mxu0 0
        %9799 = vmatpush2.bf16.msra.mxu0 %v9721
        %9800 = vmatprep.subr.bf16.mxu0 0
        %9801 = vmatpush2.bf16.msra.mxu0 %v9720
        %9802 = vmatprep.subr.bf16.mxu0 0
        %9803 = vmatpush2.bf16.msra.mxu0 %v9719
        %9804 = vmatprep.subr.bf16.mxu0 0
        %9805 = vmatpush2.bf16.msra.mxu0 %v9718
        %9806 = vmatprep.mubr.bf16.mxu0 %v9514
        %9807 = vmatmul.mubr.bf16.gmra.mxu0 %v9513
        %v9808 = vpop.f32.mrf.mxu0
        %v9809 = vadd.f32 %v9581, %v9808
        %v9810 = vpop.f32.mrf.mxu0
        %v9811 = vpop.f32.mrf.mxu0
        %v9812 = vpop.f32.mrf.mxu0
        %9813 = vdwg.mxu0
        %9814 = vmatprep.subr.bf16.mxu0 0
        %9815 = vmatpush1.bf16.msra.mxu0 %v9733
        %9816 = vmatprep.subr.bf16.mxu0 0
        %9817 = vmatpush1.bf16.msra.mxu0 %v9732
        %9818 = vmatprep.subr.bf16.mxu0 0
        %9819 = vmatpush1.bf16.msra.mxu0 %v9731
        %9820 = vmatprep.subr.bf16.mxu0 0
        %9821 = vmatpush1.bf16.msra.mxu0 %v9730
        %9822 = vmatprep.subr.bf16.mxu0 0
        %9823 = vmatpush1.bf16.msra.mxu0 %v9729
        %9824 = vmatprep.subr.bf16.mxu0 0
        %9825 = vmatpush1.bf16.msra.mxu0 %v9728
        %9826 = vmatprep.subr.bf16.mxu0 0
        %9827 = vmatpush1.bf16.msra.mxu0 %v9727
        %9828 = vmatprep.subr.bf16.mxu0 0
        %9829 = vmatpush1.bf16.msra.mxu0 %v9726
        %9830 = vmatprep.subr.bf16.mxu0 0
        %9831 = vmatpush2.bf16.msra.mxu0 %v9741
        %9832 = vmatprep.subr.bf16.mxu0 0
        %9833 = vmatpush2.bf16.msra.mxu0 %v9740
        %9834 = vmatprep.subr.bf16.mxu0 0
        %9835 = vmatpush2.bf16.msra.mxu0 %v9739
        %9836 = vmatprep.subr.bf16.mxu0 0
        %9837 = vmatpush2.bf16.msra.mxu0 %v9738
        %9838 = vmatprep.subr.bf16.mxu0 0
        %9839 = vmatpush2.bf16.msra.mxu0 %v9737
        %9840 = vmatprep.subr.bf16.mxu0 0
        %9841 = vmatpush2.bf16.msra.mxu0 %v9736
        %9842 = vmatprep.subr.bf16.mxu0 0
        %9843 = vmatpush2.bf16.msra.mxu0 %v9735
        %9844 = vmatprep.subr.bf16.mxu0 0
        %9845 = vmatpush2.bf16.msra.mxu0 %v9734
        %9846 = vmatprep.mubr.bf16.mxu0 %v9516
        %9847 = vmatmul.mubr.bf16.gmra.mxu0 %v9515
        %v9848 = vpop.f32.mrf.mxu0
        %v9849 = vadd.f32 %v9809, %v9848
        %v9850 = vpop.f32.mrf.mxu0
        %v9851 = vpop.f32.mrf.mxu0
        %v9852 = vpop.f32.mrf.mxu0
        %9853 = vdwg.mxu0
        %9854 = vst [vmem:[%s564] sm:$0x1] %v9849
        %s9855 = sand.u32 %s361, 1
        %s9856 = scalar_lea.sflag [#allocation10], %s9855
        %s9857 = sand.u32 %s361, 1
        %s9858 = scalar_lea.vmem [#allocation19], %s9857
        // Predicated region
        $region105: #{detector_cnn_forward.1} parent=79 // pred_check
          %p9859 = pneg %p371
        $region106: #{detector_cnn_forward.1} parent=79 // pred_check_branch
          %9861 = sbr.rel (%p9859) target = $region108
        $region107: #{detector_cnn_forward.1} parent=79 // pred_region
          %s9863 = ssub.s32 16, 16
          %9864 = vsyncadd %s9856, %s9863
          %s9865 = smul.addr %s33, 16
          %s9866 = scalar_lea.hbm %s15, %s9865
          %s9868 = sshll.u32 %s9858, 4
          %s9869 = int_to_ptr.vmem [resolvable:$true] %s9868
          %9871 = dma.vmem_to_hbm [thread:$0]  %s9869, 16, %s9866, %s9856
        $region108: #{detector_cnn_forward.1} parent=79 // pred_fallthru
          _
      $region80: #{detector_cnn_forward.1} parent=5 // pred_fallthru
        _
      %p9872 = scmp.le.s32.totalorder 2, %s28
      // Predicated region
      $region109: #{detector_cnn_forward.1} parent=5 // pred_check
        %p9873 = pneg %p9872
      $region110: #{detector_cnn_forward.1} parent=5 // pred_check_branch
        %9875 = sbr.rel (%p9873) target = $region112
      $region111: #{detector_cnn_forward.1} parent=5 // pred_region
        %s9876 = ssub.s32 %s28, 2
        // Predicated region
        $region113: #{detector_cnn_forward.1} parent=111 // pred_check
          %p9877 = pneg %p377
        $region114: #{detector_cnn_forward.1} parent=111 // pred_check_branch
          %9879 = sbr.rel (%p9877) target = $region116
        $region115: #{detector_cnn_forward.1} parent=111 // pred_region
          %s9880 = sand.u32 %s362, 1
          %s9881 = scalar_lea.sflag [#allocation10], %s9880
          %s9882 = sand.u32 %s362, 1
          %s9883 = scalar_lea.vmem [#allocation19], %s9882
          %9884 = dma.done %s9881, 16
        $region116: #{detector_cnn_forward.1} parent=111 // pred_fallthru
          _
      $region112: #{detector_cnn_forward.1} parent=5 // pred_fallthru
        _
    $region6: #{detector_cnn_forward.1} parent=1 // loop_footer
      %s32 = sadd.s32 1, %s28
    $region7: #{detector_cnn_forward.1} parent=1 // loop_footer_branch
      %27 = sbr.rel target = $region3
    $region8: #{detector_cnn_forward.1} parent=1 // loop_exit
      _
    %9885 = vsyncpa [#allocation9], 1
    %s9886 = scalar_lea.sflag [#allocation9], 1
    %9887 = vsyncpa %s9886, 1
    %9888 = vsyncpa [#allocation12], 1
    %9889 = vsyncpa [#allocation15], 1
    %9890 = vsyncpa [#allocation18], 1
    %9891 = vsyncpa [#allocation10], 1
    %s9892 = scalar_lea.sflag [#allocation10], 1
    %9893 = vsyncpa %s9892, 1

</llo_original>
